<compile_context>
chip_gen: v7x
topology: tpu7x:2x2x1
jax: 0.10.0
libtpu: 0.0.40
codegen_flags: <defaults>
</compile_context>

<pallas_src>
import functools
import math

import jax
import jax.numpy as jnp
from jax import lax
from jax.experimental import pallas as pl
from jax.experimental.pallas import tpu as pltpu


# ---------------------------------------------------------------------------
# Fused conv Pallas kernel
# ---------------------------------------------------------------------------

def _pad_hw(x, ph0, ph1, pw0, pw1):
    """Zero-pad a (H, W, C) tile spatially inside the kernel (VMEM concat)."""
    H, W, C = x.shape
    dt = x.dtype
    if pw0 or pw1:
        parts = []
        if pw0:
            parts.append(jnp.zeros((H, pw0, C), dt))
        parts.append(x)
        if pw1:
            parts.append(jnp.zeros((H, pw1, C), dt))
        x = jnp.concatenate(parts, axis=1)
        W = W + pw0 + pw1
    if ph0 or ph1:
        parts = []
        if ph0:
            parts.append(jnp.zeros((ph0, W, C), dt))
        parts.append(x)
        if ph1:
            parts.append(jnp.zeros((ph1, W, C), dt))
        x = jnp.concatenate(parts, axis=0)
    return x


def _fused_conv_kernel(*refs, taps, Ho, Wo, pad_h, pad_w,
                       in_norm, in_silu, in_scale,
                       out_norm, out_silu, out_scale, n_res):
    """One (b, t) grid step of a fused causal conv.

    refs = (x_ref, w_ref, b_ref, [gin_ref], [gout_ref], *res_refs, o_ref)
      x_ref    : (T, H, W, Cx)  bf16   -- whole (unpadded) time axis, resident
      w_ref    : (K, Coutp)     bf16   -- resident, K = sum of tap widths
      b_ref    : (1, Coutp)     f32
      gin_ref  : (1, Cx)        f32    -- fused RMS_norm(+SiLU) prologue
      gout_ref : (1, Coutp)     f32    -- fused RMS_norm(+SiLU) epilogue
      res_refs : (Ho, Wo, Coutp)       -- fused residual adds (any dtype)
      o_ref    : (Ho, Wo, Coutp)

    taps: static tuple of (t_off, dh, dw, c0, clen) defining the im2col
    columns (ordering matches the weight rows).
    """
    x_ref, w_ref, b_ref = refs[0], refs[1], refs[2]
    i = 3
    gin_ref = gout_ref = None
    if in_norm:
        gin_ref = refs[i]
        i += 1
    if out_norm:
        gout_ref = refs[i]
        i += 1
    res_refs = refs[i:i + n_res]
    o_ref = refs[i + n_res]

    t = pl.program_id(1)
    Coutp = o_ref.shape[-1]

    # Distinct time offsets, in tap order.
    t_offs = []
    for tp in taps:
        if tp[0] not in t_offs:
            t_offs.append(tp[0])

    cols = []
    for t_off in t_offs:
        if t_off == 0:
            x_t = x_ref[pl.ds(t, 1)][0]                     # (H, W, Cx)
            mask = None
        else:  # causal left pad: slice may fall before frame 0 -> masked
            src = t + t_off
            x_t = x_ref[pl.ds(jnp.maximum(src, 0), 1)][0]
            mask = (src >= 0).astype(jnp.float32)

        if in_norm:
            # RMS_norm (F.normalize * sqrt(C) * gamma) + optional SiLU, f32.
            xf = x_t.astype(jnp.float32)
            nrm = jnp.sqrt(jnp.sum(xf * xf, axis=-1, keepdims=True))
            g = gin_ref[...].reshape(1, 1, -1)
            s = in_scale if mask is None else in_scale * mask
            y = xf * (s / jnp.maximum(nrm, 1e-12)) * g
            if in_silu:
                y = y * jax.nn.sigmoid(y)
            x_act = y.astype(jnp.bfloat16)
        elif mask is not None:
            x_act = (x_t.astype(jnp.float32) * mask).astype(jnp.bfloat16)
        else:
            x_act = x_t

        xp = _pad_hw(x_act, pad_h[0], pad_h[1], pad_w[0], pad_w[1])
        for (to, dh, dw, c0, clen) in taps:
            if to != t_off:
                continue
            cols.append(xp[dh:dh + Ho, dw:dw + Wo, c0:c0 + clen])

    # One big-K MXU matmul with vreg f32 accumulation.
    patch = cols[0] if len(cols) == 1 else jnp.concatenate(cols, axis=-1)
    K = patch.shape[-1]
    acc = jnp.dot(patch.reshape(Ho * Wo, K), w_ref[...],
                  preferred_element_type=jnp.float32)
    acc = acc + b_ref[...]

    if out_norm:
        # Producer-side RMS_norm(+SiLU) of the NEXT conv (norm of zero pad
        # is still exactly zero, so fusing before padding stays exact).
        nrm = jnp.sqrt(jnp.sum(acc * acc, axis=-1, keepdims=True))
        acc = acc * (out_scale / jnp.maximum(nrm, 1e-12)) * gout_ref[...]
        if out_silu:
            acc = acc * jax.nn.sigmoid(acc)

    for r_ref in res_refs:
        acc = acc + r_ref[...].reshape(Ho * Wo, Coutp).astype(jnp.float32)

    o_ref[...] = acc.reshape(Ho, Wo, Coutp).astype(o_ref.dtype)


def fused_conv(x, w, b, *, taps, Ho, Wo, pad_h=(0, 0), pad_w=(0, 0),
               gamma_in=None, silu_in=False, in_scale=1.0,
               gamma_out=None, silu_out=False, out_scale=1.0,
               residuals=(), out_dtype=jnp.bfloat16):
    """Fused (norm+SiLU) -> conv(taps) -> +bias -> (norm+SiLU) -> (+residuals)."""
    B, T, H, W, Cx = x.shape
    K, Coutp = w.shape
    assert K == sum(tp[4] for tp in taps), (K, taps)
    n_res = len(residuals)

    kernel = functools.partial(
        _fused_conv_kernel, taps=tuple(taps), Ho=Ho, Wo=Wo,
        pad_h=tuple(pad_h), pad_w=tuple(pad_w),
        in_norm=gamma_in is not None, in_silu=silu_in, in_scale=float(in_scale),
        out_norm=gamma_out is not None, out_silu=silu_out,
        out_scale=float(out_scale), n_res=n_res)

    # All block last-two dims equal the full array dims or are 128-multiples.
    in_specs = [
        # x: whole time axis, constant block index per b -> resident across t.
        pl.BlockSpec((None, T, H, W, Cx), lambda b_, t_: (b_, 0, 0, 0, 0)),
        # weight / bias: constant index map -> fetched once, resident.
        pl.BlockSpec((K, Coutp), lambda b_, t_: (0, 0)),
        pl.BlockSpec((1, Coutp), lambda b_, t_: (0, 0)),
    ]
    inputs = [x, w, b]
    if gamma_in is not None:
        in_specs.append(pl.BlockSpec((1, Cx), lambda b_, t_: (0, 0)))
        inputs.append(gamma_in)
    if gamma_out is not None:
        in_specs.append(pl.BlockSpec((1, Coutp), lambda b_, t_: (0, 0)))
        inputs.append(gamma_out)
    for r in residuals:
        assert r.shape == (B, T, Ho, Wo, Coutp), (r.shape,)
        in_specs.append(pl.BlockSpec((None, None, Ho, Wo, Coutp),
                                     lambda b_, t_: (b_, t_, 0, 0, 0)))
        inputs.append(r)

    return pl.pallas_call(
        kernel,
        out_shape=jax.ShapeDtypeStruct((B, T, Ho, Wo, Coutp), out_dtype),
        grid=(B, T),
        in_specs=in_specs,
        out_specs=pl.BlockSpec((None, None, Ho, Wo, Coutp),
                               lambda b_, t_: (b_, t_, 0, 0, 0)),
        compiler_params=pltpu.CompilerParams(
            dimension_semantics=("parallel", "parallel"),
            vmem_limit_bytes=48 * 1024 * 1024),
    )(*inputs)


# ---------------------------------------------------------------------------
# Blocks (thin JAX glue around the fused kernel)
# ---------------------------------------------------------------------------

def _causal_taps(T, kt, kh, kw, C):
    """Taps of a causal (kt,kh,kw) conv; time taps that are always in the
    zero left-pad for this T are dropped at trace time."""
    dt_min = max(0, kt - T)
    taps = []
    for dt in range(dt_min, kt):
        for dh in range(kh):
            for dw in range(kw):
                taps.append((dt - (kt - 1), dh, dw, 0, C))
    return tuple(taps), dt_min


def residual_block(h, p, coutp, *, extra_residuals=(), out_dtype=jnp.bfloat16):
    """ResidualBlock: conv1 carries norm1+SiLU prologue AND norm2+SiLU epilogue;
    conv2 carries the shortcut (+ optional avg-shortcut) adds in its epilogue."""
    B, T, H, W, Cx = h.shape
    if 'short_w' in p:           # 1x1x1 CausalConv3d shortcut (in_dim != out_dim)
        short = fused_conv(h, p['short_w'], p['short_b'],
                           taps=((0, 0, 0, 0, Cx),), Ho=H, Wo=W)
    else:
        short = h

    taps1, dt1 = _causal_taps(T, 3, 3, 3, Cx)
    w1 = p['conv1_w'][dt1:].reshape(-1, coutp)
    y = fused_conv(h, w1, p['conv1_b'], taps=taps1, Ho=H, Wo=W,
                   pad_h=(1, 1), pad_w=(1, 1),
                   gamma_in=p['gamma1'], silu_in=True,
                   in_scale=math.sqrt(p['in_real']),
                   gamma_out=p['gamma2'], silu_out=True,
                   out_scale=math.sqrt(p['out_real']))

    # Dropout(0.0) is identity; conv2 input is already pre-activated.
    taps2, dt2 = _causal_taps(T, 3, 3, 3, coutp)
    w2 = p['conv2_w'][dt2:].reshape(-1, coutp)
    return fused_conv(y, w2, p['conv2_b'], taps=taps2, Ho=H, Wo=W,
                      pad_h=(1, 1), pad_w=(1, 1),
                      residuals=(short,) + tuple(extra_residuals),
                      out_dtype=out_dtype)


def downsample2d(h, p, coutp, *, extra_residuals=(), out_dtype=jnp.float32):
    """Resample38 downsample: ZeroPad2d((0,1,0,1)) + 3x3 stride-2 Conv2d as a
    9-tap gather over the 2x2 space-to-depth view (zero phase taps dropped)."""
    B, T, H, W, Cs = h.shape
    Ho, Wo = H // 2, W // 2
    hp = jnp.pad(h, ((0, 0), (0, 0), (0, 2), (0, 2), (0, 0)))
    s2d = hp.reshape(B, T, Ho + 1, 2, Wo + 1, 2, Cs)
    s2d = jnp.transpose(s2d, (0, 1, 2, 4, 3, 5, 6))
    s2d = s2d.reshape(B, T, Ho + 1, Wo + 1, 4 * Cs)
    # tap (dh, dw) of the original 3x3 -> phase (dh%2, dw%2) at spatial
    # offset (dh//2, dw//2) in the s2d view; only these 9 taps are nonzero.
    taps = tuple((0, dh // 2, dw // 2, ((dh % 2) * 2 + (dw % 2)) * Cs, Cs)
                 for dh in range(3) for dw in range(3))
    return fused_conv(s2d, p['w'], p['b'], taps=taps, Ho=Ho, Wo=Wo,
                      residuals=tuple(extra_residuals), out_dtype=out_dtype)


def avg_down_3d(x, out_dim, factor_t, factor_s):
    """AvgDown3D shortcut (plain-JAX glue: channel-grouped average pooling)."""
    B, T, H, W, C = x.shape
    pad_t = (-T) % factor_t
    x = jnp.pad(x, ((0, 0), (pad_t, 0), (0, 0), (0, 0), (0, 0)))
    T2 = T + pad_t
    x = x.reshape(B, T2 // factor_t, factor_t, H // factor_s, factor_s,
                  W // factor_s, factor_s, C)
    x = jnp.transpose(x, (0, 1, 3, 5, 7, 2, 4, 6))
    factor = factor_t * factor_s * factor_s
    x = x.reshape(B, T2 // factor_t, H // factor_s, W // factor_s, C * factor)
    gs = C * factor // out_dim
    x = x.reshape(B, T2 // factor_t, H // factor_s, W // factor_s, out_dim, gs)
    return jnp.mean(x, axis=-1)


def down_residual_block_forward(x_ncthw, params):
    """Down_ResidualBlock.forward (feat_cache=None / first-chunk semantics)."""
    coutp = params['cout_pad']
    out_dim = params['out_dim']
    xb = jnp.transpose(x_ncthw, (0, 2, 3, 4, 1)).astype(jnp.float32)   # BTHWC
    # AvgDown3D shortcut; its add is fused into the last conv's epilogue.
    sc = avg_down_3d(xb, out_dim, params['factor_t'], params['factor_s'])
    sc = jnp.pad(sc, ((0, 0),) * 4 + ((0, coutp - out_dim),))
    h = xb.astype(jnp.bfloat16)

    n = len(params['res_blocks'])
    for i, p in enumerate(params['res_blocks']):
        is_final = (i == n - 1) and not params['down_flag']
        h = residual_block(h, p, coutp,
                           extra_residuals=(sc,) if is_final else (),
                           out_dtype=jnp.float32 if is_final else jnp.bfloat16)
    if params['down_flag']:
        h = downsample2d(h, params['resample'], coutp,
                         extra_residuals=(sc,), out_dtype=jnp.float32)
    return jnp.transpose(h[..., :out_dim], (0, 4, 1, 2, 3))            # NCTHW


# ---------------------------------------------------------------------------
# Deterministic synthetic parameters (kernel layout + reference layout)
# ---------------------------------------------------------------------------

def build_down_residual_block(key, in_dim, out_dim, mult,
                              temperal_downsample=False, down_flag=False):
    keys = iter(jax.random.split(key, 64))

    def rnd(shape, s):
        return s * jax.random.normal(next(keys), shape, jnp.float32)

    def q(w):  # bf16 quantization used by the kernels, mirrored in the ref
        return w.astype(jnp.bfloat16).astype(jnp.float32)

    coutp = ((out_dim + 127) // 128) * 128   # lane-dense padded channel count

    def pad_vec(v, cp):
        return jnp.pad(v, ((0, 0), (0, cp - v.shape[1])))

    def prep_w(w, cin_p, cout_p):
        kt, kh, kw, ci, co = w.shape
        wp = jnp.pad(w, ((0, 0), (0, 0), (0, 0),
                         (0, cin_p - ci), (0, cout_p - co)))
        return wp.reshape(kt, kh * kw * cin_p, cout_p).astype(jnp.bfloat16)

    meta = {'down_flag': down_flag, 'out_dim': out_dim, 'cout_pad': coutp,
            'factor_t': 2 if temperal_downsample else 1,
            'factor_s': 2 if down_flag else 1}
    kparams = dict(meta, res_blocks=[])
    rparams = dict(meta, res_blocks=[])

    d = in_dim
    for i in range(mult):
        cx = d if i == 0 else coutp          # stored (padded) input channels
        g1 = 1.0 + rnd((1, d), 0.05)
        w1 = q(rnd((3, 3, 3, d, out_dim), 0.05))
        b1 = rnd((1, out_dim), 0.02)
        g2 = 1.0 + rnd((1, out_dim), 0.05)
        w2 = q(rnd((3, 3, 3, out_dim, out_dim), 0.05))
        b2 = rnd((1, out_dim), 0.02)
        kblk = {'in_real': d, 'out_real': out_dim,
                'gamma1': pad_vec(g1, cx),
                'conv1_w': prep_w(w1, cx, coutp),
                'conv1_b': pad_vec(b1, coutp),
                'gamma2': pad_vec(g2, coutp),
                'conv2_w': prep_w(w2, coutp, coutp),
                'conv2_b': pad_vec(b2, coutp)}
        rblk = {'gamma1': g1, 'conv1_w': w1, 'conv1_b': b1,
                'gamma2': g2, 'conv2_w': w2, 'conv2_b': b2}
        if d != out_dim:
            ws = q(rnd((1, 1, 1, d, out_dim), 0.1))
            bs = rnd((1, out_dim), 0.02)
            kblk['short_w'] = prep_w(ws, cx, coutp).reshape(cx, coutp)
            kblk['short_b'] = pad_vec(bs, coutp)
            rblk['short_w'] = ws
            rblk['short_b'] = bs
        kparams['res_blocks'].append(kblk)
        rparams['res_blocks'].append(rblk)
        d = out_dim

    if down_flag:
        w3 = q(rnd((3, 3, out_dim, out_dim), 0.05))
        b3 = rnd((1, out_dim), 0.02)
        cs = coutp
        blocks = []
        for dh in range(3):
            for dw in range(3):
                wb = jnp.zeros((cs, coutp), jnp.float32)
                wb = wb.at[:out_dim, :out_dim].set(w3[dh, dw])
                blocks.append(wb)
        kparams['resample'] = {
            'w': jnp.concatenate(blocks, axis=0).astype(jnp.bfloat16),
            'b': pad_vec(b3, coutp)}
        rparams['resample_w'] = w3
        rparams['resample_b'] = b3
    return kparams, rparams


# ---------------------------------------------------------------------------
# Pure-JAX f32 reference (mirrors the PyTorch module, feat_cache=None path)
# ---------------------------------------------------------------------------

def _ref_norm_silu(x, gamma):
    C = x.shape[-1]
    n = jnp.sqrt(jnp.sum(x * x, axis=-1, keepdims=True))
    y = x / jnp.maximum(n, 1e-12) * math.sqrt(C) * gamma.reshape(
        (1,) * (x.ndim - 1) + (C,))
    return y * jax.nn.sigmoid(y)


def _ref_conv3d(x, w, b, pads):
    y = lax.conv_general_dilated(
        x, w, window_strides=(1, 1, 1), padding=pads,
        dimension_numbers=('NDHWC', 'DHWIO', 'NDHWC'),
        precision=lax.Precision.HIGHEST)
    return y + b.reshape(1, 1, 1, 1, -1)


def _ref_forward(x_ncthw, rp):
    x = jnp.transpose(x_ncthw, (0, 2, 3, 4, 1)).astype(jnp.float32)
    h = x
    for blk in rp['res_blocks']:
        if 'short_w' in blk:
            s = _ref_conv3d(h, blk['short_w'], blk['short_b'],
                            [(0, 0), (0, 0), (0, 0)])
        else:
            s = h
        y = _ref_norm_silu(h, blk['gamma1'])
        y = _ref_conv3d(y, blk['conv1_w'], blk['conv1_b'],
                        [(2, 0), (1, 1), (1, 1)])
        y = _ref_norm_silu(y, blk['gamma2'])
        y = _ref_conv3d(y, blk['conv2_w'], blk['conv2_b'],
                        [(2, 0), (1, 1), (1, 1)])
        h = y + s
    if rp['down_flag']:
        B, T, H, W, C = h.shape
        h2 = jnp.pad(h.reshape(B * T, H, W, C),
                     ((0, 0), (0, 1), (0, 1), (0, 0)))
        y = lax.conv_general_dilated(
            h2, rp['resample_w'], window_strides=(2, 2), padding='VALID',
            dimension_numbers=('NHWC', 'HWIO', 'NHWC'),
            precision=lax.Precision.HIGHEST)
        y = y + rp['resample_b'].reshape(1, 1, 1, -1)
        h = y.reshape(B, T, y.shape[1], y.shape[2], -1)
    sc = avg_down_3d(x, rp['out_dim'], rp['factor_t'], rp['factor_s'])
    return jnp.transpose(h + sc, (0, 4, 1, 2, 3))


# ---------------------------------------------------------------------------
# Test harness
# ---------------------------------------------------------------------------

if __name__ == "__main__":
    key = jax.random.PRNGKey(0)
    k_par, k_x = jax.random.split(key)

    B, C_IN, T, H, W = 2, 32, 1, 16, 16
    C_OUT, MULT = 64, 2
    params, ref_params = build_down_residual_block(
        k_par, C_IN, C_OUT, mult=MULT,
        temperal_downsample=False, down_flag=True)

    x = jax.random.normal(k_x, (B, C_IN, T, H, W), jnp.float32)

    fwd = jax.jit(lambda inp: down_residual_block_forward(inp, params))
    out = fwd(x)
    jax.block_until_ready(out)

    assert out.shape == (B, C_OUT, T, H // 2, W // 2), out.shape
    assert bool(jnp.all(jnp.isfinite(out)))

    # Correctness check against the pure-JAX f32 reference (bf16 activation
    # rounding is the only expected source of divergence).
    ref = jax.jit(lambda inp: _ref_forward(inp, ref_params))(x)
    jax.block_until_ready(ref)
    err = float(jnp.max(jnp.abs(out.astype(jnp.float32) - ref)))
    ref_mag = float(jnp.max(jnp.abs(ref)))
    assert err <= 0.08 * ref_mag + 1e-3, (err, ref_mag)

    print("KERNEL_OK")
</pallas_src>

<mosaic_0001>
module attributes {stable_mosaic.version = 11 : i64} {
  func.func @_fused_conv_kernel(%arg0: i32, %arg1: i32, %arg2: memref<1x1x16x16x32xbf16, #tpu.memory_space<vmem>>, %arg3: memref<32x128xbf16, #tpu.memory_space<vmem>>, %arg4: memref<1x128xf32, #tpu.memory_space<vmem>>, %arg5: memref<1x1x16x16x128xbf16, #tpu.memory_space<vmem>>) attributes {dimension_semantics = [#tpu.dimension_semantics<parallel>, #tpu.dimension_semantics<parallel>], iteration_bounds = array<i64: 2, 1>, scalar_prefetch = 0 : i64, scratch_operands = 0 : i64, tpu.core_type = #tpu.core_type<tc>, window_params = [{transform_indices = @transform_0, window_bounds = array<i64: 1, 1, 16, 16, 32>}, {pipeline_mode = #tpu.pipeline_mode<synchronous>, transform_indices = @transform_1, window_bounds = array<i64: 32, 128>}, {pipeline_mode = #tpu.pipeline_mode<synchronous>, transform_indices = @transform_2, window_bounds = array<i64: 1, 128>}, {transform_indices = @transform_3, window_bounds = array<i64: 1, 1, 16, 16, 128>}]} {
    %c0 = arith.constant 0 : index
    %0 = arith.index_cast %arg1 : i32 to index
    %c0_0 = arith.constant 0 : index
    %c0_1 = arith.constant 0 : index
    %c0_2 = arith.constant 0 : index
    %1 = vector.load %arg2[%c0, %0, %c0_0, %c0_1, %c0_2] : memref<1x1x16x16x32xbf16, #tpu.memory_space<vmem>>, vector<1x1x16x16x32xbf16>
    %2 = vector.shape_cast %1 : vector<1x1x16x16x32xbf16> to vector<1x16x16x32xbf16>
    %3 = vector.shape_cast %2 : vector<1x16x16x32xbf16> to vector<16x16x32xbf16>
    %4 = vector.shape_cast %3 : vector<16x16x32xbf16> to vector<256x32xbf16>
    %c0_3 = arith.constant 0 : index
    %c0_4 = arith.constant 0 : index
    %5 = vector.load %arg3[%c0_3, %c0_4] : memref<32x128xbf16, #tpu.memory_space<vmem>>, vector<32x128xbf16>
    %cst = arith.constant dense<0.000000e+00> : vector<256x128xf32>
    %6 = tpu.matmul %4, %5, %cst {dimension_numbers = #tpu.dot_dimension_numbers<[1], [0], [0], [1], [0, 0, 1, 1], [], []>} : vector<256x32xbf16>, vector<32x128xbf16>, vector<256x128xf32> -> vector<256x128xf32>
    %c0_5 = arith.constant 0 : index
    %c0_6 = arith.constant 0 : index
    %7 = vector.load %arg4[%c0_5, %c0_6] : memref<1x128xf32, #tpu.memory_space<vmem>>, vector<1x128xf32>
    %8 = vector.broadcast %7 : vector<1x128xf32> to vector<256x128xf32>
    %9 = arith.addf %6, %8 : vector<256x128xf32>
    %10 = vector.shape_cast %9 : vector<256x128xf32> to vector<16x16x128xf32>
    %11 = arith.truncf %10 : vector<16x16x128xf32> to vector<16x16x128xbf16>
    %c0_7 = arith.constant 0 : index
    %c0_8 = arith.constant 0 : index
    %c0_9 = arith.constant 0 : index
    %c0_10 = arith.constant 0 : index
    %c0_11 = arith.constant 0 : index
    %12 = vector.load %arg5[%c0_7, %c0_8, %c0_9, %c0_10, %c0_11] : memref<1x1x16x16x128xbf16, #tpu.memory_space<vmem>>, vector<1x1x16x16x128xbf16>
    %13 = vector.shape_cast %12 : vector<1x1x16x16x128xbf16> to vector<16x16x128xbf16>
    %14 = vector.shape_cast %11 : vector<16x16x128xbf16> to vector<1x1x16x16x128xbf16>
    tpu.vector_store %arg5[%c0_7, %c0_8, %c0_9, %c0_10, %c0_11], %14 {strides = array<i32>} : memref<1x1x16x16x128xbf16, #tpu.memory_space<vmem>>, vector<1x1x16x16x128xbf16>,
    return
  }
  func.func @transform_0(%arg0: i32, %arg1: i32) -> (i32, i32, i32, i32, i32) {
    %c0_i32 = arith.constant 0 : i32
    %c0_i32_0 = arith.constant 0 : i32
    %c0_i32_1 = arith.constant 0 : i32
    %c0_i32_2 = arith.constant 0 : i32
    %c0_i32_3 = arith.constant 0 : i32
    return %arg0, %c0_i32, %c0_i32_0, %c0_i32_1, %c0_i32_2 : i32, i32, i32, i32, i32
  }
  func.func @transform_1(%arg0: i32, %arg1: i32) -> (i32, i32) {
    %c0_i32 = arith.constant 0 : i32
    %c0_i32_0 = arith.constant 0 : i32
    %c0_i32_1 = arith.constant 0 : i32
    return %c0_i32, %c0_i32_0 : i32, i32
  }
  func.func @transform_2(%arg0: i32, %arg1: i32) -> (i32, i32) {
    %c0_i32 = arith.constant 0 : i32
    %c0_i32_0 = arith.constant 0 : i32
    %c0_i32_1 = arith.constant 0 : i32
    return %c0_i32, %c0_i32_0 : i32, i32
  }
  func.func @transform_3(%arg0: i32, %arg1: i32) -> (i32, i32, i32, i32, i32) {
    %c0_i32 = arith.constant 0 : i32
    %c0_i32_0 = arith.constant 0 : i32
    %c0_i32_1 = arith.constant 0 : i32
    %c0_i32_2 = arith.constant 0 : i32
    return %arg0, %arg1, %c0_i32, %c0_i32_0, %c0_i32_1 : i32, i32, i32, i32, i32
  }
}

module attributes {stable_mosaic.version = 11 : i64} {
  func.func @_fused_conv_kernel(%arg0: i32, %arg1: i32, %arg2: memref<1x1x16x16x32xbf16, #tpu.memory_space<vmem>>, %arg3: memref<288x128xbf16, #tpu.memory_space<vmem>>, %arg4: memref<1x128xf32, #tpu.memory_space<vmem>>, %arg5: memref<1x32xf32, #tpu.memory_space<vmem>>, %arg6: memref<1x128xf32, #tpu.memory_space<vmem>>, %arg7: memref<1x1x16x16x128xbf16, #tpu.memory_space<vmem>>) attributes {dimension_semantics = [#tpu.dimension_semantics<parallel>, #tpu.dimension_semantics<parallel>], iteration_bounds = array<i64: 2, 1>, scalar_prefetch = 0 : i64, scratch_operands = 0 : i64, tpu.core_type = #tpu.core_type<tc>, window_params = [{transform_indices = @transform_0, window_bounds = array<i64: 1, 1, 16, 16, 32>}, {pipeline_mode = #tpu.pipeline_mode<synchronous>, transform_indices = @transform_1, window_bounds = array<i64: 288, 128>}, {pipeline_mode = #tpu.pipeline_mode<synchronous>, transform_indices = @transform_2, window_bounds = array<i64: 1, 128>}, {pipeline_mode = #tpu.pipeline_mode<synchronous>, transform_indices = @transform_3, window_bounds = array<i64: 1, 32>}, {pipeline_mode = #tpu.pipeline_mode<synchronous>, transform_indices = @transform_4, window_bounds = array<i64: 1, 128>}, {transform_indices = @transform_5, window_bounds = array<i64: 1, 1, 16, 16, 128>}]} {
    %c0 = arith.constant 0 : index
    %0 = arith.index_cast %arg1 : i32 to index
    %c0_0 = arith.constant 0 : index
    %c0_1 = arith.constant 0 : index
    %c0_2 = arith.constant 0 : index
    %1 = vector.load %arg2[%c0, %0, %c0_0, %c0_1, %c0_2] : memref<1x1x16x16x32xbf16, #tpu.memory_space<vmem>>, vector<1x1x16x16x32xbf16>
    %2 = vector.shape_cast %1 : vector<1x1x16x16x32xbf16> to vector<1x16x16x32xbf16>
    %3 = vector.shape_cast %2 : vector<1x16x16x32xbf16> to vector<16x16x32xbf16>
    %4 = arith.extf %3 : vector<16x16x32xbf16> to vector<16x16x32xf32>
    %5 = arith.mulf %4, %4 : vector<16x16x32xf32>
    %cst = arith.constant dense<0.000000e+00> : vector<16x16xf32>
    %6 = vector.multi_reduction <add>, %5, %cst [2] : vector<16x16x32xf32> to vector<16x16xf32>
    %7 = vector.shape_cast %6 : vector<16x16xf32> to vector<16x16x1xf32>
    %8 = math.sqrt %7 : vector<16x16x1xf32>
    %c0_3 = arith.constant 0 : index
    %c0_4 = arith.constant 0 : index
    %9 = vector.load %arg5[%c0_3, %c0_4] : memref<1x32xf32, #tpu.memory_space<vmem>>, vector<1x32xf32>
    %10 = vector.shape_cast %9 : vector<1x32xf32> to vector<1x1x32xf32>
    %cst_5 = arith.constant 9.99999996E-13 : f32
    %11 = vector.broadcast %cst_5 : f32 to vector<16x16x1xf32>
    %12 = arith.maximumf %8, %11 : vector<16x16x1xf32>
    %cst_6 = arith.constant 5.65685415 : f32
    %13 = vector.broadcast %cst_6 : f32 to vector<16x16x1xf32>
    %14 = arith.divf %13, %12 : vector<16x16x1xf32>
    %15 = vector.broadcast %14 : vector<16x16x1xf32> to vector<16x16x32xf32>
    %16 = arith.mulf %4, %15 : vector<16x16x32xf32>
    %17 = vector.broadcast %10 : vector<1x1x32xf32> to vector<16x16x32xf32>
    %18 = arith.mulf %16, %17 : vector<16x16x32xf32>
    %19 = arith.negf %18 : vector<16x16x32xf32>
    %20 = math.exp %19 : vector<16x16x32xf32>
    %cst_7 = arith.constant 1.000000e+00 : f32
    %21 = vector.broadcast %cst_7 : f32 to vector<16x16x32xf32>
    %22 = arith.addf %21, %20 : vector<16x16x32xf32>
    %23 = arith.divf %21, %22 : vector<16x16x32xf32>
    %24 = arith.mulf %18, %23 : vector<16x16x32xf32>
    %25 = arith.truncf %24 : vector<16x16x32xf32> to vector<16x16x32xbf16>
    %cst_8 = arith.constant 0.000000e+00 : bf16
    %26 = vector.broadcast %cst_8 : bf16 to vector<16x1x32xbf16>
    %cst_9 = arith.constant 0.000000e+00 : bf16
    %27 = vector.broadcast %cst_9 : bf16 to vector<16x1x32xbf16>
    %28 = tpu.concatenate %26, %25, %27 in 1 : vector<16x1x32xbf16>, vector<16x16x32xbf16>, vector<16x1x32xbf16> -> vector<16x18x32xbf16>
    %cst_10 = arith.constant 0.000000e+00 : bf16
    %29 = vector.broadcast %cst_10 : bf16 to vector<1x18x32xbf16>
    %cst_11 = arith.constant 0.000000e+00 : bf16
    %30 = vector.broadcast %cst_11 : bf16 to vector<1x18x32xbf16>
    %31 = tpu.concatenate %29, %28, %30 in 0 : vector<1x18x32xbf16>, vector<16x18x32xbf16>, vector<1x18x32xbf16> -> vector<18x18x32xbf16>
    %32 = vector.extract_strided_slice %31 {offsets = [0, 0, 0], sizes = [16, 16, 32], strides = [1, 1, 1]} : vector<18x18x32xbf16> to vector<16x16x32xbf16>
    %33 = vector.extract_strided_slice %31 {offsets = [0, 1, 0], sizes = [16, 16, 32], strides = [1, 1, 1]} : vector<18x18x32xbf16> to vector<16x16x32xbf16>
    %34 = vector.extract_strided_slice %31 {offsets = [0, 2, 0], sizes = [16, 16, 32], strides = [1, 1, 1]} : vector<18x18x32xbf16> to vector<16x16x32xbf16>
    %35 = vector.extract_strided_slice %31 {offsets = [1, 0, 0], sizes = [16, 16, 32], strides = [1, 1, 1]} : vector<18x18x32xbf16> to vector<16x16x32xbf16>
    %36 = vector.extract_strided_slice %31 {offsets = [1, 1, 0], sizes = [16, 16, 32], strides = [1, 1, 1]} : vector<18x18x32xbf16> to vector<16x16x32xbf16>
    %37 = vector.extract_strided_slice %31 {offsets = [1, 2, 0], sizes = [16, 16, 32], strides = [1, 1, 1]} : vector<18x18x32xbf16> to vector<16x16x32xbf16>
    %38 = vector.extract_strided_slice %31 {offsets = [2, 0, 0], sizes = [16, 16, 32], strides = [1, 1, 1]} : vector<18x18x32xbf16> to vector<16x16x32xbf16>
    %39 = vector.extract_strided_slice %31 {offsets = [2, 1, 0], sizes = [16, 16, 32], strides = [1, 1, 1]} : vector<18x18x32xbf16> to vector<16x16x32xbf16>
    %40 = vector.extract_strided_slice %31 {offsets = [2, 2, 0], sizes = [16, 16, 32], strides = [1, 1, 1]} : vector<18x18x32xbf16> to vector<16x16x32xbf16>
    %41 = tpu.concatenate %32, %33, %34, %35, %36, %37, %38, %39, %40 in 2 : vector<16x16x32xbf16>, vector<16x16x32xbf16>, vector<16x16x32xbf16>, vector<16x16x32xbf16>, vector<16x16x32xbf16>, vector<16x16x32xbf16>, vector<16x16x32xbf16>, vector<16x16x32xbf16>, vector<16x16x32xbf16> -> vector<16x16x288xbf16>
    %42 = vector.shape_cast %41 : vector<16x16x288xbf16> to vector<256x288xbf16>
    %c0_12 = arith.constant 0 : index
    %c0_13 = arith.constant 0 : index
    %43 = vector.load %arg3[%c0_12, %c0_13] : memref<288x128xbf16, #tpu.memory_space<vmem>>, vector<288x128xbf16>
    %cst_14 = arith.constant dense<0.000000e+00> : vector<256x128xf32>
    %44 = tpu.matmul %42, %43, %cst_14 {dimension_numbers = #tpu.dot_dimension_numbers<[1], [0], [0], [1], [0, 0, 1, 1], [], []>} : vector<256x288xbf16>, vector<288x128xbf16>, vector<256x128xf32> -> vector<256x128xf32>
    %c0_15 = arith.constant 0 : index
    %c0_16 = arith.constant 0 : index
    %45 = vector.load %arg4[%c0_15, %c0_16] : memref<1x128xf32, #tpu.memory_space<vmem>>, vector<1x128xf32>
    %46 = vector.broadcast %45 : vector<1x128xf32> to vector<256x128xf32>
    %47 = arith.addf %44, %46 : vector<256x128xf32>
    %48 = arith.mulf %47, %47 : vector<256x128xf32>
    %cst_17 = arith.constant dense<0.000000e+00> : vector<256xf32>
    %49 = vector.multi_reduction <add>, %48, %cst_17 [1] : vector<256x128xf32> to vector<256xf32>
    %50 = vector.shape_cast %49 : vector<256xf32> to vector<256x1xf32>
    %51 = math.sqrt %50 : vector<256x1xf32>
    %cst_18 = arith.constant 9.99999996E-13 : f32
    %52 = vector.broadcast %cst_18 : f32 to vector<256x1xf32>
    %53 = arith.maximumf %51, %52 : vector<256x1xf32>
    %cst_19 = arith.constant 8.000000e+00 : f32
    %54 = vector.broadcast %cst_19 : f32 to vector<256x1xf32>
    %55 = arith.divf %54, %53 : vector<256x1xf32>
    %56 = vector.broadcast %55 : vector<256x1xf32> to vector<256x128xf32>
    %57 = arith.mulf %47, %56 : vector<256x128xf32>
    %c0_20 = arith.constant 0 : index
    %c0_21 = arith.constant 0 : index
    %58 = vector.load %arg6[%c0_20, %c0_21] : memref<1x128xf32, #tpu.memory_space<vmem>>, vector<1x128xf32>
    %59 = vector.broadcast %58 : vector<1x128xf32> to vector<256x128xf32>
    %60 = arith.mulf %57, %59 : vector<256x128xf32>
    %61 = arith.negf %60 : vector<256x128xf32>
    %62 = math.exp %61 : vector<256x128xf32>
    %cst_22 = arith.constant 1.000000e+00 : f32
    %63 = vector.broadcast %cst_22 : f32 to vector<256x128xf32>
    %64 = arith.addf %63, %62 : vector<256x128xf32>
    %65 = arith.divf %63, %64 : vector<256x128xf32>
    %66 = arith.mulf %60, %65 : vector<256x128xf32>
    %67 = vector.shape_cast %66 : vector<256x128xf32> to vector<16x16x128xf32>
    %68 = arith.truncf %67 : vector<16x16x128xf32> to vector<16x16x128xbf16>
    %c0_23 = arith.constant 0 : index
    %c0_24 = arith.constant 0 : index
    %c0_25 = arith.constant 0 : index
    %c0_26 = arith.constant 0 : index
    %c0_27 = arith.constant 0 : index
    %69 = vector.load %arg7[%c0_23, %c0_24, %c0_25, %c0_26, %c0_27] : memref<1x1x16x16x128xbf16, #tpu.memory_space<vmem>>, vector<1x1x16x16x128xbf16>
    %70 = vector.shape_cast %69 : vector<1x1x16x16x128xbf16> to vector<16x16x128xbf16>
    %71 = vector.shape_cast %68 : vector<16x16x128xbf16> to vector<1x1x16x16x128xbf16>
    tpu.vector_store %arg7[%c0_23, %c0_24, %c0_25, %c0_26, %c0_27], %71 {strides = array<i32>} : memref<1x1x16x16x128xbf16, #tpu.memory_space<vmem>>, vector<1x1x16x16x128xbf16>,
    return
  }
  func.func @transform_0(%arg0: i32, %arg1: i32) -> (i32, i32, i32, i32, i32) {
    %c0_i32 = arith.constant 0 : i32
    %c0_i32_0 = arith.constant 0 : i32
    %c0_i32_1 = arith.constant 0 : i32
    %c0_i32_2 = arith.constant 0 : i32
    %c0_i32_3 = arith.constant 0 : i32
    return %arg0, %c0_i32, %c0_i32_0, %c0_i32_1, %c0_i32_2 : i32, i32, i32, i32, i32
  }
  func.func @transform_1(%arg0: i32, %arg1: i32) -> (i32, i32) {
    %c0_i32 = arith.constant 0 : i32
    %c0_i32_0 = arith.constant 0 : i32
    %c0_i32_1 = arith.constant 0 : i32
    return %c0_i32, %c0_i32_0 : i32, i32
  }
  func.func @transform_2(%arg0: i32, %arg1: i32) -> (i32, i32) {
    %c0_i32 = arith.constant 0 : i32
    %c0_i32_0 = arith.constant 0 : i32
    %c0_i32_1 = arith.constant 0 : i32
    return %c0_i32, %c0_i32_0 : i32, i32
  }
  func.func @transform_3(%arg0: i32, %arg1: i32) -> (i32, i32) {
    %c0_i32 = arith.constant 0 : i32
    %c0_i32_0 = arith.constant 0 : i32
    %c0_i32_1 = arith.constant 0 : i32
    return %c0_i32, %c0_i32_0 : i32, i32
  }
  func.func @transform_4(%arg0: i32, %arg1: i32) -> (i32, i32) {
    %c0_i32 = arith.constant 0 : i32
    %c0_i32_0 = arith.constant 0 : i32
    %c0_i32_1 = arith.constant 0 : i32
    return %c0_i32, %c0_i32_0 : i32, i32
  }
  func.func @transform_5(%arg0: i32, %arg1: i32) -> (i32, i32, i32, i32, i32) {
    %c0_i32 = arith.constant 0 : i32
    %c0_i32_0 = arith.constant 0 : i32
    %c0_i32_1 = arith.constant 0 : i32
    %c0_i32_2 = arith.constant 0 : i32
    return %arg0, %arg1, %c0_i32, %c0_i32_0, %c0_i32_1 : i32, i32, i32, i32, i32
  }
}

module attributes {stable_mosaic.version = 11 : i64} {
  func.func @_fused_conv_kernel(%arg0: i32, %arg1: i32, %arg2: memref<1x1x16x16x128xbf16, #tpu.memory_space<vmem>>, %arg3: memref<1152x128xbf16, #tpu.memory_space<vmem>>, %arg4: memref<1x128xf32, #tpu.memory_space<vmem>>, %arg5: memref<1x1x16x16x128xbf16, #tpu.memory_space<vmem>>, %arg6: memref<1x1x16x16x128xbf16, #tpu.memory_space<vmem>>) attributes {dimension_semantics = [#tpu.dimension_semantics<parallel>, #tpu.dimension_semantics<parallel>], iteration_bounds = array<i64: 2, 1>, scalar_prefetch = 0 : i64, scratch_operands = 0 : i64, tpu.core_type = #tpu.core_type<tc>, window_params = [{transform_indices = @transform_0, window_bounds = array<i64: 1, 1, 16, 16, 128>}, {pipeline_mode = #tpu.pipeline_mode<synchronous>, transform_indices = @transform_1, window_bounds = array<i64: 1152, 128>}, {pipeline_mode = #tpu.pipeline_mode<synchronous>, transform_indices = @transform_2, window_bounds = array<i64: 1, 128>}, {transform_indices = @transform_3, window_bounds = array<i64: 1, 1, 16, 16, 128>}, {transform_indices = @transform_4, window_bounds = array<i64: 1, 1, 16, 16, 128>}]} {
    %c0 = arith.constant 0 : index
    %0 = arith.index_cast %arg1 : i32 to index
    %c0_0 = arith.constant 0 : index
    %c0_1 = arith.constant 0 : index
    %c0_2 = arith.constant 0 : index
    %1 = vector.load %arg2[%c0, %0, %c0_0, %c0_1, %c0_2] : memref<1x1x16x16x128xbf16, #tpu.memory_space<vmem>>, vector<1x1x16x16x128xbf16>
    %2 = vector.shape_cast %1 : vector<1x1x16x16x128xbf16> to vector<1x16x16x128xbf16>
    %3 = vector.shape_cast %2 : vector<1x16x16x128xbf16> to vector<16x16x128xbf16>
    %cst = arith.constant 0.000000e+00 : bf16
    %4 = vector.broadcast %cst : bf16 to vector<16x1x128xbf16>
    %cst_3 = arith.constant 0.000000e+00 : bf16
    %5 = vector.broadcast %cst_3 : bf16 to vector<16x1x128xbf16>
    %6 = tpu.concatenate %4, %3, %5 in 1 : vector<16x1x128xbf16>, vector<16x16x128xbf16>, vector<16x1x128xbf16> -> vector<16x18x128xbf16>
    %cst_4 = arith.constant 0.000000e+00 : bf16
    %7 = vector.broadcast %cst_4 : bf16 to vector<1x18x128xbf16>
    %cst_5 = arith.constant 0.000000e+00 : bf16
    %8 = vector.broadcast %cst_5 : bf16 to vector<1x18x128xbf16>
    %9 = tpu.concatenate %7, %6, %8 in 0 : vector<1x18x128xbf16>, vector<16x18x128xbf16>, vector<1x18x128xbf16> -> vector<18x18x128xbf16>
    %10 = vector.extract_strided_slice %9 {offsets = [0, 0, 0], sizes = [16, 16, 128], strides = [1, 1, 1]} : vector<18x18x128xbf16> to vector<16x16x128xbf16>
    %11 = vector.extract_strided_slice %9 {offsets = [0, 1, 0], sizes = [16, 16, 128], strides = [1, 1, 1]} : vector<18x18x128xbf16> to vector<16x16x128xbf16>
    %12 = vector.extract_strided_slice %9 {offsets = [0, 2, 0], sizes = [16, 16, 128], strides = [1, 1, 1]} : vector<18x18x128xbf16> to vector<16x16x128xbf16>
    %13 = vector.extract_strided_slice %9 {offsets = [1, 0, 0], sizes = [16, 16, 128], strides = [1, 1, 1]} : vector<18x18x128xbf16> to vector<16x16x128xbf16>
    %14 = vector.extract_strided_slice %9 {offsets = [1, 1, 0], sizes = [16, 16, 128], strides = [1, 1, 1]} : vector<18x18x128xbf16> to vector<16x16x128xbf16>
    %15 = vector.extract_strided_slice %9 {offsets = [1, 2, 0], sizes = [16, 16, 128], strides = [1, 1, 1]} : vector<18x18x128xbf16> to vector<16x16x128xbf16>
    %16 = vector.extract_strided_slice %9 {offsets = [2, 0, 0], sizes = [16, 16, 128], strides = [1, 1, 1]} : vector<18x18x128xbf16> to vector<16x16x128xbf16>
    %17 = vector.extract_strided_slice %9 {offsets = [2, 1, 0], sizes = [16, 16, 128], strides = [1, 1, 1]} : vector<18x18x128xbf16> to vector<16x16x128xbf16>
    %18 = vector.extract_strided_slice %9 {offsets = [2, 2, 0], sizes = [16, 16, 128], strides = [1, 1, 1]} : vector<18x18x128xbf16> to vector<16x16x128xbf16>
    %19 = tpu.concatenate %10, %11, %12, %13, %14, %15, %16, %17, %18 in 2 : vector<16x16x128xbf16>, vector<16x16x128xbf16>, vector<16x16x128xbf16>, vector<16x16x128xbf16>, vector<16x16x128xbf16>, vector<16x16x128xbf16>, vector<16x16x128xbf16>, vector<16x16x128xbf16>, vector<16x16x128xbf16> -> vector<16x16x1152xbf16>
    %20 = vector.shape_cast %19 : vector<16x16x1152xbf16> to vector<256x1152xbf16>
    %c0_6 = arith.constant 0 : index
    %c0_7 = arith.constant 0 : index
    %21 = vector.load %arg3[%c0_6, %c0_7] : memref<1152x128xbf16, #tpu.memory_space<vmem>>, vector<1152x128xbf16>
    %cst_8 = arith.constant dense<0.000000e+00> : vector<256x128xf32>
    %22 = tpu.matmul %20, %21, %cst_8 {dimension_numbers = #tpu.dot_dimension_numbers<[1], [0], [0], [1], [0, 0, 1, 1], [], []>} : vector<256x1152xbf16>, vector<1152x128xbf16>, vector<256x128xf32> -> vector<256x128xf32>
    %c0_9 = arith.constant 0 : index
    %c0_10 = arith.constant 0 : index
    %23 = vector.load %arg4[%c0_9, %c0_10] : memref<1x128xf32, #tpu.memory_space<vmem>>, vector<1x128xf32>
    %24 = vector.broadcast %23 : vector<1x128xf32> to vector<256x128xf32>
    %25 = arith.addf %22, %24 : vector<256x128xf32>
    %c0_11 = arith.constant 0 : index
    %c0_12 = arith.constant 0 : index
    %c0_13 = arith.constant 0 : index
    %c0_14 = arith.constant 0 : index
    %c0_15 = arith.constant 0 : index
    %26 = vector.load %arg5[%c0_11, %c0_12, %c0_13, %c0_14, %c0_15] : memref<1x1x16x16x128xbf16, #tpu.memory_space<vmem>>, vector<1x1x16x16x128xbf16>
    %27 = vector.shape_cast %26 : vector<1x1x16x16x128xbf16> to vector<16x16x128xbf16>
    %28 = vector.shape_cast %27 : vector<16x16x128xbf16> to vector<256x128xbf16>
    %29 = arith.extf %28 : vector<256x128xbf16> to vector<256x128xf32>
    %30 = arith.addf %25, %29 : vector<256x128xf32>
    %31 = vector.shape_cast %30 : vector<256x128xf32> to vector<16x16x128xf32>
    %32 = arith.truncf %31 : vector<16x16x128xf32> to vector<16x16x128xbf16>
    %c0_16 = arith.constant 0 : index
    %c0_17 = arith.constant 0 : index
    %c0_18 = arith.constant 0 : index
    %c0_19 = arith.constant 0 : index
    %c0_20 = arith.constant 0 : index
    %33 = vector.load %arg6[%c0_16, %c0_17, %c0_18, %c0_19, %c0_20] : memref<1x1x16x16x128xbf16, #tpu.memory_space<vmem>>, vector<1x1x16x16x128xbf16>
    %34 = vector.shape_cast %33 : vector<1x1x16x16x128xbf16> to vector<16x16x128xbf16>
    %35 = vector.shape_cast %32 : vector<16x16x128xbf16> to vector<1x1x16x16x128xbf16>
    tpu.vector_store %arg6[%c0_16, %c0_17, %c0_18, %c0_19, %c0_20], %35 {strides = array<i32>} : memref<1x1x16x16x128xbf16, #tpu.memory_space<vmem>>, vector<1x1x16x16x128xbf16>,
    return
  }
  func.func @transform_0(%arg0: i32, %arg1: i32) -> (i32, i32, i32, i32, i32) {
    %c0_i32 = arith.constant 0 : i32
    %c0_i32_0 = arith.constant 0 : i32
    %c0_i32_1 = arith.constant 0 : i32
    %c0_i32_2 = arith.constant 0 : i32
    %c0_i32_3 = arith.constant 0 : i32
    return %arg0, %c0_i32, %c0_i32_0, %c0_i32_1, %c0_i32_2 : i32, i32, i32, i32, i32
  }
  func.func @transform_1(%arg0: i32, %arg1: i32) -> (i32, i32) {
    %c0_i32 = arith.constant 0 : i32
    %c0_i32_0 = arith.constant 0 : i32
    %c0_i32_1 = arith.constant 0 : i32
    return %c0_i32, %c0_i32_0 : i32, i32
  }
  func.func @transform_2(%arg0: i32, %arg1: i32) -> (i32, i32) {
    %c0_i32 = arith.constant 0 : i32
    %c0_i32_0 = arith.constant 0 : i32
    %c0_i32_1 = arith.constant 0 : i32
    return %c0_i32, %c0_i32_0 : i32, i32
  }
  func.func @transform_3(%arg0: i32, %arg1: i32) -> (i32, i32, i32, i32, i32) {
    %c0_i32 = arith.constant 0 : i32
    %c0_i32_0 = arith.constant 0 : i32
    %c0_i32_1 = arith.constant 0 : i32
    %c0_i32_2 = arith.constant 0 : i32
    return %arg0, %arg1, %c0_i32, %c0_i32_0, %c0_i32_1 : i32, i32, i32, i32, i32
  }
  func.func @transform_4(%arg0: i32, %arg1: i32) -> (i32, i32, i32, i32, i32) {
    %c0_i32 = arith.constant 0 : i32
    %c0_i32_0 = arith.constant 0 : i32
    %c0_i32_1 = arith.constant 0 : i32
    %c0_i32_2 = arith.constant 0 : i32
    return %arg0, %arg1, %c0_i32, %c0_i32_0, %c0_i32_1 : i32, i32, i32, i32, i32
  }
}

module attributes {stable_mosaic.version = 11 : i64} {
  func.func @_fused_conv_kernel(%arg0: i32, %arg1: i32, %arg2: memref<1x1x16x16x128xbf16, #tpu.memory_space<vmem>>, %arg3: memref<1152x128xbf16, #tpu.memory_space<vmem>>, %arg4: memref<1x128xf32, #tpu.memory_space<vmem>>, %arg5: memref<1x128xf32, #tpu.memory_space<vmem>>, %arg6: memref<1x128xf32, #tpu.memory_space<vmem>>, %arg7: memref<1x1x16x16x128xbf16, #tpu.memory_space<vmem>>) attributes {dimension_semantics = [#tpu.dimension_semantics<parallel>, #tpu.dimension_semantics<parallel>], iteration_bounds = array<i64: 2, 1>, scalar_prefetch = 0 : i64, scratch_operands = 0 : i64, tpu.core_type = #tpu.core_type<tc>, window_params = [{transform_indices = @transform_0, window_bounds = array<i64: 1, 1, 16, 16, 128>}, {pipeline_mode = #tpu.pipeline_mode<synchronous>, transform_indices = @transform_1, window_bounds = array<i64: 1152, 128>}, {pipeline_mode = #tpu.pipeline_mode<synchronous>, transform_indices = @transform_2, window_bounds = array<i64: 1, 128>}, {pipeline_mode = #tpu.pipeline_mode<synchronous>, transform_indices = @transform_3, window_bounds = array<i64: 1, 128>}, {pipeline_mode = #tpu.pipeline_mode<synchronous>, transform_indices = @transform_4, window_bounds = array<i64: 1, 128>}, {transform_indices = @transform_5, window_bounds = array<i64: 1, 1, 16, 16, 128>}]} {
    %c0 = arith.constant 0 : index
    %0 = arith.index_cast %arg1 : i32 to index
    %c0_0 = arith.constant 0 : index
    %c0_1 = arith.constant 0 : index
    %c0_2 = arith.constant 0 : index
    %1 = vector.load %arg2[%c0, %0, %c0_0, %c0_1, %c0_2] : memref<1x1x16x16x128xbf16, #tpu.memory_space<vmem>>, vector<1x1x16x16x128xbf16>
    %2 = vector.shape_cast %1 : vector<1x1x16x16x128xbf16> to vector<1x16x16x128xbf16>
    %3 = vector.shape_cast %2 : vector<1x16x16x128xbf16> to vector<16x16x128xbf16>
    %4 = arith.extf %3 : vector<16x16x128xbf16> to vector<16x16x128xf32>
    %5 = arith.mulf %4, %4 : vector<16x16x128xf32>
    %cst = arith.constant dense<0.000000e+00> : vector<16x16xf32>
    %6 = vector.multi_reduction <add>, %5, %cst [2] : vector<16x16x128xf32> to vector<16x16xf32>
    %7 = vector.shape_cast %6 : vector<16x16xf32> to vector<16x16x1xf32>
    %8 = math.sqrt %7 : vector<16x16x1xf32>
    %c0_3 = arith.constant 0 : index
    %c0_4 = arith.constant 0 : index
    %9 = vector.load %arg5[%c0_3, %c0_4] : memref<1x128xf32, #tpu.memory_space<vmem>>, vector<1x128xf32>
    %10 = vector.shape_cast %9 : vector<1x128xf32> to vector<1x1x128xf32>
    %cst_5 = arith.constant 9.99999996E-13 : f32
    %11 = vector.broadcast %cst_5 : f32 to vector<16x16x1xf32>
    %12 = arith.maximumf %8, %11 : vector<16x16x1xf32>
    %cst_6 = arith.constant 8.000000e+00 : f32
    %13 = vector.broadcast %cst_6 : f32 to vector<16x16x1xf32>
    %14 = arith.divf %13, %12 : vector<16x16x1xf32>
    %15 = vector.broadcast %14 : vector<16x16x1xf32> to vector<16x16x128xf32>
    %16 = arith.mulf %4, %15 : vector<16x16x128xf32>
    %17 = vector.broadcast %10 : vector<1x1x128xf32> to vector<16x16x128xf32>
    %18 = arith.mulf %16, %17 : vector<16x16x128xf32>
    %19 = arith.negf %18 : vector<16x16x128xf32>
    %20 = math.exp %19 : vector<16x16x128xf32>
    %cst_7 = arith.constant 1.000000e+00 : f32
    %21 = vector.broadcast %cst_7 : f32 to vector<16x16x128xf32>
    %22 = arith.addf %21, %20 : vector<16x16x128xf32>
    %23 = arith.divf %21, %22 : vector<16x16x128xf32>
    %24 = arith.mulf %18, %23 : vector<16x16x128xf32>
    %25 = arith.truncf %24 : vector<16x16x128xf32> to vector<16x16x128xbf16>
    %cst_8 = arith.constant 0.000000e+00 : bf16
    %26 = vector.broadcast %cst_8 : bf16 to vector<16x1x128xbf16>
    %cst_9 = arith.constant 0.000000e+00 : bf16
    %27 = vector.broadcast %cst_9 : bf16 to vector<16x1x128xbf16>
    %28 = tpu.concatenate %26, %25, %27 in 1 : vector<16x1x128xbf16>, vector<16x16x128xbf16>, vector<16x1x128xbf16> -> vector<16x18x128xbf16>
    %cst_10 = arith.constant 0.000000e+00 : bf16
    %29 = vector.broadcast %cst_10 : bf16 to vector<1x18x128xbf16>
    %cst_11 = arith.constant 0.000000e+00 : bf16
    %30 = vector.broadcast %cst_11 : bf16 to vector<1x18x128xbf16>
    %31 = tpu.concatenate %29, %28, %30 in 0 : vector<1x18x128xbf16>, vector<16x18x128xbf16>, vector<1x18x128xbf16> -> vector<18x18x128xbf16>
    %32 = vector.extract_strided_slice %31 {offsets = [0, 0, 0], sizes = [16, 16, 128], strides = [1, 1, 1]} : vector<18x18x128xbf16> to vector<16x16x128xbf16>
    %33 = vector.extract_strided_slice %31 {offsets = [0, 1, 0], sizes = [16, 16, 128], strides = [1, 1, 1]} : vector<18x18x128xbf16> to vector<16x16x128xbf16>
    %34 = vector.extract_strided_slice %31 {offsets = [0, 2, 0], sizes = [16, 16, 128], strides = [1, 1, 1]} : vector<18x18x128xbf16> to vector<16x16x128xbf16>
    %35 = vector.extract_strided_slice %31 {offsets = [1, 0, 0], sizes = [16, 16, 128], strides = [1, 1, 1]} : vector<18x18x128xbf16> to vector<16x16x128xbf16>
    %36 = vector.extract_strided_slice %31 {offsets = [1, 1, 0], sizes = [16, 16, 128], strides = [1, 1, 1]} : vector<18x18x128xbf16> to vector<16x16x128xbf16>
    %37 = vector.extract_strided_slice %31 {offsets = [1, 2, 0], sizes = [16, 16, 128], strides = [1, 1, 1]} : vector<18x18x128xbf16> to vector<16x16x128xbf16>
    %38 = vector.extract_strided_slice %31 {offsets = [2, 0, 0], sizes = [16, 16, 128], strides = [1, 1, 1]} : vector<18x18x128xbf16> to vector<16x16x128xbf16>
    %39 = vector.extract_strided_slice %31 {offsets = [2, 1, 0], sizes = [16, 16, 128], strides = [1, 1, 1]} : vector<18x18x128xbf16> to vector<16x16x128xbf16>
    %40 = vector.extract_strided_slice %31 {offsets = [2, 2, 0], sizes = [16, 16, 128], strides = [1, 1, 1]} : vector<18x18x128xbf16> to vector<16x16x128xbf16>
    %41 = tpu.concatenate %32, %33, %34, %35, %36, %37, %38, %39, %40 in 2 : vector<16x16x128xbf16>, vector<16x16x128xbf16>, vector<16x16x128xbf16>, vector<16x16x128xbf16>, vector<16x16x128xbf16>, vector<16x16x128xbf16>, vector<16x16x128xbf16>, vector<16x16x128xbf16>, vector<16x16x128xbf16> -> vector<16x16x1152xbf16>
    %42 = vector.shape_cast %41 : vector<16x16x1152xbf16> to vector<256x1152xbf16>
    %c0_12 = arith.constant 0 : index
    %c0_13 = arith.constant 0 : index
    %43 = vector.load %arg3[%c0_12, %c0_13] : memref<1152x128xbf16, #tpu.memory_space<vmem>>, vector<1152x128xbf16>
    %cst_14 = arith.constant dense<0.000000e+00> : vector<256x128xf32>
    %44 = tpu.matmul %42, %43, %cst_14 {dimension_numbers = #tpu.dot_dimension_numbers<[1], [0], [0], [1], [0, 0, 1, 1], [], []>} : vector<256x1152xbf16>, vector<1152x128xbf16>, vector<256x128xf32> -> vector<256x128xf32>
    %c0_15 = arith.constant 0 : index
    %c0_16 = arith.constant 0 : index
    %45 = vector.load %arg4[%c0_15, %c0_16] : memref<1x128xf32, #tpu.memory_space<vmem>>, vector<1x128xf32>
    %46 = vector.broadcast %45 : vector<1x128xf32> to vector<256x128xf32>
    %47 = arith.addf %44, %46 : vector<256x128xf32>
    %48 = arith.mulf %47, %47 : vector<256x128xf32>
    %cst_17 = arith.constant dense<0.000000e+00> : vector<256xf32>
    %49 = vector.multi_reduction <add>, %48, %cst_17 [1] : vector<256x128xf32> to vector<256xf32>
    %50 = vector.shape_cast %49 : vector<256xf32> to vector<256x1xf32>
    %51 = math.sqrt %50 : vector<256x1xf32>
    %cst_18 = arith.constant 9.99999996E-13 : f32
    %52 = vector.broadcast %cst_18 : f32 to vector<256x1xf32>
    %53 = arith.maximumf %51, %52 : vector<256x1xf32>
    %cst_19 = arith.constant 8.000000e+00 : f32
    %54 = vector.broadcast %cst_19 : f32 to vector<256x1xf32>
    %55 = arith.divf %54, %53 : vector<256x1xf32>
    %56 = vector.broadcast %55 : vector<256x1xf32> to vector<256x128xf32>
    %57 = arith.mulf %47, %56 : vector<256x128xf32>
    %c0_20 = arith.constant 0 : index
    %c0_21 = arith.constant 0 : index
    %58 = vector.load %arg6[%c0_20, %c0_21] : memref<1x128xf32, #tpu.memory_space<vmem>>, vector<1x128xf32>
    %59 = vector.broadcast %58 : vector<1x128xf32> to vector<256x128xf32>
    %60 = arith.mulf %57, %59 : vector<256x128xf32>
    %61 = arith.negf %60 : vector<256x128xf32>
    %62 = math.exp %61 : vector<256x128xf32>
    %cst_22 = arith.constant 1.000000e+00 : f32
    %63 = vector.broadcast %cst_22 : f32 to vector<256x128xf32>
    %64 = arith.addf %63, %62 : vector<256x128xf32>
    %65 = arith.divf %63, %64 : vector<256x128xf32>
    %66 = arith.mulf %60, %65 : vector<256x128xf32>
    %67 = vector.shape_cast %66 : vector<256x128xf32> to vector<16x16x128xf32>
    %68 = arith.truncf %67 : vector<16x16x128xf32> to vector<16x16x128xbf16>
    %c0_23 = arith.constant 0 : index
    %c0_24 = arith.constant 0 : index
    %c0_25 = arith.constant 0 : index
    %c0_26 = arith.constant 0 : index
    %c0_27 = arith.constant 0 : index
    %69 = vector.load %arg7[%c0_23, %c0_24, %c0_25, %c0_26, %c0_27] : memref<1x1x16x16x128xbf16, #tpu.memory_space<vmem>>, vector<1x1x16x16x128xbf16>
    %70 = vector.shape_cast %69 : vector<1x1x16x16x128xbf16> to vector<16x16x128xbf16>
    %71 = vector.shape_cast %68 : vector<16x16x128xbf16> to vector<1x1x16x16x128xbf16>
    tpu.vector_store %arg7[%c0_23, %c0_24, %c0_25, %c0_26, %c0_27], %71 {strides = array<i32>} : memref<1x1x16x16x128xbf16, #tpu.memory_space<vmem>>, vector<1x1x16x16x128xbf16>,
    return
  }
  func.func @transform_0(%arg0: i32, %arg1: i32) -> (i32, i32, i32, i32, i32) {
    %c0_i32 = arith.constant 0 : i32
    %c0_i32_0 = arith.constant 0 : i32
    %c0_i32_1 = arith.constant 0 : i32
    %c0_i32_2 = arith.constant 0 : i32
    %c0_i32_3 = arith.constant 0 : i32
    return %arg0, %c0_i32, %c0_i32_0, %c0_i32_1, %c0_i32_2 : i32, i32, i32, i32, i32
  }
  func.func @transform_1(%arg0: i32, %arg1: i32) -> (i32, i32) {
    %c0_i32 = arith.constant 0 : i32
    %c0_i32_0 = arith.constant 0 : i32
    %c0_i32_1 = arith.constant 0 : i32
    return %c0_i32, %c0_i32_0 : i32, i32
  }
  func.func @transform_2(%arg0: i32, %arg1: i32) -> (i32, i32) {
    %c0_i32 = arith.constant 0 : i32
    %c0_i32_0 = arith.constant 0 : i32
    %c0_i32_1 = arith.constant 0 : i32
    return %c0_i32, %c0_i32_0 : i32, i32
  }
  func.func @transform_3(%arg0: i32, %arg1: i32) -> (i32, i32) {
    %c0_i32 = arith.constant 0 : i32
    %c0_i32_0 = arith.constant 0 : i32
    %c0_i32_1 = arith.constant 0 : i32
    return %c0_i32, %c0_i32_0 : i32, i32
  }
  func.func @transform_4(%arg0: i32, %arg1: i32) -> (i32, i32) {
    %c0_i32 = arith.constant 0 : i32
    %c0_i32_0 = arith.constant 0 : i32
    %c0_i32_1 = arith.constant 0 : i32
    return %c0_i32, %c0_i32_0 : i32, i32
  }
  func.func @transform_5(%arg0: i32, %arg1: i32) -> (i32, i32, i32, i32, i32) {
    %c0_i32 = arith.constant 0 : i32
    %c0_i32_0 = arith.constant 0 : i32
    %c0_i32_1 = arith.constant 0 : i32
    %c0_i32_2 = arith.constant 0 : i32
    return %arg0, %arg1, %c0_i32, %c0_i32_0, %c0_i32_1 : i32, i32, i32, i32, i32
  }
}

module attributes {stable_mosaic.version = 11 : i64} {
  func.func @_fused_conv_kernel(%arg0: i32, %arg1: i32, %arg2: memref<1x1x9x9x512xbf16, #tpu.memory_space<vmem>>, %arg3: memref<1152x128xbf16, #tpu.memory_space<vmem>>, %arg4: memref<1x128xf32, #tpu.memory_space<vmem>>, %arg5: memref<1x1x8x8x128xf32, #tpu.memory_space<vmem>>, %arg6: memref<1x1x8x8x128xf32, #tpu.memory_space<vmem>>) attributes {dimension_semantics = [#tpu.dimension_semantics<parallel>, #tpu.dimension_semantics<parallel>], iteration_bounds = array<i64: 2, 1>, scalar_prefetch = 0 : i64, scratch_operands = 0 : i64, tpu.core_type = #tpu.core_type<tc>, window_params = [{transform_indices = @transform_0, window_bounds = array<i64: 1, 1, 9, 9, 512>}, {pipeline_mode = #tpu.pipeline_mode<synchronous>, transform_indices = @transform_1, window_bounds = array<i64: 1152, 128>}, {pipeline_mode = #tpu.pipeline_mode<synchronous>, transform_indices = @transform_2, window_bounds = array<i64: 1, 128>}, {transform_indices = @transform_3, window_bounds = array<i64: 1, 1, 8, 8, 128>}, {transform_indices = @transform_4, window_bounds = array<i64: 1, 1, 8, 8, 128>}]} {
    %c0 = arith.constant 0 : index
    %0 = arith.index_cast %arg1 : i32 to index
    %c0_0 = arith.constant 0 : index
    %c0_1 = arith.constant 0 : index
    %c0_2 = arith.constant 0 : index
    %1 = vector.load %arg2[%c0, %0, %c0_0, %c0_1, %c0_2] : memref<1x1x9x9x512xbf16, #tpu.memory_space<vmem>>, vector<1x1x9x9x512xbf16>
    %2 = vector.shape_cast %1 : vector<1x1x9x9x512xbf16> to vector<1x9x9x512xbf16>
    %3 = vector.shape_cast %2 : vector<1x9x9x512xbf16> to vector<9x9x512xbf16>
    %4 = vector.extract_strided_slice %3 {offsets = [0, 0, 0], sizes = [8, 8, 128], strides = [1, 1, 1]} : vector<9x9x512xbf16> to vector<8x8x128xbf16>
    %5 = vector.extract_strided_slice %3 {offsets = [0, 0, 128], sizes = [8, 8, 128], strides = [1, 1, 1]} : vector<9x9x512xbf16> to vector<8x8x128xbf16>
    %6 = vector.extract_strided_slice %3 {offsets = [0, 1, 0], sizes = [8, 8, 128], strides = [1, 1, 1]} : vector<9x9x512xbf16> to vector<8x8x128xbf16>
    %7 = vector.extract_strided_slice %3 {offsets = [0, 0, 256], sizes = [8, 8, 128], strides = [1, 1, 1]} : vector<9x9x512xbf16> to vector<8x8x128xbf16>
    %8 = vector.extract_strided_slice %3 {offsets = [0, 0, 384], sizes = [8, 8, 128], strides = [1, 1, 1]} : vector<9x9x512xbf16> to vector<8x8x128xbf16>
    %9 = vector.extract_strided_slice %3 {offsets = [0, 1, 256], sizes = [8, 8, 128], strides = [1, 1, 1]} : vector<9x9x512xbf16> to vector<8x8x128xbf16>
    %10 = vector.extract_strided_slice %3 {offsets = [1, 0, 0], sizes = [8, 8, 128], strides = [1, 1, 1]} : vector<9x9x512xbf16> to vector<8x8x128xbf16>
    %11 = vector.extract_strided_slice %3 {offsets = [1, 0, 128], sizes = [8, 8, 128], strides = [1, 1, 1]} : vector<9x9x512xbf16> to vector<8x8x128xbf16>
    %12 = vector.extract_strided_slice %3 {offsets = [1, 1, 0], sizes = [8, 8, 128], strides = [1, 1, 1]} : vector<9x9x512xbf16> to vector<8x8x128xbf16>
    %13 = tpu.concatenate %4, %5, %6, %7, %8, %9, %10, %11, %12 in 2 : vector<8x8x128xbf16>, vector<8x8x128xbf16>, vector<8x8x128xbf16>, vector<8x8x128xbf16>, vector<8x8x128xbf16>, vector<8x8x128xbf16>, vector<8x8x128xbf16>, vector<8x8x128xbf16>, vector<8x8x128xbf16> -> vector<8x8x1152xbf16>
    %14 = vector.shape_cast %13 : vector<8x8x1152xbf16> to vector<64x1152xbf16>
    %c0_3 = arith.constant 0 : index
    %c0_4 = arith.constant 0 : index
    %15 = vector.load %arg3[%c0_3, %c0_4] : memref<1152x128xbf16, #tpu.memory_space<vmem>>, vector<1152x128xbf16>
    %cst = arith.constant dense<0.000000e+00> : vector<64x128xf32>
    %16 = tpu.matmul %14, %15, %cst {dimension_numbers = #tpu.dot_dimension_numbers<[1], [0], [0], [1], [0, 0, 1, 1], [], []>} : vector<64x1152xbf16>, vector<1152x128xbf16>, vector<64x128xf32> -> vector<64x128xf32>
    %c0_5 = arith.constant 0 : index
    %c0_6 = arith.constant 0 : index
    %17 = vector.load %arg4[%c0_5, %c0_6] : memref<1x128xf32, #tpu.memory_space<vmem>>, vector<1x128xf32>
    %18 = vector.broadcast %17 : vector<1x128xf32> to vector<64x128xf32>
    %19 = arith.addf %16, %18 : vector<64x128xf32>
    %c0_7 = arith.constant 0 : index
    %c0_8 = arith.constant 0 : index
    %c0_9 = arith.constant 0 : index
    %c0_10 = arith.constant 0 : index
    %c0_11 = arith.constant 0 : index
    %20 = vector.load %arg5[%c0_7, %c0_8, %c0_9, %c0_10, %c0_11] : memref<1x1x8x8x128xf32, #tpu.memory_space<vmem>>, vector<1x1x8x8x128xf32>
    %21 = vector.shape_cast %20 : vector<1x1x8x8x128xf32> to vector<8x8x128xf32>
    %22 = vector.shape_cast %21 : vector<8x8x128xf32> to vector<64x128xf32>
    %23 = arith.addf %19, %22 : vector<64x128xf32>
    %24 = vector.shape_cast %23 : vector<64x128xf32> to vector<8x8x128xf32>
    %c0_12 = arith.constant 0 : index
    %c0_13 = arith.constant 0 : index
    %c0_14 = arith.constant 0 : index
    %c0_15 = arith.constant 0 : index
    %c0_16 = arith.constant 0 : index
    %25 = vector.load %arg6[%c0_12, %c0_13, %c0_14, %c0_15, %c0_16] : memref<1x1x8x8x128xf32, #tpu.memory_space<vmem>>, vector<1x1x8x8x128xf32>
    %26 = vector.shape_cast %25 : vector<1x1x8x8x128xf32> to vector<8x8x128xf32>
    %27 = vector.shape_cast %24 : vector<8x8x128xf32> to vector<1x1x8x8x128xf32>
    tpu.vector_store %arg6[%c0_12, %c0_13, %c0_14, %c0_15, %c0_16], %27 {strides = array<i32>} : memref<1x1x8x8x128xf32, #tpu.memory_space<vmem>>, vector<1x1x8x8x128xf32>,
    return
  }
  func.func @transform_0(%arg0: i32, %arg1: i32) -> (i32, i32, i32, i32, i32) {
    %c0_i32 = arith.constant 0 : i32
    %c0_i32_0 = arith.constant 0 : i32
    %c0_i32_1 = arith.constant 0 : i32
    %c0_i32_2 = arith.constant 0 : i32
    %c0_i32_3 = arith.constant 0 : i32
    return %arg0, %c0_i32, %c0_i32_0, %c0_i32_1, %c0_i32_2 : i32, i32, i32, i32, i32
  }
  func.func @transform_1(%arg0: i32, %arg1: i32) -> (i32, i32) {
    %c0_i32 = arith.constant 0 : i32
    %c0_i32_0 = arith.constant 0 : i32
    %c0_i32_1 = arith.constant 0 : i32
    return %c0_i32, %c0_i32_0 : i32, i32
  }
  func.func @transform_2(%arg0: i32, %arg1: i32) -> (i32, i32) {
    %c0_i32 = arith.constant 0 : i32
    %c0_i32_0 = arith.constant 0 : i32
    %c0_i32_1 = arith.constant 0 : i32
    return %c0_i32, %c0_i32_0 : i32, i32
  }
  func.func @transform_3(%arg0: i32, %arg1: i32) -> (i32, i32, i32, i32, i32) {
    %c0_i32 = arith.constant 0 : i32
    %c0_i32_0 = arith.constant 0 : i32
    %c0_i32_1 = arith.constant 0 : i32
    %c0_i32_2 = arith.constant 0 : i32
    return %arg0, %arg1, %c0_i32, %c0_i32_0, %c0_i32_1 : i32, i32, i32, i32, i32
  }
  func.func @transform_4(%arg0: i32, %arg1: i32) -> (i32, i32, i32, i32, i32) {
    %c0_i32 = arith.constant 0 : i32
    %c0_i32_0 = arith.constant 0 : i32
    %c0_i32_1 = arith.constant 0 : i32
    %c0_i32_2 = arith.constant 0 : i32
    return %arg0, %arg1, %c0_i32, %c0_i32_0, %c0_i32_1 : i32, i32, i32, i32, i32
  }
}

</mosaic_0001>

<llo_original>
// kernel: _lambda_.6
$region0: #{_lambda_.6}
  #allocation0 [shape = 'u32[]', space=smem, size = 0x4, offset = 0x4, fixed_abs, tag = 'smem constant byte address 0x4 - core index']
  #allocation1 [shape = 'u32[144,128]{1,0:T(1,128)}', space=vmem, size = 0x12000, scoped, tag = 'internal scratch']
  %s0 = inlined_call_operand.vmem [shape: bf16[2,1,16,16,32], index: 0, kind: input, shape index: {}]
  %s1 = inlined_call_operand.vmem [shape: bf16[32,128], index: 1, kind: input, shape index: {}]
  %s2 = inlined_call_operand.vmem [shape: f32[1,128], index: 2, kind: input, shape index: {}]
  %s3 = inlined_call_operand.vmem [shape: bf16[2,1,16,16,128], index: 3, kind: output, shape index: {}]
  %s4 = sld [smem:[#allocation0]]
  $region45: #{_lambda_.6} parent=0
    _
  %s6 = ssub.s32 1, %s4
  %s7 = scalar_select 0, %s6, %s4
  loop: start=0, step=1, limit=4
  $region2: #{_lambda_.6} parent=0 // loop_pre_header
    _
  $region3: #{_lambda_.6} parent=0 // loop_header
    %s9 = sphi 0, %s13
    %p10 = scmp.ge.s32.totalorder %s9, 4
    %s16 = sphi 0, %s28
    %s17 = sphi 0, %s24
    %s18 = sphi 0, %s16
    %s19 = sphi 0, %s17
    %s20 = sphi 0, %s18
    %s21 = sphi 0, %s19
    %s31 = sphi 0, %s33
    %s34 = sphi 0, %s31
    %s35 = sphi 0, %s34
    %s51 = sphi 0, %s35
    %s55 = sphi 0, %s55
    %s57 = sphi 0, %s55
    %s58 = sphi 0, %s57
    %s72 = sphi 0, %s58
    %s76 = sphi 0, %s76
    %s78 = sphi 0, %s76
    %s79 = sphi 0, %s78
    %s93 = sphi 0, %s79
    %s101 = sphi 0, %s103
    %s104 = sphi 0, %s101
    %s105 = sphi 0, %s104
    %s121 = sphi 0, %s105
  $region4: #{_lambda_.6} parent=0 // loop_header_branch
    %12 = sbr.rel (%p10) target = $region8
  $region5: #{_lambda_.6} parent=0 // loop_body
    %s14 = ssub.s32 %s9, 1
    %s15 = ssub.s32 %s9, 2
    %s22 = sadd.s32 1, %s17
    %p23 = scmp.ge.s32.totalorder %s22, 1
    %s24 = scalar_select %p23, 0, %s22
    %s25 = sadd.s32 1, %s16
    %s26 = scalar_select %p23, %s25, %s16
    %p27 = scmp.ge.s32.totalorder %s26, 2
    %s28 = scalar_select %p27, 0, %s26
    %s29 = ssub.s32 %s16, %s28
    %p30 = scmp.eq.s32.totalorder %s29, 0
    %s32 = sadd.s32 %s31, 1
    %s33 = scalar_select %p30, %s31, %s32
    %p36 = pneg %p30
    %p37 = scmp.eq.s32.totalorder %s9, 1
    %p38 = por %p36, %p37
    %p39 = scmp.ne.s32.totalorder %s31, %s34
    %p40 = scmp.eq.s32.totalorder %s9, 0
    %p41 = por %p39, %p40
    %p42 = scmp.ne.s32.totalorder %s31, %s34
    %p43 = scmp.eq.s32.totalorder %s14, 1
    %p44 = por %p42, %p43
    %p45 = scmp.ne.s32.totalorder %s34, %s35
    %p46 = scmp.eq.s32.totalorder %s14, 0
    %p47 = por %p45, %p46
    %p48 = scmp.ne.s32.totalorder %s34, %s35
    %p49 = scmp.eq.s32.totalorder %s15, 1
    %p50 = por %p48, %p49
    %p52 = scmp.ne.s32.totalorder %s35, %s51
    %p53 = scmp.eq.s32.totalorder %s15, 0
    %p54 = por %p52, %p53
    %s56 = sadd.s32 %s55, 1
    %p59 = scmp.eq.s32.totalorder %s9, 1
    %p60 = scmp.ne.s32.totalorder %s55, %s57
    %p61 = scmp.eq.s32.totalorder %s9, 0
    %p62 = por %p60, %p61
    %p63 = scmp.ne.s32.totalorder %s55, %s57
    %p64 = scmp.eq.s32.totalorder %s14, 1
    %p65 = por %p63, %p64
    %p66 = scmp.ne.s32.totalorder %s57, %s58
    %p67 = scmp.eq.s32.totalorder %s14, 0
    %p68 = por %p66, %p67
    %p69 = scmp.ne.s32.totalorder %s57, %s58
    %p70 = scmp.eq.s32.totalorder %s15, 1
    %p71 = por %p69, %p70
    %p73 = scmp.ne.s32.totalorder %s58, %s72
    %p74 = scmp.eq.s32.totalorder %s15, 0
    %p75 = por %p73, %p74
    %s77 = sadd.s32 %s76, 1
    %p80 = scmp.eq.s32.totalorder %s9, 1
    %p81 = scmp.ne.s32.totalorder %s76, %s78
    %p82 = scmp.eq.s32.totalorder %s9, 0
    %p83 = por %p81, %p82
    %p84 = scmp.ne.s32.totalorder %s76, %s78
    %p85 = scmp.eq.s32.totalorder %s14, 1
    %p86 = por %p84, %p85
    %p87 = scmp.ne.s32.totalorder %s78, %s79
    %p88 = scmp.eq.s32.totalorder %s14, 0
    %p89 = por %p87, %p88
    %p90 = scmp.ne.s32.totalorder %s78, %s79
    %p91 = scmp.eq.s32.totalorder %s15, 1
    %p92 = por %p90, %p91
    %p94 = scmp.ne.s32.totalorder %s79, %s93
    %p95 = scmp.eq.s32.totalorder %s15, 0
    %p96 = por %p94, %p95
    %s97 = ssub.s32 %s16, %s28
    %s98 = ssub.s32 %s17, %s24
    %s99 = sor.u32 %s97, %s98
    %p100 = scmp.eq.s32.totalorder %s99, 0
    %s102 = sadd.s32 %s101, 1
    %s103 = scalar_select %p100, %s101, %s102
    %p106 = pneg %p100
    %p107 = scmp.eq.s32.totalorder %s9, 1
    %p108 = por %p106, %p107
    %p109 = scmp.ne.s32.totalorder %s101, %s104
    %p110 = scmp.eq.s32.totalorder %s9, 0
    %p111 = por %p109, %p110
    %p112 = scmp.ne.s32.totalorder %s101, %s104
    %p113 = scmp.eq.s32.totalorder %s14, 1
    %p114 = por %p112, %p113
    %p115 = scmp.ne.s32.totalorder %s104, %s105
    %p116 = scmp.eq.s32.totalorder %s14, 0
    %p117 = por %p115, %p116
    %p118 = scmp.ne.s32.totalorder %s104, %s105
    %p119 = scmp.eq.s32.totalorder %s15, 1
    %p120 = por %p118, %p119
    %p122 = scmp.ne.s32.totalorder %s105, %s121
    %p123 = scmp.eq.s32.totalorder %s15, 0
    %p124 = por %p122, %p123
    %p125 = scmp.le.s32.totalorder 1, %s9
    %p126 = scmp.lt.s32.totalorder %s9, 3
    %p127 = pnand %p125, %p126
    %p128 = pneg %p127
    // Predicated region
    $region9: #{_lambda_.6} parent=5 // pred_check
      _
    $region10: #{_lambda_.6} parent=5 // pred_check_branch
      %130 = sbr.rel (%p127) target = $region12
    $region11: #{_lambda_.6} parent=5 // pred_region
      %s131 = ssub.s32 %s9, 1
      // Predicated region
      $region13: #{_lambda_.6} parent=11 // pred_check
        %p132 = pneg %p68
      $region14: #{_lambda_.6} parent=11 // pred_check_branch
        %134 = sbr.rel (%p132) target = $region16
      $region15: #{_lambda_.6} parent=11 // pred_region
        _
      $region16: #{_lambda_.6} parent=11 // pred_fallthru
        _
      // Predicated region
      $region17: #{_lambda_.6} parent=11 // pred_check
        %p135 = pneg %p89
      $region18: #{_lambda_.6} parent=11 // pred_check_branch
        %137 = sbr.rel (%p135) target = $region20
      $region19: #{_lambda_.6} parent=11 // pred_region
        _
      $region20: #{_lambda_.6} parent=11 // pred_fallthru
        _
    $region12: #{_lambda_.6} parent=5 // pred_fallthru
      _
    %p138 = scmp.lt.s32.totalorder %s9, 2
    // Predicated region
    $region21: #{_lambda_.6} parent=5 // pred_check
      %p139 = pneg %p138
    $region22: #{_lambda_.6} parent=5 // pred_check_branch
      %141 = sbr.rel (%p139) target = $region24
    $region23: #{_lambda_.6} parent=5 // pred_region
      // Predicated region
      $region25: #{_lambda_.6} parent=23 // pred_check
        %p142 = pneg %p41
      $region26: #{_lambda_.6} parent=23 // pred_check_branch
        %144 = sbr.rel (%p142) target = $region28
      $region27: #{_lambda_.6} parent=23 // pred_region
        %p145 = scmp.lt.s32.totalorder %s16, 1
        %s146 = scalar_select %p145, %s16, 1
        %s147 = smul.addr %s146, 32
        %s148 = smul.addr %s147, 4
        %s149 = scalar_lea.vmem %s0, %s148
      $region28: #{_lambda_.6} parent=23 // pred_fallthru
        _
    $region24: #{_lambda_.6} parent=5 // pred_fallthru
      _
    %p150 = scmp.le.s32.totalorder 1, %s9
    %p151 = scmp.lt.s32.totalorder %s9, 3
    %p152 = pnand %p150, %p151
    %p153 = pneg %p152
    // Predicated region
    $region29: #{_lambda_.6} parent=5 // pred_check
      _
    $region30: #{_lambda_.6} parent=5 // pred_check_branch
      %155 = sbr.rel (%p152) target = $region32
    $region31: #{_lambda_.6} parent=5 // pred_region
      %s156 = ssub.s32 %s9, 1
      %p157 = scmp.lt.s32.totalorder %s18, 1
      %s158 = scalar_select %p157, %s18, 1
      %s159 = smul.addr %s158, 32
      %s160 = smul.addr %s159, 4
      %s161 = scalar_lea.vmem %s0, %s160
      %p162 = pneg %p47
      %p163 = pneg %p44
      %p164 = pneg %p68
      %p165 = pneg %p65
      %p166 = pneg %p89
      %p167 = pneg %p86
      %p168 = pneg %p117
      %p169 = pneg %p114
      %p170 = scmp.lt.s32.totalorder %s18, 1
      %s171 = scalar_select %p170, %s18, 1
      %p172 = scmp.lt.s32.totalorder %s19, 0
      %s173 = scalar_select %p172, %s19, 0
      %s174 = smul.addr %s173, 32
      %s175 = smul.addr %s171, 32
      %s176 = sadd.s32 %s174, %s175
      %s177 = smul.addr %s176, 4
      %s178 = scalar_lea.vmem %s3, %s177
      %p179 = scmp.lt.s32.totalorder %s18, 1
      %s180 = scalar_select %p179, %s18, 1
      %s181 = smul.addr %s180, 32
      %s182 = smul.addr %s181, 4
      %s183 = scalar_lea.vmem %s0, %s182
      %p184 = scmp.lt.s32.totalorder %s18, 1
      %s185 = scalar_select %p184, %s18, 1
      %p186 = scmp.lt.s32.totalorder %s19, 0
      %s187 = scalar_select %p186, %s19, 0
      %s188 = smul.addr %s187, 32
      %s189 = smul.addr %s185, 32
      %s190 = sadd.s32 %s188, %s189
      %s191 = smul.addr %s190, 4
      %s192 = scalar_lea.vmem %s3, %s191
      %s194 = smul.u32 %s19, 32
      %s195 = smul.addr %s194, 4
      %s196 = scalar_lea.vmem %s183, %s195
      %v197 = vld [vmem:[%s196] sm:$0xf]
      %v198 = vld [vmem:[%s196 + $0x4] sm:$0xf]
      %v199 = vld [vmem:[%s196 + $0x8] sm:$0xf]
      %v200 = vld [vmem:[%s196 + $0xc] sm:$0xf]
      %v201 = vld [vmem:[%s196 + $0x10] sm:$0xf]
      %v202 = vld [vmem:[%s196 + $0x14] sm:$0xf]
      %v203 = vld [vmem:[%s196 + $0x18] sm:$0xf]
      %v204 = vld [vmem:[%s196 + $0x1c] sm:$0xf]
      %v205 = vld [vmem:[%s196 + $0x20] sm:$0xf]
      %v206 = vld [vmem:[%s196 + $0x24] sm:$0xf]
      %v207 = vld [vmem:[%s196 + $0x28] sm:$0xf]
      %v208 = vld [vmem:[%s196 + $0x2c] sm:$0xf]
      %v209 = vld [vmem:[%s196 + $0x30] sm:$0xf]
      %v210 = vld [vmem:[%s196 + $0x34] sm:$0xf]
      %v211 = vld [vmem:[%s196 + $0x38] sm:$0xf]
      %v212 = vld [vmem:[%s196 + $0x3c] sm:$0xf]
      %v213 = vld [vmem:[%s196 + $0x40] sm:$0xf]
      %v214 = vld [vmem:[%s196 + $0x44] sm:$0xf]
      %v215 = vld [vmem:[%s196 + $0x48] sm:$0xf]
      %v216 = vld [vmem:[%s196 + $0x4c] sm:$0xf]
      %v217 = vld [vmem:[%s196 + $0x50] sm:$0xf]
      %v218 = vld [vmem:[%s196 + $0x54] sm:$0xf]
      %v219 = vld [vmem:[%s196 + $0x58] sm:$0xf]
      %v220 = vld [vmem:[%s196 + $0x5c] sm:$0xf]
      %v221 = vld [vmem:[%s196 + $0x60] sm:$0xf]
      %v222 = vld [vmem:[%s196 + $0x64] sm:$0xf]
      %v223 = vld [vmem:[%s196 + $0x68] sm:$0xf]
      %v224 = vld [vmem:[%s196 + $0x6c] sm:$0xf]
      %v225 = vld [vmem:[%s196 + $0x70] sm:$0xf]
      %v226 = vld [vmem:[%s196 + $0x74] sm:$0xf]
      %v227 = vld [vmem:[%s196 + $0x78] sm:$0xf]
      %v228 = vld [vmem:[%s196 + $0x7c] sm:$0xf]
      %v229 = vld [vmem:[%s1] sm:$0xf]
      %v230 = vld [vmem:[%s1 + $0x4] sm:$0xf]
      %v231 = vld [vmem:[%s1 + $0x8] sm:$0xf]
      %v232 = vld [vmem:[%s1 + $0xc] sm:$0xf]
      %v233 = vld [vmem:[%s2] sm:$0x1]
      %v235 = vlaneseq
      %v236 = vshrl.u32 %v235, 7
      %v237 = vsub.s32 0, %v236
      %v238 = vrot.slane %v233, %v237
      %v272 = vunpack.c.l.b16 %v197
      %v273 = vunpack.c.l.b16 %v198
      %v274 = vunpack.c.l.b16 %v199
      %v275 = vunpack.c.l.b16 %v200
      %v276 = vunpack.c.l.b16 %v201
      %v277 = vunpack.c.l.b16 %v202
      %v278 = vunpack.c.l.b16 %v203
      %v279 = vunpack.c.l.b16 %v204
      %v280 = vunpack.c.l.b16 %v205
      %v281 = vunpack.c.l.b16 %v206
      %v282 = vunpack.c.l.b16 %v207
      %v283 = vunpack.c.l.b16 %v208
      %v284 = vunpack.c.l.b16 %v209
      %v285 = vunpack.c.l.b16 %v210
      %v286 = vunpack.c.l.b16 %v211
      %v287 = vunpack.c.l.b16 %v212
      %v288 = vunpack.c.l.b16 %v213
      %v289 = vunpack.c.l.b16 %v214
      %v290 = vunpack.c.l.b16 %v215
      %v291 = vunpack.c.l.b16 %v216
      %v292 = vunpack.c.l.b16 %v217
      %v293 = vunpack.c.l.b16 %v218
      %v294 = vunpack.c.l.b16 %v219
      %v295 = vunpack.c.l.b16 %v220
      %v296 = vunpack.c.l.b16 %v221
      %v297 = vunpack.c.l.b16 %v222
      %v298 = vunpack.c.l.b16 %v223
      %v299 = vunpack.c.l.b16 %v224
      %v300 = vunpack.c.l.b16 %v225
      %v301 = vunpack.c.l.b16 %v226
      %v302 = vunpack.c.l.b16 %v227
      %v303 = vunpack.c.l.b16 %v228
      %v304 = vpack.c.b16 %v273, %v272
      %v305 = vpack.c.b16 %v275, %v274
      %v306 = vpack.c.b16 %v277, %v276
      %v307 = vpack.c.b16 %v279, %v278
      %v308 = vpack.c.b16 %v281, %v280
      %v309 = vpack.c.b16 %v283, %v282
      %v310 = vpack.c.b16 %v285, %v284
      %v311 = vpack.c.b16 %v287, %v286
      %v312 = vpack.c.b16 %v289, %v288
      %v313 = vpack.c.b16 %v291, %v290
      %v314 = vpack.c.b16 %v293, %v292
      %v315 = vpack.c.b16 %v295, %v294
      %v316 = vpack.c.b16 %v297, %v296
      %v317 = vpack.c.b16 %v299, %v298
      %v318 = vpack.c.b16 %v301, %v300
      %v319 = vpack.c.b16 %v303, %v302
      %v324 = vunpack.c.l.b16 %v229
      %v325 = vunpack.c.l.b16 %v230
      %v326 = vunpack.c.l.b16 %v231
      %v327 = vunpack.c.l.b16 %v232
      %v328 = vpack.c.b16 %v325, %v324
      %v329 = vpack.c.b16 %v327, %v326
      %vm332 = vcmask 261120
      %v334 = vsel %vm332, %v304, 0
      %v337 = vsel %vm332, %v305, 0
      %v340 = vsel %vm332, %v306, 0
      %v343 = vsel %vm332, %v307, 0
      %v346 = vsel %vm332, %v308, 0
      %v349 = vsel %vm332, %v309, 0
      %v352 = vsel %vm332, %v310, 0
      %v355 = vsel %vm332, %v311, 0
      %v358 = vsel %vm332, %v312, 0
      %v361 = vsel %vm332, %v313, 0
      %v364 = vsel %vm332, %v314, 0
      %v367 = vsel %vm332, %v315, 0
      %v370 = vsel %vm332, %v316, 0
      %v373 = vsel %vm332, %v317, 0
      %v376 = vsel %vm332, %v318, 0
      %v379 = vsel %vm332, %v319, 0
      %381 = vmatprep.subr.bf16.mxu0 0
      %382 = vmatpush1.bf16.msra.mxu0 %v328
      %383 = vmatprep.subr.bf16.mxu0 0
      %384 = vmatpush1.bf16.msra.mxu0 %v329
      %385 = vmatprep.subr.bf16.mxu0 0
      %386 = vmatpush1.bf16.msra.mxu0 0
      %387 = vmatprep.subr.bf16.mxu0 0
      %388 = vmatpush1.bf16.msra.mxu0 0
      %389 = vmatprep.subr.bf16.mxu0 0
      %390 = vmatpush1.bf16.msra.mxu0 0
      %391 = vmatprep.subr.bf16.mxu0 0
      %392 = vmatpush1.bf16.msra.mxu0 0
      %393 = vmatprep.subr.bf16.mxu0 0
      %394 = vmatpush1.bf16.msra.mxu0 0
      %395 = vmatprep.subr.bf16.mxu0 0
      %396 = vmatpush1.bf16.msra.mxu0 0
      %397 = vmatprep.subr.bf16.mxu0 0
      %398 = vmatpush1.bf16.msra.mxu0 0
      %399 = vmatprep.subr.bf16.mxu0 0
      %400 = vmatpush1.bf16.msra.mxu0 0
      %401 = vmatprep.subr.bf16.mxu0 0
      %402 = vmatpush1.bf16.msra.mxu0 0
      %403 = vmatprep.subr.bf16.mxu0 0
      %404 = vmatpush1.bf16.msra.mxu0 0
      %405 = vmatprep.subr.bf16.mxu0 0
      %406 = vmatpush1.bf16.msra.mxu0 0
      %407 = vmatprep.subr.bf16.mxu0 0
      %408 = vmatpush1.bf16.msra.mxu0 0
      %409 = vmatprep.subr.bf16.mxu0 0
      %410 = vmatpush1.bf16.msra.mxu0 0
      %411 = vmatprep.subr.bf16.mxu0 0
      %412 = vmatpush1.bf16.msra.mxu0 0
      %413 = vmatprep.mubr.bf16.mxu0 0
      %414 = vmatmul.mubr.bf16.gmra.mrb[0].mxu0 %v334
      %v415 = vpop.f32.mrb[0].mxu0
      %v416 = vadd.f32 %v238, %v415
      %v417 = vpop.f32.mrb[0].mxu0
      %v418 = vpop.f32.mrb[0].mxu0
      %v419 = vadd.f32 %v238, %v418
      %v420 = vpop.f32.mrb[0].mxu0
      %421 = vmatprep.mubr.bf16.mxu0 0
      %422 = vmatmul.mubr.bf16.gmra.mrb[0].mxu0 %v337
      %v423 = vpop.f32.mrb[0].mxu0
      %v424 = vadd.f32 %v238, %v423
      %v425 = vpop.f32.mrb[0].mxu0
      %v426 = vpop.f32.mrb[0].mxu0
      %v427 = vadd.f32 %v238, %v426
      %v428 = vpop.f32.mrb[0].mxu0
      %429 = vmatprep.mubr.bf16.mxu0 0
      %430 = vmatmul.mubr.bf16.gmra.mrb[0].mxu0 %v340
      %v431 = vpop.f32.mrb[0].mxu0
      %v432 = vadd.f32 %v238, %v431
      %v433 = vpop.f32.mrb[0].mxu0
      %v434 = vpop.f32.mrb[0].mxu0
      %v435 = vadd.f32 %v238, %v434
      %v436 = vpop.f32.mrb[0].mxu0
      %437 = vmatprep.mubr.bf16.mxu0 0
      %438 = vmatmul.mubr.bf16.gmra.mrb[0].mxu0 %v343
      %v439 = vpop.f32.mrb[0].mxu0
      %v440 = vadd.f32 %v238, %v439
      %v441 = vpop.f32.mrb[0].mxu0
      %v442 = vpop.f32.mrb[0].mxu0
      %v443 = vadd.f32 %v238, %v442
      %v444 = vpop.f32.mrb[0].mxu0
      %445 = vmatprep.mubr.bf16.mxu0 0
      %446 = vmatmul.mubr.bf16.gmra.mrb[0].mxu0 %v346
      %v447 = vpop.f32.mrb[0].mxu0
      %v448 = vadd.f32 %v238, %v447
      %v449 = vpop.f32.mrb[0].mxu0
      %v450 = vpop.f32.mrb[0].mxu0
      %v451 = vadd.f32 %v238, %v450
      %v452 = vpop.f32.mrb[0].mxu0
      %453 = vmatprep.mubr.bf16.mxu0 0
      %454 = vmatmul.mubr.bf16.gmra.mrb[0].mxu0 %v349
      %v455 = vpop.f32.mrb[0].mxu0
      %v456 = vadd.f32 %v238, %v455
      %v457 = vpop.f32.mrb[0].mxu0
      %v458 = vpop.f32.mrb[0].mxu0
      %v459 = vadd.f32 %v238, %v458
      %v460 = vpop.f32.mrb[0].mxu0
      %461 = vmatprep.mubr.bf16.mxu0 0
      %462 = vmatmul.mubr.bf16.gmra.mrb[0].mxu0 %v352
      %v463 = vpop.f32.mrb[0].mxu0
      %v464 = vadd.f32 %v238, %v463
      %v465 = vpop.f32.mrb[0].mxu0
      %v466 = vpop.f32.mrb[0].mxu0
      %v467 = vadd.f32 %v238, %v466
      %v468 = vpop.f32.mrb[0].mxu0
      %469 = vmatprep.mubr.bf16.mxu0 0
      %470 = vmatmul.mubr.bf16.gmra.mrb[0].mxu0 %v355
      %v471 = vpop.f32.mrb[0].mxu0
      %v472 = vadd.f32 %v238, %v471
      %v473 = vpop.f32.mrb[0].mxu0
      %v474 = vpop.f32.mrb[0].mxu0
      %v475 = vadd.f32 %v238, %v474
      %v476 = vpop.f32.mrb[0].mxu0
      %477 = vmatprep.mubr.bf16.mxu0 0
      %478 = vmatmul.mubr.bf16.gmra.mrb[0].mxu0 %v358
      %v479 = vpop.f32.mrb[0].mxu0
      %v480 = vadd.f32 %v238, %v479
      %v481 = vpop.f32.mrb[0].mxu0
      %v482 = vpop.f32.mrb[0].mxu0
      %v483 = vadd.f32 %v238, %v482
      %v484 = vpop.f32.mrb[0].mxu0
      %485 = vmatprep.mubr.bf16.mxu0 0
      %486 = vmatmul.mubr.bf16.gmra.mrb[0].mxu0 %v361
      %v487 = vpop.f32.mrb[0].mxu0
      %v488 = vadd.f32 %v238, %v487
      %v489 = vpop.f32.mrb[0].mxu0
      %v490 = vpop.f32.mrb[0].mxu0
      %v491 = vadd.f32 %v238, %v490
      %v492 = vpop.f32.mrb[0].mxu0
      %493 = vmatprep.mubr.bf16.mxu0 0
      %494 = vmatmul.mubr.bf16.gmra.mrb[0].mxu0 %v364
      %v495 = vpop.f32.mrb[0].mxu0
      %v496 = vadd.f32 %v238, %v495
      %v497 = vpop.f32.mrb[0].mxu0
      %v498 = vpop.f32.mrb[0].mxu0
      %v499 = vadd.f32 %v238, %v498
      %v500 = vpop.f32.mrb[0].mxu0
      %501 = vmatprep.mubr.bf16.mxu0 0
      %502 = vmatmul.mubr.bf16.gmra.mrb[0].mxu0 %v367
      %v503 = vpop.f32.mrb[0].mxu0
      %v504 = vadd.f32 %v238, %v503
      %v505 = vpop.f32.mrb[0].mxu0
      %v506 = vpop.f32.mrb[0].mxu0
      %v507 = vadd.f32 %v238, %v506
      %v508 = vpop.f32.mrb[0].mxu0
      %509 = vmatprep.mubr.bf16.mxu0 0
      %510 = vmatmul.mubr.bf16.gmra.mrb[0].mxu0 %v370
      %v511 = vpop.f32.mrb[0].mxu0
      %v512 = vadd.f32 %v238, %v511
      %v513 = vpop.f32.mrb[0].mxu0
      %v514 = vpop.f32.mrb[0].mxu0
      %v515 = vadd.f32 %v238, %v514
      %v516 = vpop.f32.mrb[0].mxu0
      %517 = vmatprep.mubr.bf16.mxu0 0
      %518 = vmatmul.mubr.bf16.gmra.mrb[0].mxu0 %v373
      %v519 = vpop.f32.mrb[0].mxu0
      %v520 = vadd.f32 %v238, %v519
      %v521 = vpop.f32.mrb[0].mxu0
      %v522 = vpop.f32.mrb[0].mxu0
      %v523 = vadd.f32 %v238, %v522
      %v524 = vpop.f32.mrb[0].mxu0
      %525 = vmatprep.mubr.bf16.mxu0 0
      %526 = vmatmul.mubr.bf16.gmra.mrb[0].mxu0 %v376
      %v527 = vpop.f32.mrb[0].mxu0
      %v528 = vadd.f32 %v238, %v527
      %v529 = vpop.f32.mrb[0].mxu0
      %v530 = vpop.f32.mrb[0].mxu0
      %v531 = vadd.f32 %v238, %v530
      %v532 = vpop.f32.mrb[0].mxu0
      %533 = vmatprep.mubr.bf16.mxu0 0
      %534 = vmatmul.mubr.bf16.gmra.mrb[0].mxu0 %v379
      %v535 = vpop.f32.mrb[0].mxu0
      %v536 = vadd.f32 %v238, %v535
      %v537 = vpop.f32.mrb[0].mxu0
      %v538 = vpop.f32.mrb[0].mxu0
      %v539 = vadd.f32 %v238, %v538
      %v540 = vpop.f32.mrb[0].mxu0
      %541 = vdwg.mxu0
      %v542 = vpack.c.bf16 %v419, %v416
      %v543 = vpack.c.bf16 %v427, %v424
      %v544 = vpack.c.bf16 %v435, %v432
      %v545 = vpack.c.bf16 %v443, %v440
      %v546 = vpack.c.bf16 %v451, %v448
      %v547 = vpack.c.bf16 %v459, %v456
      %v548 = vpack.c.bf16 %v467, %v464
      %v549 = vpack.c.bf16 %v475, %v472
      %v550 = vpack.c.bf16 %v483, %v480
      %v551 = vpack.c.bf16 %v491, %v488
      %v552 = vpack.c.bf16 %v499, %v496
      %v553 = vpack.c.bf16 %v507, %v504
      %v554 = vpack.c.bf16 %v515, %v512
      %v555 = vpack.c.bf16 %v523, %v520
      %v556 = vpack.c.bf16 %v531, %v528
      %v557 = vpack.c.bf16 %v539, %v536
      %v574 = vunpack.c.l.b16 %v542
      %v575 = vunpack.c.h.b16 %v542
      %v576 = vunpack.c.l.b16 %v543
      %v577 = vunpack.c.h.b16 %v543
      %v578 = vunpack.c.l.b16 %v544
      %v579 = vunpack.c.h.b16 %v544
      %v580 = vunpack.c.l.b16 %v545
      %v581 = vunpack.c.h.b16 %v545
      %v582 = vunpack.c.l.b16 %v546
      %v583 = vunpack.c.h.b16 %v546
      %v584 = vunpack.c.l.b16 %v547
      %v585 = vunpack.c.h.b16 %v547
      %v586 = vunpack.c.l.b16 %v548
      %v587 = vunpack.c.h.b16 %v548
      %v588 = vunpack.c.l.b16 %v549
      %v589 = vunpack.c.h.b16 %v549
      %v590 = vunpack.c.l.b16 %v550
      %v591 = vunpack.c.h.b16 %v550
      %v592 = vunpack.c.l.b16 %v551
      %v593 = vunpack.c.h.b16 %v551
      %v594 = vunpack.c.l.b16 %v552
      %v595 = vunpack.c.h.b16 %v552
      %v596 = vunpack.c.l.b16 %v553
      %v597 = vunpack.c.h.b16 %v553
      %v598 = vunpack.c.l.b16 %v554
      %v599 = vunpack.c.h.b16 %v554
      %v600 = vunpack.c.l.b16 %v555
      %v601 = vunpack.c.h.b16 %v555
      %v602 = vunpack.c.l.b16 %v556
      %v603 = vunpack.c.h.b16 %v556
      %v604 = vunpack.c.l.b16 %v557
      %v605 = vunpack.c.h.b16 %v557
      %v606 = vpack.c.b16 %v574, %v574
      %v607 = vpack.c.b16 %v575, %v575
      %v608 = vpack.c.b16 %v576, %v576
      %v609 = vpack.c.b16 %v577, %v577
      %v610 = vpack.c.b16 %v578, %v578
      %v611 = vpack.c.b16 %v579, %v579
      %v612 = vpack.c.b16 %v580, %v580
      %v613 = vpack.c.b16 %v581, %v581
      %v614 = vpack.c.b16 %v582, %v582
      %v615 = vpack.c.b16 %v583, %v583
      %v616 = vpack.c.b16 %v584, %v584
      %v617 = vpack.c.b16 %v585, %v585
      %v618 = vpack.c.b16 %v586, %v586
      %v619 = vpack.c.b16 %v587, %v587
      %v620 = vpack.c.b16 %v588, %v588
      %v621 = vpack.c.b16 %v589, %v589
      %v622 = vpack.c.b16 %v590, %v590
      %v623 = vpack.c.b16 %v591, %v591
      %v624 = vpack.c.b16 %v592, %v592
      %v625 = vpack.c.b16 %v593, %v593
      %v626 = vpack.c.b16 %v594, %v594
      %v627 = vpack.c.b16 %v595, %v595
      %v628 = vpack.c.b16 %v596, %v596
      %v629 = vpack.c.b16 %v597, %v597
      %v630 = vpack.c.b16 %v598, %v598
      %v631 = vpack.c.b16 %v599, %v599
      %v632 = vpack.c.b16 %v600, %v600
      %v633 = vpack.c.b16 %v601, %v601
      %v634 = vpack.c.b16 %v602, %v602
      %v635 = vpack.c.b16 %v603, %v603
      %v636 = vpack.c.b16 %v604, %v604
      %v637 = vpack.c.b16 %v605, %v605
      %670 = vst [vmem:[%s192] sm:$0xf] %v606
      %671 = vst [vmem:[%s192 + $0x4] sm:$0xf] %v607
      %672 = vst [vmem:[%s192 + $0x8] sm:$0xf] %v608
      %673 = vst [vmem:[%s192 + $0xc] sm:$0xf] %v609
      %674 = vst [vmem:[%s192 + $0x10] sm:$0xf] %v610
      %675 = vst [vmem:[%s192 + $0x14] sm:$0xf] %v611
      %676 = vst [vmem:[%s192 + $0x18] sm:$0xf] %v612
      %677 = vst [vmem:[%s192 + $0x1c] sm:$0xf] %v613
      %678 = vst [vmem:[%s192 + $0x20] sm:$0xf] %v614
      %679 = vst [vmem:[%s192 + $0x24] sm:$0xf] %v615
      %680 = vst [vmem:[%s192 + $0x28] sm:$0xf] %v616
      %681 = vst [vmem:[%s192 + $0x2c] sm:$0xf] %v617
      %682 = vst [vmem:[%s192 + $0x30] sm:$0xf] %v618
      %683 = vst [vmem:[%s192 + $0x34] sm:$0xf] %v619
      %684 = vst [vmem:[%s192 + $0x38] sm:$0xf] %v620
      %685 = vst [vmem:[%s192 + $0x3c] sm:$0xf] %v621
      %686 = vst [vmem:[%s192 + $0x40] sm:$0xf] %v622
      %687 = vst [vmem:[%s192 + $0x44] sm:$0xf] %v623
      %688 = vst [vmem:[%s192 + $0x48] sm:$0xf] %v624
      %689 = vst [vmem:[%s192 + $0x4c] sm:$0xf] %v625
      %690 = vst [vmem:[%s192 + $0x50] sm:$0xf] %v626
      %691 = vst [vmem:[%s192 + $0x54] sm:$0xf] %v627
      %692 = vst [vmem:[%s192 + $0x58] sm:$0xf] %v628
      %693 = vst [vmem:[%s192 + $0x5c] sm:$0xf] %v629
      %694 = vst [vmem:[%s192 + $0x60] sm:$0xf] %v630
      %695 = vst [vmem:[%s192 + $0x64] sm:$0xf] %v631
      %696 = vst [vmem:[%s192 + $0x68] sm:$0xf] %v632
      %697 = vst [vmem:[%s192 + $0x6c] sm:$0xf] %v633
      %698 = vst [vmem:[%s192 + $0x70] sm:$0xf] %v634
      %699 = vst [vmem:[%s192 + $0x74] sm:$0xf] %v635
      %700 = vst [vmem:[%s192 + $0x78] sm:$0xf] %v636
      %701 = vst [vmem:[%s192 + $0x7c] sm:$0xf] %v637
      %p702 = scmp.lt.s32.totalorder %s18, 1
      %s703 = scalar_select %p702, %s18, 1
      %p704 = scmp.lt.s32.totalorder %s19, 0
      %s705 = scalar_select %p704, %s19, 0
      %s706 = smul.addr %s705, 32
      %s707 = smul.addr %s703, 32
      %s708 = sadd.s32 %s706, %s707
      %s709 = smul.addr %s708, 4
      %s710 = scalar_lea.vmem %s3, %s709
      // Predicated region
      $region33: #{_lambda_.6} parent=31 // pred_check
        %p711 = pneg %p114
      $region34: #{_lambda_.6} parent=31 // pred_check_branch
        %713 = sbr.rel (%p711) target = $region36
      $region35: #{_lambda_.6} parent=31 // pred_region
        _
      $region36: #{_lambda_.6} parent=31 // pred_fallthru
        _
    $region32: #{_lambda_.6} parent=5 // pred_fallthru
      _
    %p714 = scmp.le.s32.totalorder 2, %s9
    // Predicated region
    $region37: #{_lambda_.6} parent=5 // pred_check
      %p715 = pneg %p714
    $region38: #{_lambda_.6} parent=5 // pred_check_branch
      %717 = sbr.rel (%p715) target = $region40
    $region39: #{_lambda_.6} parent=5 // pred_region
      %s718 = ssub.s32 %s9, 2
      // Predicated region
      $region41: #{_lambda_.6} parent=39 // pred_check
        %p719 = pneg %p120
      $region42: #{_lambda_.6} parent=39 // pred_check_branch
        %721 = sbr.rel (%p719) target = $region44
      $region43: #{_lambda_.6} parent=39 // pred_region
        %p722 = scmp.lt.s32.totalorder %s20, 1
        %s723 = scalar_select %p722, %s20, 1
        %p724 = scmp.lt.s32.totalorder %s21, 0
        %s725 = scalar_select %p724, %s21, 0
        %s726 = smul.addr %s725, 32
        %s727 = smul.addr %s723, 32
        %s728 = sadd.s32 %s726, %s727
        %s729 = smul.addr %s728, 4
        %s730 = scalar_lea.vmem %s3, %s729
      $region44: #{_lambda_.6} parent=39 // pred_fallthru
        _
    $region40: #{_lambda_.6} parent=5 // pred_fallthru
      _
  $region6: #{_lambda_.6} parent=0 // loop_footer
    %s13 = sadd.s32 1, %s9
  $region7: #{_lambda_.6} parent=0 // loop_footer_branch
    %8 = sbr.rel target = $region3
  $region8: #{_lambda_.6} parent=0 // loop_exit
    _

// kernel: _lambda_.7
$region0: #{_lambda_.7}
  #allocation0 [shape = 'u32[]', space=smem, size = 0x4, offset = 0x4, fixed_abs, tag = 'smem constant byte address 0x4 - core index']
  #allocation1 [shape = 'u32[144,128]{1,0:T(1,128)}', space=vmem, size = 0x12000, scoped, tag = 'internal scratch']
  %s0 = inlined_call_operand.vmem [shape: bf16[2,1,16,16,32], index: 0, kind: input, shape index: {}]
  %s1 = inlined_call_operand.vmem [shape: bf16[288,128], index: 1, kind: input, shape index: {}]
  %s2 = inlined_call_operand.vmem [shape: f32[1,128], index: 2, kind: input, shape index: {}]
  %s3 = inlined_call_operand.vmem [shape: f32[1,32], index: 3, kind: input, shape index: {}]
  %s4 = inlined_call_operand.vmem [shape: f32[1,128], index: 4, kind: input, shape index: {}]
  %s5 = inlined_call_operand.vmem [shape: bf16[2,1,16,16,128], index: 5, kind: output, shape index: {}]
  %s6 = sld [smem:[#allocation0]]
  $region53: #{_lambda_.7} parent=0
    _
  %s8 = ssub.s32 1, %s6
  %s9 = scalar_select 0, %s8, %s6
  loop: start=0, step=1, limit=4
  $region2: #{_lambda_.7} parent=0 // loop_pre_header
    _
  $region3: #{_lambda_.7} parent=0 // loop_header
    %s11 = sphi 0, %s15
    %p12 = scmp.ge.s32.totalorder %s11, 4
    %s18 = sphi 0, %s30
    %s19 = sphi 0, %s26
    %s20 = sphi 0, %s18
    %s21 = sphi 0, %s19
    %s22 = sphi 0, %s20
    %s23 = sphi 0, %s21
    %s33 = sphi 0, %s35
    %s36 = sphi 0, %s33
    %s37 = sphi 0, %s36
    %s53 = sphi 0, %s37
    %s57 = sphi 0, %s57
    %s59 = sphi 0, %s57
    %s60 = sphi 0, %s59
    %s74 = sphi 0, %s60
    %s78 = sphi 0, %s78
    %s80 = sphi 0, %s78
    %s81 = sphi 0, %s80
    %s95 = sphi 0, %s81
    %s99 = sphi 0, %s99
    %s101 = sphi 0, %s99
    %s102 = sphi 0, %s101
    %s116 = sphi 0, %s102
    %s120 = sphi 0, %s120
    %s122 = sphi 0, %s120
    %s123 = sphi 0, %s122
    %s137 = sphi 0, %s123
    %s145 = sphi 0, %s147
    %s148 = sphi 0, %s145
    %s149 = sphi 0, %s148
    %s165 = sphi 0, %s149
  $region4: #{_lambda_.7} parent=0 // loop_header_branch
    %14 = sbr.rel (%p12) target = $region8
  $region5: #{_lambda_.7} parent=0 // loop_body
    %s16 = ssub.s32 %s11, 1
    %s17 = ssub.s32 %s11, 2
    %s24 = sadd.s32 1, %s19
    %p25 = scmp.ge.s32.totalorder %s24, 1
    %s26 = scalar_select %p25, 0, %s24
    %s27 = sadd.s32 1, %s18
    %s28 = scalar_select %p25, %s27, %s18
    %p29 = scmp.ge.s32.totalorder %s28, 2
    %s30 = scalar_select %p29, 0, %s28
    %s31 = ssub.s32 %s18, %s30
    %p32 = scmp.eq.s32.totalorder %s31, 0
    %s34 = sadd.s32 %s33, 1
    %s35 = scalar_select %p32, %s33, %s34
    %p38 = pneg %p32
    %p39 = scmp.eq.s32.totalorder %s11, 1
    %p40 = por %p38, %p39
    %p41 = scmp.ne.s32.totalorder %s33, %s36
    %p42 = scmp.eq.s32.totalorder %s11, 0
    %p43 = por %p41, %p42
    %p44 = scmp.ne.s32.totalorder %s33, %s36
    %p45 = scmp.eq.s32.totalorder %s16, 1
    %p46 = por %p44, %p45
    %p47 = scmp.ne.s32.totalorder %s36, %s37
    %p48 = scmp.eq.s32.totalorder %s16, 0
    %p49 = por %p47, %p48
    %p50 = scmp.ne.s32.totalorder %s36, %s37
    %p51 = scmp.eq.s32.totalorder %s17, 1
    %p52 = por %p50, %p51
    %p54 = scmp.ne.s32.totalorder %s37, %s53
    %p55 = scmp.eq.s32.totalorder %s17, 0
    %p56 = por %p54, %p55
    %s58 = sadd.s32 %s57, 1
    %p61 = scmp.eq.s32.totalorder %s11, 1
    %p62 = scmp.ne.s32.totalorder %s57, %s59
    %p63 = scmp.eq.s32.totalorder %s11, 0
    %p64 = por %p62, %p63
    %p65 = scmp.ne.s32.totalorder %s57, %s59
    %p66 = scmp.eq.s32.totalorder %s16, 1
    %p67 = por %p65, %p66
    %p68 = scmp.ne.s32.totalorder %s59, %s60
    %p69 = scmp.eq.s32.totalorder %s16, 0
    %p70 = por %p68, %p69
    %p71 = scmp.ne.s32.totalorder %s59, %s60
    %p72 = scmp.eq.s32.totalorder %s17, 1
    %p73 = por %p71, %p72
    %p75 = scmp.ne.s32.totalorder %s60, %s74
    %p76 = scmp.eq.s32.totalorder %s17, 0
    %p77 = por %p75, %p76
    %s79 = sadd.s32 %s78, 1
    %p82 = scmp.eq.s32.totalorder %s11, 1
    %p83 = scmp.ne.s32.totalorder %s78, %s80
    %p84 = scmp.eq.s32.totalorder %s11, 0
    %p85 = por %p83, %p84
    %p86 = scmp.ne.s32.totalorder %s78, %s80
    %p87 = scmp.eq.s32.totalorder %s16, 1
    %p88 = por %p86, %p87
    %p89 = scmp.ne.s32.totalorder %s80, %s81
    %p90 = scmp.eq.s32.totalorder %s16, 0
    %p91 = por %p89, %p90
    %p92 = scmp.ne.s32.totalorder %s80, %s81
    %p93 = scmp.eq.s32.totalorder %s17, 1
    %p94 = por %p92, %p93
    %p96 = scmp.ne.s32.totalorder %s81, %s95
    %p97 = scmp.eq.s32.totalorder %s17, 0
    %p98 = por %p96, %p97
    %s100 = sadd.s32 %s99, 1
    %p103 = scmp.eq.s32.totalorder %s11, 1
    %p104 = scmp.ne.s32.totalorder %s99, %s101
    %p105 = scmp.eq.s32.totalorder %s11, 0
    %p106 = por %p104, %p105
    %p107 = scmp.ne.s32.totalorder %s99, %s101
    %p108 = scmp.eq.s32.totalorder %s16, 1
    %p109 = por %p107, %p108
    %p110 = scmp.ne.s32.totalorder %s101, %s102
    %p111 = scmp.eq.s32.totalorder %s16, 0
    %p112 = por %p110, %p111
    %p113 = scmp.ne.s32.totalorder %s101, %s102
    %p114 = scmp.eq.s32.totalorder %s17, 1
    %p115 = por %p113, %p114
    %p117 = scmp.ne.s32.totalorder %s102, %s116
    %p118 = scmp.eq.s32.totalorder %s17, 0
    %p119 = por %p117, %p118
    %s121 = sadd.s32 %s120, 1
    %p124 = scmp.eq.s32.totalorder %s11, 1
    %p125 = scmp.ne.s32.totalorder %s120, %s122
    %p126 = scmp.eq.s32.totalorder %s11, 0
    %p127 = por %p125, %p126
    %p128 = scmp.ne.s32.totalorder %s120, %s122
    %p129 = scmp.eq.s32.totalorder %s16, 1
    %p130 = por %p128, %p129
    %p131 = scmp.ne.s32.totalorder %s122, %s123
    %p132 = scmp.eq.s32.totalorder %s16, 0
    %p133 = por %p131, %p132
    %p134 = scmp.ne.s32.totalorder %s122, %s123
    %p135 = scmp.eq.s32.totalorder %s17, 1
    %p136 = por %p134, %p135
    %p138 = scmp.ne.s32.totalorder %s123, %s137
    %p139 = scmp.eq.s32.totalorder %s17, 0
    %p140 = por %p138, %p139
    %s141 = ssub.s32 %s18, %s30
    %s142 = ssub.s32 %s19, %s26
    %s143 = sor.u32 %s141, %s142
    %p144 = scmp.eq.s32.totalorder %s143, 0
    %s146 = sadd.s32 %s145, 1
    %s147 = scalar_select %p144, %s145, %s146
    %p150 = pneg %p144
    %p151 = scmp.eq.s32.totalorder %s11, 1
    %p152 = por %p150, %p151
    %p153 = scmp.ne.s32.totalorder %s145, %s148
    %p154 = scmp.eq.s32.totalorder %s11, 0
    %p155 = por %p153, %p154
    %p156 = scmp.ne.s32.totalorder %s145, %s148
    %p157 = scmp.eq.s32.totalorder %s16, 1
    %p158 = por %p156, %p157
    %p159 = scmp.ne.s32.totalorder %s148, %s149
    %p160 = scmp.eq.s32.totalorder %s16, 0
    %p161 = por %p159, %p160
    %p162 = scmp.ne.s32.totalorder %s148, %s149
    %p163 = scmp.eq.s32.totalorder %s17, 1
    %p164 = por %p162, %p163
    %p166 = scmp.ne.s32.totalorder %s149, %s165
    %p167 = scmp.eq.s32.totalorder %s17, 0
    %p168 = por %p166, %p167
    %p169 = scmp.le.s32.totalorder 1, %s11
    %p170 = scmp.lt.s32.totalorder %s11, 3
    %p171 = pnand %p169, %p170
    %p172 = pneg %p171
    // Predicated region
    $region9: #{_lambda_.7} parent=5 // pred_check
      _
    $region10: #{_lambda_.7} parent=5 // pred_check_branch
      %174 = sbr.rel (%p171) target = $region12
    $region11: #{_lambda_.7} parent=5 // pred_region
      %s175 = ssub.s32 %s11, 1
      // Predicated region
      $region13: #{_lambda_.7} parent=11 // pred_check
        %p176 = pneg %p70
      $region14: #{_lambda_.7} parent=11 // pred_check_branch
        %178 = sbr.rel (%p176) target = $region16
      $region15: #{_lambda_.7} parent=11 // pred_region
        _
      $region16: #{_lambda_.7} parent=11 // pred_fallthru
        _
      // Predicated region
      $region17: #{_lambda_.7} parent=11 // pred_check
        %p179 = pneg %p91
      $region18: #{_lambda_.7} parent=11 // pred_check_branch
        %181 = sbr.rel (%p179) target = $region20
      $region19: #{_lambda_.7} parent=11 // pred_region
        _
      $region20: #{_lambda_.7} parent=11 // pred_fallthru
        _
      // Predicated region
      $region21: #{_lambda_.7} parent=11 // pred_check
        %p182 = pneg %p112
      $region22: #{_lambda_.7} parent=11 // pred_check_branch
        %184 = sbr.rel (%p182) target = $region24
      $region23: #{_lambda_.7} parent=11 // pred_region
        _
      $region24: #{_lambda_.7} parent=11 // pred_fallthru
        _
      // Predicated region
      $region25: #{_lambda_.7} parent=11 // pred_check
        %p185 = pneg %p133
      $region26: #{_lambda_.7} parent=11 // pred_check_branch
        %187 = sbr.rel (%p185) target = $region28
      $region27: #{_lambda_.7} parent=11 // pred_region
        _
      $region28: #{_lambda_.7} parent=11 // pred_fallthru
        _
    $region12: #{_lambda_.7} parent=5 // pred_fallthru
      _
    %p188 = scmp.lt.s32.totalorder %s11, 2
    // Predicated region
    $region29: #{_lambda_.7} parent=5 // pred_check
      %p189 = pneg %p188
    $region30: #{_lambda_.7} parent=5 // pred_check_branch
      %191 = sbr.rel (%p189) target = $region32
    $region31: #{_lambda_.7} parent=5 // pred_region
      // Predicated region
      $region33: #{_lambda_.7} parent=31 // pred_check
        %p192 = pneg %p43
      $region34: #{_lambda_.7} parent=31 // pred_check_branch
        %194 = sbr.rel (%p192) target = $region36
      $region35: #{_lambda_.7} parent=31 // pred_region
        %p195 = scmp.lt.s32.totalorder %s18, 1
        %s196 = scalar_select %p195, %s18, 1
        %s197 = smul.addr %s196, 32
        %s198 = smul.addr %s197, 4
        %s199 = scalar_lea.vmem %s0, %s198
      $region36: #{_lambda_.7} parent=31 // pred_fallthru
        _
    $region32: #{_lambda_.7} parent=5 // pred_fallthru
      _
    %p200 = scmp.le.s32.totalorder 1, %s11
    %p201 = scmp.lt.s32.totalorder %s11, 3
    %p202 = pnand %p200, %p201
    %p203 = pneg %p202
    // Predicated region
    $region37: #{_lambda_.7} parent=5 // pred_check
      _
    $region38: #{_lambda_.7} parent=5 // pred_check_branch
      %205 = sbr.rel (%p202) target = $region40
    $region39: #{_lambda_.7} parent=5 // pred_region
      %s206 = ssub.s32 %s11, 1
      %p207 = scmp.lt.s32.totalorder %s20, 1
      %s208 = scalar_select %p207, %s20, 1
      %s209 = smul.addr %s208, 32
      %s210 = smul.addr %s209, 4
      %s211 = scalar_lea.vmem %s0, %s210
      %p212 = pneg %p49
      %p213 = pneg %p46
      %p214 = pneg %p70
      %p215 = pneg %p67
      %p216 = pneg %p91
      %p217 = pneg %p88
      %p218 = pneg %p112
      %p219 = pneg %p109
      %p220 = pneg %p133
      %p221 = pneg %p130
      %p222 = pneg %p161
      %p223 = pneg %p158
      %p224 = scmp.lt.s32.totalorder %s20, 1
      %s225 = scalar_select %p224, %s20, 1
      %p226 = scmp.lt.s32.totalorder %s21, 0
      %s227 = scalar_select %p226, %s21, 0
      %s228 = smul.addr %s227, 32
      %s229 = smul.addr %s225, 32
      %s230 = sadd.s32 %s228, %s229
      %s231 = smul.addr %s230, 4
      %s232 = scalar_lea.vmem %s5, %s231
      %p233 = scmp.lt.s32.totalorder %s20, 1
      %s234 = scalar_select %p233, %s20, 1
      %s235 = smul.addr %s234, 32
      %s236 = smul.addr %s235, 4
      %s237 = scalar_lea.vmem %s0, %s236
      %p238 = scmp.lt.s32.totalorder %s20, 1
      %s239 = scalar_select %p238, %s20, 1
      %p240 = scmp.lt.s32.totalorder %s21, 0
      %s241 = scalar_select %p240, %s21, 0
      %s242 = smul.addr %s241, 32
      %s243 = smul.addr %s239, 32
      %s244 = sadd.s32 %s242, %s243
      %s245 = smul.addr %s244, 4
      %s246 = scalar_lea.vmem %s5, %s245
      %s248 = smul.u32 %s21, 32
      %s249 = smul.addr %s248, 4
      %s250 = scalar_lea.vmem %s237, %s249
      %v251 = vld [vmem:[%s250] sm:$0xf]
      %v252 = vld [vmem:[%s250 + $0x4] sm:$0xf]
      %v253 = vld [vmem:[%s250 + $0x8] sm:$0xf]
      %v254 = vld [vmem:[%s250 + $0xc] sm:$0xf]
      %v255 = vld [vmem:[%s250 + $0x10] sm:$0xf]
      %v256 = vld [vmem:[%s250 + $0x14] sm:$0xf]
      %v257 = vld [vmem:[%s250 + $0x18] sm:$0xf]
      %v258 = vld [vmem:[%s250 + $0x1c] sm:$0xf]
      %v259 = vld [vmem:[%s250 + $0x20] sm:$0xf]
      %v260 = vld [vmem:[%s250 + $0x24] sm:$0xf]
      %v261 = vld [vmem:[%s250 + $0x28] sm:$0xf]
      %v262 = vld [vmem:[%s250 + $0x2c] sm:$0xf]
      %v263 = vld [vmem:[%s250 + $0x30] sm:$0xf]
      %v264 = vld [vmem:[%s250 + $0x34] sm:$0xf]
      %v265 = vld [vmem:[%s250 + $0x38] sm:$0xf]
      %v266 = vld [vmem:[%s250 + $0x3c] sm:$0xf]
      %v267 = vld [vmem:[%s250 + $0x40] sm:$0xf]
      %v268 = vld [vmem:[%s250 + $0x44] sm:$0xf]
      %v269 = vld [vmem:[%s250 + $0x48] sm:$0xf]
      %v270 = vld [vmem:[%s250 + $0x4c] sm:$0xf]
      %v271 = vld [vmem:[%s250 + $0x50] sm:$0xf]
      %v272 = vld [vmem:[%s250 + $0x54] sm:$0xf]
      %v273 = vld [vmem:[%s250 + $0x58] sm:$0xf]
      %v274 = vld [vmem:[%s250 + $0x5c] sm:$0xf]
      %v275 = vld [vmem:[%s250 + $0x60] sm:$0xf]
      %v276 = vld [vmem:[%s250 + $0x64] sm:$0xf]
      %v277 = vld [vmem:[%s250 + $0x68] sm:$0xf]
      %v278 = vld [vmem:[%s250 + $0x6c] sm:$0xf]
      %v279 = vld [vmem:[%s250 + $0x70] sm:$0xf]
      %v280 = vld [vmem:[%s250 + $0x74] sm:$0xf]
      %v281 = vld [vmem:[%s250 + $0x78] sm:$0xf]
      %v282 = vld [vmem:[%s250 + $0x7c] sm:$0xf]
      %v283 = vunpack.c.l.bf16 %v251
      %v284 = vunpack.c.l.bf16 %v252
      %v285 = vunpack.c.l.bf16 %v253
      %v286 = vunpack.c.l.bf16 %v254
      %v287 = vunpack.c.l.bf16 %v255
      %v288 = vunpack.c.l.bf16 %v256
      %v289 = vunpack.c.l.bf16 %v257
      %v290 = vunpack.c.l.bf16 %v258
      %v291 = vunpack.c.l.bf16 %v259
      %v292 = vunpack.c.l.bf16 %v260
      %v293 = vunpack.c.l.bf16 %v261
      %v294 = vunpack.c.l.bf16 %v262
      %v295 = vunpack.c.l.bf16 %v263
      %v296 = vunpack.c.l.bf16 %v264
      %v297 = vunpack.c.l.bf16 %v265
      %v298 = vunpack.c.l.bf16 %v266
      %v299 = vunpack.c.l.bf16 %v267
      %v300 = vunpack.c.l.bf16 %v268
      %v301 = vunpack.c.l.bf16 %v269
      %v302 = vunpack.c.l.bf16 %v270
      %v303 = vunpack.c.l.bf16 %v271
      %v304 = vunpack.c.l.bf16 %v272
      %v305 = vunpack.c.l.bf16 %v273
      %v306 = vunpack.c.l.bf16 %v274
      %v307 = vunpack.c.l.bf16 %v275
      %v308 = vunpack.c.l.bf16 %v276
      %v309 = vunpack.c.l.bf16 %v277
      %v310 = vunpack.c.l.bf16 %v278
      %v311 = vunpack.c.l.bf16 %v279
      %v312 = vunpack.c.l.bf16 %v280
      %v313 = vunpack.c.l.bf16 %v281
      %v314 = vunpack.c.l.bf16 %v282
      %v315 = vmul.f32 %v283, %v283
      %v316 = vmul.f32 %v284, %v284
      %v317 = vmul.f32 %v285, %v285
      %v318 = vmul.f32 %v286, %v286
      %v319 = vmul.f32 %v287, %v287
      %v320 = vmul.f32 %v288, %v288
      %v321 = vmul.f32 %v289, %v289
      %v322 = vmul.f32 %v290, %v290
      %v323 = vmul.f32 %v291, %v291
      %v324 = vmul.f32 %v292, %v292
      %v325 = vmul.f32 %v293, %v293
      %v326 = vmul.f32 %v294, %v294
      %v327 = vmul.f32 %v295, %v295
      %v328 = vmul.f32 %v296, %v296
      %v329 = vmul.f32 %v297, %v297
      %v330 = vmul.f32 %v298, %v298
      %v331 = vmul.f32 %v299, %v299
      %v332 = vmul.f32 %v300, %v300
      %v333 = vmul.f32 %v301, %v301
      %v334 = vmul.f32 %v302, %v302
      %v335 = vmul.f32 %v303, %v303
      %v336 = vmul.f32 %v304, %v304
      %v337 = vmul.f32 %v305, %v305
      %v338 = vmul.f32 %v306, %v306
      %v339 = vmul.f32 %v307, %v307
      %v340 = vmul.f32 %v308, %v308
      %v341 = vmul.f32 %v309, %v309
      %v342 = vmul.f32 %v310, %v310
      %v343 = vmul.f32 %v311, %v311
      %v344 = vmul.f32 %v312, %v312
      %v345 = vmul.f32 %v313, %v313
      %v346 = vmul.f32 %v314, %v314
      %vm347 = vcmask 261120
      %v348 = vsel %vm347, %v315, 0.0
      %349 = vadd.xlane.f32.xlu0 %v348
      %v350 = vpop.xlane.xlu0 %349
      %v351 = vsel %vm347, %v316, 0.0
      %352 = vadd.xlane.f32.xlu0 %v351
      %v353 = vpop.xlane.xlu0 %352
      %v354 = vsel %vm347, %v317, 0.0
      %355 = vadd.xlane.f32.xlu0 %v354
      %v356 = vpop.xlane.xlu0 %355
      %v357 = vsel %vm347, %v318, 0.0
      %358 = vadd.xlane.f32.xlu0 %v357
      %v359 = vpop.xlane.xlu0 %358
      %v360 = vsel %vm347, %v319, 0.0
      %361 = vadd.xlane.f32.xlu0 %v360
      %v362 = vpop.xlane.xlu0 %361
      %v363 = vsel %vm347, %v320, 0.0
      %364 = vadd.xlane.f32.xlu0 %v363
      %v365 = vpop.xlane.xlu0 %364
      %v366 = vsel %vm347, %v321, 0.0
      %367 = vadd.xlane.f32.xlu0 %v366
      %v368 = vpop.xlane.xlu0 %367
      %v369 = vsel %vm347, %v322, 0.0
      %370 = vadd.xlane.f32.xlu0 %v369
      %v371 = vpop.xlane.xlu0 %370
      %v372 = vsel %vm347, %v323, 0.0
      %373 = vadd.xlane.f32.xlu0 %v372
      %v374 = vpop.xlane.xlu0 %373
      %v375 = vsel %vm347, %v324, 0.0
      %376 = vadd.xlane.f32.xlu0 %v375
      %v377 = vpop.xlane.xlu0 %376
      %v378 = vsel %vm347, %v325, 0.0
      %379 = vadd.xlane.f32.xlu0 %v378
      %v380 = vpop.xlane.xlu0 %379
      %v381 = vsel %vm347, %v326, 0.0
      %382 = vadd.xlane.f32.xlu0 %v381
      %v383 = vpop.xlane.xlu0 %382
      %v384 = vsel %vm347, %v327, 0.0
      %385 = vadd.xlane.f32.xlu0 %v384
      %v386 = vpop.xlane.xlu0 %385
      %v387 = vsel %vm347, %v328, 0.0
      %388 = vadd.xlane.f32.xlu0 %v387
      %v389 = vpop.xlane.xlu0 %388
      %v390 = vsel %vm347, %v329, 0.0
      %391 = vadd.xlane.f32.xlu0 %v390
      %v392 = vpop.xlane.xlu0 %391
      %v393 = vsel %vm347, %v330, 0.0
      %394 = vadd.xlane.f32.xlu0 %v393
      %v395 = vpop.xlane.xlu0 %394
      %v396 = vsel %vm347, %v331, 0.0
      %397 = vadd.xlane.f32.xlu0 %v396
      %v398 = vpop.xlane.xlu0 %397
      %v399 = vsel %vm347, %v332, 0.0
      %400 = vadd.xlane.f32.xlu0 %v399
      %v401 = vpop.xlane.xlu0 %400
      %v402 = vsel %vm347, %v333, 0.0
      %403 = vadd.xlane.f32.xlu0 %v402
      %v404 = vpop.xlane.xlu0 %403
      %v405 = vsel %vm347, %v334, 0.0
      %406 = vadd.xlane.f32.xlu0 %v405
      %v407 = vpop.xlane.xlu0 %406
      %v408 = vsel %vm347, %v335, 0.0
      %409 = vadd.xlane.f32.xlu0 %v408
      %v410 = vpop.xlane.xlu0 %409
      %v411 = vsel %vm347, %v336, 0.0
      %412 = vadd.xlane.f32.xlu0 %v411
      %v413 = vpop.xlane.xlu0 %412
      %v414 = vsel %vm347, %v337, 0.0
      %415 = vadd.xlane.f32.xlu0 %v414
      %v416 = vpop.xlane.xlu0 %415
      %v417 = vsel %vm347, %v338, 0.0
      %418 = vadd.xlane.f32.xlu0 %v417
      %v419 = vpop.xlane.xlu0 %418
      %v420 = vsel %vm347, %v339, 0.0
      %421 = vadd.xlane.f32.xlu0 %v420
      %v422 = vpop.xlane.xlu0 %421
      %v423 = vsel %vm347, %v340, 0.0
      %424 = vadd.xlane.f32.xlu0 %v423
      %v425 = vpop.xlane.xlu0 %424
      %v426 = vsel %vm347, %v341, 0.0
      %427 = vadd.xlane.f32.xlu0 %v426
      %v428 = vpop.xlane.xlu0 %427
      %v429 = vsel %vm347, %v342, 0.0
      %430 = vadd.xlane.f32.xlu0 %v429
      %v431 = vpop.xlane.xlu0 %430
      %v432 = vsel %vm347, %v343, 0.0
      %433 = vadd.xlane.f32.xlu0 %v432
      %v434 = vpop.xlane.xlu0 %433
      %v435 = vsel %vm347, %v344, 0.0
      %436 = vadd.xlane.f32.xlu0 %v435
      %v437 = vpop.xlane.xlu0 %436
      %v438 = vsel %vm347, %v345, 0.0
      %439 = vadd.xlane.f32.xlu0 %v438
      %v440 = vpop.xlane.xlu0 %439
      %v441 = vsel %vm347, %v346, 0.0
      %442 = vadd.xlane.f32.xlu0 %v441
      %v443 = vpop.xlane.xlu0 %442
      %v444 = vrsqrt.pop %v350
      %v445 = vmul.f32 %v350, %v444
      %vm446 = vcmp.eq.f32.partialorder %v350, inf
      %v447 = vsel %vm446, %v350, %v445
      %vm448 = vcmp.eq.f32.partialorder %v350, 0.0
      %v449 = vand.u32 %v350, 2147483648
      %v450 = vsel %vm448, %v449, %v447
      %v451 = vrsqrt.pop %v353
      %v452 = vmul.f32 %v353, %v451
      %vm453 = vcmp.eq.f32.partialorder %v353, inf
      %v454 = vsel %vm453, %v353, %v452
      %vm455 = vcmp.eq.f32.partialorder %v353, 0.0
      %v456 = vand.u32 %v353, 2147483648
      %v457 = vsel %vm455, %v456, %v454
      %v458 = vrsqrt.pop %v356
      %v459 = vmul.f32 %v356, %v458
      %vm460 = vcmp.eq.f32.partialorder %v356, inf
      %v461 = vsel %vm460, %v356, %v459
      %vm462 = vcmp.eq.f32.partialorder %v356, 0.0
      %v463 = vand.u32 %v356, 2147483648
      %v464 = vsel %vm462, %v463, %v461
      %v465 = vrsqrt.pop %v359
      %v466 = vmul.f32 %v359, %v465
      %vm467 = vcmp.eq.f32.partialorder %v359, inf
      %v468 = vsel %vm467, %v359, %v466
      %vm469 = vcmp.eq.f32.partialorder %v359, 0.0
      %v470 = vand.u32 %v359, 2147483648
      %v471 = vsel %vm469, %v470, %v468
      %v472 = vrsqrt.pop %v362
      %v473 = vmul.f32 %v362, %v472
      %vm474 = vcmp.eq.f32.partialorder %v362, inf
      %v475 = vsel %vm474, %v362, %v473
      %vm476 = vcmp.eq.f32.partialorder %v362, 0.0
      %v477 = vand.u32 %v362, 2147483648
      %v478 = vsel %vm476, %v477, %v475
      %v479 = vrsqrt.pop %v365
      %v480 = vmul.f32 %v365, %v479
      %vm481 = vcmp.eq.f32.partialorder %v365, inf
      %v482 = vsel %vm481, %v365, %v480
      %vm483 = vcmp.eq.f32.partialorder %v365, 0.0
      %v484 = vand.u32 %v365, 2147483648
      %v485 = vsel %vm483, %v484, %v482
      %v486 = vrsqrt.pop %v368
      %v487 = vmul.f32 %v368, %v486
      %vm488 = vcmp.eq.f32.partialorder %v368, inf
      %v489 = vsel %vm488, %v368, %v487
      %vm490 = vcmp.eq.f32.partialorder %v368, 0.0
      %v491 = vand.u32 %v368, 2147483648
      %v492 = vsel %vm490, %v491, %v489
      %v493 = vrsqrt.pop %v371
      %v494 = vmul.f32 %v371, %v493
      %vm495 = vcmp.eq.f32.partialorder %v371, inf
      %v496 = vsel %vm495, %v371, %v494
      %vm497 = vcmp.eq.f32.partialorder %v371, 0.0
      %v498 = vand.u32 %v371, 2147483648
      %v499 = vsel %vm497, %v498, %v496
      %v500 = vrsqrt.pop %v374
      %v501 = vmul.f32 %v374, %v500
      %vm502 = vcmp.eq.f32.partialorder %v374, inf
      %v503 = vsel %vm502, %v374, %v501
      %vm504 = vcmp.eq.f32.partialorder %v374, 0.0
      %v505 = vand.u32 %v374, 2147483648
      %v506 = vsel %vm504, %v505, %v503
      %v507 = vrsqrt.pop %v377
      %v508 = vmul.f32 %v377, %v507
      %vm509 = vcmp.eq.f32.partialorder %v377, inf
      %v510 = vsel %vm509, %v377, %v508
      %vm511 = vcmp.eq.f32.partialorder %v377, 0.0
      %v512 = vand.u32 %v377, 2147483648
      %v513 = vsel %vm511, %v512, %v510
      %v514 = vrsqrt.pop %v380
      %v515 = vmul.f32 %v380, %v514
      %vm516 = vcmp.eq.f32.partialorder %v380, inf
      %v517 = vsel %vm516, %v380, %v515
      %vm518 = vcmp.eq.f32.partialorder %v380, 0.0
      %v519 = vand.u32 %v380, 2147483648
      %v520 = vsel %vm518, %v519, %v517
      %v521 = vrsqrt.pop %v383
      %v522 = vmul.f32 %v383, %v521
      %vm523 = vcmp.eq.f32.partialorder %v383, inf
      %v524 = vsel %vm523, %v383, %v522
      %vm525 = vcmp.eq.f32.partialorder %v383, 0.0
      %v526 = vand.u32 %v383, 2147483648
      %v527 = vsel %vm525, %v526, %v524
      %v528 = vrsqrt.pop %v386
      %v529 = vmul.f32 %v386, %v528
      %vm530 = vcmp.eq.f32.partialorder %v386, inf
      %v531 = vsel %vm530, %v386, %v529
      %vm532 = vcmp.eq.f32.partialorder %v386, 0.0
      %v533 = vand.u32 %v386, 2147483648
      %v534 = vsel %vm532, %v533, %v531
      %v535 = vrsqrt.pop %v389
      %v536 = vmul.f32 %v389, %v535
      %vm537 = vcmp.eq.f32.partialorder %v389, inf
      %v538 = vsel %vm537, %v389, %v536
      %vm539 = vcmp.eq.f32.partialorder %v389, 0.0
      %v540 = vand.u32 %v389, 2147483648
      %v541 = vsel %vm539, %v540, %v538
      %v542 = vrsqrt.pop %v392
      %v543 = vmul.f32 %v392, %v542
      %vm544 = vcmp.eq.f32.partialorder %v392, inf
      %v545 = vsel %vm544, %v392, %v543
      %vm546 = vcmp.eq.f32.partialorder %v392, 0.0
      %v547 = vand.u32 %v392, 2147483648
      %v548 = vsel %vm546, %v547, %v545
      %v549 = vrsqrt.pop %v395
      %v550 = vmul.f32 %v395, %v549
      %vm551 = vcmp.eq.f32.partialorder %v395, inf
      %v552 = vsel %vm551, %v395, %v550
      %vm553 = vcmp.eq.f32.partialorder %v395, 0.0
      %v554 = vand.u32 %v395, 2147483648
      %v555 = vsel %vm553, %v554, %v552
      %v556 = vrsqrt.pop %v398
      %v557 = vmul.f32 %v398, %v556
      %vm558 = vcmp.eq.f32.partialorder %v398, inf
      %v559 = vsel %vm558, %v398, %v557
      %vm560 = vcmp.eq.f32.partialorder %v398, 0.0
      %v561 = vand.u32 %v398, 2147483648
      %v562 = vsel %vm560, %v561, %v559
      %v563 = vrsqrt.pop %v401
      %v564 = vmul.f32 %v401, %v563
      %vm565 = vcmp.eq.f32.partialorder %v401, inf
      %v566 = vsel %vm565, %v401, %v564
      %vm567 = vcmp.eq.f32.partialorder %v401, 0.0
      %v568 = vand.u32 %v401, 2147483648
      %v569 = vsel %vm567, %v568, %v566
      %v570 = vrsqrt.pop %v404
      %v571 = vmul.f32 %v404, %v570
      %vm572 = vcmp.eq.f32.partialorder %v404, inf
      %v573 = vsel %vm572, %v404, %v571
      %vm574 = vcmp.eq.f32.partialorder %v404, 0.0
      %v575 = vand.u32 %v404, 2147483648
      %v576 = vsel %vm574, %v575, %v573
      %v577 = vrsqrt.pop %v407
      %v578 = vmul.f32 %v407, %v577
      %vm579 = vcmp.eq.f32.partialorder %v407, inf
      %v580 = vsel %vm579, %v407, %v578
      %vm581 = vcmp.eq.f32.partialorder %v407, 0.0
      %v582 = vand.u32 %v407, 2147483648
      %v583 = vsel %vm581, %v582, %v580
      %v584 = vrsqrt.pop %v410
      %v585 = vmul.f32 %v410, %v584
      %vm586 = vcmp.eq.f32.partialorder %v410, inf
      %v587 = vsel %vm586, %v410, %v585
      %vm588 = vcmp.eq.f32.partialorder %v410, 0.0
      %v589 = vand.u32 %v410, 2147483648
      %v590 = vsel %vm588, %v589, %v587
      %v591 = vrsqrt.pop %v413
      %v592 = vmul.f32 %v413, %v591
      %vm593 = vcmp.eq.f32.partialorder %v413, inf
      %v594 = vsel %vm593, %v413, %v592
      %vm595 = vcmp.eq.f32.partialorder %v413, 0.0
      %v596 = vand.u32 %v413, 2147483648
      %v597 = vsel %vm595, %v596, %v594
      %v598 = vrsqrt.pop %v416
      %v599 = vmul.f32 %v416, %v598
      %vm600 = vcmp.eq.f32.partialorder %v416, inf
      %v601 = vsel %vm600, %v416, %v599
      %vm602 = vcmp.eq.f32.partialorder %v416, 0.0
      %v603 = vand.u32 %v416, 2147483648
      %v604 = vsel %vm602, %v603, %v601
      %v605 = vrsqrt.pop %v419
      %v606 = vmul.f32 %v419, %v605
      %vm607 = vcmp.eq.f32.partialorder %v419, inf
      %v608 = vsel %vm607, %v419, %v606
      %vm609 = vcmp.eq.f32.partialorder %v419, 0.0
      %v610 = vand.u32 %v419, 2147483648
      %v611 = vsel %vm609, %v610, %v608
      %v612 = vrsqrt.pop %v422
      %v613 = vmul.f32 %v422, %v612
      %vm614 = vcmp.eq.f32.partialorder %v422, inf
      %v615 = vsel %vm614, %v422, %v613
      %vm616 = vcmp.eq.f32.partialorder %v422, 0.0
      %v617 = vand.u32 %v422, 2147483648
      %v618 = vsel %vm616, %v617, %v615
      %v619 = vrsqrt.pop %v425
      %v620 = vmul.f32 %v425, %v619
      %vm621 = vcmp.eq.f32.partialorder %v425, inf
      %v622 = vsel %vm621, %v425, %v620
      %vm623 = vcmp.eq.f32.partialorder %v425, 0.0
      %v624 = vand.u32 %v425, 2147483648
      %v625 = vsel %vm623, %v624, %v622
      %v626 = vrsqrt.pop %v428
      %v627 = vmul.f32 %v428, %v626
      %vm628 = vcmp.eq.f32.partialorder %v428, inf
      %v629 = vsel %vm628, %v428, %v627
      %vm630 = vcmp.eq.f32.partialorder %v428, 0.0
      %v631 = vand.u32 %v428, 2147483648
      %v632 = vsel %vm630, %v631, %v629
      %v633 = vrsqrt.pop %v431
      %v634 = vmul.f32 %v431, %v633
      %vm635 = vcmp.eq.f32.partialorder %v431, inf
      %v636 = vsel %vm635, %v431, %v634
      %vm637 = vcmp.eq.f32.partialorder %v431, 0.0
      %v638 = vand.u32 %v431, 2147483648
      %v639 = vsel %vm637, %v638, %v636
      %v640 = vrsqrt.pop %v434
      %v641 = vmul.f32 %v434, %v640
      %vm642 = vcmp.eq.f32.partialorder %v434, inf
      %v643 = vsel %vm642, %v434, %v641
      %vm644 = vcmp.eq.f32.partialorder %v434, 0.0
      %v645 = vand.u32 %v434, 2147483648
      %v646 = vsel %vm644, %v645, %v643
      %v647 = vrsqrt.pop %v437
      %v648 = vmul.f32 %v437, %v647
      %vm649 = vcmp.eq.f32.partialorder %v437, inf
      %v650 = vsel %vm649, %v437, %v648
      %vm651 = vcmp.eq.f32.partialorder %v437, 0.0
      %v652 = vand.u32 %v437, 2147483648
      %v653 = vsel %vm651, %v652, %v650
      %v654 = vrsqrt.pop %v440
      %v655 = vmul.f32 %v440, %v654
      %vm656 = vcmp.eq.f32.partialorder %v440, inf
      %v657 = vsel %vm656, %v440, %v655
      %vm658 = vcmp.eq.f32.partialorder %v440, 0.0
      %v659 = vand.u32 %v440, 2147483648
      %v660 = vsel %vm658, %v659, %v657
      %v661 = vrsqrt.pop %v443
      %v662 = vmul.f32 %v443, %v661
      %vm663 = vcmp.eq.f32.partialorder %v443, inf
      %v664 = vsel %vm663, %v443, %v662
      %vm665 = vcmp.eq.f32.partialorder %v443, 0.0
      %v666 = vand.u32 %v443, 2147483648
      %v667 = vsel %vm665, %v666, %v664
      %v668 = vld [vmem:[%s3] sm:$0x1]
      %v669 = vmax.f32 %v450, 1e-12
      %v670 = vmax.f32 %v457, 1e-12
      %v671 = vmax.f32 %v464, 1e-12
      %v672 = vmax.f32 %v471, 1e-12
      %v673 = vmax.f32 %v478, 1e-12
      %v674 = vmax.f32 %v485, 1e-12
      %v675 = vmax.f32 %v492, 1e-12
      %v676 = vmax.f32 %v499, 1e-12
      %v677 = vmax.f32 %v506, 1e-12
      %v678 = vmax.f32 %v513, 1e-12
      %v679 = vmax.f32 %v520, 1e-12
      %v680 = vmax.f32 %v527, 1e-12
      %v681 = vmax.f32 %v534, 1e-12
      %v682 = vmax.f32 %v541, 1e-12
      %v683 = vmax.f32 %v548, 1e-12
      %v684 = vmax.f32 %v555, 1e-12
      %v685 = vmax.f32 %v562, 1e-12
      %v686 = vmax.f32 %v569, 1e-12
      %v687 = vmax.f32 %v576, 1e-12
      %v688 = vmax.f32 %v583, 1e-12
      %v689 = vmax.f32 %v590, 1e-12
      %v690 = vmax.f32 %v597, 1e-12
      %v691 = vmax.f32 %v604, 1e-12
      %v692 = vmax.f32 %v611, 1e-12
      %v693 = vmax.f32 %v618, 1e-12
      %v694 = vmax.f32 %v625, 1e-12
      %v695 = vmax.f32 %v632, 1e-12
      %v696 = vmax.f32 %v639, 1e-12
      %v697 = vmax.f32 %v646, 1e-12
      %v698 = vmax.f32 %v653, 1e-12
      %v699 = vmax.f32 %v660, 1e-12
      %v700 = vmax.f32 %v667, 1e-12
      %v701 = vrcp.pop %v669
      %v702 = vmul.f32 5.656854, %v701
      %v703 = vrcp.pop %v670
      %v704 = vmul.f32 5.656854, %v703
      %v705 = vrcp.pop %v671
      %v706 = vmul.f32 5.656854, %v705
      %v707 = vrcp.pop %v672
      %v708 = vmul.f32 5.656854, %v707
      %v709 = vrcp.pop %v673
      %v710 = vmul.f32 5.656854, %v709
      %v711 = vrcp.pop %v674
      %v712 = vmul.f32 5.656854, %v711
      %v713 = vrcp.pop %v675
      %v714 = vmul.f32 5.656854, %v713
      %v715 = vrcp.pop %v676
      %v716 = vmul.f32 5.656854, %v715
      %v717 = vrcp.pop %v677
      %v718 = vmul.f32 5.656854, %v717
      %v719 = vrcp.pop %v678
      %v720 = vmul.f32 5.656854, %v719
      %v721 = vrcp.pop %v679
      %v722 = vmul.f32 5.656854, %v721
      %v723 = vrcp.pop %v680
      %v724 = vmul.f32 5.656854, %v723
      %v725 = vrcp.pop %v681
      %v726 = vmul.f32 5.656854, %v725
      %v727 = vrcp.pop %v682
      %v728 = vmul.f32 5.656854, %v727
      %v729 = vrcp.pop %v683
      %v730 = vmul.f32 5.656854, %v729
      %v731 = vrcp.pop %v684
      %v732 = vmul.f32 5.656854, %v731
      %v733 = vrcp.pop %v685
      %v734 = vmul.f32 5.656854, %v733
      %v735 = vrcp.pop %v686
      %v736 = vmul.f32 5.656854, %v735
      %v737 = vrcp.pop %v687
      %v738 = vmul.f32 5.656854, %v737
      %v739 = vrcp.pop %v688
      %v740 = vmul.f32 5.656854, %v739
      %v741 = vrcp.pop %v689
      %v742 = vmul.f32 5.656854, %v741
      %v743 = vrcp.pop %v690
      %v744 = vmul.f32 5.656854, %v743
      %v745 = vrcp.pop %v691
      %v746 = vmul.f32 5.656854, %v745
      %v747 = vrcp.pop %v692
      %v748 = vmul.f32 5.656854, %v747
      %v749 = vrcp.pop %v693
      %v750 = vmul.f32 5.656854, %v749
      %v751 = vrcp.pop %v694
      %v752 = vmul.f32 5.656854, %v751
      %v753 = vrcp.pop %v695
      %v754 = vmul.f32 5.656854, %v753
      %v755 = vrcp.pop %v696
      %v756 = vmul.f32 5.656854, %v755
      %v757 = vrcp.pop %v697
      %v758 = vmul.f32 5.656854, %v757
      %v759 = vrcp.pop %v698
      %v760 = vmul.f32 5.656854, %v759
      %v761 = vrcp.pop %v699
      %v762 = vmul.f32 5.656854, %v761
      %v763 = vrcp.pop %v700
      %v764 = vmul.f32 5.656854, %v763
      %v765 = vmul.f32 %v283, %v702
      %v766 = vmul.f32 %v284, %v704
      %v767 = vmul.f32 %v285, %v706
      %v768 = vmul.f32 %v286, %v708
      %v769 = vmul.f32 %v287, %v710
      %v770 = vmul.f32 %v288, %v712
      %v771 = vmul.f32 %v289, %v714
      %v772 = vmul.f32 %v290, %v716
      %v773 = vmul.f32 %v291, %v718
      %v774 = vmul.f32 %v292, %v720
      %v775 = vmul.f32 %v293, %v722
      %v776 = vmul.f32 %v294, %v724
      %v777 = vmul.f32 %v295, %v726
      %v778 = vmul.f32 %v296, %v728
      %v779 = vmul.f32 %v297, %v730
      %v780 = vmul.f32 %v298, %v732
      %v781 = vmul.f32 %v299, %v734
      %v782 = vmul.f32 %v300, %v736
      %v783 = vmul.f32 %v301, %v738
      %v784 = vmul.f32 %v302, %v740
      %v785 = vmul.f32 %v303, %v742
      %v786 = vmul.f32 %v304, %v744
      %v787 = vmul.f32 %v305, %v746
      %v788 = vmul.f32 %v306, %v748
      %v789 = vmul.f32 %v307, %v750
      %v790 = vmul.f32 %v308, %v752
      %v791 = vmul.f32 %v309, %v754
      %v792 = vmul.f32 %v310, %v756
      %v793 = vmul.f32 %v311, %v758
      %v794 = vmul.f32 %v312, %v760
      %v795 = vmul.f32 %v313, %v762
      %v796 = vmul.f32 %v314, %v764
      %v798 = vlaneseq
      %v799 = vshrl.u32 %v798, 7
      %v800 = vsub.s32 0, %v799
      %v801 = vrot.slane %v668, %v800
      %v803 = vmul.f32 %v765, %v801
      %v804 = vmul.f32 %v766, %v801
      %v805 = vmul.f32 %v767, %v801
      %v806 = vmul.f32 %v768, %v801
      %v807 = vmul.f32 %v769, %v801
      %v808 = vmul.f32 %v770, %v801
      %v809 = vmul.f32 %v771, %v801
      %v810 = vmul.f32 %v772, %v801
      %v811 = vmul.f32 %v773, %v801
      %v812 = vmul.f32 %v774, %v801
      %v813 = vmul.f32 %v775, %v801
      %v814 = vmul.f32 %v776, %v801
      %v815 = vmul.f32 %v777, %v801
      %v816 = vmul.f32 %v778, %v801
      %v817 = vmul.f32 %v779, %v801
      %v818 = vmul.f32 %v780, %v801
      %v819 = vmul.f32 %v781, %v801
      %v820 = vmul.f32 %v782, %v801
      %v821 = vmul.f32 %v783, %v801
      %v822 = vmul.f32 %v784, %v801
      %v823 = vmul.f32 %v785, %v801
      %v824 = vmul.f32 %v786, %v801
      %v825 = vmul.f32 %v787, %v801
      %v826 = vmul.f32 %v788, %v801
      %v827 = vmul.f32 %v789, %v801
      %v828 = vmul.f32 %v790, %v801
      %v829 = vmul.f32 %v791, %v801
      %v830 = vmul.f32 %v792, %v801
      %v831 = vmul.f32 %v793, %v801
      %v832 = vmul.f32 %v794, %v801
      %v833 = vmul.f32 %v795, %v801
      %v834 = vmul.f32 %v796, %v801
      %v835 = vxor.u32 %v803, 2147483648
      %v836 = vxor.u32 %v804, 2147483648
      %v837 = vxor.u32 %v805, 2147483648
      %v838 = vxor.u32 %v806, 2147483648
      %v839 = vxor.u32 %v807, 2147483648
      %v840 = vxor.u32 %v808, 2147483648
      %v841 = vxor.u32 %v809, 2147483648
      %v842 = vxor.u32 %v810, 2147483648
      %v843 = vxor.u32 %v811, 2147483648
      %v844 = vxor.u32 %v812, 2147483648
      %v845 = vxor.u32 %v813, 2147483648
      %v846 = vxor.u32 %v814, 2147483648
      %v847 = vxor.u32 %v815, 2147483648
      %v848 = vxor.u32 %v816, 2147483648
      %v849 = vxor.u32 %v817, 2147483648
      %v850 = vxor.u32 %v818, 2147483648
      %v851 = vxor.u32 %v819, 2147483648
      %v852 = vxor.u32 %v820, 2147483648
      %v853 = vxor.u32 %v821, 2147483648
      %v854 = vxor.u32 %v822, 2147483648
      %v855 = vxor.u32 %v823, 2147483648
      %v856 = vxor.u32 %v824, 2147483648
      %v857 = vxor.u32 %v825, 2147483648
      %v858 = vxor.u32 %v826, 2147483648
      %v859 = vxor.u32 %v827, 2147483648
      %v860 = vxor.u32 %v828, 2147483648
      %v861 = vxor.u32 %v829, 2147483648
      %v862 = vxor.u32 %v830, 2147483648
      %v863 = vxor.u32 %v831, 2147483648
      %v864 = vxor.u32 %v832, 2147483648
      %v865 = vxor.u32 %v833, 2147483648
      %v866 = vxor.u32 %v834, 2147483648
      %v867 = vmul.f32 %v835, 1.442695
      %v868 = vpow.pop %v867
      %v869 = vmul.f32 %v836, 1.442695
      %v870 = vpow.pop %v869
      %v871 = vmul.f32 %v837, 1.442695
      %v872 = vpow.pop %v871
      %v873 = vmul.f32 %v838, 1.442695
      %v874 = vpow.pop %v873
      %v875 = vmul.f32 %v839, 1.442695
      %v876 = vpow.pop %v875
      %v877 = vmul.f32 %v840, 1.442695
      %v878 = vpow.pop %v877
      %v879 = vmul.f32 %v841, 1.442695
      %v880 = vpow.pop %v879
      %v881 = vmul.f32 %v842, 1.442695
      %v882 = vpow.pop %v881
      %v883 = vmul.f32 %v843, 1.442695
      %v884 = vpow.pop %v883
      %v885 = vmul.f32 %v844, 1.442695
      %v886 = vpow.pop %v885
      %v887 = vmul.f32 %v845, 1.442695
      %v888 = vpow.pop %v887
      %v889 = vmul.f32 %v846, 1.442695
      %v890 = vpow.pop %v889
      %v891 = vmul.f32 %v847, 1.442695
      %v892 = vpow.pop %v891
      %v893 = vmul.f32 %v848, 1.442695
      %v894 = vpow.pop %v893
      %v895 = vmul.f32 %v849, 1.442695
      %v896 = vpow.pop %v895
      %v897 = vmul.f32 %v850, 1.442695
      %v898 = vpow.pop %v897
      %v899 = vmul.f32 %v851, 1.442695
      %v900 = vpow.pop %v899
      %v901 = vmul.f32 %v852, 1.442695
      %v902 = vpow.pop %v901
      %v903 = vmul.f32 %v853, 1.442695
      %v904 = vpow.pop %v903
      %v905 = vmul.f32 %v854, 1.442695
      %v906 = vpow.pop %v905
      %v907 = vmul.f32 %v855, 1.442695
      %v908 = vpow.pop %v907
      %v909 = vmul.f32 %v856, 1.442695
      %v910 = vpow.pop %v909
      %v911 = vmul.f32 %v857, 1.442695
      %v912 = vpow.pop %v911
      %v913 = vmul.f32 %v858, 1.442695
      %v914 = vpow.pop %v913
      %v915 = vmul.f32 %v859, 1.442695
      %v916 = vpow.pop %v915
      %v917 = vmul.f32 %v860, 1.442695
      %v918 = vpow.pop %v917
      %v919 = vmul.f32 %v861, 1.442695
      %v920 = vpow.pop %v919
      %v921 = vmul.f32 %v862, 1.442695
      %v922 = vpow.pop %v921
      %v923 = vmul.f32 %v863, 1.442695
      %v924 = vpow.pop %v923
      %v925 = vmul.f32 %v864, 1.442695
      %v926 = vpow.pop %v925
      %v927 = vmul.f32 %v865, 1.442695
      %v928 = vpow.pop %v927
      %v929 = vmul.f32 %v866, 1.442695
      %v930 = vpow.pop %v929
      %v931 = vadd.f32 %v868, 1.0
      %v932 = vadd.f32 %v870, 1.0
      %v933 = vadd.f32 %v872, 1.0
      %v934 = vadd.f32 %v874, 1.0
      %v935 = vadd.f32 %v876, 1.0
      %v936 = vadd.f32 %v878, 1.0
      %v937 = vadd.f32 %v880, 1.0
      %v938 = vadd.f32 %v882, 1.0
      %v939 = vadd.f32 %v884, 1.0
      %v940 = vadd.f32 %v886, 1.0
      %v941 = vadd.f32 %v888, 1.0
      %v942 = vadd.f32 %v890, 1.0
      %v943 = vadd.f32 %v892, 1.0
      %v944 = vadd.f32 %v894, 1.0
      %v945 = vadd.f32 %v896, 1.0
      %v946 = vadd.f32 %v898, 1.0
      %v947 = vadd.f32 %v900, 1.0
      %v948 = vadd.f32 %v902, 1.0
      %v949 = vadd.f32 %v904, 1.0
      %v950 = vadd.f32 %v906, 1.0
      %v951 = vadd.f32 %v908, 1.0
      %v952 = vadd.f32 %v910, 1.0
      %v953 = vadd.f32 %v912, 1.0
      %v954 = vadd.f32 %v914, 1.0
      %v955 = vadd.f32 %v916, 1.0
      %v956 = vadd.f32 %v918, 1.0
      %v957 = vadd.f32 %v920, 1.0
      %v958 = vadd.f32 %v922, 1.0
      %v959 = vadd.f32 %v924, 1.0
      %v960 = vadd.f32 %v926, 1.0
      %v961 = vadd.f32 %v928, 1.0
      %v962 = vadd.f32 %v930, 1.0
      %v963 = vrcp.pop %v931
      %v964 = vmul.f32 1.0, %v963
      %v965 = vrcp.pop %v932
      %v966 = vmul.f32 1.0, %v965
      %v967 = vrcp.pop %v933
      %v968 = vmul.f32 1.0, %v967
      %v969 = vrcp.pop %v934
      %v970 = vmul.f32 1.0, %v969
      %v971 = vrcp.pop %v935
      %v972 = vmul.f32 1.0, %v971
      %v973 = vrcp.pop %v936
      %v974 = vmul.f32 1.0, %v973
      %v975 = vrcp.pop %v937
      %v976 = vmul.f32 1.0, %v975
      %v977 = vrcp.pop %v938
      %v978 = vmul.f32 1.0, %v977
      %v979 = vrcp.pop %v939
      %v980 = vmul.f32 1.0, %v979
      %v981 = vrcp.pop %v940
      %v982 = vmul.f32 1.0, %v981
      %v983 = vrcp.pop %v941
      %v984 = vmul.f32 1.0, %v983
      %v985 = vrcp.pop %v942
      %v986 = vmul.f32 1.0, %v985
      %v987 = vrcp.pop %v943
      %v988 = vmul.f32 1.0, %v987
      %v989 = vrcp.pop %v944
      %v990 = vmul.f32 1.0, %v989
      %v991 = vrcp.pop %v945
      %v992 = vmul.f32 1.0, %v991
      %v993 = vrcp.pop %v946
      %v994 = vmul.f32 1.0, %v993
      %v995 = vrcp.pop %v947
      %v996 = vmul.f32 1.0, %v995
      %v997 = vrcp.pop %v948
      %v998 = vmul.f32 1.0, %v997
      %v999 = vrcp.pop %v949
      %v1000 = vmul.f32 1.0, %v999
      %v1001 = vrcp.pop %v950
      %v1002 = vmul.f32 1.0, %v1001
      %v1003 = vrcp.pop %v951
      %v1004 = vmul.f32 1.0, %v1003
      %v1005 = vrcp.pop %v952
      %v1006 = vmul.f32 1.0, %v1005
      %v1007 = vrcp.pop %v953
      %v1008 = vmul.f32 1.0, %v1007
      %v1009 = vrcp.pop %v954
      %v1010 = vmul.f32 1.0, %v1009
      %v1011 = vrcp.pop %v955
      %v1012 = vmul.f32 1.0, %v1011
      %v1013 = vrcp.pop %v956
      %v1014 = vmul.f32 1.0, %v1013
      %v1015 = vrcp.pop %v957
      %v1016 = vmul.f32 1.0, %v1015
      %v1017 = vrcp.pop %v958
      %v1018 = vmul.f32 1.0, %v1017
      %v1019 = vrcp.pop %v959
      %v1020 = vmul.f32 1.0, %v1019
      %v1021 = vrcp.pop %v960
      %v1022 = vmul.f32 1.0, %v1021
      %v1023 = vrcp.pop %v961
      %v1024 = vmul.f32 1.0, %v1023
      %v1025 = vrcp.pop %v962
      %v1026 = vmul.f32 1.0, %v1025
      %v1027 = vmul.f32 %v803, %v964
      %v1028 = vmul.f32 %v804, %v966
      %v1029 = vmul.f32 %v805, %v968
      %v1030 = vmul.f32 %v806, %v970
      %v1031 = vmul.f32 %v807, %v972
      %v1032 = vmul.f32 %v808, %v974
      %v1033 = vmul.f32 %v809, %v976
      %v1034 = vmul.f32 %v810, %v978
      %v1035 = vmul.f32 %v811, %v980
      %v1036 = vmul.f32 %v812, %v982
      %v1037 = vmul.f32 %v813, %v984
      %v1038 = vmul.f32 %v814, %v986
      %v1039 = vmul.f32 %v815, %v988
      %v1040 = vmul.f32 %v816, %v990
      %v1041 = vmul.f32 %v817, %v992
      %v1042 = vmul.f32 %v818, %v994
      %v1043 = vmul.f32 %v819, %v996
      %v1044 = vmul.f32 %v820, %v998
      %v1045 = vmul.f32 %v821, %v1000
      %v1046 = vmul.f32 %v822, %v1002
      %v1047 = vmul.f32 %v823, %v1004
      %v1048 = vmul.f32 %v824, %v1006
      %v1049 = vmul.f32 %v825, %v1008
      %v1050 = vmul.f32 %v826, %v1010
      %v1051 = vmul.f32 %v827, %v1012
      %v1052 = vmul.f32 %v828, %v1014
      %v1053 = vmul.f32 %v829, %v1016
      %v1054 = vmul.f32 %v830, %v1018
      %v1055 = vmul.f32 %v831, %v1020
      %v1056 = vmul.f32 %v832, %v1022
      %v1057 = vmul.f32 %v833, %v1024
      %v1058 = vmul.f32 %v834, %v1026
      %v1059 = vpack.c.bf16 %v1028, %v1027
      %v1060 = vpack.c.bf16 %v1030, %v1029
      %v1061 = vpack.c.bf16 %v1032, %v1031
      %v1062 = vpack.c.bf16 %v1034, %v1033
      %v1063 = vpack.c.bf16 %v1036, %v1035
      %v1064 = vpack.c.bf16 %v1038, %v1037
      %v1065 = vpack.c.bf16 %v1040, %v1039
      %v1066 = vpack.c.bf16 %v1042, %v1041
      %v1067 = vpack.c.bf16 %v1044, %v1043
      %v1068 = vpack.c.bf16 %v1046, %v1045
      %v1069 = vpack.c.bf16 %v1048, %v1047
      %v1070 = vpack.c.bf16 %v1050, %v1049
      %v1071 = vpack.c.bf16 %v1052, %v1051
      %v1072 = vpack.c.bf16 %v1054, %v1053
      %v1073 = vpack.c.bf16 %v1056, %v1055
      %v1074 = vpack.c.bf16 %v1058, %v1057
      %v1076 = vshrl.u32 %v1059, 16
      %v1078 = vrot.slane %v1076, 7
      %v1079 = vshll.u32 %v1059, 16
      %v1081 = vor.u32 %v1078, %v1079
      %v1083 = vshrl.u32 %v1060, 16
      %v1085 = vrot.slane %v1083, 7
      %v1086 = vshll.u32 %v1060, 16
      %v1088 = vor.u32 %v1085, %v1086
      %v1090 = vshrl.u32 %v1061, 16
      %v1092 = vrot.slane %v1090, 7
      %v1093 = vshll.u32 %v1061, 16
      %v1095 = vor.u32 %v1092, %v1093
      %v1097 = vshrl.u32 %v1062, 16
      %v1099 = vrot.slane %v1097, 7
      %v1100 = vshll.u32 %v1062, 16
      %v1102 = vor.u32 %v1099, %v1100
      %v1104 = vshrl.u32 %v1063, 16
      %v1106 = vrot.slane %v1104, 7
      %v1107 = vshll.u32 %v1063, 16
      %v1109 = vor.u32 %v1106, %v1107
      %v1111 = vshrl.u32 %v1064, 16
      %v1113 = vrot.slane %v1111, 7
      %v1114 = vshll.u32 %v1064, 16
      %v1116 = vor.u32 %v1113, %v1114
      %v1118 = vshrl.u32 %v1065, 16
      %v1120 = vrot.slane %v1118, 7
      %v1121 = vshll.u32 %v1065, 16
      %v1123 = vor.u32 %v1120, %v1121
      %v1125 = vshrl.u32 %v1066, 16
      %v1127 = vrot.slane %v1125, 7
      %v1128 = vshll.u32 %v1066, 16
      %v1130 = vor.u32 %v1127, %v1128
      %v1132 = vshrl.u32 %v1067, 16
      %v1134 = vrot.slane %v1132, 7
      %v1135 = vshll.u32 %v1067, 16
      %v1137 = vor.u32 %v1134, %v1135
      %v1139 = vshrl.u32 %v1068, 16
      %v1141 = vrot.slane %v1139, 7
      %v1142 = vshll.u32 %v1068, 16
      %v1144 = vor.u32 %v1141, %v1142
      %v1146 = vshrl.u32 %v1069, 16
      %v1148 = vrot.slane %v1146, 7
      %v1149 = vshll.u32 %v1069, 16
      %v1151 = vor.u32 %v1148, %v1149
      %v1153 = vshrl.u32 %v1070, 16
      %v1155 = vrot.slane %v1153, 7
      %v1156 = vshll.u32 %v1070, 16
      %v1158 = vor.u32 %v1155, %v1156
      %v1160 = vshrl.u32 %v1071, 16
      %v1162 = vrot.slane %v1160, 7
      %v1163 = vshll.u32 %v1071, 16
      %v1165 = vor.u32 %v1162, %v1163
      %v1167 = vshrl.u32 %v1072, 16
      %v1169 = vrot.slane %v1167, 7
      %v1170 = vshll.u32 %v1072, 16
      %v1172 = vor.u32 %v1169, %v1170
      %v1174 = vshrl.u32 %v1073, 16
      %v1176 = vrot.slane %v1174, 7
      %v1177 = vshll.u32 %v1073, 16
      %v1179 = vor.u32 %v1176, %v1177
      %v1181 = vshrl.u32 %v1074, 16
      %v1183 = vrot.slane %v1181, 7
      %v1184 = vshll.u32 %v1074, 16
      %v1186 = vor.u32 %v1183, %v1184
      %vm1219 = vcmask 1040384
      %vm1220 = vsmask.f32 256
      %vm1221 = vmand %vm1219, %vm1220
      %v1222 = vsel %vm1221, 0, %v1081
      %v1223 = vsel %vm1221, 0, %v1088
      %v1224 = vsel %vm1221, 0, %v1095
      %v1225 = vsel %vm1221, 0, %v1102
      %v1226 = vsel %vm1221, 0, %v1109
      %v1227 = vsel %vm1221, 0, %v1116
      %v1228 = vsel %vm1221, 0, %v1123
      %v1229 = vsel %vm1221, 0, %v1130
      %v1230 = vsel %vm1221, 0, %v1137
      %v1231 = vsel %vm1221, 0, %v1144
      %v1232 = vsel %vm1221, 0, %v1151
      %v1233 = vsel %vm1221, 0, %v1158
      %v1234 = vsel %vm1221, 0, %v1165
      %v1235 = vsel %vm1221, 0, %v1172
      %v1236 = vsel %vm1221, 0, %v1179
      %v1237 = vsel %vm1221, 0, %v1186
      %v1238 = vsel %vm1221, %v1078, 0
      %v1239 = vsel %vm1221, %v1085, 0
      %v1240 = vsel %vm1221, %v1092, 0
      %v1241 = vsel %vm1221, %v1099, 0
      %v1242 = vsel %vm1221, %v1106, 0
      %v1243 = vsel %vm1221, %v1113, 0
      %v1244 = vsel %vm1221, %v1120, 0
      %v1245 = vsel %vm1221, %v1127, 0
      %v1246 = vsel %vm1221, %v1134, 0
      %v1247 = vsel %vm1221, %v1141, 0
      %v1248 = vsel %vm1221, %v1148, 0
      %v1249 = vsel %vm1221, %v1155, 0
      %v1250 = vsel %vm1221, %v1162, 0
      %v1251 = vsel %vm1221, %v1169, 0
      %v1252 = vsel %vm1221, %v1176, 0
      %v1253 = vsel %vm1221, %v1183, 0
      %vm1254 = vsmask.f32 7424
      %v1256 = vshrl.u32 0, 16
      %v1258 = vshll.u32 0, 16
      %v1260 = vrot.slane %v1258, 1
      %v1261 = vor.u32 %v1256, %v1260
      %v1262 = vsel %vm1254, %v1261, %v1260
      %v1264 = vshrl.u32 %v1222, 16
      %v1266 = vshll.u32 %v1222, 16
      %v1268 = vrot.slane %v1266, 1
      %v1269 = vor.u32 %v1264, %v1268
      %v1271 = vshll.u32 %v1238, 16
      %v1273 = vrot.slane %v1271, 1
      %v1274 = vsel %vm1254, %v1269, %v1273
      %v1276 = vshrl.u32 %v1223, 16
      %v1278 = vshll.u32 %v1223, 16
      %v1280 = vrot.slane %v1278, 1
      %v1281 = vor.u32 %v1276, %v1280
      %v1283 = vshll.u32 %v1239, 16
      %v1285 = vrot.slane %v1283, 1
      %v1286 = vsel %vm1254, %v1281, %v1285
      %v1288 = vshrl.u32 %v1224, 16
      %v1290 = vshll.u32 %v1224, 16
      %v1292 = vrot.slane %v1290, 1
      %v1293 = vor.u32 %v1288, %v1292
      %v1295 = vshll.u32 %v1240, 16
      %v1297 = vrot.slane %v1295, 1
      %v1298 = vsel %vm1254, %v1293, %v1297
      %v1300 = vshrl.u32 %v1225, 16
      %v1302 = vshll.u32 %v1225, 16
      %v1304 = vrot.slane %v1302, 1
      %v1305 = vor.u32 %v1300, %v1304
      %v1307 = vshll.u32 %v1241, 16
      %v1309 = vrot.slane %v1307, 1
      %v1310 = vsel %vm1254, %v1305, %v1309
      %v1312 = vshrl.u32 %v1226, 16
      %v1314 = vshll.u32 %v1226, 16
      %v1316 = vrot.slane %v1314, 1
      %v1317 = vor.u32 %v1312, %v1316
      %v1319 = vshll.u32 %v1242, 16
      %v1321 = vrot.slane %v1319, 1
      %v1322 = vsel %vm1254, %v1317, %v1321
      %v1324 = vshrl.u32 %v1227, 16
      %v1326 = vshll.u32 %v1227, 16
      %v1328 = vrot.slane %v1326, 1
      %v1329 = vor.u32 %v1324, %v1328
      %v1331 = vshll.u32 %v1243, 16
      %v1333 = vrot.slane %v1331, 1
      %v1334 = vsel %vm1254, %v1329, %v1333
      %v1336 = vshrl.u32 %v1228, 16
      %v1338 = vshll.u32 %v1228, 16
      %v1340 = vrot.slane %v1338, 1
      %v1341 = vor.u32 %v1336, %v1340
      %v1343 = vshll.u32 %v1244, 16
      %v1345 = vrot.slane %v1343, 1
      %v1346 = vsel %vm1254, %v1341, %v1345
      %v1348 = vshrl.u32 %v1229, 16
      %v1350 = vshll.u32 %v1229, 16
      %v1352 = vrot.slane %v1350, 1
      %v1353 = vor.u32 %v1348, %v1352
      %v1355 = vshll.u32 %v1245, 16
      %v1357 = vrot.slane %v1355, 1
      %v1358 = vsel %vm1254, %v1353, %v1357
      %v1360 = vshrl.u32 %v1230, 16
      %v1362 = vshll.u32 %v1230, 16
      %v1364 = vrot.slane %v1362, 1
      %v1365 = vor.u32 %v1360, %v1364
      %v1367 = vshll.u32 %v1246, 16
      %v1369 = vrot.slane %v1367, 1
      %v1370 = vsel %vm1254, %v1365, %v1369
      %v1372 = vshrl.u32 %v1231, 16
      %v1374 = vshll.u32 %v1231, 16
      %v1376 = vrot.slane %v1374, 1
      %v1377 = vor.u32 %v1372, %v1376
      %v1379 = vshll.u32 %v1247, 16
      %v1381 = vrot.slane %v1379, 1
      %v1382 = vsel %vm1254, %v1377, %v1381
      %v1384 = vshrl.u32 %v1232, 16
      %v1386 = vshll.u32 %v1232, 16
      %v1388 = vrot.slane %v1386, 1
      %v1389 = vor.u32 %v1384, %v1388
      %v1391 = vshll.u32 %v1248, 16
      %v1393 = vrot.slane %v1391, 1
      %v1394 = vsel %vm1254, %v1389, %v1393
      %v1396 = vshrl.u32 %v1233, 16
      %v1398 = vshll.u32 %v1233, 16
      %v1400 = vrot.slane %v1398, 1
      %v1401 = vor.u32 %v1396, %v1400
      %v1403 = vshll.u32 %v1249, 16
      %v1405 = vrot.slane %v1403, 1
      %v1406 = vsel %vm1254, %v1401, %v1405
      %v1408 = vshrl.u32 %v1234, 16
      %v1410 = vshll.u32 %v1234, 16
      %v1412 = vrot.slane %v1410, 1
      %v1413 = vor.u32 %v1408, %v1412
      %v1415 = vshll.u32 %v1250, 16
      %v1417 = vrot.slane %v1415, 1
      %v1418 = vsel %vm1254, %v1413, %v1417
      %v1420 = vshrl.u32 %v1235, 16
      %v1422 = vshll.u32 %v1235, 16
      %v1424 = vrot.slane %v1422, 1
      %v1425 = vor.u32 %v1420, %v1424
      %v1427 = vshll.u32 %v1251, 16
      %v1429 = vrot.slane %v1427, 1
      %v1430 = vsel %vm1254, %v1425, %v1429
      %v1432 = vshrl.u32 %v1236, 16
      %v1434 = vshll.u32 %v1236, 16
      %v1436 = vrot.slane %v1434, 1
      %v1437 = vor.u32 %v1432, %v1436
      %v1439 = vshll.u32 %v1252, 16
      %v1441 = vrot.slane %v1439, 1
      %v1442 = vsel %vm1254, %v1437, %v1441
      %1443 = vrot.lane.b32.xlu0 %v1262, 32
      %v1444 = vpop.permute.xlu0 %1443
      %1445 = vrot.lane.b32.xlu0 %v1274, 32
      %v1446 = vpop.permute.xlu0 %1445
      %1447 = vrot.lane.b32.xlu0 %v1286, 32
      %v1448 = vpop.permute.xlu0 %1447
      %1449 = vrot.lane.b32.xlu0 %v1298, 32
      %v1450 = vpop.permute.xlu0 %1449
      %1451 = vrot.lane.b32.xlu0 %v1310, 32
      %v1452 = vpop.permute.xlu0 %1451
      %1453 = vrot.lane.b32.xlu0 %v1322, 32
      %v1454 = vpop.permute.xlu0 %1453
      %1455 = vrot.lane.b32.xlu0 %v1334, 32
      %v1456 = vpop.permute.xlu0 %1455
      %1457 = vrot.lane.b32.xlu0 %v1346, 32
      %v1458 = vpop.permute.xlu0 %1457
      %1459 = vrot.lane.b32.xlu0 %v1358, 32
      %v1460 = vpop.permute.xlu0 %1459
      %1461 = vrot.lane.b32.xlu0 %v1370, 32
      %v1462 = vpop.permute.xlu0 %1461
      %1463 = vrot.lane.b32.xlu0 %v1382, 32
      %v1464 = vpop.permute.xlu0 %1463
      %1465 = vrot.lane.b32.xlu0 %v1394, 32
      %v1466 = vpop.permute.xlu0 %1465
      %1467 = vrot.lane.b32.xlu0 %v1406, 32
      %v1468 = vpop.permute.xlu0 %1467
      %1469 = vrot.lane.b32.xlu0 %v1418, 32
      %v1470 = vpop.permute.xlu0 %1469
      %1471 = vrot.lane.b32.xlu0 %v1430, 32
      %v1472 = vpop.permute.xlu0 %1471
      %1473 = vrot.lane.b32.xlu0 %v1442, 32
      %v1474 = vpop.permute.xlu0 %1473
      %vm1506 = vcmask 1046528
      %v1507 = vrot.slane 0, 1
      %v1508 = vsel %vm1506, %v1507, %v1507
      %v1509 = vrot.slane %v1222, 1
      %v1510 = vrot.slane %v1238, 1
      %v1511 = vsel %vm1506, %v1509, %v1510
      %v1512 = vrot.slane %v1223, 1
      %v1513 = vrot.slane %v1239, 1
      %v1514 = vsel %vm1506, %v1512, %v1513
      %v1515 = vrot.slane %v1224, 1
      %v1516 = vrot.slane %v1240, 1
      %v1517 = vsel %vm1506, %v1515, %v1516
      %v1518 = vrot.slane %v1225, 1
      %v1519 = vrot.slane %v1241, 1
      %v1520 = vsel %vm1506, %v1518, %v1519
      %v1521 = vrot.slane %v1226, 1
      %v1522 = vrot.slane %v1242, 1
      %v1523 = vsel %vm1506, %v1521, %v1522
      %v1524 = vrot.slane %v1227, 1
      %v1525 = vrot.slane %v1243, 1
      %v1526 = vsel %vm1506, %v1524, %v1525
      %v1527 = vrot.slane %v1228, 1
      %v1528 = vrot.slane %v1244, 1
      %v1529 = vsel %vm1506, %v1527, %v1528
      %v1530 = vrot.slane %v1229, 1
      %v1531 = vrot.slane %v1245, 1
      %v1532 = vsel %vm1506, %v1530, %v1531
      %v1533 = vrot.slane %v1230, 1
      %v1534 = vrot.slane %v1246, 1
      %v1535 = vsel %vm1506, %v1533, %v1534
      %v1536 = vrot.slane %v1231, 1
      %v1537 = vrot.slane %v1247, 1
      %v1538 = vsel %vm1506, %v1536, %v1537
      %v1539 = vrot.slane %v1232, 1
      %v1540 = vrot.slane %v1248, 1
      %v1541 = vsel %vm1506, %v1539, %v1540
      %v1542 = vrot.slane %v1233, 1
      %v1543 = vrot.slane %v1249, 1
      %v1544 = vsel %vm1506, %v1542, %v1543
      %v1545 = vrot.slane %v1234, 1
      %v1546 = vrot.slane %v1250, 1
      %v1547 = vsel %vm1506, %v1545, %v1546
      %v1548 = vrot.slane %v1235, 1
      %v1549 = vrot.slane %v1251, 1
      %v1550 = vsel %vm1506, %v1548, %v1549
      %v1551 = vrot.slane %v1236, 1
      %v1552 = vrot.slane %v1252, 1
      %v1553 = vsel %vm1506, %v1551, %v1552
      %1554 = vrot.lane.b32.xlu0 %v1508, 64
      %v1555 = vpop.permute.xlu0 %1554
      %1556 = vrot.lane.b32.xlu0 %v1511, 64
      %v1557 = vpop.permute.xlu0 %1556
      %1558 = vrot.lane.b32.xlu0 %v1514, 64
      %v1559 = vpop.permute.xlu0 %1558
      %1560 = vrot.lane.b32.xlu0 %v1517, 64
      %v1561 = vpop.permute.xlu0 %1560
      %1562 = vrot.lane.b32.xlu0 %v1520, 64
      %v1563 = vpop.permute.xlu0 %1562
      %1564 = vrot.lane.b32.xlu0 %v1523, 64
      %v1565 = vpop.permute.xlu0 %1564
      %1566 = vrot.lane.b32.xlu0 %v1526, 64
      %v1567 = vpop.permute.xlu0 %1566
      %1568 = vrot.lane.b32.xlu0 %v1529, 64
      %v1569 = vpop.permute.xlu0 %1568
      %1570 = vrot.lane.b32.xlu0 %v1532, 64
      %v1571 = vpop.permute.xlu0 %1570
      %1572 = vrot.lane.b32.xlu0 %v1535, 64
      %v1573 = vpop.permute.xlu0 %1572
      %1574 = vrot.lane.b32.xlu0 %v1538, 64
      %v1575 = vpop.permute.xlu0 %1574
      %1576 = vrot.lane.b32.xlu0 %v1541, 64
      %v1577 = vpop.permute.xlu0 %1576
      %1578 = vrot.lane.b32.xlu0 %v1544, 64
      %v1579 = vpop.permute.xlu0 %1578
      %1580 = vrot.lane.b32.xlu0 %v1547, 64
      %v1581 = vpop.permute.xlu0 %1580
      %1582 = vrot.lane.b32.xlu0 %v1550, 64
      %v1583 = vpop.permute.xlu0 %1582
      %1584 = vrot.lane.b32.xlu0 %v1553, 64
      %v1585 = vpop.permute.xlu0 %1584
      %1587 = vrot.lane.b32.xlu0 %v1222, 96
      %v1588 = vpop.permute.xlu0 %1587
      %1589 = vrot.lane.b32.xlu0 %v1223, 96
      %v1590 = vpop.permute.xlu0 %1589
      %1591 = vrot.lane.b32.xlu0 %v1224, 96
      %v1592 = vpop.permute.xlu0 %1591
      %1593 = vrot.lane.b32.xlu0 %v1225, 96
      %v1594 = vpop.permute.xlu0 %1593
      %1595 = vrot.lane.b32.xlu0 %v1226, 96
      %v1596 = vpop.permute.xlu0 %1595
      %1597 = vrot.lane.b32.xlu0 %v1227, 96
      %v1598 = vpop.permute.xlu0 %1597
      %1599 = vrot.lane.b32.xlu0 %v1228, 96
      %v1600 = vpop.permute.xlu0 %1599
      %1601 = vrot.lane.b32.xlu0 %v1229, 96
      %v1602 = vpop.permute.xlu0 %1601
      %1603 = vrot.lane.b32.xlu0 %v1230, 96
      %v1604 = vpop.permute.xlu0 %1603
      %1605 = vrot.lane.b32.xlu0 %v1231, 96
      %v1606 = vpop.permute.xlu0 %1605
      %1607 = vrot.lane.b32.xlu0 %v1232, 96
      %v1608 = vpop.permute.xlu0 %1607
      %1609 = vrot.lane.b32.xlu0 %v1233, 96
      %v1610 = vpop.permute.xlu0 %1609
      %1611 = vrot.lane.b32.xlu0 %v1234, 96
      %v1612 = vpop.permute.xlu0 %1611
      %1613 = vrot.lane.b32.xlu0 %v1235, 96
      %v1614 = vpop.permute.xlu0 %1613
      %1615 = vrot.lane.b32.xlu0 %v1236, 96
      %v1616 = vpop.permute.xlu0 %1615
      %1617 = vrot.lane.b32.xlu0 %v1237, 96
      %v1618 = vpop.permute.xlu0 %1617
      %v1620 = vshrl.u32 %v1237, 16
      %v1622 = vshll.u32 %v1237, 16
      %v1624 = vrot.slane %v1622, 1
      %v1625 = vor.u32 %v1620, %v1624
      %v1627 = vshll.u32 %v1253, 16
      %v1629 = vrot.slane %v1627, 1
      %v1630 = vsel %vm1254, %v1625, %v1629
      %v1632 = vrot.slane %v1237, 1
      %v1633 = vrot.slane %v1253, 1
      %v1634 = vsel %vm1506, %v1632, %v1633
      %1635 = vrot.lane.b32.xlu0 %v1511, 32
      %v1636 = vpop.permute.xlu0 %1635
      %1637 = vrot.lane.b32.xlu0 %v1514, 32
      %v1638 = vpop.permute.xlu0 %1637
      %1639 = vrot.lane.b32.xlu0 %v1517, 32
      %v1640 = vpop.permute.xlu0 %1639
      %1641 = vrot.lane.b32.xlu0 %v1520, 32
      %v1642 = vpop.permute.xlu0 %1641
      %1643 = vrot.lane.b32.xlu0 %v1523, 32
      %v1644 = vpop.permute.xlu0 %1643
      %1645 = vrot.lane.b32.xlu0 %v1526, 32
      %v1646 = vpop.permute.xlu0 %1645
      %1647 = vrot.lane.b32.xlu0 %v1529, 32
      %v1648 = vpop.permute.xlu0 %1647
      %1649 = vrot.lane.b32.xlu0 %v1532, 32
      %v1650 = vpop.permute.xlu0 %1649
      %1651 = vrot.lane.b32.xlu0 %v1535, 32
      %v1652 = vpop.permute.xlu0 %1651
      %1653 = vrot.lane.b32.xlu0 %v1538, 32
      %v1654 = vpop.permute.xlu0 %1653
      %1655 = vrot.lane.b32.xlu0 %v1541, 32
      %v1656 = vpop.permute.xlu0 %1655
      %1657 = vrot.lane.b32.xlu0 %v1544, 32
      %v1658 = vpop.permute.xlu0 %1657
      %1659 = vrot.lane.b32.xlu0 %v1547, 32
      %v1660 = vpop.permute.xlu0 %1659
      %1661 = vrot.lane.b32.xlu0 %v1550, 32
      %v1662 = vpop.permute.xlu0 %1661
      %1663 = vrot.lane.b32.xlu0 %v1553, 32
      %v1664 = vpop.permute.xlu0 %1663
      %1665 = vrot.lane.b32.xlu0 %v1634, 32
      %v1666 = vpop.permute.xlu0 %1665
      %1667 = vrot.lane.b32.xlu0 %v1223, 64
      %v1668 = vpop.permute.xlu0 %1667
      %1669 = vrot.lane.b32.xlu0 %v1224, 64
      %v1670 = vpop.permute.xlu0 %1669
      %1671 = vrot.lane.b32.xlu0 %v1225, 64
      %v1672 = vpop.permute.xlu0 %1671
      %1673 = vrot.lane.b32.xlu0 %v1226, 64
      %v1674 = vpop.permute.xlu0 %1673
      %1675 = vrot.lane.b32.xlu0 %v1227, 64
      %v1676 = vpop.permute.xlu0 %1675
      %1677 = vrot.lane.b32.xlu0 %v1228, 64
      %v1678 = vpop.permute.xlu0 %1677
      %1679 = vrot.lane.b32.xlu0 %v1229, 64
      %v1680 = vpop.permute.xlu0 %1679
      %1681 = vrot.lane.b32.xlu0 %v1230, 64
      %v1682 = vpop.permute.xlu0 %1681
      %1683 = vrot.lane.b32.xlu0 %v1231, 64
      %v1684 = vpop.permute.xlu0 %1683
      %1685 = vrot.lane.b32.xlu0 %v1232, 64
      %v1686 = vpop.permute.xlu0 %1685
      %1687 = vrot.lane.b32.xlu0 %v1233, 64
      %v1688 = vpop.permute.xlu0 %1687
      %1689 = vrot.lane.b32.xlu0 %v1234, 64
      %v1690 = vpop.permute.xlu0 %1689
      %1691 = vrot.lane.b32.xlu0 %v1235, 64
      %v1692 = vpop.permute.xlu0 %1691
      %1693 = vrot.lane.b32.xlu0 %v1236, 64
      %v1694 = vpop.permute.xlu0 %1693
      %1695 = vrot.lane.b32.xlu0 %v1237, 64
      %v1696 = vpop.permute.xlu0 %1695
      %1697 = vrot.lane.b32.xlu0 0, 64
      %v1698 = vpop.permute.xlu0 %1697
      %1699 = vrot.lane.b32.xlu0 %v1286, 96
      %v1700 = vpop.permute.xlu0 %1699
      %1701 = vrot.lane.b32.xlu0 %v1298, 96
      %v1702 = vpop.permute.xlu0 %1701
      %1703 = vrot.lane.b32.xlu0 %v1310, 96
      %v1704 = vpop.permute.xlu0 %1703
      %1705 = vrot.lane.b32.xlu0 %v1322, 96
      %v1706 = vpop.permute.xlu0 %1705
      %1707 = vrot.lane.b32.xlu0 %v1334, 96
      %v1708 = vpop.permute.xlu0 %1707
      %1709 = vrot.lane.b32.xlu0 %v1346, 96
      %v1710 = vpop.permute.xlu0 %1709
      %1711 = vrot.lane.b32.xlu0 %v1358, 96
      %v1712 = vpop.permute.xlu0 %1711
      %1713 = vrot.lane.b32.xlu0 %v1370, 96
      %v1714 = vpop.permute.xlu0 %1713
      %1715 = vrot.lane.b32.xlu0 %v1382, 96
      %v1716 = vpop.permute.xlu0 %1715
      %1717 = vrot.lane.b32.xlu0 %v1394, 96
      %v1718 = vpop.permute.xlu0 %1717
      %1719 = vrot.lane.b32.xlu0 %v1406, 96
      %v1720 = vpop.permute.xlu0 %1719
      %1721 = vrot.lane.b32.xlu0 %v1418, 96
      %v1722 = vpop.permute.xlu0 %1721
      %1723 = vrot.lane.b32.xlu0 %v1430, 96
      %v1724 = vpop.permute.xlu0 %1723
      %1725 = vrot.lane.b32.xlu0 %v1442, 96
      %v1726 = vpop.permute.xlu0 %1725
      %1727 = vrot.lane.b32.xlu0 %v1630, 96
      %v1728 = vpop.permute.xlu0 %1727
      %1729 = vrot.lane.b32.xlu0 %v1262, 96
      %v1730 = vpop.permute.xlu0 %1729
      %v1732 = vsel %vm347, 0, %v1444
      %v1734 = vsel %vm347, %v1222, %v1446
      %v1736 = vsel %vm347, %v1223, %v1448
      %v1738 = vsel %vm347, %v1224, %v1450
      %v1740 = vsel %vm347, %v1225, %v1452
      %v1742 = vsel %vm347, %v1226, %v1454
      %v1744 = vsel %vm347, %v1227, %v1456
      %v1746 = vsel %vm347, %v1228, %v1458
      %v1748 = vsel %vm347, %v1229, %v1460
      %v1750 = vsel %vm347, %v1230, %v1462
      %v1752 = vsel %vm347, %v1231, %v1464
      %v1754 = vsel %vm347, %v1232, %v1466
      %v1756 = vsel %vm347, %v1233, %v1468
      %v1758 = vsel %vm347, %v1234, %v1470
      %v1760 = vsel %vm347, %v1235, %v1472
      %v1762 = vsel %vm347, %v1236, %v1474
      %vm1763 = vcmask 523264
      %v1765 = vsel %vm1763, %v1732, %v1555
      %v1767 = vsel %vm1763, %v1734, %v1557
      %v1769 = vsel %vm1763, %v1736, %v1559
      %v1771 = vsel %vm1763, %v1738, %v1561
      %v1773 = vsel %vm1763, %v1740, %v1563
      %v1775 = vsel %vm1763, %v1742, %v1565
      %v1777 = vsel %vm1763, %v1744, %v1567
      %v1779 = vsel %vm1763, %v1746, %v1569
      %v1781 = vsel %vm1763, %v1748, %v1571
      %v1783 = vsel %vm1763, %v1750, %v1573
      %v1785 = vsel %vm1763, %v1752, %v1575
      %v1787 = vsel %vm1763, %v1754, %v1577
      %v1789 = vsel %vm1763, %v1756, %v1579
      %v1791 = vsel %vm1763, %v1758, %v1581
      %v1793 = vsel %vm1763, %v1760, %v1583
      %v1795 = vsel %vm1763, %v1762, %v1585
      %vm1796 = vcmask 785408
      %v1798 = vsel %vm1796, %v1765, %v1588
      %v1801 = vsel %vm1796, %v1767, %v1590
      %v1804 = vsel %vm1796, %v1769, %v1592
      %v1807 = vsel %vm1796, %v1771, %v1594
      %v1810 = vsel %vm1796, %v1773, %v1596
      %v1813 = vsel %vm1796, %v1775, %v1598
      %v1816 = vsel %vm1796, %v1777, %v1600
      %v1819 = vsel %vm1796, %v1779, %v1602
      %v1822 = vsel %vm1796, %v1781, %v1604
      %v1825 = vsel %vm1796, %v1783, %v1606
      %v1828 = vsel %vm1796, %v1785, %v1608
      %v1831 = vsel %vm1796, %v1787, %v1610
      %v1834 = vsel %vm1796, %v1789, %v1612
      %v1837 = vsel %vm1796, %v1791, %v1614
      %v1840 = vsel %vm1796, %v1793, %v1616
      %v1843 = vsel %vm1796, %v1795, %v1618
      %v1847 = vsel %vm347, %v1274, %v1636
      %v1850 = vsel %vm347, %v1286, %v1638
      %v1853 = vsel %vm347, %v1298, %v1640
      %v1856 = vsel %vm347, %v1310, %v1642
      %v1859 = vsel %vm347, %v1322, %v1644
      %v1862 = vsel %vm347, %v1334, %v1646
      %v1865 = vsel %vm347, %v1346, %v1648
      %v1868 = vsel %vm347, %v1358, %v1650
      %v1871 = vsel %vm347, %v1370, %v1652
      %v1874 = vsel %vm347, %v1382, %v1654
      %v1877 = vsel %vm347, %v1394, %v1656
      %v1880 = vsel %vm347, %v1406, %v1658
      %v1883 = vsel %vm347, %v1418, %v1660
      %v1886 = vsel %vm347, %v1430, %v1662
      %v1889 = vsel %vm347, %v1442, %v1664
      %v1892 = vsel %vm347, %v1630, %v1666
      %v1894 = vsel %vm1763, %v1847, %v1668
      %v1896 = vsel %vm1763, %v1850, %v1670
      %v1898 = vsel %vm1763, %v1853, %v1672
      %v1900 = vsel %vm1763, %v1856, %v1674
      %v1902 = vsel %vm1763, %v1859, %v1676
      %v1904 = vsel %vm1763, %v1862, %v1678
      %v1906 = vsel %vm1763, %v1865, %v1680
      %v1908 = vsel %vm1763, %v1868, %v1682
      %v1910 = vsel %vm1763, %v1871, %v1684
      %v1912 = vsel %vm1763, %v1874, %v1686
      %v1914 = vsel %vm1763, %v1877, %v1688
      %v1916 = vsel %vm1763, %v1880, %v1690
      %v1918 = vsel %vm1763, %v1883, %v1692
      %v1920 = vsel %vm1763, %v1886, %v1694
      %v1922 = vsel %vm1763, %v1889, %v1696
      %v1924 = vsel %vm1763, %v1892, %v1698
      %v1926 = vsel %vm1796, %v1894, %v1700
      %v1929 = vsel %vm1796, %v1896, %v1702
      %v1932 = vsel %vm1796, %v1898, %v1704
      %v1935 = vsel %vm1796, %v1900, %v1706
      %v1938 = vsel %vm1796, %v1902, %v1708
      %v1941 = vsel %vm1796, %v1904, %v1710
      %v1944 = vsel %vm1796, %v1906, %v1712
      %v1947 = vsel %vm1796, %v1908, %v1714
      %v1950 = vsel %vm1796, %v1910, %v1716
      %v1953 = vsel %vm1796, %v1912, %v1718
      %v1956 = vsel %vm1796, %v1914, %v1720
      %v1959 = vsel %vm1796, %v1916, %v1722
      %v1962 = vsel %vm1796, %v1918, %v1724
      %v1965 = vsel %vm1796, %v1920, %v1726
      %v1968 = vsel %vm1796, %v1922, %v1728
      %v1971 = vsel %vm1796, %v1924, %v1730
      %v1973 = vld [vmem:[%s1] sm:$0xf]
      %v1974 = vld [vmem:[%s1 + $0x4] sm:$0xf]
      %v1975 = vld [vmem:[%s1 + $0x8] sm:$0xf]
      %v1976 = vld [vmem:[%s1 + $0xc] sm:$0xf]
      %v1977 = vld [vmem:[%s1 + $0x10] sm:$0xf]
      %v1978 = vld [vmem:[%s1 + $0x14] sm:$0xf]
      %v1979 = vld [vmem:[%s1 + $0x18] sm:$0xf]
      %v1980 = vld [vmem:[%s1 + $0x1c] sm:$0xf]
      %v1981 = vld [vmem:[%s1 + $0x20] sm:$0xf]
      %v1982 = vld [vmem:[%s1 + $0x24] sm:$0xf]
      %v1983 = vld [vmem:[%s1 + $0x28] sm:$0xf]
      %v1984 = vld [vmem:[%s1 + $0x2c] sm:$0xf]
      %v1985 = vld [vmem:[%s1 + $0x30] sm:$0xf]
      %v1986 = vld [vmem:[%s1 + $0x34] sm:$0xf]
      %v1987 = vld [vmem:[%s1 + $0x38] sm:$0xf]
      %v1988 = vld [vmem:[%s1 + $0x3c] sm:$0xf]
      %v1989 = vld [vmem:[%s1 + $0x40] sm:$0xf]
      %v1990 = vld [vmem:[%s1 + $0x44] sm:$0xf]
      %v1991 = vld [vmem:[%s1 + $0x48] sm:$0xf]
      %v1992 = vld [vmem:[%s1 + $0x4c] sm:$0xf]
      %v1993 = vld [vmem:[%s1 + $0x50] sm:$0xf]
      %v1994 = vld [vmem:[%s1 + $0x54] sm:$0xf]
      %v1995 = vld [vmem:[%s1 + $0x58] sm:$0xf]
      %v1996 = vld [vmem:[%s1 + $0x5c] sm:$0xf]
      %v1997 = vld [vmem:[%s1 + $0x60] sm:$0xf]
      %v1998 = vld [vmem:[%s1 + $0x64] sm:$0xf]
      %v1999 = vld [vmem:[%s1 + $0x68] sm:$0xf]
      %v2000 = vld [vmem:[%s1 + $0x6c] sm:$0xf]
      %v2001 = vld [vmem:[%s1 + $0x70] sm:$0xf]
      %v2002 = vld [vmem:[%s1 + $0x74] sm:$0xf]
      %v2003 = vld [vmem:[%s1 + $0x78] sm:$0xf]
      %v2004 = vld [vmem:[%s1 + $0x7c] sm:$0xf]
      %v2005 = vld [vmem:[%s1 + $0x80] sm:$0xf]
      %v2006 = vld [vmem:[%s1 + $0x84] sm:$0xf]
      %v2007 = vld [vmem:[%s1 + $0x88] sm:$0xf]
      %v2008 = vld [vmem:[%s1 + $0x8c] sm:$0xf]
      %v2009 = vld [vmem:[%s2] sm:$0x1]
      %v2011 = vlaneseq
      %v2012 = vshrl.u32 %v2011, 7
      %v2013 = vsub.s32 0, %v2012
      %v2014 = vrot.slane %v2009, %v2013
      %v2052 = vunpack.c.l.b16 %v1973
      %v2053 = vunpack.c.l.b16 %v1974
      %v2054 = vunpack.c.l.b16 %v1975
      %v2055 = vunpack.c.l.b16 %v1976
      %v2056 = vunpack.c.l.b16 %v1977
      %v2057 = vunpack.c.l.b16 %v1978
      %v2058 = vunpack.c.l.b16 %v1979
      %v2059 = vunpack.c.l.b16 %v1980
      %v2060 = vunpack.c.l.b16 %v1981
      %v2061 = vunpack.c.l.b16 %v1982
      %v2062 = vunpack.c.l.b16 %v1983
      %v2063 = vunpack.c.l.b16 %v1984
      %v2064 = vunpack.c.l.b16 %v1985
      %v2065 = vunpack.c.l.b16 %v1986
      %v2066 = vunpack.c.l.b16 %v1987
      %v2067 = vunpack.c.l.b16 %v1988
      %v2068 = vunpack.c.l.b16 %v1989
      %v2069 = vunpack.c.l.b16 %v1990
      %v2070 = vunpack.c.l.b16 %v1991
      %v2071 = vunpack.c.l.b16 %v1992
      %v2072 = vunpack.c.l.b16 %v1993
      %v2073 = vunpack.c.l.b16 %v1994
      %v2074 = vunpack.c.l.b16 %v1995
      %v2075 = vunpack.c.l.b16 %v1996
      %v2076 = vunpack.c.l.b16 %v1997
      %v2077 = vunpack.c.l.b16 %v1998
      %v2078 = vunpack.c.l.b16 %v1999
      %v2079 = vunpack.c.l.b16 %v2000
      %v2080 = vunpack.c.l.b16 %v2001
      %v2081 = vunpack.c.l.b16 %v2002
      %v2082 = vunpack.c.l.b16 %v2003
      %v2083 = vunpack.c.l.b16 %v2004
      %v2084 = vunpack.c.l.b16 %v2005
      %v2085 = vunpack.c.l.b16 %v2006
      %v2086 = vunpack.c.l.b16 %v2007
      %v2087 = vunpack.c.l.b16 %v2008
      %v2088 = vpack.c.b16 %v2053, %v2052
      %v2089 = vpack.c.b16 %v2055, %v2054
      %v2090 = vpack.c.b16 %v2057, %v2056
      %v2091 = vpack.c.b16 %v2059, %v2058
      %v2092 = vpack.c.b16 %v2061, %v2060
      %v2093 = vpack.c.b16 %v2063, %v2062
      %v2094 = vpack.c.b16 %v2065, %v2064
      %v2095 = vpack.c.b16 %v2067, %v2066
      %v2096 = vpack.c.b16 %v2069, %v2068
      %v2097 = vpack.c.b16 %v2071, %v2070
      %v2098 = vpack.c.b16 %v2073, %v2072
      %v2099 = vpack.c.b16 %v2075, %v2074
      %v2100 = vpack.c.b16 %v2077, %v2076
      %v2101 = vpack.c.b16 %v2079, %v2078
      %v2102 = vpack.c.b16 %v2081, %v2080
      %v2103 = vpack.c.b16 %v2083, %v2082
      %v2104 = vpack.c.b16 %v2085, %v2084
      %v2105 = vpack.c.b16 %v2087, %v2086
      %v2125 = vsel %vm347, %v1514, 0
      %v2128 = vsel %vm347, %v1517, 0
      %v2131 = vsel %vm347, %v1520, 0
      %v2134 = vsel %vm347, %v1523, 0
      %v2137 = vsel %vm347, %v1526, 0
      %v2140 = vsel %vm347, %v1529, 0
      %v2143 = vsel %vm347, %v1532, 0
      %v2146 = vsel %vm347, %v1535, 0
      %v2149 = vsel %vm347, %v1538, 0
      %v2152 = vsel %vm347, %v1541, 0
      %v2155 = vsel %vm347, %v1544, 0
      %v2158 = vsel %vm347, %v1547, 0
      %v2161 = vsel %vm347, %v1550, 0
      %v2164 = vsel %vm347, %v1553, 0
      %v2167 = vsel %vm347, %v1634, 0
      %v2170 = vsel %vm347, %v1508, 0
      %2172 = vmatprep.subr.bf16.mxu0 0
      %2173 = vmatpush1.bf16.msra.mxu0 %v2088
      %2174 = vmatprep.subr.bf16.mxu0 0
      %2175 = vmatpush1.bf16.msra.mxu0 %v2089
      %2176 = vmatprep.subr.bf16.mxu0 0
      %2177 = vmatpush1.bf16.msra.mxu0 %v2090
      %2178 = vmatprep.subr.bf16.mxu0 0
      %2179 = vmatpush1.bf16.msra.mxu0 %v2091
      %2180 = vmatprep.subr.bf16.mxu0 0
      %2181 = vmatpush1.bf16.msra.mxu0 %v2092
      %2182 = vmatprep.subr.bf16.mxu0 0
      %2183 = vmatpush1.bf16.msra.mxu0 %v2093
      %2184 = vmatprep.subr.bf16.mxu0 0
      %2185 = vmatpush1.bf16.msra.mxu0 %v2094
      %2186 = vmatprep.subr.bf16.mxu0 0
      %2187 = vmatpush1.bf16.msra.mxu0 %v2095
      %2188 = vmatprep.subr.bf16.mxu0 0
      %2189 = vmatpush1.bf16.msra.mxu0 %v2096
      %2190 = vmatprep.subr.bf16.mxu0 0
      %2191 = vmatpush1.bf16.msra.mxu0 %v2097
      %2192 = vmatprep.subr.bf16.mxu0 0
      %2193 = vmatpush1.bf16.msra.mxu0 %v2098
      %2194 = vmatprep.subr.bf16.mxu0 0
      %2195 = vmatpush1.bf16.msra.mxu0 %v2099
      %2196 = vmatprep.subr.bf16.mxu0 0
      %2197 = vmatpush1.bf16.msra.mxu0 %v2100
      %2198 = vmatprep.subr.bf16.mxu0 0
      %2199 = vmatpush1.bf16.msra.mxu0 %v2101
      %2200 = vmatprep.subr.bf16.mxu0 0
      %2201 = vmatpush1.bf16.msra.mxu0 %v2102
      %2202 = vmatprep.subr.bf16.mxu0 0
      %2203 = vmatpush1.bf16.msra.mxu0 %v2103
      %2204 = vmatprep.mubr.bf16.mxu0 %v1926
      %2205 = vmatmul.mubr.bf16.gmra.mrb[0].mxu0 %v1798
      %v2206 = vpop.f32.mrb[0].mxu0
      %v2207 = vadd.f32 %v2014, %v2206
      %v2208 = vpop.f32.mrb[0].mxu0
      %v2209 = vpop.f32.mrb[0].mxu0
      %v2210 = vadd.f32 %v2014, %v2209
      %v2211 = vpop.f32.mrb[0].mxu0
      %2212 = vmatprep.mubr.bf16.mxu0 %v1929
      %2213 = vmatmul.mubr.bf16.gmra.mrb[0].mxu0 %v1801
      %v2214 = vpop.f32.mrb[0].mxu0
      %v2215 = vadd.f32 %v2014, %v2214
      %v2216 = vpop.f32.mrb[0].mxu0
      %v2217 = vpop.f32.mrb[0].mxu0
      %v2218 = vadd.f32 %v2014, %v2217
      %v2219 = vpop.f32.mrb[0].mxu0
      %2220 = vmatprep.mubr.bf16.mxu0 %v1932
      %2221 = vmatmul.mubr.bf16.gmra.mrb[0].mxu0 %v1804
      %v2222 = vpop.f32.mrb[0].mxu0
      %v2223 = vadd.f32 %v2014, %v2222
      %v2224 = vpop.f32.mrb[0].mxu0
      %v2225 = vpop.f32.mrb[0].mxu0
      %v2226 = vadd.f32 %v2014, %v2225
      %v2227 = vpop.f32.mrb[0].mxu0
      %2228 = vmatprep.mubr.bf16.mxu0 %v1935
      %2229 = vmatmul.mubr.bf16.gmra.mrb[0].mxu0 %v1807
      %v2230 = vpop.f32.mrb[0].mxu0
      %v2231 = vadd.f32 %v2014, %v2230
      %v2232 = vpop.f32.mrb[0].mxu0
      %v2233 = vpop.f32.mrb[0].mxu0
      %v2234 = vadd.f32 %v2014, %v2233
      %v2235 = vpop.f32.mrb[0].mxu0
      %2236 = vmatprep.mubr.bf16.mxu0 %v1938
      %2237 = vmatmul.mubr.bf16.gmra.mrb[0].mxu0 %v1810
      %v2238 = vpop.f32.mrb[0].mxu0
      %v2239 = vadd.f32 %v2014, %v2238
      %v2240 = vpop.f32.mrb[0].mxu0
      %v2241 = vpop.f32.mrb[0].mxu0
      %v2242 = vadd.f32 %v2014, %v2241
      %v2243 = vpop.f32.mrb[0].mxu0
      %2244 = vmatprep.mubr.bf16.mxu0 %v1941
      %2245 = vmatmul.mubr.bf16.gmra.mrb[0].mxu0 %v1813
      %v2246 = vpop.f32.mrb[0].mxu0
      %v2247 = vadd.f32 %v2014, %v2246
      %v2248 = vpop.f32.mrb[0].mxu0
      %v2249 = vpop.f32.mrb[0].mxu0
      %v2250 = vadd.f32 %v2014, %v2249
      %v2251 = vpop.f32.mrb[0].mxu0
      %2252 = vmatprep.mubr.bf16.mxu0 %v1944
      %2253 = vmatmul.mubr.bf16.gmra.mrb[0].mxu0 %v1816
      %v2254 = vpop.f32.mrb[0].mxu0
      %v2255 = vadd.f32 %v2014, %v2254
      %v2256 = vpop.f32.mrb[0].mxu0
      %v2257 = vpop.f32.mrb[0].mxu0
      %v2258 = vadd.f32 %v2014, %v2257
      %v2259 = vpop.f32.mrb[0].mxu0
      %2260 = vmatprep.mubr.bf16.mxu0 %v1947
      %2261 = vmatmul.mubr.bf16.gmra.mrb[0].mxu0 %v1819
      %v2262 = vpop.f32.mrb[0].mxu0
      %v2263 = vadd.f32 %v2014, %v2262
      %v2264 = vpop.f32.mrb[0].mxu0
      %v2265 = vpop.f32.mrb[0].mxu0
      %v2266 = vadd.f32 %v2014, %v2265
      %v2267 = vpop.f32.mrb[0].mxu0
      %2268 = vmatprep.mubr.bf16.mxu0 %v1950
      %2269 = vmatmul.mubr.bf16.gmra.mrb[0].mxu0 %v1822
      %v2270 = vpop.f32.mrb[0].mxu0
      %v2271 = vadd.f32 %v2014, %v2270
      %v2272 = vpop.f32.mrb[0].mxu0
      %v2273 = vpop.f32.mrb[0].mxu0
      %v2274 = vadd.f32 %v2014, %v2273
      %v2275 = vpop.f32.mrb[0].mxu0
      %2276 = vmatprep.mubr.bf16.mxu0 %v1953
      %2277 = vmatmul.mubr.bf16.gmra.mrb[0].mxu0 %v1825
      %v2278 = vpop.f32.mrb[0].mxu0
      %v2279 = vadd.f32 %v2014, %v2278
      %v2280 = vpop.f32.mrb[0].mxu0
      %v2281 = vpop.f32.mrb[0].mxu0
      %v2282 = vadd.f32 %v2014, %v2281
      %v2283 = vpop.f32.mrb[0].mxu0
      %2284 = vmatprep.mubr.bf16.mxu0 %v1956
      %2285 = vmatmul.mubr.bf16.gmra.mrb[0].mxu0 %v1828
      %v2286 = vpop.f32.mrb[0].mxu0
      %v2287 = vadd.f32 %v2014, %v2286
      %v2288 = vpop.f32.mrb[0].mxu0
      %v2289 = vpop.f32.mrb[0].mxu0
      %v2290 = vadd.f32 %v2014, %v2289
      %v2291 = vpop.f32.mrb[0].mxu0
      %2292 = vmatprep.mubr.bf16.mxu0 %v1959
      %2293 = vmatmul.mubr.bf16.gmra.mrb[0].mxu0 %v1831
      %v2294 = vpop.f32.mrb[0].mxu0
      %v2295 = vadd.f32 %v2014, %v2294
      %v2296 = vpop.f32.mrb[0].mxu0
      %v2297 = vpop.f32.mrb[0].mxu0
      %v2298 = vadd.f32 %v2014, %v2297
      %v2299 = vpop.f32.mrb[0].mxu0
      %2300 = vmatprep.mubr.bf16.mxu0 %v1962
      %2301 = vmatmul.mubr.bf16.gmra.mrb[0].mxu0 %v1834
      %v2302 = vpop.f32.mrb[0].mxu0
      %v2303 = vadd.f32 %v2014, %v2302
      %v2304 = vpop.f32.mrb[0].mxu0
      %v2305 = vpop.f32.mrb[0].mxu0
      %v2306 = vadd.f32 %v2014, %v2305
      %v2307 = vpop.f32.mrb[0].mxu0
      %2308 = vmatprep.mubr.bf16.mxu0 %v1965
      %2309 = vmatmul.mubr.bf16.gmra.mrb[0].mxu0 %v1837
      %v2310 = vpop.f32.mrb[0].mxu0
      %v2311 = vadd.f32 %v2014, %v2310
      %v2312 = vpop.f32.mrb[0].mxu0
      %v2313 = vpop.f32.mrb[0].mxu0
      %v2314 = vadd.f32 %v2014, %v2313
      %v2315 = vpop.f32.mrb[0].mxu0
      %2316 = vmatprep.mubr.bf16.mxu0 %v1968
      %2317 = vmatmul.mubr.bf16.gmra.mrb[0].mxu0 %v1840
      %v2318 = vpop.f32.mrb[0].mxu0
      %v2319 = vadd.f32 %v2014, %v2318
      %v2320 = vpop.f32.mrb[0].mxu0
      %v2321 = vpop.f32.mrb[0].mxu0
      %v2322 = vadd.f32 %v2014, %v2321
      %v2323 = vpop.f32.mrb[0].mxu0
      %2324 = vmatprep.mubr.bf16.mxu0 %v1971
      %2325 = vmatmul.mubr.bf16.gmra.mrb[0].mxu0 %v1843
      %v2326 = vpop.f32.mrb[0].mxu0
      %v2327 = vadd.f32 %v2014, %v2326
      %v2328 = vpop.f32.mrb[0].mxu0
      %v2329 = vpop.f32.mrb[0].mxu0
      %v2330 = vadd.f32 %v2014, %v2329
      %v2331 = vpop.f32.mrb[0].mxu0
      %2332 = vdwg.mxu0
      %2333 = vmatprep.subr.bf16.mxu0 0
      %2334 = vmatpush1.bf16.msra.mxu0 %v2104
      %2335 = vmatprep.subr.bf16.mxu0 0
      %2336 = vmatpush1.bf16.msra.mxu0 %v2105
      %2337 = vmatprep.subr.bf16.mxu0 0
      %2338 = vmatpush1.bf16.msra.mxu0 0
      %2339 = vmatprep.subr.bf16.mxu0 0
      %2340 = vmatpush1.bf16.msra.mxu0 0
      %2341 = vmatprep.subr.bf16.mxu0 0
      %2342 = vmatpush1.bf16.msra.mxu0 0
      %2343 = vmatprep.subr.bf16.mxu0 0
      %2344 = vmatpush1.bf16.msra.mxu0 0
      %2345 = vmatprep.subr.bf16.mxu0 0
      %2346 = vmatpush1.bf16.msra.mxu0 0
      %2347 = vmatprep.subr.bf16.mxu0 0
      %2348 = vmatpush1.bf16.msra.mxu0 0
      %2349 = vmatprep.subr.bf16.mxu0 0
      %2350 = vmatpush1.bf16.msra.mxu0 0
      %2351 = vmatprep.subr.bf16.mxu0 0
      %2352 = vmatpush1.bf16.msra.mxu0 0
      %2353 = vmatprep.subr.bf16.mxu0 0
      %2354 = vmatpush1.bf16.msra.mxu0 0
      %2355 = vmatprep.subr.bf16.mxu0 0
      %2356 = vmatpush1.bf16.msra.mxu0 0
      %2357 = vmatprep.subr.bf16.mxu0 0
      %2358 = vmatpush1.bf16.msra.mxu0 0
      %2359 = vmatprep.subr.bf16.mxu0 0
      %2360 = vmatpush1.bf16.msra.mxu0 0
      %2361 = vmatprep.subr.bf16.mxu0 0
      %2362 = vmatpush1.bf16.msra.mxu0 0
      %2363 = vmatprep.subr.bf16.mxu0 0
      %2364 = vmatpush1.bf16.msra.mxu0 0
      %2365 = vmatprep.mubr.bf16.mxu0 0
      %2366 = vmatmul.mubr.bf16.gmra.mrb[0].mxu0 %v2125
      %v2367 = vpop.f32.mrb[0].mxu0
      %v2368 = vadd.f32 %v2207, %v2367
      %v2369 = vpop.f32.mrb[0].mxu0
      %v2370 = vpop.f32.mrb[0].mxu0
      %v2371 = vadd.f32 %v2210, %v2370
      %v2372 = vpop.f32.mrb[0].mxu0
      %2373 = vmatprep.mubr.bf16.mxu0 0
      %2374 = vmatmul.mubr.bf16.gmra.mrb[0].mxu0 %v2128
      %v2375 = vpop.f32.mrb[0].mxu0
      %v2376 = vadd.f32 %v2215, %v2375
      %v2377 = vpop.f32.mrb[0].mxu0
      %v2378 = vpop.f32.mrb[0].mxu0
      %v2379 = vadd.f32 %v2218, %v2378
      %v2380 = vpop.f32.mrb[0].mxu0
      %2381 = vmatprep.mubr.bf16.mxu0 0
      %2382 = vmatmul.mubr.bf16.gmra.mrb[0].mxu0 %v2131
      %v2383 = vpop.f32.mrb[0].mxu0
      %v2384 = vadd.f32 %v2223, %v2383
      %v2385 = vpop.f32.mrb[0].mxu0
      %v2386 = vpop.f32.mrb[0].mxu0
      %v2387 = vadd.f32 %v2226, %v2386
      %v2388 = vpop.f32.mrb[0].mxu0
      %2389 = vmatprep.mubr.bf16.mxu0 0
      %2390 = vmatmul.mubr.bf16.gmra.mrb[0].mxu0 %v2134
      %v2391 = vpop.f32.mrb[0].mxu0
      %v2392 = vadd.f32 %v2231, %v2391
      %v2393 = vpop.f32.mrb[0].mxu0
      %v2394 = vpop.f32.mrb[0].mxu0
      %v2395 = vadd.f32 %v2234, %v2394
      %v2396 = vpop.f32.mrb[0].mxu0
      %2397 = vmatprep.mubr.bf16.mxu0 0
      %2398 = vmatmul.mubr.bf16.gmra.mrb[0].mxu0 %v2137
      %v2399 = vpop.f32.mrb[0].mxu0
      %v2400 = vadd.f32 %v2239, %v2399
      %v2401 = vpop.f32.mrb[0].mxu0
      %v2402 = vpop.f32.mrb[0].mxu0
      %v2403 = vadd.f32 %v2242, %v2402
      %v2404 = vpop.f32.mrb[0].mxu0
      %2405 = vmatprep.mubr.bf16.mxu0 0
      %2406 = vmatmul.mubr.bf16.gmra.mrb[0].mxu0 %v2140
      %v2407 = vpop.f32.mrb[0].mxu0
      %v2408 = vadd.f32 %v2247, %v2407
      %v2409 = vpop.f32.mrb[0].mxu0
      %v2410 = vpop.f32.mrb[0].mxu0
      %v2411 = vadd.f32 %v2250, %v2410
      %v2412 = vpop.f32.mrb[0].mxu0
      %2413 = vmatprep.mubr.bf16.mxu0 0
      %2414 = vmatmul.mubr.bf16.gmra.mrb[0].mxu0 %v2143
      %v2415 = vpop.f32.mrb[0].mxu0
      %v2416 = vadd.f32 %v2255, %v2415
      %v2417 = vpop.f32.mrb[0].mxu0
      %v2418 = vpop.f32.mrb[0].mxu0
      %v2419 = vadd.f32 %v2258, %v2418
      %v2420 = vpop.f32.mrb[0].mxu0
      %2421 = vmatprep.mubr.bf16.mxu0 0
      %2422 = vmatmul.mubr.bf16.gmra.mrb[0].mxu0 %v2146
      %v2423 = vpop.f32.mrb[0].mxu0
      %v2424 = vadd.f32 %v2263, %v2423
      %v2425 = vpop.f32.mrb[0].mxu0
      %v2426 = vpop.f32.mrb[0].mxu0
      %v2427 = vadd.f32 %v2266, %v2426
      %v2428 = vpop.f32.mrb[0].mxu0
      %2429 = vmatprep.mubr.bf16.mxu0 0
      %2430 = vmatmul.mubr.bf16.gmra.mrb[0].mxu0 %v2149
      %v2431 = vpop.f32.mrb[0].mxu0
      %v2432 = vadd.f32 %v2271, %v2431
      %v2433 = vpop.f32.mrb[0].mxu0
      %v2434 = vpop.f32.mrb[0].mxu0
      %v2435 = vadd.f32 %v2274, %v2434
      %v2436 = vpop.f32.mrb[0].mxu0
      %2437 = vmatprep.mubr.bf16.mxu0 0
      %2438 = vmatmul.mubr.bf16.gmra.mrb[0].mxu0 %v2152
      %v2439 = vpop.f32.mrb[0].mxu0
      %v2440 = vadd.f32 %v2279, %v2439
      %v2441 = vpop.f32.mrb[0].mxu0
      %v2442 = vpop.f32.mrb[0].mxu0
      %v2443 = vadd.f32 %v2282, %v2442
      %v2444 = vpop.f32.mrb[0].mxu0
      %2445 = vmatprep.mubr.bf16.mxu0 0
      %2446 = vmatmul.mubr.bf16.gmra.mrb[0].mxu0 %v2155
      %v2447 = vpop.f32.mrb[0].mxu0
      %v2448 = vadd.f32 %v2287, %v2447
      %v2449 = vpop.f32.mrb[0].mxu0
      %v2450 = vpop.f32.mrb[0].mxu0
      %v2451 = vadd.f32 %v2290, %v2450
      %v2452 = vpop.f32.mrb[0].mxu0
      %2453 = vmatprep.mubr.bf16.mxu0 0
      %2454 = vmatmul.mubr.bf16.gmra.mrb[0].mxu0 %v2158
      %v2455 = vpop.f32.mrb[0].mxu0
      %v2456 = vadd.f32 %v2295, %v2455
      %v2457 = vpop.f32.mrb[0].mxu0
      %v2458 = vpop.f32.mrb[0].mxu0
      %v2459 = vadd.f32 %v2298, %v2458
      %v2460 = vpop.f32.mrb[0].mxu0
      %2461 = vmatprep.mubr.bf16.mxu0 0
      %2462 = vmatmul.mubr.bf16.gmra.mrb[0].mxu0 %v2161
      %v2463 = vpop.f32.mrb[0].mxu0
      %v2464 = vadd.f32 %v2303, %v2463
      %v2465 = vpop.f32.mrb[0].mxu0
      %v2466 = vpop.f32.mrb[0].mxu0
      %v2467 = vadd.f32 %v2306, %v2466
      %v2468 = vpop.f32.mrb[0].mxu0
      %2469 = vmatprep.mubr.bf16.mxu0 0
      %2470 = vmatmul.mubr.bf16.gmra.mrb[0].mxu0 %v2164
      %v2471 = vpop.f32.mrb[0].mxu0
      %v2472 = vadd.f32 %v2311, %v2471
      %v2473 = vpop.f32.mrb[0].mxu0
      %v2474 = vpop.f32.mrb[0].mxu0
      %v2475 = vadd.f32 %v2314, %v2474
      %v2476 = vpop.f32.mrb[0].mxu0
      %2477 = vmatprep.mubr.bf16.mxu0 0
      %2478 = vmatmul.mubr.bf16.gmra.mrb[0].mxu0 %v2167
      %v2479 = vpop.f32.mrb[0].mxu0
      %v2480 = vadd.f32 %v2319, %v2479
      %v2481 = vpop.f32.mrb[0].mxu0
      %v2482 = vpop.f32.mrb[0].mxu0
      %v2483 = vadd.f32 %v2322, %v2482
      %v2484 = vpop.f32.mrb[0].mxu0
      %2485 = vmatprep.mubr.bf16.mxu0 0
      %2486 = vmatmul.mubr.bf16.gmra.mrb[0].mxu0 %v2170
      %v2487 = vpop.f32.mrb[0].mxu0
      %v2488 = vadd.f32 %v2327, %v2487
      %v2489 = vpop.f32.mrb[0].mxu0
      %v2490 = vpop.f32.mrb[0].mxu0
      %v2491 = vadd.f32 %v2330, %v2490
      %v2492 = vpop.f32.mrb[0].mxu0
      %2493 = vdwg.mxu0
      %v2494 = vmul.f32 %v2368, %v2368
      %v2495 = vmul.f32 %v2371, %v2371
      %v2496 = vmul.f32 %v2376, %v2376
      %v2497 = vmul.f32 %v2379, %v2379
      %v2498 = vmul.f32 %v2384, %v2384
      %v2499 = vmul.f32 %v2387, %v2387
      %v2500 = vmul.f32 %v2392, %v2392
      %v2501 = vmul.f32 %v2395, %v2395
      %v2502 = vmul.f32 %v2400, %v2400
      %v2503 = vmul.f32 %v2403, %v2403
      %v2504 = vmul.f32 %v2408, %v2408
      %v2505 = vmul.f32 %v2411, %v2411
      %v2506 = vmul.f32 %v2416, %v2416
      %v2507 = vmul.f32 %v2419, %v2419
      %v2508 = vmul.f32 %v2424, %v2424
      %v2509 = vmul.f32 %v2427, %v2427
      %v2510 = vmul.f32 %v2432, %v2432
      %v2511 = vmul.f32 %v2435, %v2435
      %v2512 = vmul.f32 %v2440, %v2440
      %v2513 = vmul.f32 %v2443, %v2443
      %v2514 = vmul.f32 %v2448, %v2448
      %v2515 = vmul.f32 %v2451, %v2451
      %v2516 = vmul.f32 %v2456, %v2456
      %v2517 = vmul.f32 %v2459, %v2459
      %v2518 = vmul.f32 %v2464, %v2464
      %v2519 = vmul.f32 %v2467, %v2467
      %v2520 = vmul.f32 %v2472, %v2472
      %v2521 = vmul.f32 %v2475, %v2475
      %v2522 = vmul.f32 %v2480, %v2480
      %v2523 = vmul.f32 %v2483, %v2483
      %v2524 = vmul.f32 %v2488, %v2488
      %v2525 = vmul.f32 %v2491, %v2491
      %2526 = vadd.xlane.f32.xlu0 %v2494
      %v2527 = vpop.xlane.xlu0 %2526
      %2528 = vadd.xlane.f32.xlu0 %v2495
      %v2529 = vpop.xlane.xlu0 %2528
      %2530 = vadd.xlane.f32.xlu0 %v2496
      %v2531 = vpop.xlane.xlu0 %2530
      %2532 = vadd.xlane.f32.xlu0 %v2497
      %v2533 = vpop.xlane.xlu0 %2532
      %2534 = vadd.xlane.f32.xlu0 %v2498
      %v2535 = vpop.xlane.xlu0 %2534
      %2536 = vadd.xlane.f32.xlu0 %v2499
      %v2537 = vpop.xlane.xlu0 %2536
      %2538 = vadd.xlane.f32.xlu0 %v2500
      %v2539 = vpop.xlane.xlu0 %2538
      %2540 = vadd.xlane.f32.xlu0 %v2501
      %v2541 = vpop.xlane.xlu0 %2540
      %2542 = vadd.xlane.f32.xlu0 %v2502
      %v2543 = vpop.xlane.xlu0 %2542
      %2544 = vadd.xlane.f32.xlu0 %v2503
      %v2545 = vpop.xlane.xlu0 %2544
      %2546 = vadd.xlane.f32.xlu0 %v2504
      %v2547 = vpop.xlane.xlu0 %2546
      %2548 = vadd.xlane.f32.xlu0 %v2505
      %v2549 = vpop.xlane.xlu0 %2548
      %2550 = vadd.xlane.f32.xlu0 %v2506
      %v2551 = vpop.xlane.xlu0 %2550
      %2552 = vadd.xlane.f32.xlu0 %v2507
      %v2553 = vpop.xlane.xlu0 %2552
      %2554 = vadd.xlane.f32.xlu0 %v2508
      %v2555 = vpop.xlane.xlu0 %2554
      %2556 = vadd.xlane.f32.xlu0 %v2509
      %v2557 = vpop.xlane.xlu0 %2556
      %2558 = vadd.xlane.f32.xlu0 %v2510
      %v2559 = vpop.xlane.xlu0 %2558
      %2560 = vadd.xlane.f32.xlu0 %v2511
      %v2561 = vpop.xlane.xlu0 %2560
      %2562 = vadd.xlane.f32.xlu0 %v2512
      %v2563 = vpop.xlane.xlu0 %2562
      %2564 = vadd.xlane.f32.xlu0 %v2513
      %v2565 = vpop.xlane.xlu0 %2564
      %2566 = vadd.xlane.f32.xlu0 %v2514
      %v2567 = vpop.xlane.xlu0 %2566
      %2568 = vadd.xlane.f32.xlu0 %v2515
      %v2569 = vpop.xlane.xlu0 %2568
      %2570 = vadd.xlane.f32.xlu0 %v2516
      %v2571 = vpop.xlane.xlu0 %2570
      %2572 = vadd.xlane.f32.xlu0 %v2517
      %v2573 = vpop.xlane.xlu0 %2572
      %2574 = vadd.xlane.f32.xlu0 %v2518
      %v2575 = vpop.xlane.xlu0 %2574
      %2576 = vadd.xlane.f32.xlu0 %v2519
      %v2577 = vpop.xlane.xlu0 %2576
      %2578 = vadd.xlane.f32.xlu0 %v2520
      %v2579 = vpop.xlane.xlu0 %2578
      %2580 = vadd.xlane.f32.xlu0 %v2521
      %v2581 = vpop.xlane.xlu0 %2580
      %2582 = vadd.xlane.f32.xlu0 %v2522
      %v2583 = vpop.xlane.xlu0 %2582
      %2584 = vadd.xlane.f32.xlu0 %v2523
      %v2585 = vpop.xlane.xlu0 %2584
      %2586 = vadd.xlane.f32.xlu0 %v2524
      %v2587 = vpop.xlane.xlu0 %2586
      %2588 = vadd.xlane.f32.xlu0 %v2525
      %v2589 = vpop.xlane.xlu0 %2588
      %v2590 = vrsqrt.pop %v2527
      %v2591 = vmul.f32 %v2527, %v2590
      %vm2592 = vcmp.eq.f32.partialorder %v2527, inf
      %v2593 = vsel %vm2592, %v2527, %v2591
      %vm2594 = vcmp.eq.f32.partialorder %v2527, 0.0
      %v2595 = vand.u32 %v2527, 2147483648
      %v2596 = vsel %vm2594, %v2595, %v2593
      %v2597 = vrsqrt.pop %v2529
      %v2598 = vmul.f32 %v2529, %v2597
      %vm2599 = vcmp.eq.f32.partialorder %v2529, inf
      %v2600 = vsel %vm2599, %v2529, %v2598
      %vm2601 = vcmp.eq.f32.partialorder %v2529, 0.0
      %v2602 = vand.u32 %v2529, 2147483648
      %v2603 = vsel %vm2601, %v2602, %v2600
      %v2604 = vrsqrt.pop %v2531
      %v2605 = vmul.f32 %v2531, %v2604
      %vm2606 = vcmp.eq.f32.partialorder %v2531, inf
      %v2607 = vsel %vm2606, %v2531, %v2605
      %vm2608 = vcmp.eq.f32.partialorder %v2531, 0.0
      %v2609 = vand.u32 %v2531, 2147483648
      %v2610 = vsel %vm2608, %v2609, %v2607
      %v2611 = vrsqrt.pop %v2533
      %v2612 = vmul.f32 %v2533, %v2611
      %vm2613 = vcmp.eq.f32.partialorder %v2533, inf
      %v2614 = vsel %vm2613, %v2533, %v2612
      %vm2615 = vcmp.eq.f32.partialorder %v2533, 0.0
      %v2616 = vand.u32 %v2533, 2147483648
      %v2617 = vsel %vm2615, %v2616, %v2614
      %v2618 = vrsqrt.pop %v2535
      %v2619 = vmul.f32 %v2535, %v2618
      %vm2620 = vcmp.eq.f32.partialorder %v2535, inf
      %v2621 = vsel %vm2620, %v2535, %v2619
      %vm2622 = vcmp.eq.f32.partialorder %v2535, 0.0
      %v2623 = vand.u32 %v2535, 2147483648
      %v2624 = vsel %vm2622, %v2623, %v2621
      %v2625 = vrsqrt.pop %v2537
      %v2626 = vmul.f32 %v2537, %v2625
      %vm2627 = vcmp.eq.f32.partialorder %v2537, inf
      %v2628 = vsel %vm2627, %v2537, %v2626
      %vm2629 = vcmp.eq.f32.partialorder %v2537, 0.0
      %v2630 = vand.u32 %v2537, 2147483648
      %v2631 = vsel %vm2629, %v2630, %v2628
      %v2632 = vrsqrt.pop %v2539
      %v2633 = vmul.f32 %v2539, %v2632
      %vm2634 = vcmp.eq.f32.partialorder %v2539, inf
      %v2635 = vsel %vm2634, %v2539, %v2633
      %vm2636 = vcmp.eq.f32.partialorder %v2539, 0.0
      %v2637 = vand.u32 %v2539, 2147483648
      %v2638 = vsel %vm2636, %v2637, %v2635
      %v2639 = vrsqrt.pop %v2541
      %v2640 = vmul.f32 %v2541, %v2639
      %vm2641 = vcmp.eq.f32.partialorder %v2541, inf
      %v2642 = vsel %vm2641, %v2541, %v2640
      %vm2643 = vcmp.eq.f32.partialorder %v2541, 0.0
      %v2644 = vand.u32 %v2541, 2147483648
      %v2645 = vsel %vm2643, %v2644, %v2642
      %v2646 = vrsqrt.pop %v2543
      %v2647 = vmul.f32 %v2543, %v2646
      %vm2648 = vcmp.eq.f32.partialorder %v2543, inf
      %v2649 = vsel %vm2648, %v2543, %v2647
      %vm2650 = vcmp.eq.f32.partialorder %v2543, 0.0
      %v2651 = vand.u32 %v2543, 2147483648
      %v2652 = vsel %vm2650, %v2651, %v2649
      %v2653 = vrsqrt.pop %v2545
      %v2654 = vmul.f32 %v2545, %v2653
      %vm2655 = vcmp.eq.f32.partialorder %v2545, inf
      %v2656 = vsel %vm2655, %v2545, %v2654
      %vm2657 = vcmp.eq.f32.partialorder %v2545, 0.0
      %v2658 = vand.u32 %v2545, 2147483648
      %v2659 = vsel %vm2657, %v2658, %v2656
      %v2660 = vrsqrt.pop %v2547
      %v2661 = vmul.f32 %v2547, %v2660
      %vm2662 = vcmp.eq.f32.partialorder %v2547, inf
      %v2663 = vsel %vm2662, %v2547, %v2661
      %vm2664 = vcmp.eq.f32.partialorder %v2547, 0.0
      %v2665 = vand.u32 %v2547, 2147483648
      %v2666 = vsel %vm2664, %v2665, %v2663
      %v2667 = vrsqrt.pop %v2549
      %v2668 = vmul.f32 %v2549, %v2667
      %vm2669 = vcmp.eq.f32.partialorder %v2549, inf
      %v2670 = vsel %vm2669, %v2549, %v2668
      %vm2671 = vcmp.eq.f32.partialorder %v2549, 0.0
      %v2672 = vand.u32 %v2549, 2147483648
      %v2673 = vsel %vm2671, %v2672, %v2670
      %v2674 = vrsqrt.pop %v2551
      %v2675 = vmul.f32 %v2551, %v2674
      %vm2676 = vcmp.eq.f32.partialorder %v2551, inf
      %v2677 = vsel %vm2676, %v2551, %v2675
      %vm2678 = vcmp.eq.f32.partialorder %v2551, 0.0
      %v2679 = vand.u32 %v2551, 2147483648
      %v2680 = vsel %vm2678, %v2679, %v2677
      %v2681 = vrsqrt.pop %v2553
      %v2682 = vmul.f32 %v2553, %v2681
      %vm2683 = vcmp.eq.f32.partialorder %v2553, inf
      %v2684 = vsel %vm2683, %v2553, %v2682
      %vm2685 = vcmp.eq.f32.partialorder %v2553, 0.0
      %v2686 = vand.u32 %v2553, 2147483648
      %v2687 = vsel %vm2685, %v2686, %v2684
      %v2688 = vrsqrt.pop %v2555
      %v2689 = vmul.f32 %v2555, %v2688
      %vm2690 = vcmp.eq.f32.partialorder %v2555, inf
      %v2691 = vsel %vm2690, %v2555, %v2689
      %vm2692 = vcmp.eq.f32.partialorder %v2555, 0.0
      %v2693 = vand.u32 %v2555, 2147483648
      %v2694 = vsel %vm2692, %v2693, %v2691
      %v2695 = vrsqrt.pop %v2557
      %v2696 = vmul.f32 %v2557, %v2695
      %vm2697 = vcmp.eq.f32.partialorder %v2557, inf
      %v2698 = vsel %vm2697, %v2557, %v2696
      %vm2699 = vcmp.eq.f32.partialorder %v2557, 0.0
      %v2700 = vand.u32 %v2557, 2147483648
      %v2701 = vsel %vm2699, %v2700, %v2698
      %v2702 = vrsqrt.pop %v2559
      %v2703 = vmul.f32 %v2559, %v2702
      %vm2704 = vcmp.eq.f32.partialorder %v2559, inf
      %v2705 = vsel %vm2704, %v2559, %v2703
      %vm2706 = vcmp.eq.f32.partialorder %v2559, 0.0
      %v2707 = vand.u32 %v2559, 2147483648
      %v2708 = vsel %vm2706, %v2707, %v2705
      %v2709 = vrsqrt.pop %v2561
      %v2710 = vmul.f32 %v2561, %v2709
      %vm2711 = vcmp.eq.f32.partialorder %v2561, inf
      %v2712 = vsel %vm2711, %v2561, %v2710
      %vm2713 = vcmp.eq.f32.partialorder %v2561, 0.0
      %v2714 = vand.u32 %v2561, 2147483648
      %v2715 = vsel %vm2713, %v2714, %v2712
      %v2716 = vrsqrt.pop %v2563
      %v2717 = vmul.f32 %v2563, %v2716
      %vm2718 = vcmp.eq.f32.partialorder %v2563, inf
      %v2719 = vsel %vm2718, %v2563, %v2717
      %vm2720 = vcmp.eq.f32.partialorder %v2563, 0.0
      %v2721 = vand.u32 %v2563, 2147483648
      %v2722 = vsel %vm2720, %v2721, %v2719
      %v2723 = vrsqrt.pop %v2565
      %v2724 = vmul.f32 %v2565, %v2723
      %vm2725 = vcmp.eq.f32.partialorder %v2565, inf
      %v2726 = vsel %vm2725, %v2565, %v2724
      %vm2727 = vcmp.eq.f32.partialorder %v2565, 0.0
      %v2728 = vand.u32 %v2565, 2147483648
      %v2729 = vsel %vm2727, %v2728, %v2726
      %v2730 = vrsqrt.pop %v2567
      %v2731 = vmul.f32 %v2567, %v2730
      %vm2732 = vcmp.eq.f32.partialorder %v2567, inf
      %v2733 = vsel %vm2732, %v2567, %v2731
      %vm2734 = vcmp.eq.f32.partialorder %v2567, 0.0
      %v2735 = vand.u32 %v2567, 2147483648
      %v2736 = vsel %vm2734, %v2735, %v2733
      %v2737 = vrsqrt.pop %v2569
      %v2738 = vmul.f32 %v2569, %v2737
      %vm2739 = vcmp.eq.f32.partialorder %v2569, inf
      %v2740 = vsel %vm2739, %v2569, %v2738
      %vm2741 = vcmp.eq.f32.partialorder %v2569, 0.0
      %v2742 = vand.u32 %v2569, 2147483648
      %v2743 = vsel %vm2741, %v2742, %v2740
      %v2744 = vrsqrt.pop %v2571
      %v2745 = vmul.f32 %v2571, %v2744
      %vm2746 = vcmp.eq.f32.partialorder %v2571, inf
      %v2747 = vsel %vm2746, %v2571, %v2745
      %vm2748 = vcmp.eq.f32.partialorder %v2571, 0.0
      %v2749 = vand.u32 %v2571, 2147483648
      %v2750 = vsel %vm2748, %v2749, %v2747
      %v2751 = vrsqrt.pop %v2573
      %v2752 = vmul.f32 %v2573, %v2751
      %vm2753 = vcmp.eq.f32.partialorder %v2573, inf
      %v2754 = vsel %vm2753, %v2573, %v2752
      %vm2755 = vcmp.eq.f32.partialorder %v2573, 0.0
      %v2756 = vand.u32 %v2573, 2147483648
      %v2757 = vsel %vm2755, %v2756, %v2754
      %v2758 = vrsqrt.pop %v2575
      %v2759 = vmul.f32 %v2575, %v2758
      %vm2760 = vcmp.eq.f32.partialorder %v2575, inf
      %v2761 = vsel %vm2760, %v2575, %v2759
      %vm2762 = vcmp.eq.f32.partialorder %v2575, 0.0
      %v2763 = vand.u32 %v2575, 2147483648
      %v2764 = vsel %vm2762, %v2763, %v2761
      %v2765 = vrsqrt.pop %v2577
      %v2766 = vmul.f32 %v2577, %v2765
      %vm2767 = vcmp.eq.f32.partialorder %v2577, inf
      %v2768 = vsel %vm2767, %v2577, %v2766
      %vm2769 = vcmp.eq.f32.partialorder %v2577, 0.0
      %v2770 = vand.u32 %v2577, 2147483648
      %v2771 = vsel %vm2769, %v2770, %v2768
      %v2772 = vrsqrt.pop %v2579
      %v2773 = vmul.f32 %v2579, %v2772
      %vm2774 = vcmp.eq.f32.partialorder %v2579, inf
      %v2775 = vsel %vm2774, %v2579, %v2773
      %vm2776 = vcmp.eq.f32.partialorder %v2579, 0.0
      %v2777 = vand.u32 %v2579, 2147483648
      %v2778 = vsel %vm2776, %v2777, %v2775
      %v2779 = vrsqrt.pop %v2581
      %v2780 = vmul.f32 %v2581, %v2779
      %vm2781 = vcmp.eq.f32.partialorder %v2581, inf
      %v2782 = vsel %vm2781, %v2581, %v2780
      %vm2783 = vcmp.eq.f32.partialorder %v2581, 0.0
      %v2784 = vand.u32 %v2581, 2147483648
      %v2785 = vsel %vm2783, %v2784, %v2782
      %v2786 = vrsqrt.pop %v2583
      %v2787 = vmul.f32 %v2583, %v2786
      %vm2788 = vcmp.eq.f32.partialorder %v2583, inf
      %v2789 = vsel %vm2788, %v2583, %v2787
      %vm2790 = vcmp.eq.f32.partialorder %v2583, 0.0
      %v2791 = vand.u32 %v2583, 2147483648
      %v2792 = vsel %vm2790, %v2791, %v2789
      %v2793 = vrsqrt.pop %v2585
      %v2794 = vmul.f32 %v2585, %v2793
      %vm2795 = vcmp.eq.f32.partialorder %v2585, inf
      %v2796 = vsel %vm2795, %v2585, %v2794
      %vm2797 = vcmp.eq.f32.partialorder %v2585, 0.0
      %v2798 = vand.u32 %v2585, 2147483648
      %v2799 = vsel %vm2797, %v2798, %v2796
      %v2800 = vrsqrt.pop %v2587
      %v2801 = vmul.f32 %v2587, %v2800
      %vm2802 = vcmp.eq.f32.partialorder %v2587, inf
      %v2803 = vsel %vm2802, %v2587, %v2801
      %vm2804 = vcmp.eq.f32.partialorder %v2587, 0.0
      %v2805 = vand.u32 %v2587, 2147483648
      %v2806 = vsel %vm2804, %v2805, %v2803
      %v2807 = vrsqrt.pop %v2589
      %v2808 = vmul.f32 %v2589, %v2807
      %vm2809 = vcmp.eq.f32.partialorder %v2589, inf
      %v2810 = vsel %vm2809, %v2589, %v2808
      %vm2811 = vcmp.eq.f32.partialorder %v2589, 0.0
      %v2812 = vand.u32 %v2589, 2147483648
      %v2813 = vsel %vm2811, %v2812, %v2810
      %v2814 = vmax.f32 %v2596, 1e-12
      %v2815 = vmax.f32 %v2603, 1e-12
      %v2816 = vmax.f32 %v2610, 1e-12
      %v2817 = vmax.f32 %v2617, 1e-12
      %v2818 = vmax.f32 %v2624, 1e-12
      %v2819 = vmax.f32 %v2631, 1e-12
      %v2820 = vmax.f32 %v2638, 1e-12
      %v2821 = vmax.f32 %v2645, 1e-12
      %v2822 = vmax.f32 %v2652, 1e-12
      %v2823 = vmax.f32 %v2659, 1e-12
      %v2824 = vmax.f32 %v2666, 1e-12
      %v2825 = vmax.f32 %v2673, 1e-12
      %v2826 = vmax.f32 %v2680, 1e-12
      %v2827 = vmax.f32 %v2687, 1e-12
      %v2828 = vmax.f32 %v2694, 1e-12
      %v2829 = vmax.f32 %v2701, 1e-12
      %v2830 = vmax.f32 %v2708, 1e-12
      %v2831 = vmax.f32 %v2715, 1e-12
      %v2832 = vmax.f32 %v2722, 1e-12
      %v2833 = vmax.f32 %v2729, 1e-12
      %v2834 = vmax.f32 %v2736, 1e-12
      %v2835 = vmax.f32 %v2743, 1e-12
      %v2836 = vmax.f32 %v2750, 1e-12
      %v2837 = vmax.f32 %v2757, 1e-12
      %v2838 = vmax.f32 %v2764, 1e-12
      %v2839 = vmax.f32 %v2771, 1e-12
      %v2840 = vmax.f32 %v2778, 1e-12
      %v2841 = vmax.f32 %v2785, 1e-12
      %v2842 = vmax.f32 %v2792, 1e-12
      %v2843 = vmax.f32 %v2799, 1e-12
      %v2844 = vmax.f32 %v2806, 1e-12
      %v2845 = vmax.f32 %v2813, 1e-12
      %v2846 = vrcp.pop %v2814
      %v2847 = vmul.f32 8.0, %v2846
      %v2848 = vrcp.pop %v2815
      %v2849 = vmul.f32 8.0, %v2848
      %v2850 = vrcp.pop %v2816
      %v2851 = vmul.f32 8.0, %v2850
      %v2852 = vrcp.pop %v2817
      %v2853 = vmul.f32 8.0, %v2852
      %v2854 = vrcp.pop %v2818
      %v2855 = vmul.f32 8.0, %v2854
      %v2856 = vrcp.pop %v2819
      %v2857 = vmul.f32 8.0, %v2856
      %v2858 = vrcp.pop %v2820
      %v2859 = vmul.f32 8.0, %v2858
      %v2860 = vrcp.pop %v2821
      %v2861 = vmul.f32 8.0, %v2860
      %v2862 = vrcp.pop %v2822
      %v2863 = vmul.f32 8.0, %v2862
      %v2864 = vrcp.pop %v2823
      %v2865 = vmul.f32 8.0, %v2864
      %v2866 = vrcp.pop %v2824
      %v2867 = vmul.f32 8.0, %v2866
      %v2868 = vrcp.pop %v2825
      %v2869 = vmul.f32 8.0, %v2868
      %v2870 = vrcp.pop %v2826
      %v2871 = vmul.f32 8.0, %v2870
      %v2872 = vrcp.pop %v2827
      %v2873 = vmul.f32 8.0, %v2872
      %v2874 = vrcp.pop %v2828
      %v2875 = vmul.f32 8.0, %v2874
      %v2876 = vrcp.pop %v2829
      %v2877 = vmul.f32 8.0, %v2876
      %v2878 = vrcp.pop %v2830
      %v2879 = vmul.f32 8.0, %v2878
      %v2880 = vrcp.pop %v2831
      %v2881 = vmul.f32 8.0, %v2880
      %v2882 = vrcp.pop %v2832
      %v2883 = vmul.f32 8.0, %v2882
      %v2884 = vrcp.pop %v2833
      %v2885 = vmul.f32 8.0, %v2884
      %v2886 = vrcp.pop %v2834
      %v2887 = vmul.f32 8.0, %v2886
      %v2888 = vrcp.pop %v2835
      %v2889 = vmul.f32 8.0, %v2888
      %v2890 = vrcp.pop %v2836
      %v2891 = vmul.f32 8.0, %v2890
      %v2892 = vrcp.pop %v2837
      %v2893 = vmul.f32 8.0, %v2892
      %v2894 = vrcp.pop %v2838
      %v2895 = vmul.f32 8.0, %v2894
      %v2896 = vrcp.pop %v2839
      %v2897 = vmul.f32 8.0, %v2896
      %v2898 = vrcp.pop %v2840
      %v2899 = vmul.f32 8.0, %v2898
      %v2900 = vrcp.pop %v2841
      %v2901 = vmul.f32 8.0, %v2900
      %v2902 = vrcp.pop %v2842
      %v2903 = vmul.f32 8.0, %v2902
      %v2904 = vrcp.pop %v2843
      %v2905 = vmul.f32 8.0, %v2904
      %v2906 = vrcp.pop %v2844
      %v2907 = vmul.f32 8.0, %v2906
      %v2908 = vrcp.pop %v2845
      %v2909 = vmul.f32 8.0, %v2908
      %v2910 = vmul.f32 %v2368, %v2847
      %v2911 = vmul.f32 %v2371, %v2849
      %v2912 = vmul.f32 %v2376, %v2851
      %v2913 = vmul.f32 %v2379, %v2853
      %v2914 = vmul.f32 %v2384, %v2855
      %v2915 = vmul.f32 %v2387, %v2857
      %v2916 = vmul.f32 %v2392, %v2859
      %v2917 = vmul.f32 %v2395, %v2861
      %v2918 = vmul.f32 %v2400, %v2863
      %v2919 = vmul.f32 %v2403, %v2865
      %v2920 = vmul.f32 %v2408, %v2867
      %v2921 = vmul.f32 %v2411, %v2869
      %v2922 = vmul.f32 %v2416, %v2871
      %v2923 = vmul.f32 %v2419, %v2873
      %v2924 = vmul.f32 %v2424, %v2875
      %v2925 = vmul.f32 %v2427, %v2877
      %v2926 = vmul.f32 %v2432, %v2879
      %v2927 = vmul.f32 %v2435, %v2881
      %v2928 = vmul.f32 %v2440, %v2883
      %v2929 = vmul.f32 %v2443, %v2885
      %v2930 = vmul.f32 %v2448, %v2887
      %v2931 = vmul.f32 %v2451, %v2889
      %v2932 = vmul.f32 %v2456, %v2891
      %v2933 = vmul.f32 %v2459, %v2893
      %v2934 = vmul.f32 %v2464, %v2895
      %v2935 = vmul.f32 %v2467, %v2897
      %v2936 = vmul.f32 %v2472, %v2899
      %v2937 = vmul.f32 %v2475, %v2901
      %v2938 = vmul.f32 %v2480, %v2903
      %v2939 = vmul.f32 %v2483, %v2905
      %v2940 = vmul.f32 %v2488, %v2907
      %v2941 = vmul.f32 %v2491, %v2909
      %v2942 = vld [vmem:[%s4] sm:$0x1]
      %v2944 = vlaneseq
      %v2945 = vshrl.u32 %v2944, 7
      %v2946 = vsub.s32 0, %v2945
      %v2947 = vrot.slane %v2942, %v2946
      %v2949 = vmul.f32 %v2910, %v2947
      %v2950 = vmul.f32 %v2911, %v2947
      %v2951 = vmul.f32 %v2912, %v2947
      %v2952 = vmul.f32 %v2913, %v2947
      %v2953 = vmul.f32 %v2914, %v2947
      %v2954 = vmul.f32 %v2915, %v2947
      %v2955 = vmul.f32 %v2916, %v2947
      %v2956 = vmul.f32 %v2917, %v2947
      %v2957 = vmul.f32 %v2918, %v2947
      %v2958 = vmul.f32 %v2919, %v2947
      %v2959 = vmul.f32 %v2920, %v2947
      %v2960 = vmul.f32 %v2921, %v2947
      %v2961 = vmul.f32 %v2922, %v2947
      %v2962 = vmul.f32 %v2923, %v2947
      %v2963 = vmul.f32 %v2924, %v2947
      %v2964 = vmul.f32 %v2925, %v2947
      %v2965 = vmul.f32 %v2926, %v2947
      %v2966 = vmul.f32 %v2927, %v2947
      %v2967 = vmul.f32 %v2928, %v2947
      %v2968 = vmul.f32 %v2929, %v2947
      %v2969 = vmul.f32 %v2930, %v2947
      %v2970 = vmul.f32 %v2931, %v2947
      %v2971 = vmul.f32 %v2932, %v2947
      %v2972 = vmul.f32 %v2933, %v2947
      %v2973 = vmul.f32 %v2934, %v2947
      %v2974 = vmul.f32 %v2935, %v2947
      %v2975 = vmul.f32 %v2936, %v2947
      %v2976 = vmul.f32 %v2937, %v2947
      %v2977 = vmul.f32 %v2938, %v2947
      %v2978 = vmul.f32 %v2939, %v2947
      %v2979 = vmul.f32 %v2940, %v2947
      %v2980 = vmul.f32 %v2941, %v2947
      %v2981 = vxor.u32 %v2949, 2147483648
      %v2982 = vxor.u32 %v2950, 2147483648
      %v2983 = vxor.u32 %v2951, 2147483648
      %v2984 = vxor.u32 %v2952, 2147483648
      %v2985 = vxor.u32 %v2953, 2147483648
      %v2986 = vxor.u32 %v2954, 2147483648
      %v2987 = vxor.u32 %v2955, 2147483648
      %v2988 = vxor.u32 %v2956, 2147483648
      %v2989 = vxor.u32 %v2957, 2147483648
      %v2990 = vxor.u32 %v2958, 2147483648
      %v2991 = vxor.u32 %v2959, 2147483648
      %v2992 = vxor.u32 %v2960, 2147483648
      %v2993 = vxor.u32 %v2961, 2147483648
      %v2994 = vxor.u32 %v2962, 2147483648
      %v2995 = vxor.u32 %v2963, 2147483648
      %v2996 = vxor.u32 %v2964, 2147483648
      %v2997 = vxor.u32 %v2965, 2147483648
      %v2998 = vxor.u32 %v2966, 2147483648
      %v2999 = vxor.u32 %v2967, 2147483648
      %v3000 = vxor.u32 %v2968, 2147483648
      %v3001 = vxor.u32 %v2969, 2147483648
      %v3002 = vxor.u32 %v2970, 2147483648
      %v3003 = vxor.u32 %v2971, 2147483648
      %v3004 = vxor.u32 %v2972, 2147483648
      %v3005 = vxor.u32 %v2973, 2147483648
      %v3006 = vxor.u32 %v2974, 2147483648
      %v3007 = vxor.u32 %v2975, 2147483648
      %v3008 = vxor.u32 %v2976, 2147483648
      %v3009 = vxor.u32 %v2977, 2147483648
      %v3010 = vxor.u32 %v2978, 2147483648
      %v3011 = vxor.u32 %v2979, 2147483648
      %v3012 = vxor.u32 %v2980, 2147483648
      %v3013 = vmul.f32 %v2981, 1.442695
      %v3014 = vpow.pop %v3013
      %v3015 = vmul.f32 %v2982, 1.442695
      %v3016 = vpow.pop %v3015
      %v3017 = vmul.f32 %v2983, 1.442695
      %v3018 = vpow.pop %v3017
      %v3019 = vmul.f32 %v2984, 1.442695
      %v3020 = vpow.pop %v3019
      %v3021 = vmul.f32 %v2985, 1.442695
      %v3022 = vpow.pop %v3021
      %v3023 = vmul.f32 %v2986, 1.442695
      %v3024 = vpow.pop %v3023
      %v3025 = vmul.f32 %v2987, 1.442695
      %v3026 = vpow.pop %v3025
      %v3027 = vmul.f32 %v2988, 1.442695
      %v3028 = vpow.pop %v3027
      %v3029 = vmul.f32 %v2989, 1.442695
      %v3030 = vpow.pop %v3029
      %v3031 = vmul.f32 %v2990, 1.442695
      %v3032 = vpow.pop %v3031
      %v3033 = vmul.f32 %v2991, 1.442695
      %v3034 = vpow.pop %v3033
      %v3035 = vmul.f32 %v2992, 1.442695
      %v3036 = vpow.pop %v3035
      %v3037 = vmul.f32 %v2993, 1.442695
      %v3038 = vpow.pop %v3037
      %v3039 = vmul.f32 %v2994, 1.442695
      %v3040 = vpow.pop %v3039
      %v3041 = vmul.f32 %v2995, 1.442695
      %v3042 = vpow.pop %v3041
      %v3043 = vmul.f32 %v2996, 1.442695
      %v3044 = vpow.pop %v3043
      %v3045 = vmul.f32 %v2997, 1.442695
      %v3046 = vpow.pop %v3045
      %v3047 = vmul.f32 %v2998, 1.442695
      %v3048 = vpow.pop %v3047
      %v3049 = vmul.f32 %v2999, 1.442695
      %v3050 = vpow.pop %v3049
      %v3051 = vmul.f32 %v3000, 1.442695
      %v3052 = vpow.pop %v3051
      %v3053 = vmul.f32 %v3001, 1.442695
      %v3054 = vpow.pop %v3053
      %v3055 = vmul.f32 %v3002, 1.442695
      %v3056 = vpow.pop %v3055
      %v3057 = vmul.f32 %v3003, 1.442695
      %v3058 = vpow.pop %v3057
      %v3059 = vmul.f32 %v3004, 1.442695
      %v3060 = vpow.pop %v3059
      %v3061 = vmul.f32 %v3005, 1.442695
      %v3062 = vpow.pop %v3061
      %v3063 = vmul.f32 %v3006, 1.442695
      %v3064 = vpow.pop %v3063
      %v3065 = vmul.f32 %v3007, 1.442695
      %v3066 = vpow.pop %v3065
      %v3067 = vmul.f32 %v3008, 1.442695
      %v3068 = vpow.pop %v3067
      %v3069 = vmul.f32 %v3009, 1.442695
      %v3070 = vpow.pop %v3069
      %v3071 = vmul.f32 %v3010, 1.442695
      %v3072 = vpow.pop %v3071
      %v3073 = vmul.f32 %v3011, 1.442695
      %v3074 = vpow.pop %v3073
      %v3075 = vmul.f32 %v3012, 1.442695
      %v3076 = vpow.pop %v3075
      %v3077 = vadd.f32 %v3014, 1.0
      %v3078 = vadd.f32 %v3016, 1.0
      %v3079 = vadd.f32 %v3018, 1.0
      %v3080 = vadd.f32 %v3020, 1.0
      %v3081 = vadd.f32 %v3022, 1.0
      %v3082 = vadd.f32 %v3024, 1.0
      %v3083 = vadd.f32 %v3026, 1.0
      %v3084 = vadd.f32 %v3028, 1.0
      %v3085 = vadd.f32 %v3030, 1.0
      %v3086 = vadd.f32 %v3032, 1.0
      %v3087 = vadd.f32 %v3034, 1.0
      %v3088 = vadd.f32 %v3036, 1.0
      %v3089 = vadd.f32 %v3038, 1.0
      %v3090 = vadd.f32 %v3040, 1.0
      %v3091 = vadd.f32 %v3042, 1.0
      %v3092 = vadd.f32 %v3044, 1.0
      %v3093 = vadd.f32 %v3046, 1.0
      %v3094 = vadd.f32 %v3048, 1.0
      %v3095 = vadd.f32 %v3050, 1.0
      %v3096 = vadd.f32 %v3052, 1.0
      %v3097 = vadd.f32 %v3054, 1.0
      %v3098 = vadd.f32 %v3056, 1.0
      %v3099 = vadd.f32 %v3058, 1.0
      %v3100 = vadd.f32 %v3060, 1.0
      %v3101 = vadd.f32 %v3062, 1.0
      %v3102 = vadd.f32 %v3064, 1.0
      %v3103 = vadd.f32 %v3066, 1.0
      %v3104 = vadd.f32 %v3068, 1.0
      %v3105 = vadd.f32 %v3070, 1.0
      %v3106 = vadd.f32 %v3072, 1.0
      %v3107 = vadd.f32 %v3074, 1.0
      %v3108 = vadd.f32 %v3076, 1.0
      %v3109 = vrcp.pop %v3077
      %v3110 = vmul.f32 1.0, %v3109
      %v3111 = vrcp.pop %v3078
      %v3112 = vmul.f32 1.0, %v3111
      %v3113 = vrcp.pop %v3079
      %v3114 = vmul.f32 1.0, %v3113
      %v3115 = vrcp.pop %v3080
      %v3116 = vmul.f32 1.0, %v3115
      %v3117 = vrcp.pop %v3081
      %v3118 = vmul.f32 1.0, %v3117
      %v3119 = vrcp.pop %v3082
      %v3120 = vmul.f32 1.0, %v3119
      %v3121 = vrcp.pop %v3083
      %v3122 = vmul.f32 1.0, %v3121
      %v3123 = vrcp.pop %v3084
      %v3124 = vmul.f32 1.0, %v3123
      %v3125 = vrcp.pop %v3085
      %v3126 = vmul.f32 1.0, %v3125
      %v3127 = vrcp.pop %v3086
      %v3128 = vmul.f32 1.0, %v3127
      %v3129 = vrcp.pop %v3087
      %v3130 = vmul.f32 1.0, %v3129
      %v3131 = vrcp.pop %v3088
      %v3132 = vmul.f32 1.0, %v3131
      %v3133 = vrcp.pop %v3089
      %v3134 = vmul.f32 1.0, %v3133
      %v3135 = vrcp.pop %v3090
      %v3136 = vmul.f32 1.0, %v3135
      %v3137 = vrcp.pop %v3091
      %v3138 = vmul.f32 1.0, %v3137
      %v3139 = vrcp.pop %v3092
      %v3140 = vmul.f32 1.0, %v3139
      %v3141 = vrcp.pop %v3093
      %v3142 = vmul.f32 1.0, %v3141
      %v3143 = vrcp.pop %v3094
      %v3144 = vmul.f32 1.0, %v3143
      %v3145 = vrcp.pop %v3095
      %v3146 = vmul.f32 1.0, %v3145
      %v3147 = vrcp.pop %v3096
      %v3148 = vmul.f32 1.0, %v3147
      %v3149 = vrcp.pop %v3097
      %v3150 = vmul.f32 1.0, %v3149
      %v3151 = vrcp.pop %v3098
      %v3152 = vmul.f32 1.0, %v3151
      %v3153 = vrcp.pop %v3099
      %v3154 = vmul.f32 1.0, %v3153
      %v3155 = vrcp.pop %v3100
      %v3156 = vmul.f32 1.0, %v3155
      %v3157 = vrcp.pop %v3101
      %v3158 = vmul.f32 1.0, %v3157
      %v3159 = vrcp.pop %v3102
      %v3160 = vmul.f32 1.0, %v3159
      %v3161 = vrcp.pop %v3103
      %v3162 = vmul.f32 1.0, %v3161
      %v3163 = vrcp.pop %v3104
      %v3164 = vmul.f32 1.0, %v3163
      %v3165 = vrcp.pop %v3105
      %v3166 = vmul.f32 1.0, %v3165
      %v3167 = vrcp.pop %v3106
      %v3168 = vmul.f32 1.0, %v3167
      %v3169 = vrcp.pop %v3107
      %v3170 = vmul.f32 1.0, %v3169
      %v3171 = vrcp.pop %v3108
      %v3172 = vmul.f32 1.0, %v3171
      %v3173 = vmul.f32 %v2949, %v3110
      %v3174 = vmul.f32 %v2950, %v3112
      %v3175 = vmul.f32 %v2951, %v3114
      %v3176 = vmul.f32 %v2952, %v3116
      %v3177 = vmul.f32 %v2953, %v3118
      %v3178 = vmul.f32 %v2954, %v3120
      %v3179 = vmul.f32 %v2955, %v3122
      %v3180 = vmul.f32 %v2956, %v3124
      %v3181 = vmul.f32 %v2957, %v3126
      %v3182 = vmul.f32 %v2958, %v3128
      %v3183 = vmul.f32 %v2959, %v3130
      %v3184 = vmul.f32 %v2960, %v3132
      %v3185 = vmul.f32 %v2961, %v3134
      %v3186 = vmul.f32 %v2962, %v3136
      %v3187 = vmul.f32 %v2963, %v3138
      %v3188 = vmul.f32 %v2964, %v3140
      %v3189 = vmul.f32 %v2965, %v3142
      %v3190 = vmul.f32 %v2966, %v3144
      %v3191 = vmul.f32 %v2967, %v3146
      %v3192 = vmul.f32 %v2968, %v3148
      %v3193 = vmul.f32 %v2969, %v3150
      %v3194 = vmul.f32 %v2970, %v3152
      %v3195 = vmul.f32 %v2971, %v3154
      %v3196 = vmul.f32 %v2972, %v3156
      %v3197 = vmul.f32 %v2973, %v3158
      %v3198 = vmul.f32 %v2974, %v3160
      %v3199 = vmul.f32 %v2975, %v3162
      %v3200 = vmul.f32 %v2976, %v3164
      %v3201 = vmul.f32 %v2977, %v3166
      %v3202 = vmul.f32 %v2978, %v3168
      %v3203 = vmul.f32 %v2979, %v3170
      %v3204 = vmul.f32 %v2980, %v3172
      %v3205 = vpack.c.bf16 %v3174, %v3173
      %v3206 = vpack.c.bf16 %v3176, %v3175
      %v3207 = vpack.c.bf16 %v3178, %v3177
      %v3208 = vpack.c.bf16 %v3180, %v3179
      %v3209 = vpack.c.bf16 %v3182, %v3181
      %v3210 = vpack.c.bf16 %v3184, %v3183
      %v3211 = vpack.c.bf16 %v3186, %v3185
      %v3212 = vpack.c.bf16 %v3188, %v3187
      %v3213 = vpack.c.bf16 %v3190, %v3189
      %v3214 = vpack.c.bf16 %v3192, %v3191
      %v3215 = vpack.c.bf16 %v3194, %v3193
      %v3216 = vpack.c.bf16 %v3196, %v3195
      %v3217 = vpack.c.bf16 %v3198, %v3197
      %v3218 = vpack.c.bf16 %v3200, %v3199
      %v3219 = vpack.c.bf16 %v3202, %v3201
      %v3220 = vpack.c.bf16 %v3204, %v3203
      %v3237 = vunpack.c.l.b16 %v3205
      %v3238 = vunpack.c.h.b16 %v3205
      %v3239 = vunpack.c.l.b16 %v3206
      %v3240 = vunpack.c.h.b16 %v3206
      %v3241 = vunpack.c.l.b16 %v3207
      %v3242 = vunpack.c.h.b16 %v3207
      %v3243 = vunpack.c.l.b16 %v3208
      %v3244 = vunpack.c.h.b16 %v3208
      %v3245 = vunpack.c.l.b16 %v3209
      %v3246 = vunpack.c.h.b16 %v3209
      %v3247 = vunpack.c.l.b16 %v3210
      %v3248 = vunpack.c.h.b16 %v3210
      %v3249 = vunpack.c.l.b16 %v3211
      %v3250 = vunpack.c.h.b16 %v3211
      %v3251 = vunpack.c.l.b16 %v3212
      %v3252 = vunpack.c.h.b16 %v3212
      %v3253 = vunpack.c.l.b16 %v3213
      %v3254 = vunpack.c.h.b16 %v3213
      %v3255 = vunpack.c.l.b16 %v3214
      %v3256 = vunpack.c.h.b16 %v3214
      %v3257 = vunpack.c.l.b16 %v3215
      %v3258 = vunpack.c.h.b16 %v3215
      %v3259 = vunpack.c.l.b16 %v3216
      %v3260 = vunpack.c.h.b16 %v3216
      %v3261 = vunpack.c.l.b16 %v3217
      %v3262 = vunpack.c.h.b16 %v3217
      %v3263 = vunpack.c.l.b16 %v3218
      %v3264 = vunpack.c.h.b16 %v3218
      %v3265 = vunpack.c.l.b16 %v3219
      %v3266 = vunpack.c.h.b16 %v3219
      %v3267 = vunpack.c.l.b16 %v3220
      %v3268 = vunpack.c.h.b16 %v3220
      %v3269 = vpack.c.b16 %v3237, %v3237
      %v3270 = vpack.c.b16 %v3238, %v3238
      %v3271 = vpack.c.b16 %v3239, %v3239
      %v3272 = vpack.c.b16 %v3240, %v3240
      %v3273 = vpack.c.b16 %v3241, %v3241
      %v3274 = vpack.c.b16 %v3242, %v3242
      %v3275 = vpack.c.b16 %v3243, %v3243
      %v3276 = vpack.c.b16 %v3244, %v3244
      %v3277 = vpack.c.b16 %v3245, %v3245
      %v3278 = vpack.c.b16 %v3246, %v3246
      %v3279 = vpack.c.b16 %v3247, %v3247
      %v3280 = vpack.c.b16 %v3248, %v3248
      %v3281 = vpack.c.b16 %v3249, %v3249
      %v3282 = vpack.c.b16 %v3250, %v3250
      %v3283 = vpack.c.b16 %v3251, %v3251
      %v3284 = vpack.c.b16 %v3252, %v3252
      %v3285 = vpack.c.b16 %v3253, %v3253
      %v3286 = vpack.c.b16 %v3254, %v3254
      %v3287 = vpack.c.b16 %v3255, %v3255
      %v3288 = vpack.c.b16 %v3256, %v3256
      %v3289 = vpack.c.b16 %v3257, %v3257
      %v3290 = vpack.c.b16 %v3258, %v3258
      %v3291 = vpack.c.b16 %v3259, %v3259
      %v3292 = vpack.c.b16 %v3260, %v3260
      %v3293 = vpack.c.b16 %v3261, %v3261
      %v3294 = vpack.c.b16 %v3262, %v3262
      %v3295 = vpack.c.b16 %v3263, %v3263
      %v3296 = vpack.c.b16 %v3264, %v3264
      %v3297 = vpack.c.b16 %v3265, %v3265
      %v3298 = vpack.c.b16 %v3266, %v3266
      %v3299 = vpack.c.b16 %v3267, %v3267
      %v3300 = vpack.c.b16 %v3268, %v3268
      %3333 = vst [vmem:[%s246] sm:$0xf] %v3269
      %3334 = vst [vmem:[%s246 + $0x4] sm:$0xf] %v3270
      %3335 = vst [vmem:[%s246 + $0x8] sm:$0xf] %v3271
      %3336 = vst [vmem:[%s246 + $0xc] sm:$0xf] %v3272
      %3337 = vst [vmem:[%s246 + $0x10] sm:$0xf] %v3273
      %3338 = vst [vmem:[%s246 + $0x14] sm:$0xf] %v3274
      %3339 = vst [vmem:[%s246 + $0x18] sm:$0xf] %v3275
      %3340 = vst [vmem:[%s246 + $0x1c] sm:$0xf] %v3276
      %3341 = vst [vmem:[%s246 + $0x20] sm:$0xf] %v3277
      %3342 = vst [vmem:[%s246 + $0x24] sm:$0xf] %v3278
      %3343 = vst [vmem:[%s246 + $0x28] sm:$0xf] %v3279
      %3344 = vst [vmem:[%s246 + $0x2c] sm:$0xf] %v3280
      %3345 = vst [vmem:[%s246 + $0x30] sm:$0xf] %v3281
      %3346 = vst [vmem:[%s246 + $0x34] sm:$0xf] %v3282
      %3347 = vst [vmem:[%s246 + $0x38] sm:$0xf] %v3283
      %3348 = vst [vmem:[%s246 + $0x3c] sm:$0xf] %v3284
      %3349 = vst [vmem:[%s246 + $0x40] sm:$0xf] %v3285
      %3350 = vst [vmem:[%s246 + $0x44] sm:$0xf] %v3286
      %3351 = vst [vmem:[%s246 + $0x48] sm:$0xf] %v3287
      %3352 = vst [vmem:[%s246 + $0x4c] sm:$0xf] %v3288
      %3353 = vst [vmem:[%s246 + $0x50] sm:$0xf] %v3289
      %3354 = vst [vmem:[%s246 + $0x54] sm:$0xf] %v3290
      %3355 = vst [vmem:[%s246 + $0x58] sm:$0xf] %v3291
      %3356 = vst [vmem:[%s246 + $0x5c] sm:$0xf] %v3292
      %3357 = vst [vmem:[%s246 + $0x60] sm:$0xf] %v3293
      %3358 = vst [vmem:[%s246 + $0x64] sm:$0xf] %v3294
      %3359 = vst [vmem:[%s246 + $0x68] sm:$0xf] %v3295
      %3360 = vst [vmem:[%s246 + $0x6c] sm:$0xf] %v3296
      %3361 = vst [vmem:[%s246 + $0x70] sm:$0xf] %v3297
      %3362 = vst [vmem:[%s246 + $0x74] sm:$0xf] %v3298
      %3363 = vst [vmem:[%s246 + $0x78] sm:$0xf] %v3299
      %3364 = vst [vmem:[%s246 + $0x7c] sm:$0xf] %v3300
      %p3365 = scmp.lt.s32.totalorder %s20, 1
      %s3366 = scalar_select %p3365, %s20, 1
      %p3367 = scmp.lt.s32.totalorder %s21, 0
      %s3368 = scalar_select %p3367, %s21, 0
      %s3369 = smul.addr %s3368, 32
      %s3370 = smul.addr %s3366, 32
      %s3371 = sadd.s32 %s3369, %s3370
      %s3372 = smul.addr %s3371, 4
      %s3373 = scalar_lea.vmem %s5, %s3372
      // Predicated region
      $region41: #{_lambda_.7} parent=39 // pred_check
        %p3374 = pneg %p158
      $region42: #{_lambda_.7} parent=39 // pred_check_branch
        %3376 = sbr.rel (%p3374) target = $region44
      $region43: #{_lambda_.7} parent=39 // pred_region
        _
      $region44: #{_lambda_.7} parent=39 // pred_fallthru
        _
    $region40: #{_lambda_.7} parent=5 // pred_fallthru
      _
    %p3377 = scmp.le.s32.totalorder 2, %s11
    // Predicated region
    $region45: #{_lambda_.7} parent=5 // pred_check
      %p3378 = pneg %p3377
    $region46: #{_lambda_.7} parent=5 // pred_check_branch
      %3380 = sbr.rel (%p3378) target = $region48
    $region47: #{_lambda_.7} parent=5 // pred_region
      %s3381 = ssub.s32 %s11, 2
      // Predicated region
      $region49: #{_lambda_.7} parent=47 // pred_check
        %p3382 = pneg %p164
      $region50: #{_lambda_.7} parent=47 // pred_check_branch
        %3384 = sbr.rel (%p3382) target = $region52
      $region51: #{_lambda_.7} parent=47 // pred_region
        %p3385 = scmp.lt.s32.totalorder %s22, 1
        %s3386 = scalar_select %p3385, %s22, 1
        %p3387 = scmp.lt.s32.totalorder %s23, 0
        %s3388 = scalar_select %p3387, %s23, 0
        %s3389 = smul.addr %s3388, 32
        %s3390 = smul.addr %s3386, 32
        %s3391 = sadd.s32 %s3389, %s3390
        %s3392 = smul.addr %s3391, 4
        %s3393 = scalar_lea.vmem %s5, %s3392
      $region52: #{_lambda_.7} parent=47 // pred_fallthru
        _
    $region48: #{_lambda_.7} parent=5 // pred_fallthru
      _
  $region6: #{_lambda_.7} parent=0 // loop_footer
    %s15 = sadd.s32 1, %s11
  $region7: #{_lambda_.7} parent=0 // loop_footer_branch
    %10 = sbr.rel target = $region3
  $region8: #{_lambda_.7} parent=0 // loop_exit
    _

// kernel: _lambda_.8
$region0: #{_lambda_.8}
  #allocation0 [shape = 'u32[]', space=smem, size = 0x4, offset = 0x4, fixed_abs, tag = 'smem constant byte address 0x4 - core index']
  #allocation1 [shape = 'u32[144,128]{1,0:T(1,128)}', space=vmem, size = 0x12000, scoped, tag = 'internal scratch']
  %s0 = inlined_call_operand.vmem [shape: bf16[2,1,16,16,128], index: 0, kind: input, shape index: {}]
  %s1 = inlined_call_operand.vmem [shape: bf16[1152,128], index: 1, kind: input, shape index: {}]
  %s2 = inlined_call_operand.vmem [shape: f32[1,128], index: 2, kind: input, shape index: {}]
  %s3 = inlined_call_operand.vmem [shape: bf16[2,1,16,16,128], index: 3, kind: input, shape index: {}]
  %s4 = inlined_call_operand.vmem [shape: bf16[2,1,16,16,128], index: 4, kind: output, shape index: {}]
  %s5 = sld [smem:[#allocation0]]
  $region49: #{_lambda_.8} parent=0
    _
  %s7 = ssub.s32 1, %s5
  %s8 = scalar_select 0, %s7, %s5
  loop: start=0, step=1, limit=4
  $region2: #{_lambda_.8} parent=0 // loop_pre_header
    _
  $region3: #{_lambda_.8} parent=0 // loop_header
    %s10 = sphi 0, %s14
    %p11 = scmp.ge.s32.totalorder %s10, 4
    %s17 = sphi 0, %s29
    %s18 = sphi 0, %s25
    %s19 = sphi 0, %s17
    %s20 = sphi 0, %s18
    %s21 = sphi 0, %s19
    %s22 = sphi 0, %s20
    %s32 = sphi 0, %s34
    %s35 = sphi 0, %s32
    %s36 = sphi 0, %s35
    %s52 = sphi 0, %s36
    %s56 = sphi 0, %s56
    %s58 = sphi 0, %s56
    %s59 = sphi 0, %s58
    %s73 = sphi 0, %s59
    %s77 = sphi 0, %s77
    %s79 = sphi 0, %s77
    %s80 = sphi 0, %s79
    %s94 = sphi 0, %s80
    %s102 = sphi 0, %s104
    %s105 = sphi 0, %s102
    %s106 = sphi 0, %s105
    %s122 = sphi 0, %s106
    %s130 = sphi 0, %s132
    %s133 = sphi 0, %s130
    %s134 = sphi 0, %s133
    %s150 = sphi 0, %s134
  $region4: #{_lambda_.8} parent=0 // loop_header_branch
    %13 = sbr.rel (%p11) target = $region8
  $region5: #{_lambda_.8} parent=0 // loop_body
    %s15 = ssub.s32 %s10, 1
    %s16 = ssub.s32 %s10, 2
    %s23 = sadd.s32 1, %s18
    %p24 = scmp.ge.s32.totalorder %s23, 1
    %s25 = scalar_select %p24, 0, %s23
    %s26 = sadd.s32 1, %s17
    %s27 = scalar_select %p24, %s26, %s17
    %p28 = scmp.ge.s32.totalorder %s27, 2
    %s29 = scalar_select %p28, 0, %s27
    %s30 = ssub.s32 %s17, %s29
    %p31 = scmp.eq.s32.totalorder %s30, 0
    %s33 = sadd.s32 %s32, 1
    %s34 = scalar_select %p31, %s32, %s33
    %p37 = pneg %p31
    %p38 = scmp.eq.s32.totalorder %s10, 1
    %p39 = por %p37, %p38
    %p40 = scmp.ne.s32.totalorder %s32, %s35
    %p41 = scmp.eq.s32.totalorder %s10, 0
    %p42 = por %p40, %p41
    %p43 = scmp.ne.s32.totalorder %s32, %s35
    %p44 = scmp.eq.s32.totalorder %s15, 1
    %p45 = por %p43, %p44
    %p46 = scmp.ne.s32.totalorder %s35, %s36
    %p47 = scmp.eq.s32.totalorder %s15, 0
    %p48 = por %p46, %p47
    %p49 = scmp.ne.s32.totalorder %s35, %s36
    %p50 = scmp.eq.s32.totalorder %s16, 1
    %p51 = por %p49, %p50
    %p53 = scmp.ne.s32.totalorder %s36, %s52
    %p54 = scmp.eq.s32.totalorder %s16, 0
    %p55 = por %p53, %p54
    %s57 = sadd.s32 %s56, 1
    %p60 = scmp.eq.s32.totalorder %s10, 1
    %p61 = scmp.ne.s32.totalorder %s56, %s58
    %p62 = scmp.eq.s32.totalorder %s10, 0
    %p63 = por %p61, %p62
    %p64 = scmp.ne.s32.totalorder %s56, %s58
    %p65 = scmp.eq.s32.totalorder %s15, 1
    %p66 = por %p64, %p65
    %p67 = scmp.ne.s32.totalorder %s58, %s59
    %p68 = scmp.eq.s32.totalorder %s15, 0
    %p69 = por %p67, %p68
    %p70 = scmp.ne.s32.totalorder %s58, %s59
    %p71 = scmp.eq.s32.totalorder %s16, 1
    %p72 = por %p70, %p71
    %p74 = scmp.ne.s32.totalorder %s59, %s73
    %p75 = scmp.eq.s32.totalorder %s16, 0
    %p76 = por %p74, %p75
    %s78 = sadd.s32 %s77, 1
    %p81 = scmp.eq.s32.totalorder %s10, 1
    %p82 = scmp.ne.s32.totalorder %s77, %s79
    %p83 = scmp.eq.s32.totalorder %s10, 0
    %p84 = por %p82, %p83
    %p85 = scmp.ne.s32.totalorder %s77, %s79
    %p86 = scmp.eq.s32.totalorder %s15, 1
    %p87 = por %p85, %p86
    %p88 = scmp.ne.s32.totalorder %s79, %s80
    %p89 = scmp.eq.s32.totalorder %s15, 0
    %p90 = por %p88, %p89
    %p91 = scmp.ne.s32.totalorder %s79, %s80
    %p92 = scmp.eq.s32.totalorder %s16, 1
    %p93 = por %p91, %p92
    %p95 = scmp.ne.s32.totalorder %s80, %s94
    %p96 = scmp.eq.s32.totalorder %s16, 0
    %p97 = por %p95, %p96
    %s98 = ssub.s32 %s17, %s29
    %s99 = ssub.s32 %s18, %s25
    %s100 = sor.u32 %s98, %s99
    %p101 = scmp.eq.s32.totalorder %s100, 0
    %s103 = sadd.s32 %s102, 1
    %s104 = scalar_select %p101, %s102, %s103
    %p107 = pneg %p101
    %p108 = scmp.eq.s32.totalorder %s10, 1
    %p109 = por %p107, %p108
    %p110 = scmp.ne.s32.totalorder %s102, %s105
    %p111 = scmp.eq.s32.totalorder %s10, 0
    %p112 = por %p110, %p111
    %p113 = scmp.ne.s32.totalorder %s102, %s105
    %p114 = scmp.eq.s32.totalorder %s15, 1
    %p115 = por %p113, %p114
    %p116 = scmp.ne.s32.totalorder %s105, %s106
    %p117 = scmp.eq.s32.totalorder %s15, 0
    %p118 = por %p116, %p117
    %p119 = scmp.ne.s32.totalorder %s105, %s106
    %p120 = scmp.eq.s32.totalorder %s16, 1
    %p121 = por %p119, %p120
    %p123 = scmp.ne.s32.totalorder %s106, %s122
    %p124 = scmp.eq.s32.totalorder %s16, 0
    %p125 = por %p123, %p124
    %s126 = ssub.s32 %s17, %s29
    %s127 = ssub.s32 %s18, %s25
    %s128 = sor.u32 %s126, %s127
    %p129 = scmp.eq.s32.totalorder %s128, 0
    %s131 = sadd.s32 %s130, 1
    %s132 = scalar_select %p129, %s130, %s131
    %p135 = pneg %p129
    %p136 = scmp.eq.s32.totalorder %s10, 1
    %p137 = por %p135, %p136
    %p138 = scmp.ne.s32.totalorder %s130, %s133
    %p139 = scmp.eq.s32.totalorder %s10, 0
    %p140 = por %p138, %p139
    %p141 = scmp.ne.s32.totalorder %s130, %s133
    %p142 = scmp.eq.s32.totalorder %s15, 1
    %p143 = por %p141, %p142
    %p144 = scmp.ne.s32.totalorder %s133, %s134
    %p145 = scmp.eq.s32.totalorder %s15, 0
    %p146 = por %p144, %p145
    %p147 = scmp.ne.s32.totalorder %s133, %s134
    %p148 = scmp.eq.s32.totalorder %s16, 1
    %p149 = por %p147, %p148
    %p151 = scmp.ne.s32.totalorder %s134, %s150
    %p152 = scmp.eq.s32.totalorder %s16, 0
    %p153 = por %p151, %p152
    %p154 = scmp.le.s32.totalorder 1, %s10
    %p155 = scmp.lt.s32.totalorder %s10, 3
    %p156 = pnand %p154, %p155
    %p157 = pneg %p156
    // Predicated region
    $region9: #{_lambda_.8} parent=5 // pred_check
      _
    $region10: #{_lambda_.8} parent=5 // pred_check_branch
      %159 = sbr.rel (%p156) target = $region12
    $region11: #{_lambda_.8} parent=5 // pred_region
      %s160 = ssub.s32 %s10, 1
      // Predicated region
      $region13: #{_lambda_.8} parent=11 // pred_check
        %p161 = pneg %p69
      $region14: #{_lambda_.8} parent=11 // pred_check_branch
        %163 = sbr.rel (%p161) target = $region16
      $region15: #{_lambda_.8} parent=11 // pred_region
        _
      $region16: #{_lambda_.8} parent=11 // pred_fallthru
        _
      // Predicated region
      $region17: #{_lambda_.8} parent=11 // pred_check
        %p164 = pneg %p90
      $region18: #{_lambda_.8} parent=11 // pred_check_branch
        %166 = sbr.rel (%p164) target = $region20
      $region19: #{_lambda_.8} parent=11 // pred_region
        _
      $region20: #{_lambda_.8} parent=11 // pred_fallthru
        _
    $region12: #{_lambda_.8} parent=5 // pred_fallthru
      _
    %p167 = scmp.lt.s32.totalorder %s10, 2
    // Predicated region
    $region21: #{_lambda_.8} parent=5 // pred_check
      %p168 = pneg %p167
    $region22: #{_lambda_.8} parent=5 // pred_check_branch
      %170 = sbr.rel (%p168) target = $region24
    $region23: #{_lambda_.8} parent=5 // pred_region
      // Predicated region
      $region25: #{_lambda_.8} parent=23 // pred_check
        %p171 = pneg %p42
      $region26: #{_lambda_.8} parent=23 // pred_check_branch
        %173 = sbr.rel (%p171) target = $region28
      $region27: #{_lambda_.8} parent=23 // pred_region
        %p174 = scmp.lt.s32.totalorder %s17, 1
        %s175 = scalar_select %p174, %s17, 1
        %s176 = smul.addr %s175, 32
        %s177 = smul.addr %s176, 4
        %s178 = scalar_lea.vmem %s0, %s177
      $region28: #{_lambda_.8} parent=23 // pred_fallthru
        _
      // Predicated region
      $region29: #{_lambda_.8} parent=23 // pred_check
        %p179 = pneg %p112
      $region30: #{_lambda_.8} parent=23 // pred_check_branch
        %181 = sbr.rel (%p179) target = $region32
      $region31: #{_lambda_.8} parent=23 // pred_region
        %p182 = scmp.lt.s32.totalorder %s17, 1
        %s183 = scalar_select %p182, %s17, 1
        %p184 = scmp.lt.s32.totalorder %s18, 0
        %s185 = scalar_select %p184, %s18, 0
        %s186 = smul.addr %s185, 32
        %s187 = smul.addr %s183, 32
        %s188 = sadd.s32 %s186, %s187
        %s189 = smul.addr %s188, 4
        %s190 = scalar_lea.vmem %s3, %s189
      $region32: #{_lambda_.8} parent=23 // pred_fallthru
        _
    $region24: #{_lambda_.8} parent=5 // pred_fallthru
      _
    %p191 = scmp.le.s32.totalorder 1, %s10
    %p192 = scmp.lt.s32.totalorder %s10, 3
    %p193 = pnand %p191, %p192
    %p194 = pneg %p193
    // Predicated region
    $region33: #{_lambda_.8} parent=5 // pred_check
      _
    $region34: #{_lambda_.8} parent=5 // pred_check_branch
      %196 = sbr.rel (%p193) target = $region36
    $region35: #{_lambda_.8} parent=5 // pred_region
      %s197 = ssub.s32 %s10, 1
      %p198 = scmp.lt.s32.totalorder %s19, 1
      %s199 = scalar_select %p198, %s19, 1
      %s200 = smul.addr %s199, 32
      %s201 = smul.addr %s200, 4
      %s202 = scalar_lea.vmem %s0, %s201
      %p203 = pneg %p48
      %p204 = pneg %p45
      %p205 = pneg %p69
      %p206 = pneg %p66
      %p207 = pneg %p90
      %p208 = pneg %p87
      %p209 = scmp.lt.s32.totalorder %s19, 1
      %s210 = scalar_select %p209, %s19, 1
      %p211 = scmp.lt.s32.totalorder %s20, 0
      %s212 = scalar_select %p211, %s20, 0
      %s213 = smul.addr %s212, 32
      %s214 = smul.addr %s210, 32
      %s215 = sadd.s32 %s213, %s214
      %s216 = smul.addr %s215, 4
      %s217 = scalar_lea.vmem %s3, %s216
      %p218 = pneg %p118
      %p219 = pneg %p115
      %p220 = pneg %p146
      %p221 = pneg %p143
      %p222 = scmp.lt.s32.totalorder %s19, 1
      %s223 = scalar_select %p222, %s19, 1
      %p224 = scmp.lt.s32.totalorder %s20, 0
      %s225 = scalar_select %p224, %s20, 0
      %s226 = smul.addr %s225, 32
      %s227 = smul.addr %s223, 32
      %s228 = sadd.s32 %s226, %s227
      %s229 = smul.addr %s228, 4
      %s230 = scalar_lea.vmem %s4, %s229
      %p231 = scmp.lt.s32.totalorder %s19, 1
      %s232 = scalar_select %p231, %s19, 1
      %s233 = smul.addr %s232, 32
      %s234 = smul.addr %s233, 4
      %s235 = scalar_lea.vmem %s0, %s234
      %p236 = scmp.lt.s32.totalorder %s19, 1
      %s237 = scalar_select %p236, %s19, 1
      %p238 = scmp.lt.s32.totalorder %s20, 0
      %s239 = scalar_select %p238, %s20, 0
      %s240 = smul.addr %s239, 32
      %s241 = smul.addr %s237, 32
      %s242 = sadd.s32 %s240, %s241
      %s243 = smul.addr %s242, 4
      %s244 = scalar_lea.vmem %s3, %s243
      %p245 = scmp.lt.s32.totalorder %s19, 1
      %s246 = scalar_select %p245, %s19, 1
      %p247 = scmp.lt.s32.totalorder %s20, 0
      %s248 = scalar_select %p247, %s20, 0
      %s249 = smul.addr %s248, 32
      %s250 = smul.addr %s246, 32
      %s251 = sadd.s32 %s249, %s250
      %s252 = smul.addr %s251, 4
      %s253 = scalar_lea.vmem %s4, %s252
      %s255 = smul.u32 %s20, 32
      %s256 = smul.addr %s255, 4
      %s257 = scalar_lea.vmem %s235, %s256
      %v258 = vld [vmem:[%s257] sm:$0xf]
      %v259 = vld [vmem:[%s257 + $0x4] sm:$0xf]
      %v260 = vld [vmem:[%s257 + $0x8] sm:$0xf]
      %v261 = vld [vmem:[%s257 + $0xc] sm:$0xf]
      %v262 = vld [vmem:[%s257 + $0x10] sm:$0xf]
      %v263 = vld [vmem:[%s257 + $0x14] sm:$0xf]
      %v264 = vld [vmem:[%s257 + $0x18] sm:$0xf]
      %v265 = vld [vmem:[%s257 + $0x1c] sm:$0xf]
      %v266 = vld [vmem:[%s257 + $0x20] sm:$0xf]
      %v267 = vld [vmem:[%s257 + $0x24] sm:$0xf]
      %v268 = vld [vmem:[%s257 + $0x28] sm:$0xf]
      %v269 = vld [vmem:[%s257 + $0x2c] sm:$0xf]
      %v270 = vld [vmem:[%s257 + $0x30] sm:$0xf]
      %v271 = vld [vmem:[%s257 + $0x34] sm:$0xf]
      %v272 = vld [vmem:[%s257 + $0x38] sm:$0xf]
      %v273 = vld [vmem:[%s257 + $0x3c] sm:$0xf]
      %v274 = vld [vmem:[%s257 + $0x40] sm:$0xf]
      %v275 = vld [vmem:[%s257 + $0x44] sm:$0xf]
      %v276 = vld [vmem:[%s257 + $0x48] sm:$0xf]
      %v277 = vld [vmem:[%s257 + $0x4c] sm:$0xf]
      %v278 = vld [vmem:[%s257 + $0x50] sm:$0xf]
      %v279 = vld [vmem:[%s257 + $0x54] sm:$0xf]
      %v280 = vld [vmem:[%s257 + $0x58] sm:$0xf]
      %v281 = vld [vmem:[%s257 + $0x5c] sm:$0xf]
      %v282 = vld [vmem:[%s257 + $0x60] sm:$0xf]
      %v283 = vld [vmem:[%s257 + $0x64] sm:$0xf]
      %v284 = vld [vmem:[%s257 + $0x68] sm:$0xf]
      %v285 = vld [vmem:[%s257 + $0x6c] sm:$0xf]
      %v286 = vld [vmem:[%s257 + $0x70] sm:$0xf]
      %v287 = vld [vmem:[%s257 + $0x74] sm:$0xf]
      %v288 = vld [vmem:[%s257 + $0x78] sm:$0xf]
      %v289 = vld [vmem:[%s257 + $0x7c] sm:$0xf]
      %v322 = vunpack.c.l.b16 %v258
      %v323 = vunpack.c.l.b16 %v259
      %v324 = vunpack.c.l.b16 %v260
      %v325 = vunpack.c.l.b16 %v261
      %v326 = vunpack.c.l.b16 %v262
      %v327 = vunpack.c.l.b16 %v263
      %v328 = vunpack.c.l.b16 %v264
      %v329 = vunpack.c.l.b16 %v265
      %v330 = vunpack.c.l.b16 %v266
      %v331 = vunpack.c.l.b16 %v267
      %v332 = vunpack.c.l.b16 %v268
      %v333 = vunpack.c.l.b16 %v269
      %v334 = vunpack.c.l.b16 %v270
      %v335 = vunpack.c.l.b16 %v271
      %v336 = vunpack.c.l.b16 %v272
      %v337 = vunpack.c.l.b16 %v273
      %v338 = vunpack.c.l.b16 %v274
      %v339 = vunpack.c.l.b16 %v275
      %v340 = vunpack.c.l.b16 %v276
      %v341 = vunpack.c.l.b16 %v277
      %v342 = vunpack.c.l.b16 %v278
      %v343 = vunpack.c.l.b16 %v279
      %v344 = vunpack.c.l.b16 %v280
      %v345 = vunpack.c.l.b16 %v281
      %v346 = vunpack.c.l.b16 %v282
      %v347 = vunpack.c.l.b16 %v283
      %v348 = vunpack.c.l.b16 %v284
      %v349 = vunpack.c.l.b16 %v285
      %v350 = vunpack.c.l.b16 %v286
      %v351 = vunpack.c.l.b16 %v287
      %v352 = vunpack.c.l.b16 %v288
      %v353 = vunpack.c.l.b16 %v289
      %v354 = vpack.c.b16 %v323, %v322
      %v355 = vpack.c.b16 %v325, %v324
      %v356 = vpack.c.b16 %v327, %v326
      %v357 = vpack.c.b16 %v329, %v328
      %v358 = vpack.c.b16 %v331, %v330
      %v359 = vpack.c.b16 %v333, %v332
      %v360 = vpack.c.b16 %v335, %v334
      %v361 = vpack.c.b16 %v337, %v336
      %v362 = vpack.c.b16 %v339, %v338
      %v363 = vpack.c.b16 %v341, %v340
      %v364 = vpack.c.b16 %v343, %v342
      %v365 = vpack.c.b16 %v345, %v344
      %v366 = vpack.c.b16 %v347, %v346
      %v367 = vpack.c.b16 %v349, %v348
      %v368 = vpack.c.b16 %v351, %v350
      %v369 = vpack.c.b16 %v353, %v352
      %v371 = vshrl.u32 %v354, 16
      %v373 = vrot.slane %v371, 7
      %v374 = vshll.u32 %v354, 16
      %v376 = vor.u32 %v373, %v374
      %v378 = vshrl.u32 %v355, 16
      %v380 = vrot.slane %v378, 7
      %v381 = vshll.u32 %v355, 16
      %v383 = vor.u32 %v380, %v381
      %v385 = vshrl.u32 %v356, 16
      %v387 = vrot.slane %v385, 7
      %v388 = vshll.u32 %v356, 16
      %v390 = vor.u32 %v387, %v388
      %v392 = vshrl.u32 %v357, 16
      %v394 = vrot.slane %v392, 7
      %v395 = vshll.u32 %v357, 16
      %v397 = vor.u32 %v394, %v395
      %v399 = vshrl.u32 %v358, 16
      %v401 = vrot.slane %v399, 7
      %v402 = vshll.u32 %v358, 16
      %v404 = vor.u32 %v401, %v402
      %v406 = vshrl.u32 %v359, 16
      %v408 = vrot.slane %v406, 7
      %v409 = vshll.u32 %v359, 16
      %v411 = vor.u32 %v408, %v409
      %v413 = vshrl.u32 %v360, 16
      %v415 = vrot.slane %v413, 7
      %v416 = vshll.u32 %v360, 16
      %v418 = vor.u32 %v415, %v416
      %v420 = vshrl.u32 %v361, 16
      %v422 = vrot.slane %v420, 7
      %v423 = vshll.u32 %v361, 16
      %v425 = vor.u32 %v422, %v423
      %v427 = vshrl.u32 %v362, 16
      %v429 = vrot.slane %v427, 7
      %v430 = vshll.u32 %v362, 16
      %v432 = vor.u32 %v429, %v430
      %v434 = vshrl.u32 %v363, 16
      %v436 = vrot.slane %v434, 7
      %v437 = vshll.u32 %v363, 16
      %v439 = vor.u32 %v436, %v437
      %v441 = vshrl.u32 %v364, 16
      %v443 = vrot.slane %v441, 7
      %v444 = vshll.u32 %v364, 16
      %v446 = vor.u32 %v443, %v444
      %v448 = vshrl.u32 %v365, 16
      %v450 = vrot.slane %v448, 7
      %v451 = vshll.u32 %v365, 16
      %v453 = vor.u32 %v450, %v451
      %v455 = vshrl.u32 %v366, 16
      %v457 = vrot.slane %v455, 7
      %v458 = vshll.u32 %v366, 16
      %v460 = vor.u32 %v457, %v458
      %v462 = vshrl.u32 %v367, 16
      %v464 = vrot.slane %v462, 7
      %v465 = vshll.u32 %v367, 16
      %v467 = vor.u32 %v464, %v465
      %v469 = vshrl.u32 %v368, 16
      %v471 = vrot.slane %v469, 7
      %v472 = vshll.u32 %v368, 16
      %v474 = vor.u32 %v471, %v472
      %v476 = vshrl.u32 %v369, 16
      %v478 = vrot.slane %v476, 7
      %v479 = vshll.u32 %v369, 16
      %v481 = vor.u32 %v478, %v479
      %vm514 = vcmask 1040384
      %vm515 = vsmask.f32 256
      %vm516 = vmand %vm514, %vm515
      %v517 = vsel %vm516, 0, %v376
      %v518 = vsel %vm516, 0, %v383
      %v519 = vsel %vm516, 0, %v390
      %v520 = vsel %vm516, 0, %v397
      %v521 = vsel %vm516, 0, %v404
      %v522 = vsel %vm516, 0, %v411
      %v523 = vsel %vm516, 0, %v418
      %v524 = vsel %vm516, 0, %v425
      %v525 = vsel %vm516, 0, %v432
      %v526 = vsel %vm516, 0, %v439
      %v527 = vsel %vm516, 0, %v446
      %v528 = vsel %vm516, 0, %v453
      %v529 = vsel %vm516, 0, %v460
      %v530 = vsel %vm516, 0, %v467
      %v531 = vsel %vm516, 0, %v474
      %v532 = vsel %vm516, 0, %v481
      %v533 = vsel %vm516, %v373, 0
      %v534 = vsel %vm516, %v380, 0
      %v535 = vsel %vm516, %v387, 0
      %v536 = vsel %vm516, %v394, 0
      %v537 = vsel %vm516, %v401, 0
      %v538 = vsel %vm516, %v408, 0
      %v539 = vsel %vm516, %v415, 0
      %v540 = vsel %vm516, %v422, 0
      %v541 = vsel %vm516, %v429, 0
      %v542 = vsel %vm516, %v436, 0
      %v543 = vsel %vm516, %v443, 0
      %v544 = vsel %vm516, %v450, 0
      %v545 = vsel %vm516, %v457, 0
      %v546 = vsel %vm516, %v464, 0
      %v547 = vsel %vm516, %v471, 0
      %v548 = vsel %vm516, %v478, 0
      %vm549 = vsmask.f32 7424
      %v551 = vshrl.u32 0, 16
      %v553 = vshll.u32 0, 16
      %v555 = vrot.slane %v553, 1
      %v556 = vor.u32 %v551, %v555
      %v557 = vsel %vm549, %v556, %v555
      %v559 = vshrl.u32 %v517, 16
      %v561 = vshll.u32 %v517, 16
      %v563 = vrot.slane %v561, 1
      %v564 = vor.u32 %v559, %v563
      %v566 = vshll.u32 %v533, 16
      %v568 = vrot.slane %v566, 1
      %v569 = vsel %vm549, %v564, %v568
      %v571 = vshrl.u32 %v518, 16
      %v573 = vshll.u32 %v518, 16
      %v575 = vrot.slane %v573, 1
      %v576 = vor.u32 %v571, %v575
      %v578 = vshll.u32 %v534, 16
      %v580 = vrot.slane %v578, 1
      %v581 = vsel %vm549, %v576, %v580
      %v583 = vshrl.u32 %v519, 16
      %v585 = vshll.u32 %v519, 16
      %v587 = vrot.slane %v585, 1
      %v588 = vor.u32 %v583, %v587
      %v590 = vshll.u32 %v535, 16
      %v592 = vrot.slane %v590, 1
      %v593 = vsel %vm549, %v588, %v592
      %v595 = vshrl.u32 %v520, 16
      %v597 = vshll.u32 %v520, 16
      %v599 = vrot.slane %v597, 1
      %v600 = vor.u32 %v595, %v599
      %v602 = vshll.u32 %v536, 16
      %v604 = vrot.slane %v602, 1
      %v605 = vsel %vm549, %v600, %v604
      %v607 = vshrl.u32 %v521, 16
      %v609 = vshll.u32 %v521, 16
      %v611 = vrot.slane %v609, 1
      %v612 = vor.u32 %v607, %v611
      %v614 = vshll.u32 %v537, 16
      %v616 = vrot.slane %v614, 1
      %v617 = vsel %vm549, %v612, %v616
      %v619 = vshrl.u32 %v522, 16
      %v621 = vshll.u32 %v522, 16
      %v623 = vrot.slane %v621, 1
      %v624 = vor.u32 %v619, %v623
      %v626 = vshll.u32 %v538, 16
      %v628 = vrot.slane %v626, 1
      %v629 = vsel %vm549, %v624, %v628
      %v631 = vshrl.u32 %v523, 16
      %v633 = vshll.u32 %v523, 16
      %v635 = vrot.slane %v633, 1
      %v636 = vor.u32 %v631, %v635
      %v638 = vshll.u32 %v539, 16
      %v640 = vrot.slane %v638, 1
      %v641 = vsel %vm549, %v636, %v640
      %v643 = vshrl.u32 %v524, 16
      %v645 = vshll.u32 %v524, 16
      %v647 = vrot.slane %v645, 1
      %v648 = vor.u32 %v643, %v647
      %v650 = vshll.u32 %v540, 16
      %v652 = vrot.slane %v650, 1
      %v653 = vsel %vm549, %v648, %v652
      %v655 = vshrl.u32 %v525, 16
      %v657 = vshll.u32 %v525, 16
      %v659 = vrot.slane %v657, 1
      %v660 = vor.u32 %v655, %v659
      %v662 = vshll.u32 %v541, 16
      %v664 = vrot.slane %v662, 1
      %v665 = vsel %vm549, %v660, %v664
      %v667 = vshrl.u32 %v526, 16
      %v669 = vshll.u32 %v526, 16
      %v671 = vrot.slane %v669, 1
      %v672 = vor.u32 %v667, %v671
      %v674 = vshll.u32 %v542, 16
      %v676 = vrot.slane %v674, 1
      %v677 = vsel %vm549, %v672, %v676
      %v679 = vshrl.u32 %v527, 16
      %v681 = vshll.u32 %v527, 16
      %v683 = vrot.slane %v681, 1
      %v684 = vor.u32 %v679, %v683
      %v686 = vshll.u32 %v543, 16
      %v688 = vrot.slane %v686, 1
      %v689 = vsel %vm549, %v684, %v688
      %v691 = vshrl.u32 %v528, 16
      %v693 = vshll.u32 %v528, 16
      %v695 = vrot.slane %v693, 1
      %v696 = vor.u32 %v691, %v695
      %v698 = vshll.u32 %v544, 16
      %v700 = vrot.slane %v698, 1
      %v701 = vsel %vm549, %v696, %v700
      %v703 = vshrl.u32 %v529, 16
      %v705 = vshll.u32 %v529, 16
      %v707 = vrot.slane %v705, 1
      %v708 = vor.u32 %v703, %v707
      %v710 = vshll.u32 %v545, 16
      %v712 = vrot.slane %v710, 1
      %v713 = vsel %vm549, %v708, %v712
      %v715 = vshrl.u32 %v530, 16
      %v717 = vshll.u32 %v530, 16
      %v719 = vrot.slane %v717, 1
      %v720 = vor.u32 %v715, %v719
      %v722 = vshll.u32 %v546, 16
      %v724 = vrot.slane %v722, 1
      %v725 = vsel %vm549, %v720, %v724
      %v727 = vshrl.u32 %v531, 16
      %v729 = vshll.u32 %v531, 16
      %v731 = vrot.slane %v729, 1
      %v732 = vor.u32 %v727, %v731
      %v734 = vshll.u32 %v547, 16
      %v736 = vrot.slane %v734, 1
      %v737 = vsel %vm549, %v732, %v736
      %vm785 = vcmask 1046528
      %v786 = vrot.slane 0, 1
      %v787 = vsel %vm785, %v786, %v786
      %v788 = vrot.slane %v517, 1
      %v789 = vrot.slane %v533, 1
      %v790 = vsel %vm785, %v788, %v789
      %v791 = vrot.slane %v518, 1
      %v792 = vrot.slane %v534, 1
      %v793 = vsel %vm785, %v791, %v792
      %v794 = vrot.slane %v519, 1
      %v795 = vrot.slane %v535, 1
      %v796 = vsel %vm785, %v794, %v795
      %v797 = vrot.slane %v520, 1
      %v798 = vrot.slane %v536, 1
      %v799 = vsel %vm785, %v797, %v798
      %v800 = vrot.slane %v521, 1
      %v801 = vrot.slane %v537, 1
      %v802 = vsel %vm785, %v800, %v801
      %v803 = vrot.slane %v522, 1
      %v804 = vrot.slane %v538, 1
      %v805 = vsel %vm785, %v803, %v804
      %v806 = vrot.slane %v523, 1
      %v807 = vrot.slane %v539, 1
      %v808 = vsel %vm785, %v806, %v807
      %v809 = vrot.slane %v524, 1
      %v810 = vrot.slane %v540, 1
      %v811 = vsel %vm785, %v809, %v810
      %v812 = vrot.slane %v525, 1
      %v813 = vrot.slane %v541, 1
      %v814 = vsel %vm785, %v812, %v813
      %v815 = vrot.slane %v526, 1
      %v816 = vrot.slane %v542, 1
      %v817 = vsel %vm785, %v815, %v816
      %v818 = vrot.slane %v527, 1
      %v819 = vrot.slane %v543, 1
      %v820 = vsel %vm785, %v818, %v819
      %v821 = vrot.slane %v528, 1
      %v822 = vrot.slane %v544, 1
      %v823 = vsel %vm785, %v821, %v822
      %v824 = vrot.slane %v529, 1
      %v825 = vrot.slane %v545, 1
      %v826 = vsel %vm785, %v824, %v825
      %v827 = vrot.slane %v530, 1
      %v828 = vrot.slane %v546, 1
      %v829 = vsel %vm785, %v827, %v828
      %v830 = vrot.slane %v531, 1
      %v831 = vrot.slane %v547, 1
      %v832 = vsel %vm785, %v830, %v831
      %v850 = vshrl.u32 %v532, 16
      %v852 = vshll.u32 %v532, 16
      %v854 = vrot.slane %v852, 1
      %v855 = vor.u32 %v850, %v854
      %v857 = vshll.u32 %v548, 16
      %v859 = vrot.slane %v857, 1
      %v860 = vsel %vm549, %v855, %v859
      %v864 = vrot.slane %v532, 1
      %v865 = vrot.slane %v548, 1
      %v866 = vsel %vm785, %v864, %v865
      %v868 = vld [vmem:[%s1] sm:$0xf]
      %v869 = vld [vmem:[%s1 + $0x4] sm:$0xf]
      %v870 = vld [vmem:[%s1 + $0x8] sm:$0xf]
      %v871 = vld [vmem:[%s1 + $0xc] sm:$0xf]
      %v872 = vld [vmem:[%s1 + $0x10] sm:$0xf]
      %v873 = vld [vmem:[%s1 + $0x14] sm:$0xf]
      %v874 = vld [vmem:[%s1 + $0x18] sm:$0xf]
      %v875 = vld [vmem:[%s1 + $0x1c] sm:$0xf]
      %v876 = vld [vmem:[%s1 + $0x20] sm:$0xf]
      %v877 = vld [vmem:[%s1 + $0x24] sm:$0xf]
      %v878 = vld [vmem:[%s1 + $0x28] sm:$0xf]
      %v879 = vld [vmem:[%s1 + $0x2c] sm:$0xf]
      %v880 = vld [vmem:[%s1 + $0x30] sm:$0xf]
      %v881 = vld [vmem:[%s1 + $0x34] sm:$0xf]
      %v882 = vld [vmem:[%s1 + $0x38] sm:$0xf]
      %v883 = vld [vmem:[%s1 + $0x3c] sm:$0xf]
      %v884 = vld [vmem:[%s1 + $0x40] sm:$0xf]
      %v885 = vld [vmem:[%s1 + $0x44] sm:$0xf]
      %v886 = vld [vmem:[%s1 + $0x48] sm:$0xf]
      %v887 = vld [vmem:[%s1 + $0x4c] sm:$0xf]
      %v888 = vld [vmem:[%s1 + $0x50] sm:$0xf]
      %v889 = vld [vmem:[%s1 + $0x54] sm:$0xf]
      %v890 = vld [vmem:[%s1 + $0x58] sm:$0xf]
      %v891 = vld [vmem:[%s1 + $0x5c] sm:$0xf]
      %v892 = vld [vmem:[%s1 + $0x60] sm:$0xf]
      %v893 = vld [vmem:[%s1 + $0x64] sm:$0xf]
      %v894 = vld [vmem:[%s1 + $0x68] sm:$0xf]
      %v895 = vld [vmem:[%s1 + $0x6c] sm:$0xf]
      %v896 = vld [vmem:[%s1 + $0x70] sm:$0xf]
      %v897 = vld [vmem:[%s1 + $0x74] sm:$0xf]
      %v898 = vld [vmem:[%s1 + $0x78] sm:$0xf]
      %v899 = vld [vmem:[%s1 + $0x7c] sm:$0xf]
      %v900 = vld [vmem:[%s1 + $0x80] sm:$0xf]
      %v901 = vld [vmem:[%s1 + $0x84] sm:$0xf]
      %v902 = vld [vmem:[%s1 + $0x88] sm:$0xf]
      %v903 = vld [vmem:[%s1 + $0x8c] sm:$0xf]
      %v904 = vld [vmem:[%s1 + $0x90] sm:$0xf]
      %v905 = vld [vmem:[%s1 + $0x94] sm:$0xf]
      %v906 = vld [vmem:[%s1 + $0x98] sm:$0xf]
      %v907 = vld [vmem:[%s1 + $0x9c] sm:$0xf]
      %v908 = vld [vmem:[%s1 + $0xa0] sm:$0xf]
      %v909 = vld [vmem:[%s1 + $0xa4] sm:$0xf]
      %v910 = vld [vmem:[%s1 + $0xa8] sm:$0xf]
      %v911 = vld [vmem:[%s1 + $0xac] sm:$0xf]
      %v912 = vld [vmem:[%s1 + $0xb0] sm:$0xf]
      %v913 = vld [vmem:[%s1 + $0xb4] sm:$0xf]
      %v914 = vld [vmem:[%s1 + $0xb8] sm:$0xf]
      %v915 = vld [vmem:[%s1 + $0xbc] sm:$0xf]
      %v916 = vld [vmem:[%s1 + $0xc0] sm:$0xf]
      %v917 = vld [vmem:[%s1 + $0xc4] sm:$0xf]
      %v918 = vld [vmem:[%s1 + $0xc8] sm:$0xf]
      %v919 = vld [vmem:[%s1 + $0xcc] sm:$0xf]
      %v920 = vld [vmem:[%s1 + $0xd0] sm:$0xf]
      %v921 = vld [vmem:[%s1 + $0xd4] sm:$0xf]
      %v922 = vld [vmem:[%s1 + $0xd8] sm:$0xf]
      %v923 = vld [vmem:[%s1 + $0xdc] sm:$0xf]
      %v924 = vld [vmem:[%s1 + $0xe0] sm:$0xf]
      %v925 = vld [vmem:[%s1 + $0xe4] sm:$0xf]
      %v926 = vld [vmem:[%s1 + $0xe8] sm:$0xf]
      %v927 = vld [vmem:[%s1 + $0xec] sm:$0xf]
      %v928 = vld [vmem:[%s1 + $0xf0] sm:$0xf]
      %v929 = vld [vmem:[%s1 + $0xf4] sm:$0xf]
      %v930 = vld [vmem:[%s1 + $0xf8] sm:$0xf]
      %v931 = vld [vmem:[%s1 + $0xfc] sm:$0xf]
      %v932 = vld [vmem:[%s1 + $0x100] sm:$0xf]
      %v933 = vld [vmem:[%s1 + $0x104] sm:$0xf]
      %v934 = vld [vmem:[%s1 + $0x108] sm:$0xf]
      %v935 = vld [vmem:[%s1 + $0x10c] sm:$0xf]
      %v936 = vld [vmem:[%s1 + $0x110] sm:$0xf]
      %v937 = vld [vmem:[%s1 + $0x114] sm:$0xf]
      %v938 = vld [vmem:[%s1 + $0x118] sm:$0xf]
      %v939 = vld [vmem:[%s1 + $0x11c] sm:$0xf]
      %v940 = vld [vmem:[%s1 + $0x120] sm:$0xf]
      %v941 = vld [vmem:[%s1 + $0x124] sm:$0xf]
      %v942 = vld [vmem:[%s1 + $0x128] sm:$0xf]
      %v943 = vld [vmem:[%s1 + $0x12c] sm:$0xf]
      %v944 = vld [vmem:[%s1 + $0x130] sm:$0xf]
      %v945 = vld [vmem:[%s1 + $0x134] sm:$0xf]
      %v946 = vld [vmem:[%s1 + $0x138] sm:$0xf]
      %v947 = vld [vmem:[%s1 + $0x13c] sm:$0xf]
      %v948 = vld [vmem:[%s1 + $0x140] sm:$0xf]
      %v949 = vld [vmem:[%s1 + $0x144] sm:$0xf]
      %v950 = vld [vmem:[%s1 + $0x148] sm:$0xf]
      %v951 = vld [vmem:[%s1 + $0x14c] sm:$0xf]
      %v952 = vld [vmem:[%s1 + $0x150] sm:$0xf]
      %v953 = vld [vmem:[%s1 + $0x154] sm:$0xf]
      %v954 = vld [vmem:[%s1 + $0x158] sm:$0xf]
      %v955 = vld [vmem:[%s1 + $0x15c] sm:$0xf]
      %v956 = vld [vmem:[%s1 + $0x160] sm:$0xf]
      %v957 = vld [vmem:[%s1 + $0x164] sm:$0xf]
      %v958 = vld [vmem:[%s1 + $0x168] sm:$0xf]
      %v959 = vld [vmem:[%s1 + $0x16c] sm:$0xf]
      %v960 = vld [vmem:[%s1 + $0x170] sm:$0xf]
      %v961 = vld [vmem:[%s1 + $0x174] sm:$0xf]
      %v962 = vld [vmem:[%s1 + $0x178] sm:$0xf]
      %v963 = vld [vmem:[%s1 + $0x17c] sm:$0xf]
      %v964 = vld [vmem:[%s1 + $0x180] sm:$0xf]
      %v965 = vld [vmem:[%s1 + $0x184] sm:$0xf]
      %v966 = vld [vmem:[%s1 + $0x188] sm:$0xf]
      %v967 = vld [vmem:[%s1 + $0x18c] sm:$0xf]
      %v968 = vld [vmem:[%s1 + $0x190] sm:$0xf]
      %v969 = vld [vmem:[%s1 + $0x194] sm:$0xf]
      %v970 = vld [vmem:[%s1 + $0x198] sm:$0xf]
      %v971 = vld [vmem:[%s1 + $0x19c] sm:$0xf]
      %v972 = vld [vmem:[%s1 + $0x1a0] sm:$0xf]
      %v973 = vld [vmem:[%s1 + $0x1a4] sm:$0xf]
      %v974 = vld [vmem:[%s1 + $0x1a8] sm:$0xf]
      %v975 = vld [vmem:[%s1 + $0x1ac] sm:$0xf]
      %v976 = vld [vmem:[%s1 + $0x1b0] sm:$0xf]
      %v977 = vld [vmem:[%s1 + $0x1b4] sm:$0xf]
      %v978 = vld [vmem:[%s1 + $0x1b8] sm:$0xf]
      %v979 = vld [vmem:[%s1 + $0x1bc] sm:$0xf]
      %v980 = vld [vmem:[%s1 + $0x1c0] sm:$0xf]
      %v981 = vld [vmem:[%s1 + $0x1c4] sm:$0xf]
      %v982 = vld [vmem:[%s1 + $0x1c8] sm:$0xf]
      %v983 = vld [vmem:[%s1 + $0x1cc] sm:$0xf]
      %v984 = vld [vmem:[%s1 + $0x1d0] sm:$0xf]
      %v985 = vld [vmem:[%s1 + $0x1d4] sm:$0xf]
      %v986 = vld [vmem:[%s1 + $0x1d8] sm:$0xf]
      %v987 = vld [vmem:[%s1 + $0x1dc] sm:$0xf]
      %v988 = vld [vmem:[%s1 + $0x1e0] sm:$0xf]
      %v989 = vld [vmem:[%s1 + $0x1e4] sm:$0xf]
      %v990 = vld [vmem:[%s1 + $0x1e8] sm:$0xf]
      %v991 = vld [vmem:[%s1 + $0x1ec] sm:$0xf]
      %v992 = vld [vmem:[%s1 + $0x1f0] sm:$0xf]
      %v993 = vld [vmem:[%s1 + $0x1f4] sm:$0xf]
      %v994 = vld [vmem:[%s1 + $0x1f8] sm:$0xf]
      %v995 = vld [vmem:[%s1 + $0x1fc] sm:$0xf]
      %v996 = vld [vmem:[%s1 + $0x200] sm:$0xf]
      %v997 = vld [vmem:[%s1 + $0x204] sm:$0xf]
      %v998 = vld [vmem:[%s1 + $0x208] sm:$0xf]
      %v999 = vld [vmem:[%s1 + $0x20c] sm:$0xf]
      %v1000 = vld [vmem:[%s1 + $0x210] sm:$0xf]
      %v1001 = vld [vmem:[%s1 + $0x214] sm:$0xf]
      %v1002 = vld [vmem:[%s1 + $0x218] sm:$0xf]
      %v1003 = vld [vmem:[%s1 + $0x21c] sm:$0xf]
      %v1004 = vld [vmem:[%s1 + $0x220] sm:$0xf]
      %v1005 = vld [vmem:[%s1 + $0x224] sm:$0xf]
      %v1006 = vld [vmem:[%s1 + $0x228] sm:$0xf]
      %v1007 = vld [vmem:[%s1 + $0x22c] sm:$0xf]
      %v1008 = vld [vmem:[%s1 + $0x230] sm:$0xf]
      %v1009 = vld [vmem:[%s1 + $0x234] sm:$0xf]
      %v1010 = vld [vmem:[%s1 + $0x238] sm:$0xf]
      %v1011 = vld [vmem:[%s1 + $0x23c] sm:$0xf]
      %v1012 = vld [vmem:[%s2] sm:$0x1]
      %v1014 = vlaneseq
      %v1015 = vshrl.u32 %v1014, 7
      %v1016 = vsub.s32 0, %v1015
      %v1017 = vrot.slane %v1012, %v1016
      %v1163 = vunpack.c.l.b16 %v868
      %v1164 = vunpack.c.l.b16 %v869
      %v1165 = vunpack.c.l.b16 %v870
      %v1166 = vunpack.c.l.b16 %v871
      %v1167 = vunpack.c.l.b16 %v872
      %v1168 = vunpack.c.l.b16 %v873
      %v1169 = vunpack.c.l.b16 %v874
      %v1170 = vunpack.c.l.b16 %v875
      %v1171 = vunpack.c.l.b16 %v876
      %v1172 = vunpack.c.l.b16 %v877
      %v1173 = vunpack.c.l.b16 %v878
      %v1174 = vunpack.c.l.b16 %v879
      %v1175 = vunpack.c.l.b16 %v880
      %v1176 = vunpack.c.l.b16 %v881
      %v1177 = vunpack.c.l.b16 %v882
      %v1178 = vunpack.c.l.b16 %v883
      %v1179 = vunpack.c.l.b16 %v884
      %v1180 = vunpack.c.l.b16 %v885
      %v1181 = vunpack.c.l.b16 %v886
      %v1182 = vunpack.c.l.b16 %v887
      %v1183 = vunpack.c.l.b16 %v888
      %v1184 = vunpack.c.l.b16 %v889
      %v1185 = vunpack.c.l.b16 %v890
      %v1186 = vunpack.c.l.b16 %v891
      %v1187 = vunpack.c.l.b16 %v892
      %v1188 = vunpack.c.l.b16 %v893
      %v1189 = vunpack.c.l.b16 %v894
      %v1190 = vunpack.c.l.b16 %v895
      %v1191 = vunpack.c.l.b16 %v896
      %v1192 = vunpack.c.l.b16 %v897
      %v1193 = vunpack.c.l.b16 %v898
      %v1194 = vunpack.c.l.b16 %v899
      %v1195 = vunpack.c.l.b16 %v900
      %v1196 = vunpack.c.l.b16 %v901
      %v1197 = vunpack.c.l.b16 %v902
      %v1198 = vunpack.c.l.b16 %v903
      %v1199 = vunpack.c.l.b16 %v904
      %v1200 = vunpack.c.l.b16 %v905
      %v1201 = vunpack.c.l.b16 %v906
      %v1202 = vunpack.c.l.b16 %v907
      %v1203 = vunpack.c.l.b16 %v908
      %v1204 = vunpack.c.l.b16 %v909
      %v1205 = vunpack.c.l.b16 %v910
      %v1206 = vunpack.c.l.b16 %v911
      %v1207 = vunpack.c.l.b16 %v912
      %v1208 = vunpack.c.l.b16 %v913
      %v1209 = vunpack.c.l.b16 %v914
      %v1210 = vunpack.c.l.b16 %v915
      %v1211 = vunpack.c.l.b16 %v916
      %v1212 = vunpack.c.l.b16 %v917
      %v1213 = vunpack.c.l.b16 %v918
      %v1214 = vunpack.c.l.b16 %v919
      %v1215 = vunpack.c.l.b16 %v920
      %v1216 = vunpack.c.l.b16 %v921
      %v1217 = vunpack.c.l.b16 %v922
      %v1218 = vunpack.c.l.b16 %v923
      %v1219 = vunpack.c.l.b16 %v924
      %v1220 = vunpack.c.l.b16 %v925
      %v1221 = vunpack.c.l.b16 %v926
      %v1222 = vunpack.c.l.b16 %v927
      %v1223 = vunpack.c.l.b16 %v928
      %v1224 = vunpack.c.l.b16 %v929
      %v1225 = vunpack.c.l.b16 %v930
      %v1226 = vunpack.c.l.b16 %v931
      %v1227 = vunpack.c.l.b16 %v932
      %v1228 = vunpack.c.l.b16 %v933
      %v1229 = vunpack.c.l.b16 %v934
      %v1230 = vunpack.c.l.b16 %v935
      %v1231 = vunpack.c.l.b16 %v936
      %v1232 = vunpack.c.l.b16 %v937
      %v1233 = vunpack.c.l.b16 %v938
      %v1234 = vunpack.c.l.b16 %v939
      %v1235 = vunpack.c.l.b16 %v940
      %v1236 = vunpack.c.l.b16 %v941
      %v1237 = vunpack.c.l.b16 %v942
      %v1238 = vunpack.c.l.b16 %v943
      %v1239 = vunpack.c.l.b16 %v944
      %v1240 = vunpack.c.l.b16 %v945
      %v1241 = vunpack.c.l.b16 %v946
      %v1242 = vunpack.c.l.b16 %v947
      %v1243 = vunpack.c.l.b16 %v948
      %v1244 = vunpack.c.l.b16 %v949
      %v1245 = vunpack.c.l.b16 %v950
      %v1246 = vunpack.c.l.b16 %v951
      %v1247 = vunpack.c.l.b16 %v952
      %v1248 = vunpack.c.l.b16 %v953
      %v1249 = vunpack.c.l.b16 %v954
      %v1250 = vunpack.c.l.b16 %v955
      %v1251 = vunpack.c.l.b16 %v956
      %v1252 = vunpack.c.l.b16 %v957
      %v1253 = vunpack.c.l.b16 %v958
      %v1254 = vunpack.c.l.b16 %v959
      %v1255 = vunpack.c.l.b16 %v960
      %v1256 = vunpack.c.l.b16 %v961
      %v1257 = vunpack.c.l.b16 %v962
      %v1258 = vunpack.c.l.b16 %v963
      %v1259 = vunpack.c.l.b16 %v964
      %v1260 = vunpack.c.l.b16 %v965
      %v1261 = vunpack.c.l.b16 %v966
      %v1262 = vunpack.c.l.b16 %v967
      %v1263 = vunpack.c.l.b16 %v968
      %v1264 = vunpack.c.l.b16 %v969
      %v1265 = vunpack.c.l.b16 %v970
      %v1266 = vunpack.c.l.b16 %v971
      %v1267 = vunpack.c.l.b16 %v972
      %v1268 = vunpack.c.l.b16 %v973
      %v1269 = vunpack.c.l.b16 %v974
      %v1270 = vunpack.c.l.b16 %v975
      %v1271 = vunpack.c.l.b16 %v976
      %v1272 = vunpack.c.l.b16 %v977
      %v1273 = vunpack.c.l.b16 %v978
      %v1274 = vunpack.c.l.b16 %v979
      %v1275 = vunpack.c.l.b16 %v980
      %v1276 = vunpack.c.l.b16 %v981
      %v1277 = vunpack.c.l.b16 %v982
      %v1278 = vunpack.c.l.b16 %v983
      %v1279 = vunpack.c.l.b16 %v984
      %v1280 = vunpack.c.l.b16 %v985
      %v1281 = vunpack.c.l.b16 %v986
      %v1282 = vunpack.c.l.b16 %v987
      %v1283 = vunpack.c.l.b16 %v988
      %v1284 = vunpack.c.l.b16 %v989
      %v1285 = vunpack.c.l.b16 %v990
      %v1286 = vunpack.c.l.b16 %v991
      %v1287 = vunpack.c.l.b16 %v992
      %v1288 = vunpack.c.l.b16 %v993
      %v1289 = vunpack.c.l.b16 %v994
      %v1290 = vunpack.c.l.b16 %v995
      %v1291 = vunpack.c.l.b16 %v996
      %v1292 = vunpack.c.l.b16 %v997
      %v1293 = vunpack.c.l.b16 %v998
      %v1294 = vunpack.c.l.b16 %v999
      %v1295 = vunpack.c.l.b16 %v1000
      %v1296 = vunpack.c.l.b16 %v1001
      %v1297 = vunpack.c.l.b16 %v1002
      %v1298 = vunpack.c.l.b16 %v1003
      %v1299 = vunpack.c.l.b16 %v1004
      %v1300 = vunpack.c.l.b16 %v1005
      %v1301 = vunpack.c.l.b16 %v1006
      %v1302 = vunpack.c.l.b16 %v1007
      %v1303 = vunpack.c.l.b16 %v1008
      %v1304 = vunpack.c.l.b16 %v1009
      %v1305 = vunpack.c.l.b16 %v1010
      %v1306 = vunpack.c.l.b16 %v1011
      %v1307 = vpack.c.b16 %v1164, %v1163
      %v1308 = vpack.c.b16 %v1166, %v1165
      %v1309 = vpack.c.b16 %v1168, %v1167
      %v1310 = vpack.c.b16 %v1170, %v1169
      %v1311 = vpack.c.b16 %v1172, %v1171
      %v1312 = vpack.c.b16 %v1174, %v1173
      %v1313 = vpack.c.b16 %v1176, %v1175
      %v1314 = vpack.c.b16 %v1178, %v1177
      %v1315 = vpack.c.b16 %v1180, %v1179
      %v1316 = vpack.c.b16 %v1182, %v1181
      %v1317 = vpack.c.b16 %v1184, %v1183
      %v1318 = vpack.c.b16 %v1186, %v1185
      %v1319 = vpack.c.b16 %v1188, %v1187
      %v1320 = vpack.c.b16 %v1190, %v1189
      %v1321 = vpack.c.b16 %v1192, %v1191
      %v1322 = vpack.c.b16 %v1194, %v1193
      %v1323 = vpack.c.b16 %v1196, %v1195
      %v1324 = vpack.c.b16 %v1198, %v1197
      %v1325 = vpack.c.b16 %v1200, %v1199
      %v1326 = vpack.c.b16 %v1202, %v1201
      %v1327 = vpack.c.b16 %v1204, %v1203
      %v1328 = vpack.c.b16 %v1206, %v1205
      %v1329 = vpack.c.b16 %v1208, %v1207
      %v1330 = vpack.c.b16 %v1210, %v1209
      %v1331 = vpack.c.b16 %v1212, %v1211
      %v1332 = vpack.c.b16 %v1214, %v1213
      %v1333 = vpack.c.b16 %v1216, %v1215
      %v1334 = vpack.c.b16 %v1218, %v1217
      %v1335 = vpack.c.b16 %v1220, %v1219
      %v1336 = vpack.c.b16 %v1222, %v1221
      %v1337 = vpack.c.b16 %v1224, %v1223
      %v1338 = vpack.c.b16 %v1226, %v1225
      %v1339 = vpack.c.b16 %v1228, %v1227
      %v1340 = vpack.c.b16 %v1230, %v1229
      %v1341 = vpack.c.b16 %v1232, %v1231
      %v1342 = vpack.c.b16 %v1234, %v1233
      %v1343 = vpack.c.b16 %v1236, %v1235
      %v1344 = vpack.c.b16 %v1238, %v1237
      %v1345 = vpack.c.b16 %v1240, %v1239
      %v1346 = vpack.c.b16 %v1242, %v1241
      %v1347 = vpack.c.b16 %v1244, %v1243
      %v1348 = vpack.c.b16 %v1246, %v1245
      %v1349 = vpack.c.b16 %v1248, %v1247
      %v1350 = vpack.c.b16 %v1250, %v1249
      %v1351 = vpack.c.b16 %v1252, %v1251
      %v1352 = vpack.c.b16 %v1254, %v1253
      %v1353 = vpack.c.b16 %v1256, %v1255
      %v1354 = vpack.c.b16 %v1258, %v1257
      %v1355 = vpack.c.b16 %v1260, %v1259
      %v1356 = vpack.c.b16 %v1262, %v1261
      %v1357 = vpack.c.b16 %v1264, %v1263
      %v1358 = vpack.c.b16 %v1266, %v1265
      %v1359 = vpack.c.b16 %v1268, %v1267
      %v1360 = vpack.c.b16 %v1270, %v1269
      %v1361 = vpack.c.b16 %v1272, %v1271
      %v1362 = vpack.c.b16 %v1274, %v1273
      %v1363 = vpack.c.b16 %v1276, %v1275
      %v1364 = vpack.c.b16 %v1278, %v1277
      %v1365 = vpack.c.b16 %v1280, %v1279
      %v1366 = vpack.c.b16 %v1282, %v1281
      %v1367 = vpack.c.b16 %v1284, %v1283
      %v1368 = vpack.c.b16 %v1286, %v1285
      %v1369 = vpack.c.b16 %v1288, %v1287
      %v1370 = vpack.c.b16 %v1290, %v1289
      %v1371 = vpack.c.b16 %v1292, %v1291
      %v1372 = vpack.c.b16 %v1294, %v1293
      %v1373 = vpack.c.b16 %v1296, %v1295
      %v1374 = vpack.c.b16 %v1298, %v1297
      %v1375 = vpack.c.b16 %v1300, %v1299
      %v1376 = vpack.c.b16 %v1302, %v1301
      %v1377 = vpack.c.b16 %v1304, %v1303
      %v1378 = vpack.c.b16 %v1306, %v1305
      %1451 = vmatprep.subr.bf16.mxu0 0
      %1452 = vmatpush1.bf16.msra.mxu0 %v1307
      %1453 = vmatprep.subr.bf16.mxu0 0
      %1454 = vmatpush1.bf16.msra.mxu0 %v1308
      %1455 = vmatprep.subr.bf16.mxu0 0
      %1456 = vmatpush1.bf16.msra.mxu0 %v1309
      %1457 = vmatprep.subr.bf16.mxu0 0
      %1458 = vmatpush1.bf16.msra.mxu0 %v1310
      %1459 = vmatprep.subr.bf16.mxu0 0
      %1460 = vmatpush1.bf16.msra.mxu0 %v1311
      %1461 = vmatprep.subr.bf16.mxu0 0
      %1462 = vmatpush1.bf16.msra.mxu0 %v1312
      %1463 = vmatprep.subr.bf16.mxu0 0
      %1464 = vmatpush1.bf16.msra.mxu0 %v1313
      %1465 = vmatprep.subr.bf16.mxu0 0
      %1466 = vmatpush1.bf16.msra.mxu0 %v1314
      %1467 = vmatprep.subr.bf16.mxu0 0
      %1468 = vmatpush1.bf16.msra.mxu0 %v1315
      %1469 = vmatprep.subr.bf16.mxu0 0
      %1470 = vmatpush1.bf16.msra.mxu0 %v1316
      %1471 = vmatprep.subr.bf16.mxu0 0
      %1472 = vmatpush1.bf16.msra.mxu0 %v1317
      %1473 = vmatprep.subr.bf16.mxu0 0
      %1474 = vmatpush1.bf16.msra.mxu0 %v1318
      %1475 = vmatprep.subr.bf16.mxu0 0
      %1476 = vmatpush1.bf16.msra.mxu0 %v1319
      %1477 = vmatprep.subr.bf16.mxu0 0
      %1478 = vmatpush1.bf16.msra.mxu0 %v1320
      %1479 = vmatprep.subr.bf16.mxu0 0
      %1480 = vmatpush1.bf16.msra.mxu0 %v1321
      %1481 = vmatprep.subr.bf16.mxu0 0
      %1482 = vmatpush1.bf16.msra.mxu0 %v1322
      %1483 = vmatprep.mubr.bf16.mxu0 %v557
      %1484 = vmatmul.mubr.bf16.gmra.mrb[0].mxu0 0
      %v1485 = vpop.f32.mrb[0].mxu0
      %v1486 = vadd.f32 %v1017, %v1485
      %v1487 = vpop.f32.mrb[0].mxu0
      %v1488 = vpop.f32.mrb[0].mxu0
      %v1489 = vadd.f32 %v1017, %v1488
      %v1490 = vpop.f32.mrb[0].mxu0
      %1491 = vmatprep.mubr.bf16.mxu0 %v569
      %1492 = vmatmul.mubr.bf16.gmra.mrb[0].mxu0 %v517
      %v1493 = vpop.f32.mrb[0].mxu0
      %v1494 = vadd.f32 %v1017, %v1493
      %v1495 = vpop.f32.mrb[0].mxu0
      %v1496 = vpop.f32.mrb[0].mxu0
      %v1497 = vadd.f32 %v1017, %v1496
      %v1498 = vpop.f32.mrb[0].mxu0
      %1499 = vmatprep.mubr.bf16.mxu0 %v581
      %1500 = vmatmul.mubr.bf16.gmra.mrb[0].mxu0 %v518
      %v1501 = vpop.f32.mrb[0].mxu0
      %v1502 = vadd.f32 %v1017, %v1501
      %v1503 = vpop.f32.mrb[0].mxu0
      %v1504 = vpop.f32.mrb[0].mxu0
      %v1505 = vadd.f32 %v1017, %v1504
      %v1506 = vpop.f32.mrb[0].mxu0
      %1507 = vmatprep.mubr.bf16.mxu0 %v593
      %1508 = vmatmul.mubr.bf16.gmra.mrb[0].mxu0 %v519
      %v1509 = vpop.f32.mrb[0].mxu0
      %v1510 = vadd.f32 %v1017, %v1509
      %v1511 = vpop.f32.mrb[0].mxu0
      %v1512 = vpop.f32.mrb[0].mxu0
      %v1513 = vadd.f32 %v1017, %v1512
      %v1514 = vpop.f32.mrb[0].mxu0
      %1515 = vmatprep.mubr.bf16.mxu0 %v605
      %1516 = vmatmul.mubr.bf16.gmra.mrb[0].mxu0 %v520
      %v1517 = vpop.f32.mrb[0].mxu0
      %v1518 = vadd.f32 %v1017, %v1517
      %v1519 = vpop.f32.mrb[0].mxu0
      %v1520 = vpop.f32.mrb[0].mxu0
      %v1521 = vadd.f32 %v1017, %v1520
      %v1522 = vpop.f32.mrb[0].mxu0
      %1523 = vmatprep.mubr.bf16.mxu0 %v617
      %1524 = vmatmul.mubr.bf16.gmra.mrb[0].mxu0 %v521
      %v1525 = vpop.f32.mrb[0].mxu0
      %v1526 = vadd.f32 %v1017, %v1525
      %v1527 = vpop.f32.mrb[0].mxu0
      %v1528 = vpop.f32.mrb[0].mxu0
      %v1529 = vadd.f32 %v1017, %v1528
      %v1530 = vpop.f32.mrb[0].mxu0
      %1531 = vmatprep.mubr.bf16.mxu0 %v629
      %1532 = vmatmul.mubr.bf16.gmra.mrb[0].mxu0 %v522
      %v1533 = vpop.f32.mrb[0].mxu0
      %v1534 = vadd.f32 %v1017, %v1533
      %v1535 = vpop.f32.mrb[0].mxu0
      %v1536 = vpop.f32.mrb[0].mxu0
      %v1537 = vadd.f32 %v1017, %v1536
      %v1538 = vpop.f32.mrb[0].mxu0
      %1539 = vmatprep.mubr.bf16.mxu0 %v641
      %1540 = vmatmul.mubr.bf16.gmra.mrb[0].mxu0 %v523
      %v1541 = vpop.f32.mrb[0].mxu0
      %v1542 = vadd.f32 %v1017, %v1541
      %v1543 = vpop.f32.mrb[0].mxu0
      %v1544 = vpop.f32.mrb[0].mxu0
      %v1545 = vadd.f32 %v1017, %v1544
      %v1546 = vpop.f32.mrb[0].mxu0
      %1547 = vmatprep.mubr.bf16.mxu0 %v653
      %1548 = vmatmul.mubr.bf16.gmra.mrb[0].mxu0 %v524
      %v1549 = vpop.f32.mrb[0].mxu0
      %v1550 = vadd.f32 %v1017, %v1549
      %v1551 = vpop.f32.mrb[0].mxu0
      %v1552 = vpop.f32.mrb[0].mxu0
      %v1553 = vadd.f32 %v1017, %v1552
      %v1554 = vpop.f32.mrb[0].mxu0
      %1555 = vmatprep.mubr.bf16.mxu0 %v665
      %1556 = vmatmul.mubr.bf16.gmra.mrb[0].mxu0 %v525
      %v1557 = vpop.f32.mrb[0].mxu0
      %v1558 = vadd.f32 %v1017, %v1557
      %v1559 = vpop.f32.mrb[0].mxu0
      %v1560 = vpop.f32.mrb[0].mxu0
      %v1561 = vadd.f32 %v1017, %v1560
      %v1562 = vpop.f32.mrb[0].mxu0
      %1563 = vmatprep.mubr.bf16.mxu0 %v677
      %1564 = vmatmul.mubr.bf16.gmra.mrb[0].mxu0 %v526
      %v1565 = vpop.f32.mrb[0].mxu0
      %v1566 = vadd.f32 %v1017, %v1565
      %v1567 = vpop.f32.mrb[0].mxu0
      %v1568 = vpop.f32.mrb[0].mxu0
      %v1569 = vadd.f32 %v1017, %v1568
      %v1570 = vpop.f32.mrb[0].mxu0
      %1571 = vmatprep.mubr.bf16.mxu0 %v689
      %1572 = vmatmul.mubr.bf16.gmra.mrb[0].mxu0 %v527
      %v1573 = vpop.f32.mrb[0].mxu0
      %v1574 = vadd.f32 %v1017, %v1573
      %v1575 = vpop.f32.mrb[0].mxu0
      %v1576 = vpop.f32.mrb[0].mxu0
      %v1577 = vadd.f32 %v1017, %v1576
      %v1578 = vpop.f32.mrb[0].mxu0
      %1579 = vmatprep.mubr.bf16.mxu0 %v701
      %1580 = vmatmul.mubr.bf16.gmra.mrb[0].mxu0 %v528
      %v1581 = vpop.f32.mrb[0].mxu0
      %v1582 = vadd.f32 %v1017, %v1581
      %v1583 = vpop.f32.mrb[0].mxu0
      %v1584 = vpop.f32.mrb[0].mxu0
      %v1585 = vadd.f32 %v1017, %v1584
      %v1586 = vpop.f32.mrb[0].mxu0
      %1587 = vmatprep.mubr.bf16.mxu0 %v713
      %1588 = vmatmul.mubr.bf16.gmra.mrb[0].mxu0 %v529
      %v1589 = vpop.f32.mrb[0].mxu0
      %v1590 = vadd.f32 %v1017, %v1589
      %v1591 = vpop.f32.mrb[0].mxu0
      %v1592 = vpop.f32.mrb[0].mxu0
      %v1593 = vadd.f32 %v1017, %v1592
      %v1594 = vpop.f32.mrb[0].mxu0
      %1595 = vmatprep.mubr.bf16.mxu0 %v725
      %1596 = vmatmul.mubr.bf16.gmra.mrb[0].mxu0 %v530
      %v1597 = vpop.f32.mrb[0].mxu0
      %v1598 = vadd.f32 %v1017, %v1597
      %v1599 = vpop.f32.mrb[0].mxu0
      %v1600 = vpop.f32.mrb[0].mxu0
      %v1601 = vadd.f32 %v1017, %v1600
      %v1602 = vpop.f32.mrb[0].mxu0
      %1603 = vmatprep.mubr.bf16.mxu0 %v737
      %1604 = vmatmul.mubr.bf16.gmra.mrb[0].mxu0 %v531
      %v1605 = vpop.f32.mrb[0].mxu0
      %v1606 = vadd.f32 %v1017, %v1605
      %v1607 = vpop.f32.mrb[0].mxu0
      %v1608 = vpop.f32.mrb[0].mxu0
      %v1609 = vadd.f32 %v1017, %v1608
      %v1610 = vpop.f32.mrb[0].mxu0
      %1611 = vdwg.mxu0
      %1612 = vmatprep.subr.bf16.mxu0 0
      %1613 = vmatpush1.bf16.msra.mxu0 %v1323
      %1614 = vmatprep.subr.bf16.mxu0 0
      %1615 = vmatpush1.bf16.msra.mxu0 %v1324
      %1616 = vmatprep.subr.bf16.mxu0 0
      %1617 = vmatpush1.bf16.msra.mxu0 %v1325
      %1618 = vmatprep.subr.bf16.mxu0 0
      %1619 = vmatpush1.bf16.msra.mxu0 %v1326
      %1620 = vmatprep.subr.bf16.mxu0 0
      %1621 = vmatpush1.bf16.msra.mxu0 %v1327
      %1622 = vmatprep.subr.bf16.mxu0 0
      %1623 = vmatpush1.bf16.msra.mxu0 %v1328
      %1624 = vmatprep.subr.bf16.mxu0 0
      %1625 = vmatpush1.bf16.msra.mxu0 %v1329
      %1626 = vmatprep.subr.bf16.mxu0 0
      %1627 = vmatpush1.bf16.msra.mxu0 %v1330
      %1628 = vmatprep.subr.bf16.mxu0 0
      %1629 = vmatpush1.bf16.msra.mxu0 %v1331
      %1630 = vmatprep.subr.bf16.mxu0 0
      %1631 = vmatpush1.bf16.msra.mxu0 %v1332
      %1632 = vmatprep.subr.bf16.mxu0 0
      %1633 = vmatpush1.bf16.msra.mxu0 %v1333
      %1634 = vmatprep.subr.bf16.mxu0 0
      %1635 = vmatpush1.bf16.msra.mxu0 %v1334
      %1636 = vmatprep.subr.bf16.mxu0 0
      %1637 = vmatpush1.bf16.msra.mxu0 %v1335
      %1638 = vmatprep.subr.bf16.mxu0 0
      %1639 = vmatpush1.bf16.msra.mxu0 %v1336
      %1640 = vmatprep.subr.bf16.mxu0 0
      %1641 = vmatpush1.bf16.msra.mxu0 %v1337
      %1642 = vmatprep.subr.bf16.mxu0 0
      %1643 = vmatpush1.bf16.msra.mxu0 %v1338
      %1644 = vmatprep.mubr.bf16.mxu0 %v517
      %1645 = vmatmul.mubr.bf16.gmra.mrb[0].mxu0 %v787
      %v1646 = vpop.f32.mrb[0].mxu0
      %v1647 = vadd.f32 %v1486, %v1646
      %v1648 = vpop.f32.mrb[0].mxu0
      %v1649 = vpop.f32.mrb[0].mxu0
      %v1650 = vadd.f32 %v1489, %v1649
      %v1651 = vpop.f32.mrb[0].mxu0
      %1652 = vmatprep.mubr.bf16.mxu0 %v518
      %1653 = vmatmul.mubr.bf16.gmra.mrb[0].mxu0 %v790
      %v1654 = vpop.f32.mrb[0].mxu0
      %v1655 = vadd.f32 %v1494, %v1654
      %v1656 = vpop.f32.mrb[0].mxu0
      %v1657 = vpop.f32.mrb[0].mxu0
      %v1658 = vadd.f32 %v1497, %v1657
      %v1659 = vpop.f32.mrb[0].mxu0
      %1660 = vmatprep.mubr.bf16.mxu0 %v519
      %1661 = vmatmul.mubr.bf16.gmra.mrb[0].mxu0 %v793
      %v1662 = vpop.f32.mrb[0].mxu0
      %v1663 = vadd.f32 %v1502, %v1662
      %v1664 = vpop.f32.mrb[0].mxu0
      %v1665 = vpop.f32.mrb[0].mxu0
      %v1666 = vadd.f32 %v1505, %v1665
      %v1667 = vpop.f32.mrb[0].mxu0
      %1668 = vmatprep.mubr.bf16.mxu0 %v520
      %1669 = vmatmul.mubr.bf16.gmra.mrb[0].mxu0 %v796
      %v1670 = vpop.f32.mrb[0].mxu0
      %v1671 = vadd.f32 %v1510, %v1670
      %v1672 = vpop.f32.mrb[0].mxu0
      %v1673 = vpop.f32.mrb[0].mxu0
      %v1674 = vadd.f32 %v1513, %v1673
      %v1675 = vpop.f32.mrb[0].mxu0
      %1676 = vmatprep.mubr.bf16.mxu0 %v521
      %1677 = vmatmul.mubr.bf16.gmra.mrb[0].mxu0 %v799
      %v1678 = vpop.f32.mrb[0].mxu0
      %v1679 = vadd.f32 %v1518, %v1678
      %v1680 = vpop.f32.mrb[0].mxu0
      %v1681 = vpop.f32.mrb[0].mxu0
      %v1682 = vadd.f32 %v1521, %v1681
      %v1683 = vpop.f32.mrb[0].mxu0
      %1684 = vmatprep.mubr.bf16.mxu0 %v522
      %1685 = vmatmul.mubr.bf16.gmra.mrb[0].mxu0 %v802
      %v1686 = vpop.f32.mrb[0].mxu0
      %v1687 = vadd.f32 %v1526, %v1686
      %v1688 = vpop.f32.mrb[0].mxu0
      %v1689 = vpop.f32.mrb[0].mxu0
      %v1690 = vadd.f32 %v1529, %v1689
      %v1691 = vpop.f32.mrb[0].mxu0
      %1692 = vmatprep.mubr.bf16.mxu0 %v523
      %1693 = vmatmul.mubr.bf16.gmra.mrb[0].mxu0 %v805
      %v1694 = vpop.f32.mrb[0].mxu0
      %v1695 = vadd.f32 %v1534, %v1694
      %v1696 = vpop.f32.mrb[0].mxu0
      %v1697 = vpop.f32.mrb[0].mxu0
      %v1698 = vadd.f32 %v1537, %v1697
      %v1699 = vpop.f32.mrb[0].mxu0
      %1700 = vmatprep.mubr.bf16.mxu0 %v524
      %1701 = vmatmul.mubr.bf16.gmra.mrb[0].mxu0 %v808
      %v1702 = vpop.f32.mrb[0].mxu0
      %v1703 = vadd.f32 %v1542, %v1702
      %v1704 = vpop.f32.mrb[0].mxu0
      %v1705 = vpop.f32.mrb[0].mxu0
      %v1706 = vadd.f32 %v1545, %v1705
      %v1707 = vpop.f32.mrb[0].mxu0
      %1708 = vmatprep.mubr.bf16.mxu0 %v525
      %1709 = vmatmul.mubr.bf16.gmra.mrb[0].mxu0 %v811
      %v1710 = vpop.f32.mrb[0].mxu0
      %v1711 = vadd.f32 %v1550, %v1710
      %v1712 = vpop.f32.mrb[0].mxu0
      %v1713 = vpop.f32.mrb[0].mxu0
      %v1714 = vadd.f32 %v1553, %v1713
      %v1715 = vpop.f32.mrb[0].mxu0
      %1716 = vmatprep.mubr.bf16.mxu0 %v526
      %1717 = vmatmul.mubr.bf16.gmra.mrb[0].mxu0 %v814
      %v1718 = vpop.f32.mrb[0].mxu0
      %v1719 = vadd.f32 %v1558, %v1718
      %v1720 = vpop.f32.mrb[0].mxu0
      %v1721 = vpop.f32.mrb[0].mxu0
      %v1722 = vadd.f32 %v1561, %v1721
      %v1723 = vpop.f32.mrb[0].mxu0
      %1724 = vmatprep.mubr.bf16.mxu0 %v527
      %1725 = vmatmul.mubr.bf16.gmra.mrb[0].mxu0 %v817
      %v1726 = vpop.f32.mrb[0].mxu0
      %v1727 = vadd.f32 %v1566, %v1726
      %v1728 = vpop.f32.mrb[0].mxu0
      %v1729 = vpop.f32.mrb[0].mxu0
      %v1730 = vadd.f32 %v1569, %v1729
      %v1731 = vpop.f32.mrb[0].mxu0
      %1732 = vmatprep.mubr.bf16.mxu0 %v528
      %1733 = vmatmul.mubr.bf16.gmra.mrb[0].mxu0 %v820
      %v1734 = vpop.f32.mrb[0].mxu0
      %v1735 = vadd.f32 %v1574, %v1734
      %v1736 = vpop.f32.mrb[0].mxu0
      %v1737 = vpop.f32.mrb[0].mxu0
      %v1738 = vadd.f32 %v1577, %v1737
      %v1739 = vpop.f32.mrb[0].mxu0
      %1740 = vmatprep.mubr.bf16.mxu0 %v529
      %1741 = vmatmul.mubr.bf16.gmra.mrb[0].mxu0 %v823
      %v1742 = vpop.f32.mrb[0].mxu0
      %v1743 = vadd.f32 %v1582, %v1742
      %v1744 = vpop.f32.mrb[0].mxu0
      %v1745 = vpop.f32.mrb[0].mxu0
      %v1746 = vadd.f32 %v1585, %v1745
      %v1747 = vpop.f32.mrb[0].mxu0
      %1748 = vmatprep.mubr.bf16.mxu0 %v530
      %1749 = vmatmul.mubr.bf16.gmra.mrb[0].mxu0 %v826
      %v1750 = vpop.f32.mrb[0].mxu0
      %v1751 = vadd.f32 %v1590, %v1750
      %v1752 = vpop.f32.mrb[0].mxu0
      %v1753 = vpop.f32.mrb[0].mxu0
      %v1754 = vadd.f32 %v1593, %v1753
      %v1755 = vpop.f32.mrb[0].mxu0
      %1756 = vmatprep.mubr.bf16.mxu0 %v531
      %1757 = vmatmul.mubr.bf16.gmra.mrb[0].mxu0 %v829
      %v1758 = vpop.f32.mrb[0].mxu0
      %v1759 = vadd.f32 %v1598, %v1758
      %v1760 = vpop.f32.mrb[0].mxu0
      %v1761 = vpop.f32.mrb[0].mxu0
      %v1762 = vadd.f32 %v1601, %v1761
      %v1763 = vpop.f32.mrb[0].mxu0
      %1764 = vmatprep.mubr.bf16.mxu0 %v532
      %1765 = vmatmul.mubr.bf16.gmra.mrb[0].mxu0 %v832
      %v1766 = vpop.f32.mrb[0].mxu0
      %v1767 = vadd.f32 %v1606, %v1766
      %v1768 = vpop.f32.mrb[0].mxu0
      %v1769 = vpop.f32.mrb[0].mxu0
      %v1770 = vadd.f32 %v1609, %v1769
      %v1771 = vpop.f32.mrb[0].mxu0
      %1772 = vdwg.mxu0
      %1773 = vmatprep.subr.bf16.mxu0 0
      %1774 = vmatpush1.bf16.msra.mxu0 %v1339
      %1775 = vmatprep.subr.bf16.mxu0 0
      %1776 = vmatpush1.bf16.msra.mxu0 %v1340
      %1777 = vmatprep.subr.bf16.mxu0 0
      %1778 = vmatpush1.bf16.msra.mxu0 %v1341
      %1779 = vmatprep.subr.bf16.mxu0 0
      %1780 = vmatpush1.bf16.msra.mxu0 %v1342
      %1781 = vmatprep.subr.bf16.mxu0 0
      %1782 = vmatpush1.bf16.msra.mxu0 %v1343
      %1783 = vmatprep.subr.bf16.mxu0 0
      %1784 = vmatpush1.bf16.msra.mxu0 %v1344
      %1785 = vmatprep.subr.bf16.mxu0 0
      %1786 = vmatpush1.bf16.msra.mxu0 %v1345
      %1787 = vmatprep.subr.bf16.mxu0 0
      %1788 = vmatpush1.bf16.msra.mxu0 %v1346
      %1789 = vmatprep.subr.bf16.mxu0 0
      %1790 = vmatpush1.bf16.msra.mxu0 %v1347
      %1791 = vmatprep.subr.bf16.mxu0 0
      %1792 = vmatpush1.bf16.msra.mxu0 %v1348
      %1793 = vmatprep.subr.bf16.mxu0 0
      %1794 = vmatpush1.bf16.msra.mxu0 %v1349
      %1795 = vmatprep.subr.bf16.mxu0 0
      %1796 = vmatpush1.bf16.msra.mxu0 %v1350
      %1797 = vmatprep.subr.bf16.mxu0 0
      %1798 = vmatpush1.bf16.msra.mxu0 %v1351
      %1799 = vmatprep.subr.bf16.mxu0 0
      %1800 = vmatpush1.bf16.msra.mxu0 %v1352
      %1801 = vmatprep.subr.bf16.mxu0 0
      %1802 = vmatpush1.bf16.msra.mxu0 %v1353
      %1803 = vmatprep.subr.bf16.mxu0 0
      %1804 = vmatpush1.bf16.msra.mxu0 %v1354
      %1805 = vmatprep.mubr.bf16.mxu0 %v790
      %1806 = vmatmul.mubr.bf16.gmra.mrb[0].mxu0 %v569
      %v1807 = vpop.f32.mrb[0].mxu0
      %v1808 = vadd.f32 %v1647, %v1807
      %v1809 = vpop.f32.mrb[0].mxu0
      %v1810 = vpop.f32.mrb[0].mxu0
      %v1811 = vadd.f32 %v1650, %v1810
      %v1812 = vpop.f32.mrb[0].mxu0
      %1813 = vmatprep.mubr.bf16.mxu0 %v793
      %1814 = vmatmul.mubr.bf16.gmra.mrb[0].mxu0 %v581
      %v1815 = vpop.f32.mrb[0].mxu0
      %v1816 = vadd.f32 %v1655, %v1815
      %v1817 = vpop.f32.mrb[0].mxu0
      %v1818 = vpop.f32.mrb[0].mxu0
      %v1819 = vadd.f32 %v1658, %v1818
      %v1820 = vpop.f32.mrb[0].mxu0
      %1821 = vmatprep.mubr.bf16.mxu0 %v796
      %1822 = vmatmul.mubr.bf16.gmra.mrb[0].mxu0 %v593
      %v1823 = vpop.f32.mrb[0].mxu0
      %v1824 = vadd.f32 %v1663, %v1823
      %v1825 = vpop.f32.mrb[0].mxu0
      %v1826 = vpop.f32.mrb[0].mxu0
      %v1827 = vadd.f32 %v1666, %v1826
      %v1828 = vpop.f32.mrb[0].mxu0
      %1829 = vmatprep.mubr.bf16.mxu0 %v799
      %1830 = vmatmul.mubr.bf16.gmra.mrb[0].mxu0 %v605
      %v1831 = vpop.f32.mrb[0].mxu0
      %v1832 = vadd.f32 %v1671, %v1831
      %v1833 = vpop.f32.mrb[0].mxu0
      %v1834 = vpop.f32.mrb[0].mxu0
      %v1835 = vadd.f32 %v1674, %v1834
      %v1836 = vpop.f32.mrb[0].mxu0
      %1837 = vmatprep.mubr.bf16.mxu0 %v802
      %1838 = vmatmul.mubr.bf16.gmra.mrb[0].mxu0 %v617
      %v1839 = vpop.f32.mrb[0].mxu0
      %v1840 = vadd.f32 %v1679, %v1839
      %v1841 = vpop.f32.mrb[0].mxu0
      %v1842 = vpop.f32.mrb[0].mxu0
      %v1843 = vadd.f32 %v1682, %v1842
      %v1844 = vpop.f32.mrb[0].mxu0
      %1845 = vmatprep.mubr.bf16.mxu0 %v805
      %1846 = vmatmul.mubr.bf16.gmra.mrb[0].mxu0 %v629
      %v1847 = vpop.f32.mrb[0].mxu0
      %v1848 = vadd.f32 %v1687, %v1847
      %v1849 = vpop.f32.mrb[0].mxu0
      %v1850 = vpop.f32.mrb[0].mxu0
      %v1851 = vadd.f32 %v1690, %v1850
      %v1852 = vpop.f32.mrb[0].mxu0
      %1853 = vmatprep.mubr.bf16.mxu0 %v808
      %1854 = vmatmul.mubr.bf16.gmra.mrb[0].mxu0 %v641
      %v1855 = vpop.f32.mrb[0].mxu0
      %v1856 = vadd.f32 %v1695, %v1855
      %v1857 = vpop.f32.mrb[0].mxu0
      %v1858 = vpop.f32.mrb[0].mxu0
      %v1859 = vadd.f32 %v1698, %v1858
      %v1860 = vpop.f32.mrb[0].mxu0
      %1861 = vmatprep.mubr.bf16.mxu0 %v811
      %1862 = vmatmul.mubr.bf16.gmra.mrb[0].mxu0 %v653
      %v1863 = vpop.f32.mrb[0].mxu0
      %v1864 = vadd.f32 %v1703, %v1863
      %v1865 = vpop.f32.mrb[0].mxu0
      %v1866 = vpop.f32.mrb[0].mxu0
      %v1867 = vadd.f32 %v1706, %v1866
      %v1868 = vpop.f32.mrb[0].mxu0
      %1869 = vmatprep.mubr.bf16.mxu0 %v814
      %1870 = vmatmul.mubr.bf16.gmra.mrb[0].mxu0 %v665
      %v1871 = vpop.f32.mrb[0].mxu0
      %v1872 = vadd.f32 %v1711, %v1871
      %v1873 = vpop.f32.mrb[0].mxu0
      %v1874 = vpop.f32.mrb[0].mxu0
      %v1875 = vadd.f32 %v1714, %v1874
      %v1876 = vpop.f32.mrb[0].mxu0
      %1877 = vmatprep.mubr.bf16.mxu0 %v817
      %1878 = vmatmul.mubr.bf16.gmra.mrb[0].mxu0 %v677
      %v1879 = vpop.f32.mrb[0].mxu0
      %v1880 = vadd.f32 %v1719, %v1879
      %v1881 = vpop.f32.mrb[0].mxu0
      %v1882 = vpop.f32.mrb[0].mxu0
      %v1883 = vadd.f32 %v1722, %v1882
      %v1884 = vpop.f32.mrb[0].mxu0
      %1885 = vmatprep.mubr.bf16.mxu0 %v820
      %1886 = vmatmul.mubr.bf16.gmra.mrb[0].mxu0 %v689
      %v1887 = vpop.f32.mrb[0].mxu0
      %v1888 = vadd.f32 %v1727, %v1887
      %v1889 = vpop.f32.mrb[0].mxu0
      %v1890 = vpop.f32.mrb[0].mxu0
      %v1891 = vadd.f32 %v1730, %v1890
      %v1892 = vpop.f32.mrb[0].mxu0
      %1893 = vmatprep.mubr.bf16.mxu0 %v823
      %1894 = vmatmul.mubr.bf16.gmra.mrb[0].mxu0 %v701
      %v1895 = vpop.f32.mrb[0].mxu0
      %v1896 = vadd.f32 %v1735, %v1895
      %v1897 = vpop.f32.mrb[0].mxu0
      %v1898 = vpop.f32.mrb[0].mxu0
      %v1899 = vadd.f32 %v1738, %v1898
      %v1900 = vpop.f32.mrb[0].mxu0
      %1901 = vmatprep.mubr.bf16.mxu0 %v826
      %1902 = vmatmul.mubr.bf16.gmra.mrb[0].mxu0 %v713
      %v1903 = vpop.f32.mrb[0].mxu0
      %v1904 = vadd.f32 %v1743, %v1903
      %v1905 = vpop.f32.mrb[0].mxu0
      %v1906 = vpop.f32.mrb[0].mxu0
      %v1907 = vadd.f32 %v1746, %v1906
      %v1908 = vpop.f32.mrb[0].mxu0
      %1909 = vmatprep.mubr.bf16.mxu0 %v829
      %1910 = vmatmul.mubr.bf16.gmra.mrb[0].mxu0 %v725
      %v1911 = vpop.f32.mrb[0].mxu0
      %v1912 = vadd.f32 %v1751, %v1911
      %v1913 = vpop.f32.mrb[0].mxu0
      %v1914 = vpop.f32.mrb[0].mxu0
      %v1915 = vadd.f32 %v1754, %v1914
      %v1916 = vpop.f32.mrb[0].mxu0
      %1917 = vmatprep.mubr.bf16.mxu0 %v832
      %1918 = vmatmul.mubr.bf16.gmra.mrb[0].mxu0 %v737
      %v1919 = vpop.f32.mrb[0].mxu0
      %v1920 = vadd.f32 %v1759, %v1919
      %v1921 = vpop.f32.mrb[0].mxu0
      %v1922 = vpop.f32.mrb[0].mxu0
      %v1923 = vadd.f32 %v1762, %v1922
      %v1924 = vpop.f32.mrb[0].mxu0
      %1925 = vmatprep.mubr.bf16.mxu0 %v866
      %1926 = vmatmul.mubr.bf16.gmra.mrb[0].mxu0 %v860
      %v1927 = vpop.f32.mrb[0].mxu0
      %v1928 = vadd.f32 %v1767, %v1927
      %v1929 = vpop.f32.mrb[0].mxu0
      %v1930 = vpop.f32.mrb[0].mxu0
      %v1931 = vadd.f32 %v1770, %v1930
      %v1932 = vpop.f32.mrb[0].mxu0
      %1933 = vdwg.mxu0
      %1934 = vmatprep.subr.bf16.mxu0 0
      %1935 = vmatpush1.bf16.msra.mxu0 %v1355
      %1936 = vmatprep.subr.bf16.mxu0 0
      %1937 = vmatpush1.bf16.msra.mxu0 %v1356
      %1938 = vmatprep.subr.bf16.mxu0 0
      %1939 = vmatpush1.bf16.msra.mxu0 %v1357
      %1940 = vmatprep.subr.bf16.mxu0 0
      %1941 = vmatpush1.bf16.msra.mxu0 %v1358
      %1942 = vmatprep.subr.bf16.mxu0 0
      %1943 = vmatpush1.bf16.msra.mxu0 %v1359
      %1944 = vmatprep.subr.bf16.mxu0 0
      %1945 = vmatpush1.bf16.msra.mxu0 %v1360
      %1946 = vmatprep.subr.bf16.mxu0 0
      %1947 = vmatpush1.bf16.msra.mxu0 %v1361
      %1948 = vmatprep.subr.bf16.mxu0 0
      %1949 = vmatpush1.bf16.msra.mxu0 %v1362
      %1950 = vmatprep.subr.bf16.mxu0 0
      %1951 = vmatpush1.bf16.msra.mxu0 %v1363
      %1952 = vmatprep.subr.bf16.mxu0 0
      %1953 = vmatpush1.bf16.msra.mxu0 %v1364
      %1954 = vmatprep.subr.bf16.mxu0 0
      %1955 = vmatpush1.bf16.msra.mxu0 %v1365
      %1956 = vmatprep.subr.bf16.mxu0 0
      %1957 = vmatpush1.bf16.msra.mxu0 %v1366
      %1958 = vmatprep.subr.bf16.mxu0 0
      %1959 = vmatpush1.bf16.msra.mxu0 %v1367
      %1960 = vmatprep.subr.bf16.mxu0 0
      %1961 = vmatpush1.bf16.msra.mxu0 %v1368
      %1962 = vmatprep.subr.bf16.mxu0 0
      %1963 = vmatpush1.bf16.msra.mxu0 %v1369
      %1964 = vmatprep.subr.bf16.mxu0 0
      %1965 = vmatpush1.bf16.msra.mxu0 %v1370
      %1966 = vmatprep.mubr.bf16.mxu0 %v581
      %1967 = vmatmul.mubr.bf16.gmra.mrb[0].mxu0 %v518
      %v1968 = vpop.f32.mrb[0].mxu0
      %v1969 = vadd.f32 %v1808, %v1968
      %v1970 = vpop.f32.mrb[0].mxu0
      %v1971 = vpop.f32.mrb[0].mxu0
      %v1972 = vadd.f32 %v1811, %v1971
      %v1973 = vpop.f32.mrb[0].mxu0
      %1974 = vmatprep.mubr.bf16.mxu0 %v593
      %1975 = vmatmul.mubr.bf16.gmra.mrb[0].mxu0 %v519
      %v1976 = vpop.f32.mrb[0].mxu0
      %v1977 = vadd.f32 %v1816, %v1976
      %v1978 = vpop.f32.mrb[0].mxu0
      %v1979 = vpop.f32.mrb[0].mxu0
      %v1980 = vadd.f32 %v1819, %v1979
      %v1981 = vpop.f32.mrb[0].mxu0
      %1982 = vmatprep.mubr.bf16.mxu0 %v605
      %1983 = vmatmul.mubr.bf16.gmra.mrb[0].mxu0 %v520
      %v1984 = vpop.f32.mrb[0].mxu0
      %v1985 = vadd.f32 %v1824, %v1984
      %v1986 = vpop.f32.mrb[0].mxu0
      %v1987 = vpop.f32.mrb[0].mxu0
      %v1988 = vadd.f32 %v1827, %v1987
      %v1989 = vpop.f32.mrb[0].mxu0
      %1990 = vmatprep.mubr.bf16.mxu0 %v617
      %1991 = vmatmul.mubr.bf16.gmra.mrb[0].mxu0 %v521
      %v1992 = vpop.f32.mrb[0].mxu0
      %v1993 = vadd.f32 %v1832, %v1992
      %v1994 = vpop.f32.mrb[0].mxu0
      %v1995 = vpop.f32.mrb[0].mxu0
      %v1996 = vadd.f32 %v1835, %v1995
      %v1997 = vpop.f32.mrb[0].mxu0
      %1998 = vmatprep.mubr.bf16.mxu0 %v629
      %1999 = vmatmul.mubr.bf16.gmra.mrb[0].mxu0 %v522
      %v2000 = vpop.f32.mrb[0].mxu0
      %v2001 = vadd.f32 %v1840, %v2000
      %v2002 = vpop.f32.mrb[0].mxu0
      %v2003 = vpop.f32.mrb[0].mxu0
      %v2004 = vadd.f32 %v1843, %v2003
      %v2005 = vpop.f32.mrb[0].mxu0
      %2006 = vmatprep.mubr.bf16.mxu0 %v641
      %2007 = vmatmul.mubr.bf16.gmra.mrb[0].mxu0 %v523
      %v2008 = vpop.f32.mrb[0].mxu0
      %v2009 = vadd.f32 %v1848, %v2008
      %v2010 = vpop.f32.mrb[0].mxu0
      %v2011 = vpop.f32.mrb[0].mxu0
      %v2012 = vadd.f32 %v1851, %v2011
      %v2013 = vpop.f32.mrb[0].mxu0
      %2014 = vmatprep.mubr.bf16.mxu0 %v653
      %2015 = vmatmul.mubr.bf16.gmra.mrb[0].mxu0 %v524
      %v2016 = vpop.f32.mrb[0].mxu0
      %v2017 = vadd.f32 %v1856, %v2016
      %v2018 = vpop.f32.mrb[0].mxu0
      %v2019 = vpop.f32.mrb[0].mxu0
      %v2020 = vadd.f32 %v1859, %v2019
      %v2021 = vpop.f32.mrb[0].mxu0
      %2022 = vmatprep.mubr.bf16.mxu0 %v665
      %2023 = vmatmul.mubr.bf16.gmra.mrb[0].mxu0 %v525
      %v2024 = vpop.f32.mrb[0].mxu0
      %v2025 = vadd.f32 %v1864, %v2024
      %v2026 = vpop.f32.mrb[0].mxu0
      %v2027 = vpop.f32.mrb[0].mxu0
      %v2028 = vadd.f32 %v1867, %v2027
      %v2029 = vpop.f32.mrb[0].mxu0
      %2030 = vmatprep.mubr.bf16.mxu0 %v677
      %2031 = vmatmul.mubr.bf16.gmra.mrb[0].mxu0 %v526
      %v2032 = vpop.f32.mrb[0].mxu0
      %v2033 = vadd.f32 %v1872, %v2032
      %v2034 = vpop.f32.mrb[0].mxu0
      %v2035 = vpop.f32.mrb[0].mxu0
      %v2036 = vadd.f32 %v1875, %v2035
      %v2037 = vpop.f32.mrb[0].mxu0
      %2038 = vmatprep.mubr.bf16.mxu0 %v689
      %2039 = vmatmul.mubr.bf16.gmra.mrb[0].mxu0 %v527
      %v2040 = vpop.f32.mrb[0].mxu0
      %v2041 = vadd.f32 %v1880, %v2040
      %v2042 = vpop.f32.mrb[0].mxu0
      %v2043 = vpop.f32.mrb[0].mxu0
      %v2044 = vadd.f32 %v1883, %v2043
      %v2045 = vpop.f32.mrb[0].mxu0
      %2046 = vmatprep.mubr.bf16.mxu0 %v701
      %2047 = vmatmul.mubr.bf16.gmra.mrb[0].mxu0 %v528
      %v2048 = vpop.f32.mrb[0].mxu0
      %v2049 = vadd.f32 %v1888, %v2048
      %v2050 = vpop.f32.mrb[0].mxu0
      %v2051 = vpop.f32.mrb[0].mxu0
      %v2052 = vadd.f32 %v1891, %v2051
      %v2053 = vpop.f32.mrb[0].mxu0
      %2054 = vmatprep.mubr.bf16.mxu0 %v713
      %2055 = vmatmul.mubr.bf16.gmra.mrb[0].mxu0 %v529
      %v2056 = vpop.f32.mrb[0].mxu0
      %v2057 = vadd.f32 %v1896, %v2056
      %v2058 = vpop.f32.mrb[0].mxu0
      %v2059 = vpop.f32.mrb[0].mxu0
      %v2060 = vadd.f32 %v1899, %v2059
      %v2061 = vpop.f32.mrb[0].mxu0
      %2062 = vmatprep.mubr.bf16.mxu0 %v725
      %2063 = vmatmul.mubr.bf16.gmra.mrb[0].mxu0 %v530
      %v2064 = vpop.f32.mrb[0].mxu0
      %v2065 = vadd.f32 %v1904, %v2064
      %v2066 = vpop.f32.mrb[0].mxu0
      %v2067 = vpop.f32.mrb[0].mxu0
      %v2068 = vadd.f32 %v1907, %v2067
      %v2069 = vpop.f32.mrb[0].mxu0
      %2070 = vmatprep.mubr.bf16.mxu0 %v737
      %2071 = vmatmul.mubr.bf16.gmra.mrb[0].mxu0 %v531
      %v2072 = vpop.f32.mrb[0].mxu0
      %v2073 = vadd.f32 %v1912, %v2072
      %v2074 = vpop.f32.mrb[0].mxu0
      %v2075 = vpop.f32.mrb[0].mxu0
      %v2076 = vadd.f32 %v1915, %v2075
      %v2077 = vpop.f32.mrb[0].mxu0
      %2078 = vmatprep.mubr.bf16.mxu0 %v860
      %2079 = vmatmul.mubr.bf16.gmra.mrb[0].mxu0 %v532
      %v2080 = vpop.f32.mrb[0].mxu0
      %v2081 = vadd.f32 %v1920, %v2080
      %v2082 = vpop.f32.mrb[0].mxu0
      %v2083 = vpop.f32.mrb[0].mxu0
      %v2084 = vadd.f32 %v1923, %v2083
      %v2085 = vpop.f32.mrb[0].mxu0
      %2086 = vmatprep.mubr.bf16.mxu0 %v557
      %2087 = vmatmul.mubr.bf16.gmra.mrb[0].mxu0 0
      %v2088 = vpop.f32.mrb[0].mxu0
      %v2089 = vadd.f32 %v1928, %v2088
      %v2090 = vpop.f32.mrb[0].mxu0
      %v2091 = vpop.f32.mrb[0].mxu0
      %v2092 = vadd.f32 %v1931, %v2091
      %v2093 = vpop.f32.mrb[0].mxu0
      %2094 = vdwg.mxu0
      %2095 = vmatprep.subr.bf16.mxu0 0
      %2096 = vmatpush1.bf16.msra.mxu0 %v1371
      %2097 = vmatprep.subr.bf16.mxu0 0
      %2098 = vmatpush1.bf16.msra.mxu0 %v1372
      %2099 = vmatprep.subr.bf16.mxu0 0
      %2100 = vmatpush1.bf16.msra.mxu0 %v1373
      %2101 = vmatprep.subr.bf16.mxu0 0
      %2102 = vmatpush1.bf16.msra.mxu0 %v1374
      %2103 = vmatprep.subr.bf16.mxu0 0
      %2104 = vmatpush1.bf16.msra.mxu0 %v1375
      %2105 = vmatprep.subr.bf16.mxu0 0
      %2106 = vmatpush1.bf16.msra.mxu0 %v1376
      %2107 = vmatprep.subr.bf16.mxu0 0
      %2108 = vmatpush1.bf16.msra.mxu0 %v1377
      %2109 = vmatprep.subr.bf16.mxu0 0
      %2110 = vmatpush1.bf16.msra.mxu0 %v1378
      %2111 = vmatprep.subr.bf16.mxu0 0
      %2112 = vmatpush1.bf16.msra.mxu0 0
      %2113 = vmatprep.subr.bf16.mxu0 0
      %2114 = vmatpush1.bf16.msra.mxu0 0
      %2115 = vmatprep.subr.bf16.mxu0 0
      %2116 = vmatpush1.bf16.msra.mxu0 0
      %2117 = vmatprep.subr.bf16.mxu0 0
      %2118 = vmatpush1.bf16.msra.mxu0 0
      %2119 = vmatprep.subr.bf16.mxu0 0
      %2120 = vmatpush1.bf16.msra.mxu0 0
      %2121 = vmatprep.subr.bf16.mxu0 0
      %2122 = vmatpush1.bf16.msra.mxu0 0
      %2123 = vmatprep.subr.bf16.mxu0 0
      %2124 = vmatpush1.bf16.msra.mxu0 0
      %2125 = vmatprep.subr.bf16.mxu0 0
      %2126 = vmatpush1.bf16.msra.mxu0 0
      %2127 = vmatprep.mubr.bf16.mxu0 0
      %2128 = vmatmul.mubr.bf16.gmra.mrb[0].mxu0 %v793
      %v2129 = vpop.f32.mrb[0].mxu0
      %v2130 = vadd.f32 %v1969, %v2129
      %v2131 = vpop.f32.mrb[0].mxu0
      %v2132 = vpop.f32.mrb[0].mxu0
      %v2133 = vadd.f32 %v1972, %v2132
      %v2134 = vpop.f32.mrb[0].mxu0
      %2135 = vmatprep.mubr.bf16.mxu0 0
      %2136 = vmatmul.mubr.bf16.gmra.mrb[0].mxu0 %v796
      %v2137 = vpop.f32.mrb[0].mxu0
      %v2138 = vadd.f32 %v1977, %v2137
      %v2139 = vpop.f32.mrb[0].mxu0
      %v2140 = vpop.f32.mrb[0].mxu0
      %v2141 = vadd.f32 %v1980, %v2140
      %v2142 = vpop.f32.mrb[0].mxu0
      %2143 = vmatprep.mubr.bf16.mxu0 0
      %2144 = vmatmul.mubr.bf16.gmra.mrb[0].mxu0 %v799
      %v2145 = vpop.f32.mrb[0].mxu0
      %v2146 = vadd.f32 %v1985, %v2145
      %v2147 = vpop.f32.mrb[0].mxu0
      %v2148 = vpop.f32.mrb[0].mxu0
      %v2149 = vadd.f32 %v1988, %v2148
      %v2150 = vpop.f32.mrb[0].mxu0
      %2151 = vmatprep.mubr.bf16.mxu0 0
      %2152 = vmatmul.mubr.bf16.gmra.mrb[0].mxu0 %v802
      %v2153 = vpop.f32.mrb[0].mxu0
      %v2154 = vadd.f32 %v1993, %v2153
      %v2155 = vpop.f32.mrb[0].mxu0
      %v2156 = vpop.f32.mrb[0].mxu0
      %v2157 = vadd.f32 %v1996, %v2156
      %v2158 = vpop.f32.mrb[0].mxu0
      %2159 = vmatprep.mubr.bf16.mxu0 0
      %2160 = vmatmul.mubr.bf16.gmra.mrb[0].mxu0 %v805
      %v2161 = vpop.f32.mrb[0].mxu0
      %v2162 = vadd.f32 %v2001, %v2161
      %v2163 = vpop.f32.mrb[0].mxu0
      %v2164 = vpop.f32.mrb[0].mxu0
      %v2165 = vadd.f32 %v2004, %v2164
      %v2166 = vpop.f32.mrb[0].mxu0
      %2167 = vmatprep.mubr.bf16.mxu0 0
      %2168 = vmatmul.mubr.bf16.gmra.mrb[0].mxu0 %v808
      %v2169 = vpop.f32.mrb[0].mxu0
      %v2170 = vadd.f32 %v2009, %v2169
      %v2171 = vpop.f32.mrb[0].mxu0
      %v2172 = vpop.f32.mrb[0].mxu0
      %v2173 = vadd.f32 %v2012, %v2172
      %v2174 = vpop.f32.mrb[0].mxu0
      %2175 = vmatprep.mubr.bf16.mxu0 0
      %2176 = vmatmul.mubr.bf16.gmra.mrb[0].mxu0 %v811
      %v2177 = vpop.f32.mrb[0].mxu0
      %v2178 = vadd.f32 %v2017, %v2177
      %v2179 = vpop.f32.mrb[0].mxu0
      %v2180 = vpop.f32.mrb[0].mxu0
      %v2181 = vadd.f32 %v2020, %v2180
      %v2182 = vpop.f32.mrb[0].mxu0
      %2183 = vmatprep.mubr.bf16.mxu0 0
      %2184 = vmatmul.mubr.bf16.gmra.mrb[0].mxu0 %v814
      %v2185 = vpop.f32.mrb[0].mxu0
      %v2186 = vadd.f32 %v2025, %v2185
      %v2187 = vpop.f32.mrb[0].mxu0
      %v2188 = vpop.f32.mrb[0].mxu0
      %v2189 = vadd.f32 %v2028, %v2188
      %v2190 = vpop.f32.mrb[0].mxu0
      %2191 = vmatprep.mubr.bf16.mxu0 0
      %2192 = vmatmul.mubr.bf16.gmra.mrb[0].mxu0 %v817
      %v2193 = vpop.f32.mrb[0].mxu0
      %v2194 = vadd.f32 %v2033, %v2193
      %v2195 = vpop.f32.mrb[0].mxu0
      %v2196 = vpop.f32.mrb[0].mxu0
      %v2197 = vadd.f32 %v2036, %v2196
      %v2198 = vpop.f32.mrb[0].mxu0
      %2199 = vmatprep.mubr.bf16.mxu0 0
      %2200 = vmatmul.mubr.bf16.gmra.mrb[0].mxu0 %v820
      %v2201 = vpop.f32.mrb[0].mxu0
      %v2202 = vadd.f32 %v2041, %v2201
      %v2203 = vpop.f32.mrb[0].mxu0
      %v2204 = vpop.f32.mrb[0].mxu0
      %v2205 = vadd.f32 %v2044, %v2204
      %v2206 = vpop.f32.mrb[0].mxu0
      %2207 = vmatprep.mubr.bf16.mxu0 0
      %2208 = vmatmul.mubr.bf16.gmra.mrb[0].mxu0 %v823
      %v2209 = vpop.f32.mrb[0].mxu0
      %v2210 = vadd.f32 %v2049, %v2209
      %v2211 = vpop.f32.mrb[0].mxu0
      %v2212 = vpop.f32.mrb[0].mxu0
      %v2213 = vadd.f32 %v2052, %v2212
      %v2214 = vpop.f32.mrb[0].mxu0
      %2215 = vmatprep.mubr.bf16.mxu0 0
      %2216 = vmatmul.mubr.bf16.gmra.mrb[0].mxu0 %v826
      %v2217 = vpop.f32.mrb[0].mxu0
      %v2218 = vadd.f32 %v2057, %v2217
      %v2219 = vpop.f32.mrb[0].mxu0
      %v2220 = vpop.f32.mrb[0].mxu0
      %v2221 = vadd.f32 %v2060, %v2220
      %v2222 = vpop.f32.mrb[0].mxu0
      %2223 = vmatprep.mubr.bf16.mxu0 0
      %2224 = vmatmul.mubr.bf16.gmra.mrb[0].mxu0 %v829
      %v2225 = vpop.f32.mrb[0].mxu0
      %v2226 = vadd.f32 %v2065, %v2225
      %v2227 = vpop.f32.mrb[0].mxu0
      %v2228 = vpop.f32.mrb[0].mxu0
      %v2229 = vadd.f32 %v2068, %v2228
      %v2230 = vpop.f32.mrb[0].mxu0
      %2231 = vmatprep.mubr.bf16.mxu0 0
      %2232 = vmatmul.mubr.bf16.gmra.mrb[0].mxu0 %v832
      %v2233 = vpop.f32.mrb[0].mxu0
      %v2234 = vadd.f32 %v2073, %v2233
      %v2235 = vpop.f32.mrb[0].mxu0
      %v2236 = vpop.f32.mrb[0].mxu0
      %v2237 = vadd.f32 %v2076, %v2236
      %v2238 = vpop.f32.mrb[0].mxu0
      %2239 = vmatprep.mubr.bf16.mxu0 0
      %2240 = vmatmul.mubr.bf16.gmra.mrb[0].mxu0 %v866
      %v2241 = vpop.f32.mrb[0].mxu0
      %v2242 = vadd.f32 %v2081, %v2241
      %v2243 = vpop.f32.mrb[0].mxu0
      %v2244 = vpop.f32.mrb[0].mxu0
      %v2245 = vadd.f32 %v2084, %v2244
      %v2246 = vpop.f32.mrb[0].mxu0
      %2247 = vmatprep.mubr.bf16.mxu0 0
      %2248 = vmatmul.mubr.bf16.gmra.mrb[0].mxu0 %v787
      %v2249 = vpop.f32.mrb[0].mxu0
      %v2250 = vadd.f32 %v2089, %v2249
      %v2251 = vpop.f32.mrb[0].mxu0
      %v2252 = vpop.f32.mrb[0].mxu0
      %v2253 = vadd.f32 %v2092, %v2252
      %v2254 = vpop.f32.mrb[0].mxu0
      %2255 = vdwg.mxu0
      %v2256 = vld [vmem:[%s244] sm:$0xf]
      %v2257 = vld [vmem:[%s244 + $0x4] sm:$0xf]
      %v2258 = vld [vmem:[%s244 + $0x8] sm:$0xf]
      %v2259 = vld [vmem:[%s244 + $0xc] sm:$0xf]
      %v2260 = vld [vmem:[%s244 + $0x10] sm:$0xf]
      %v2261 = vld [vmem:[%s244 + $0x14] sm:$0xf]
      %v2262 = vld [vmem:[%s244 + $0x18] sm:$0xf]
      %v2263 = vld [vmem:[%s244 + $0x1c] sm:$0xf]
      %v2264 = vld [vmem:[%s244 + $0x20] sm:$0xf]
      %v2265 = vld [vmem:[%s244 + $0x24] sm:$0xf]
      %v2266 = vld [vmem:[%s244 + $0x28] sm:$0xf]
      %v2267 = vld [vmem:[%s244 + $0x2c] sm:$0xf]
      %v2268 = vld [vmem:[%s244 + $0x30] sm:$0xf]
      %v2269 = vld [vmem:[%s244 + $0x34] sm:$0xf]
      %v2270 = vld [vmem:[%s244 + $0x38] sm:$0xf]
      %v2271 = vld [vmem:[%s244 + $0x3c] sm:$0xf]
      %v2272 = vld [vmem:[%s244 + $0x40] sm:$0xf]
      %v2273 = vld [vmem:[%s244 + $0x44] sm:$0xf]
      %v2274 = vld [vmem:[%s244 + $0x48] sm:$0xf]
      %v2275 = vld [vmem:[%s244 + $0x4c] sm:$0xf]
      %v2276 = vld [vmem:[%s244 + $0x50] sm:$0xf]
      %v2277 = vld [vmem:[%s244 + $0x54] sm:$0xf]
      %v2278 = vld [vmem:[%s244 + $0x58] sm:$0xf]
      %v2279 = vld [vmem:[%s244 + $0x5c] sm:$0xf]
      %v2280 = vld [vmem:[%s244 + $0x60] sm:$0xf]
      %v2281 = vld [vmem:[%s244 + $0x64] sm:$0xf]
      %v2282 = vld [vmem:[%s244 + $0x68] sm:$0xf]
      %v2283 = vld [vmem:[%s244 + $0x6c] sm:$0xf]
      %v2284 = vld [vmem:[%s244 + $0x70] sm:$0xf]
      %v2285 = vld [vmem:[%s244 + $0x74] sm:$0xf]
      %v2286 = vld [vmem:[%s244 + $0x78] sm:$0xf]
      %v2287 = vld [vmem:[%s244 + $0x7c] sm:$0xf]
      %v2288 = vunpack.c.l.bf16 %v2256
      %v2289 = vunpack.c.l.bf16 %v2257
      %v2290 = vunpack.c.l.bf16 %v2258
      %v2291 = vunpack.c.l.bf16 %v2259
      %v2292 = vunpack.c.l.bf16 %v2260
      %v2293 = vunpack.c.l.bf16 %v2261
      %v2294 = vunpack.c.l.bf16 %v2262
      %v2295 = vunpack.c.l.bf16 %v2263
      %v2296 = vunpack.c.l.bf16 %v2264
      %v2297 = vunpack.c.l.bf16 %v2265
      %v2298 = vunpack.c.l.bf16 %v2266
      %v2299 = vunpack.c.l.bf16 %v2267
      %v2300 = vunpack.c.l.bf16 %v2268
      %v2301 = vunpack.c.l.bf16 %v2269
      %v2302 = vunpack.c.l.bf16 %v2270
      %v2303 = vunpack.c.l.bf16 %v2271
      %v2304 = vunpack.c.l.bf16 %v2272
      %v2305 = vunpack.c.l.bf16 %v2273
      %v2306 = vunpack.c.l.bf16 %v2274
      %v2307 = vunpack.c.l.bf16 %v2275
      %v2308 = vunpack.c.l.bf16 %v2276
      %v2309 = vunpack.c.l.bf16 %v2277
      %v2310 = vunpack.c.l.bf16 %v2278
      %v2311 = vunpack.c.l.bf16 %v2279
      %v2312 = vunpack.c.l.bf16 %v2280
      %v2313 = vunpack.c.l.bf16 %v2281
      %v2314 = vunpack.c.l.bf16 %v2282
      %v2315 = vunpack.c.l.bf16 %v2283
      %v2316 = vunpack.c.l.bf16 %v2284
      %v2317 = vunpack.c.l.bf16 %v2285
      %v2318 = vunpack.c.l.bf16 %v2286
      %v2319 = vunpack.c.l.bf16 %v2287
      %v2320 = vadd.f32 %v2130, %v2288
      %v2321 = vadd.f32 %v2133, %v2289
      %v2322 = vadd.f32 %v2138, %v2290
      %v2323 = vadd.f32 %v2141, %v2291
      %v2324 = vadd.f32 %v2146, %v2292
      %v2325 = vadd.f32 %v2149, %v2293
      %v2326 = vadd.f32 %v2154, %v2294
      %v2327 = vadd.f32 %v2157, %v2295
      %v2328 = vadd.f32 %v2162, %v2296
      %v2329 = vadd.f32 %v2165, %v2297
      %v2330 = vadd.f32 %v2170, %v2298
      %v2331 = vadd.f32 %v2173, %v2299
      %v2332 = vadd.f32 %v2178, %v2300
      %v2333 = vadd.f32 %v2181, %v2301
      %v2334 = vadd.f32 %v2186, %v2302
      %v2335 = vadd.f32 %v2189, %v2303
      %v2336 = vadd.f32 %v2194, %v2304
      %v2337 = vadd.f32 %v2197, %v2305
      %v2338 = vadd.f32 %v2202, %v2306
      %v2339 = vadd.f32 %v2205, %v2307
      %v2340 = vadd.f32 %v2210, %v2308
      %v2341 = vadd.f32 %v2213, %v2309
      %v2342 = vadd.f32 %v2218, %v2310
      %v2343 = vadd.f32 %v2221, %v2311
      %v2344 = vadd.f32 %v2226, %v2312
      %v2345 = vadd.f32 %v2229, %v2313
      %v2346 = vadd.f32 %v2234, %v2314
      %v2347 = vadd.f32 %v2237, %v2315
      %v2348 = vadd.f32 %v2242, %v2316
      %v2349 = vadd.f32 %v2245, %v2317
      %v2350 = vadd.f32 %v2250, %v2318
      %v2351 = vadd.f32 %v2253, %v2319
      %v2352 = vpack.c.bf16 %v2321, %v2320
      %v2353 = vpack.c.bf16 %v2323, %v2322
      %v2354 = vpack.c.bf16 %v2325, %v2324
      %v2355 = vpack.c.bf16 %v2327, %v2326
      %v2356 = vpack.c.bf16 %v2329, %v2328
      %v2357 = vpack.c.bf16 %v2331, %v2330
      %v2358 = vpack.c.bf16 %v2333, %v2332
      %v2359 = vpack.c.bf16 %v2335, %v2334
      %v2360 = vpack.c.bf16 %v2337, %v2336
      %v2361 = vpack.c.bf16 %v2339, %v2338
      %v2362 = vpack.c.bf16 %v2341, %v2340
      %v2363 = vpack.c.bf16 %v2343, %v2342
      %v2364 = vpack.c.bf16 %v2345, %v2344
      %v2365 = vpack.c.bf16 %v2347, %v2346
      %v2366 = vpack.c.bf16 %v2349, %v2348
      %v2367 = vpack.c.bf16 %v2351, %v2350
      %v2384 = vunpack.c.l.b16 %v2352
      %v2385 = vunpack.c.h.b16 %v2352
      %v2386 = vunpack.c.l.b16 %v2353
      %v2387 = vunpack.c.h.b16 %v2353
      %v2388 = vunpack.c.l.b16 %v2354
      %v2389 = vunpack.c.h.b16 %v2354
      %v2390 = vunpack.c.l.b16 %v2355
      %v2391 = vunpack.c.h.b16 %v2355
      %v2392 = vunpack.c.l.b16 %v2356
      %v2393 = vunpack.c.h.b16 %v2356
      %v2394 = vunpack.c.l.b16 %v2357
      %v2395 = vunpack.c.h.b16 %v2357
      %v2396 = vunpack.c.l.b16 %v2358
      %v2397 = vunpack.c.h.b16 %v2358
      %v2398 = vunpack.c.l.b16 %v2359
      %v2399 = vunpack.c.h.b16 %v2359
      %v2400 = vunpack.c.l.b16 %v2360
      %v2401 = vunpack.c.h.b16 %v2360
      %v2402 = vunpack.c.l.b16 %v2361
      %v2403 = vunpack.c.h.b16 %v2361
      %v2404 = vunpack.c.l.b16 %v2362
      %v2405 = vunpack.c.h.b16 %v2362
      %v2406 = vunpack.c.l.b16 %v2363
      %v2407 = vunpack.c.h.b16 %v2363
      %v2408 = vunpack.c.l.b16 %v2364
      %v2409 = vunpack.c.h.b16 %v2364
      %v2410 = vunpack.c.l.b16 %v2365
      %v2411 = vunpack.c.h.b16 %v2365
      %v2412 = vunpack.c.l.b16 %v2366
      %v2413 = vunpack.c.h.b16 %v2366
      %v2414 = vunpack.c.l.b16 %v2367
      %v2415 = vunpack.c.h.b16 %v2367
      %v2416 = vpack.c.b16 %v2384, %v2384
      %v2417 = vpack.c.b16 %v2385, %v2385
      %v2418 = vpack.c.b16 %v2386, %v2386
      %v2419 = vpack.c.b16 %v2387, %v2387
      %v2420 = vpack.c.b16 %v2388, %v2388
      %v2421 = vpack.c.b16 %v2389, %v2389
      %v2422 = vpack.c.b16 %v2390, %v2390
      %v2423 = vpack.c.b16 %v2391, %v2391
      %v2424 = vpack.c.b16 %v2392, %v2392
      %v2425 = vpack.c.b16 %v2393, %v2393
      %v2426 = vpack.c.b16 %v2394, %v2394
      %v2427 = vpack.c.b16 %v2395, %v2395
      %v2428 = vpack.c.b16 %v2396, %v2396
      %v2429 = vpack.c.b16 %v2397, %v2397
      %v2430 = vpack.c.b16 %v2398, %v2398
      %v2431 = vpack.c.b16 %v2399, %v2399
      %v2432 = vpack.c.b16 %v2400, %v2400
      %v2433 = vpack.c.b16 %v2401, %v2401
      %v2434 = vpack.c.b16 %v2402, %v2402
      %v2435 = vpack.c.b16 %v2403, %v2403
      %v2436 = vpack.c.b16 %v2404, %v2404
      %v2437 = vpack.c.b16 %v2405, %v2405
      %v2438 = vpack.c.b16 %v2406, %v2406
      %v2439 = vpack.c.b16 %v2407, %v2407
      %v2440 = vpack.c.b16 %v2408, %v2408
      %v2441 = vpack.c.b16 %v2409, %v2409
      %v2442 = vpack.c.b16 %v2410, %v2410
      %v2443 = vpack.c.b16 %v2411, %v2411
      %v2444 = vpack.c.b16 %v2412, %v2412
      %v2445 = vpack.c.b16 %v2413, %v2413
      %v2446 = vpack.c.b16 %v2414, %v2414
      %v2447 = vpack.c.b16 %v2415, %v2415
      %2480 = vst [vmem:[%s253] sm:$0xf] %v2416
      %2481 = vst [vmem:[%s253 + $0x4] sm:$0xf] %v2417
      %2482 = vst [vmem:[%s253 + $0x8] sm:$0xf] %v2418
      %2483 = vst [vmem:[%s253 + $0xc] sm:$0xf] %v2419
      %2484 = vst [vmem:[%s253 + $0x10] sm:$0xf] %v2420
      %2485 = vst [vmem:[%s253 + $0x14] sm:$0xf] %v2421
      %2486 = vst [vmem:[%s253 + $0x18] sm:$0xf] %v2422
      %2487 = vst [vmem:[%s253 + $0x1c] sm:$0xf] %v2423
      %2488 = vst [vmem:[%s253 + $0x20] sm:$0xf] %v2424
      %2489 = vst [vmem:[%s253 + $0x24] sm:$0xf] %v2425
      %2490 = vst [vmem:[%s253 + $0x28] sm:$0xf] %v2426
      %2491 = vst [vmem:[%s253 + $0x2c] sm:$0xf] %v2427
      %2492 = vst [vmem:[%s253 + $0x30] sm:$0xf] %v2428
      %2493 = vst [vmem:[%s253 + $0x34] sm:$0xf] %v2429
      %2494 = vst [vmem:[%s253 + $0x38] sm:$0xf] %v2430
      %2495 = vst [vmem:[%s253 + $0x3c] sm:$0xf] %v2431
      %2496 = vst [vmem:[%s253 + $0x40] sm:$0xf] %v2432
      %2497 = vst [vmem:[%s253 + $0x44] sm:$0xf] %v2433
      %2498 = vst [vmem:[%s253 + $0x48] sm:$0xf] %v2434
      %2499 = vst [vmem:[%s253 + $0x4c] sm:$0xf] %v2435
      %2500 = vst [vmem:[%s253 + $0x50] sm:$0xf] %v2436
      %2501 = vst [vmem:[%s253 + $0x54] sm:$0xf] %v2437
      %2502 = vst [vmem:[%s253 + $0x58] sm:$0xf] %v2438
      %2503 = vst [vmem:[%s253 + $0x5c] sm:$0xf] %v2439
      %2504 = vst [vmem:[%s253 + $0x60] sm:$0xf] %v2440
      %2505 = vst [vmem:[%s253 + $0x64] sm:$0xf] %v2441
      %2506 = vst [vmem:[%s253 + $0x68] sm:$0xf] %v2442
      %2507 = vst [vmem:[%s253 + $0x6c] sm:$0xf] %v2443
      %2508 = vst [vmem:[%s253 + $0x70] sm:$0xf] %v2444
      %2509 = vst [vmem:[%s253 + $0x74] sm:$0xf] %v2445
      %2510 = vst [vmem:[%s253 + $0x78] sm:$0xf] %v2446
      %2511 = vst [vmem:[%s253 + $0x7c] sm:$0xf] %v2447
      %p2512 = scmp.lt.s32.totalorder %s19, 1
      %s2513 = scalar_select %p2512, %s19, 1
      %p2514 = scmp.lt.s32.totalorder %s20, 0
      %s2515 = scalar_select %p2514, %s20, 0
      %s2516 = smul.addr %s2515, 32
      %s2517 = smul.addr %s2513, 32
      %s2518 = sadd.s32 %s2516, %s2517
      %s2519 = smul.addr %s2518, 4
      %s2520 = scalar_lea.vmem %s4, %s2519
      // Predicated region
      $region37: #{_lambda_.8} parent=35 // pred_check
        %p2521 = pneg %p143
      $region38: #{_lambda_.8} parent=35 // pred_check_branch
        %2523 = sbr.rel (%p2521) target = $region40
      $region39: #{_lambda_.8} parent=35 // pred_region
        _
      $region40: #{_lambda_.8} parent=35 // pred_fallthru
        _
    $region36: #{_lambda_.8} parent=5 // pred_fallthru
      _
    %p2524 = scmp.le.s32.totalorder 2, %s10
    // Predicated region
    $region41: #{_lambda_.8} parent=5 // pred_check
      %p2525 = pneg %p2524
    $region42: #{_lambda_.8} parent=5 // pred_check_branch
      %2527 = sbr.rel (%p2525) target = $region44
    $region43: #{_lambda_.8} parent=5 // pred_region
      %s2528 = ssub.s32 %s10, 2
      // Predicated region
      $region45: #{_lambda_.8} parent=43 // pred_check
        %p2529 = pneg %p149
      $region46: #{_lambda_.8} parent=43 // pred_check_branch
        %2531 = sbr.rel (%p2529) target = $region48
      $region47: #{_lambda_.8} parent=43 // pred_region
        %p2532 = scmp.lt.s32.totalorder %s21, 1
        %s2533 = scalar_select %p2532, %s21, 1
        %p2534 = scmp.lt.s32.totalorder %s22, 0
        %s2535 = scalar_select %p2534, %s22, 0
        %s2536 = smul.addr %s2535, 32
        %s2537 = smul.addr %s2533, 32
        %s2538 = sadd.s32 %s2536, %s2537
        %s2539 = smul.addr %s2538, 4
        %s2540 = scalar_lea.vmem %s4, %s2539
      $region48: #{_lambda_.8} parent=43 // pred_fallthru
        _
    $region44: #{_lambda_.8} parent=5 // pred_fallthru
      _
  $region6: #{_lambda_.8} parent=0 // loop_footer
    %s14 = sadd.s32 1, %s10
  $region7: #{_lambda_.8} parent=0 // loop_footer_branch
    %9 = sbr.rel target = $region3
  $region8: #{_lambda_.8} parent=0 // loop_exit
    _

// kernel: _lambda_.9
$region0: #{_lambda_.9}
  #allocation0 [shape = 'u32[]', space=smem, size = 0x4, offset = 0x4, fixed_abs, tag = 'smem constant byte address 0x4 - core index']
  #allocation1 [shape = 'u32[144,128]{1,0:T(1,128)}', space=vmem, size = 0x12000, scoped, tag = 'internal scratch']
  %s0 = inlined_call_operand.vmem [shape: bf16[2,1,16,16,128], index: 0, kind: input, shape index: {}]
  %s1 = inlined_call_operand.vmem [shape: bf16[1152,128], index: 1, kind: input, shape index: {}]
  %s2 = inlined_call_operand.vmem [shape: f32[1,128], index: 2, kind: input, shape index: {}]
  %s3 = inlined_call_operand.vmem [shape: f32[1,128], index: 3, kind: input, shape index: {}]
  %s4 = inlined_call_operand.vmem [shape: f32[1,128], index: 4, kind: input, shape index: {}]
  %s5 = inlined_call_operand.vmem [shape: bf16[2,1,16,16,128], index: 5, kind: output, shape index: {}]
  %s6 = sld [smem:[#allocation0]]
  $region53: #{_lambda_.9} parent=0
    _
  %s8 = ssub.s32 1, %s6
  %s9 = scalar_select 0, %s8, %s6
  loop: start=0, step=1, limit=4
  $region2: #{_lambda_.9} parent=0 // loop_pre_header
    _
  $region3: #{_lambda_.9} parent=0 // loop_header
    %s11 = sphi 0, %s15
    %p12 = scmp.ge.s32.totalorder %s11, 4
    %s18 = sphi 0, %s30
    %s19 = sphi 0, %s26
    %s20 = sphi 0, %s18
    %s21 = sphi 0, %s19
    %s22 = sphi 0, %s20
    %s23 = sphi 0, %s21
    %s33 = sphi 0, %s35
    %s36 = sphi 0, %s33
    %s37 = sphi 0, %s36
    %s53 = sphi 0, %s37
    %s57 = sphi 0, %s57
    %s59 = sphi 0, %s57
    %s60 = sphi 0, %s59
    %s74 = sphi 0, %s60
    %s78 = sphi 0, %s78
    %s80 = sphi 0, %s78
    %s81 = sphi 0, %s80
    %s95 = sphi 0, %s81
    %s99 = sphi 0, %s99
    %s101 = sphi 0, %s99
    %s102 = sphi 0, %s101
    %s116 = sphi 0, %s102
    %s120 = sphi 0, %s120
    %s122 = sphi 0, %s120
    %s123 = sphi 0, %s122
    %s137 = sphi 0, %s123
    %s145 = sphi 0, %s147
    %s148 = sphi 0, %s145
    %s149 = sphi 0, %s148
    %s165 = sphi 0, %s149
  $region4: #{_lambda_.9} parent=0 // loop_header_branch
    %14 = sbr.rel (%p12) target = $region8
  $region5: #{_lambda_.9} parent=0 // loop_body
    %s16 = ssub.s32 %s11, 1
    %s17 = ssub.s32 %s11, 2
    %s24 = sadd.s32 1, %s19
    %p25 = scmp.ge.s32.totalorder %s24, 1
    %s26 = scalar_select %p25, 0, %s24
    %s27 = sadd.s32 1, %s18
    %s28 = scalar_select %p25, %s27, %s18
    %p29 = scmp.ge.s32.totalorder %s28, 2
    %s30 = scalar_select %p29, 0, %s28
    %s31 = ssub.s32 %s18, %s30
    %p32 = scmp.eq.s32.totalorder %s31, 0
    %s34 = sadd.s32 %s33, 1
    %s35 = scalar_select %p32, %s33, %s34
    %p38 = pneg %p32
    %p39 = scmp.eq.s32.totalorder %s11, 1
    %p40 = por %p38, %p39
    %p41 = scmp.ne.s32.totalorder %s33, %s36
    %p42 = scmp.eq.s32.totalorder %s11, 0
    %p43 = por %p41, %p42
    %p44 = scmp.ne.s32.totalorder %s33, %s36
    %p45 = scmp.eq.s32.totalorder %s16, 1
    %p46 = por %p44, %p45
    %p47 = scmp.ne.s32.totalorder %s36, %s37
    %p48 = scmp.eq.s32.totalorder %s16, 0
    %p49 = por %p47, %p48
    %p50 = scmp.ne.s32.totalorder %s36, %s37
    %p51 = scmp.eq.s32.totalorder %s17, 1
    %p52 = por %p50, %p51
    %p54 = scmp.ne.s32.totalorder %s37, %s53
    %p55 = scmp.eq.s32.totalorder %s17, 0
    %p56 = por %p54, %p55
    %s58 = sadd.s32 %s57, 1
    %p61 = scmp.eq.s32.totalorder %s11, 1
    %p62 = scmp.ne.s32.totalorder %s57, %s59
    %p63 = scmp.eq.s32.totalorder %s11, 0
    %p64 = por %p62, %p63
    %p65 = scmp.ne.s32.totalorder %s57, %s59
    %p66 = scmp.eq.s32.totalorder %s16, 1
    %p67 = por %p65, %p66
    %p68 = scmp.ne.s32.totalorder %s59, %s60
    %p69 = scmp.eq.s32.totalorder %s16, 0
    %p70 = por %p68, %p69
    %p71 = scmp.ne.s32.totalorder %s59, %s60
    %p72 = scmp.eq.s32.totalorder %s17, 1
    %p73 = por %p71, %p72
    %p75 = scmp.ne.s32.totalorder %s60, %s74
    %p76 = scmp.eq.s32.totalorder %s17, 0
    %p77 = por %p75, %p76
    %s79 = sadd.s32 %s78, 1
    %p82 = scmp.eq.s32.totalorder %s11, 1
    %p83 = scmp.ne.s32.totalorder %s78, %s80
    %p84 = scmp.eq.s32.totalorder %s11, 0
    %p85 = por %p83, %p84
    %p86 = scmp.ne.s32.totalorder %s78, %s80
    %p87 = scmp.eq.s32.totalorder %s16, 1
    %p88 = por %p86, %p87
    %p89 = scmp.ne.s32.totalorder %s80, %s81
    %p90 = scmp.eq.s32.totalorder %s16, 0
    %p91 = por %p89, %p90
    %p92 = scmp.ne.s32.totalorder %s80, %s81
    %p93 = scmp.eq.s32.totalorder %s17, 1
    %p94 = por %p92, %p93
    %p96 = scmp.ne.s32.totalorder %s81, %s95
    %p97 = scmp.eq.s32.totalorder %s17, 0
    %p98 = por %p96, %p97
    %s100 = sadd.s32 %s99, 1
    %p103 = scmp.eq.s32.totalorder %s11, 1
    %p104 = scmp.ne.s32.totalorder %s99, %s101
    %p105 = scmp.eq.s32.totalorder %s11, 0
    %p106 = por %p104, %p105
    %p107 = scmp.ne.s32.totalorder %s99, %s101
    %p108 = scmp.eq.s32.totalorder %s16, 1
    %p109 = por %p107, %p108
    %p110 = scmp.ne.s32.totalorder %s101, %s102
    %p111 = scmp.eq.s32.totalorder %s16, 0
    %p112 = por %p110, %p111
    %p113 = scmp.ne.s32.totalorder %s101, %s102
    %p114 = scmp.eq.s32.totalorder %s17, 1
    %p115 = por %p113, %p114
    %p117 = scmp.ne.s32.totalorder %s102, %s116
    %p118 = scmp.eq.s32.totalorder %s17, 0
    %p119 = por %p117, %p118
    %s121 = sadd.s32 %s120, 1
    %p124 = scmp.eq.s32.totalorder %s11, 1
    %p125 = scmp.ne.s32.totalorder %s120, %s122
    %p126 = scmp.eq.s32.totalorder %s11, 0
    %p127 = por %p125, %p126
    %p128 = scmp.ne.s32.totalorder %s120, %s122
    %p129 = scmp.eq.s32.totalorder %s16, 1
    %p130 = por %p128, %p129
    %p131 = scmp.ne.s32.totalorder %s122, %s123
    %p132 = scmp.eq.s32.totalorder %s16, 0
    %p133 = por %p131, %p132
    %p134 = scmp.ne.s32.totalorder %s122, %s123
    %p135 = scmp.eq.s32.totalorder %s17, 1
    %p136 = por %p134, %p135
    %p138 = scmp.ne.s32.totalorder %s123, %s137
    %p139 = scmp.eq.s32.totalorder %s17, 0
    %p140 = por %p138, %p139
    %s141 = ssub.s32 %s18, %s30
    %s142 = ssub.s32 %s19, %s26
    %s143 = sor.u32 %s141, %s142
    %p144 = scmp.eq.s32.totalorder %s143, 0
    %s146 = sadd.s32 %s145, 1
    %s147 = scalar_select %p144, %s145, %s146
    %p150 = pneg %p144
    %p151 = scmp.eq.s32.totalorder %s11, 1
    %p152 = por %p150, %p151
    %p153 = scmp.ne.s32.totalorder %s145, %s148
    %p154 = scmp.eq.s32.totalorder %s11, 0
    %p155 = por %p153, %p154
    %p156 = scmp.ne.s32.totalorder %s145, %s148
    %p157 = scmp.eq.s32.totalorder %s16, 1
    %p158 = por %p156, %p157
    %p159 = scmp.ne.s32.totalorder %s148, %s149
    %p160 = scmp.eq.s32.totalorder %s16, 0
    %p161 = por %p159, %p160
    %p162 = scmp.ne.s32.totalorder %s148, %s149
    %p163 = scmp.eq.s32.totalorder %s17, 1
    %p164 = por %p162, %p163
    %p166 = scmp.ne.s32.totalorder %s149, %s165
    %p167 = scmp.eq.s32.totalorder %s17, 0
    %p168 = por %p166, %p167
    %p169 = scmp.le.s32.totalorder 1, %s11
    %p170 = scmp.lt.s32.totalorder %s11, 3
    %p171 = pnand %p169, %p170
    %p172 = pneg %p171
    // Predicated region
    $region9: #{_lambda_.9} parent=5 // pred_check
      _
    $region10: #{_lambda_.9} parent=5 // pred_check_branch
      %174 = sbr.rel (%p171) target = $region12
    $region11: #{_lambda_.9} parent=5 // pred_region
      %s175 = ssub.s32 %s11, 1
      // Predicated region
      $region13: #{_lambda_.9} parent=11 // pred_check
        %p176 = pneg %p70
      $region14: #{_lambda_.9} parent=11 // pred_check_branch
        %178 = sbr.rel (%p176) target = $region16
      $region15: #{_lambda_.9} parent=11 // pred_region
        _
      $region16: #{_lambda_.9} parent=11 // pred_fallthru
        _
      // Predicated region
      $region17: #{_lambda_.9} parent=11 // pred_check
        %p179 = pneg %p91
      $region18: #{_lambda_.9} parent=11 // pred_check_branch
        %181 = sbr.rel (%p179) target = $region20
      $region19: #{_lambda_.9} parent=11 // pred_region
        _
      $region20: #{_lambda_.9} parent=11 // pred_fallthru
        _
      // Predicated region
      $region21: #{_lambda_.9} parent=11 // pred_check
        %p182 = pneg %p112
      $region22: #{_lambda_.9} parent=11 // pred_check_branch
        %184 = sbr.rel (%p182) target = $region24
      $region23: #{_lambda_.9} parent=11 // pred_region
        _
      $region24: #{_lambda_.9} parent=11 // pred_fallthru
        _
      // Predicated region
      $region25: #{_lambda_.9} parent=11 // pred_check
        %p185 = pneg %p133
      $region26: #{_lambda_.9} parent=11 // pred_check_branch
        %187 = sbr.rel (%p185) target = $region28
      $region27: #{_lambda_.9} parent=11 // pred_region
        _
      $region28: #{_lambda_.9} parent=11 // pred_fallthru
        _
    $region12: #{_lambda_.9} parent=5 // pred_fallthru
      _
    %p188 = scmp.lt.s32.totalorder %s11, 2
    // Predicated region
    $region29: #{_lambda_.9} parent=5 // pred_check
      %p189 = pneg %p188
    $region30: #{_lambda_.9} parent=5 // pred_check_branch
      %191 = sbr.rel (%p189) target = $region32
    $region31: #{_lambda_.9} parent=5 // pred_region
      // Predicated region
      $region33: #{_lambda_.9} parent=31 // pred_check
        %p192 = pneg %p43
      $region34: #{_lambda_.9} parent=31 // pred_check_branch
        %194 = sbr.rel (%p192) target = $region36
      $region35: #{_lambda_.9} parent=31 // pred_region
        %p195 = scmp.lt.s32.totalorder %s18, 1
        %s196 = scalar_select %p195, %s18, 1
        %s197 = smul.addr %s196, 32
        %s198 = smul.addr %s197, 4
        %s199 = scalar_lea.vmem %s0, %s198
      $region36: #{_lambda_.9} parent=31 // pred_fallthru
        _
    $region32: #{_lambda_.9} parent=5 // pred_fallthru
      _
    %p200 = scmp.le.s32.totalorder 1, %s11
    %p201 = scmp.lt.s32.totalorder %s11, 3
    %p202 = pnand %p200, %p201
    %p203 = pneg %p202
    // Predicated region
    $region37: #{_lambda_.9} parent=5 // pred_check
      _
    $region38: #{_lambda_.9} parent=5 // pred_check_branch
      %205 = sbr.rel (%p202) target = $region40
    $region39: #{_lambda_.9} parent=5 // pred_region
      %s206 = ssub.s32 %s11, 1
      %p207 = scmp.lt.s32.totalorder %s20, 1
      %s208 = scalar_select %p207, %s20, 1
      %s209 = smul.addr %s208, 32
      %s210 = smul.addr %s209, 4
      %s211 = scalar_lea.vmem %s0, %s210
      %p212 = pneg %p49
      %p213 = pneg %p46
      %p214 = pneg %p70
      %p215 = pneg %p67
      %p216 = pneg %p91
      %p217 = pneg %p88
      %p218 = pneg %p112
      %p219 = pneg %p109
      %p220 = pneg %p133
      %p221 = pneg %p130
      %p222 = pneg %p161
      %p223 = pneg %p158
      %p224 = scmp.lt.s32.totalorder %s20, 1
      %s225 = scalar_select %p224, %s20, 1
      %p226 = scmp.lt.s32.totalorder %s21, 0
      %s227 = scalar_select %p226, %s21, 0
      %s228 = smul.addr %s227, 32
      %s229 = smul.addr %s225, 32
      %s230 = sadd.s32 %s228, %s229
      %s231 = smul.addr %s230, 4
      %s232 = scalar_lea.vmem %s5, %s231
      %p233 = scmp.lt.s32.totalorder %s20, 1
      %s234 = scalar_select %p233, %s20, 1
      %s235 = smul.addr %s234, 32
      %s236 = smul.addr %s235, 4
      %s237 = scalar_lea.vmem %s0, %s236
      %p238 = scmp.lt.s32.totalorder %s20, 1
      %s239 = scalar_select %p238, %s20, 1
      %p240 = scmp.lt.s32.totalorder %s21, 0
      %s241 = scalar_select %p240, %s21, 0
      %s242 = smul.addr %s241, 32
      %s243 = smul.addr %s239, 32
      %s244 = sadd.s32 %s242, %s243
      %s245 = smul.addr %s244, 4
      %s246 = scalar_lea.vmem %s5, %s245
      %s248 = smul.u32 %s21, 32
      %s249 = smul.addr %s248, 4
      %s250 = scalar_lea.vmem %s237, %s249
      %v251 = vld [vmem:[%s250] sm:$0xf]
      %v252 = vld [vmem:[%s250 + $0x4] sm:$0xf]
      %v253 = vld [vmem:[%s250 + $0x8] sm:$0xf]
      %v254 = vld [vmem:[%s250 + $0xc] sm:$0xf]
      %v255 = vld [vmem:[%s250 + $0x10] sm:$0xf]
      %v256 = vld [vmem:[%s250 + $0x14] sm:$0xf]
      %v257 = vld [vmem:[%s250 + $0x18] sm:$0xf]
      %v258 = vld [vmem:[%s250 + $0x1c] sm:$0xf]
      %v259 = vld [vmem:[%s250 + $0x20] sm:$0xf]
      %v260 = vld [vmem:[%s250 + $0x24] sm:$0xf]
      %v261 = vld [vmem:[%s250 + $0x28] sm:$0xf]
      %v262 = vld [vmem:[%s250 + $0x2c] sm:$0xf]
      %v263 = vld [vmem:[%s250 + $0x30] sm:$0xf]
      %v264 = vld [vmem:[%s250 + $0x34] sm:$0xf]
      %v265 = vld [vmem:[%s250 + $0x38] sm:$0xf]
      %v266 = vld [vmem:[%s250 + $0x3c] sm:$0xf]
      %v267 = vld [vmem:[%s250 + $0x40] sm:$0xf]
      %v268 = vld [vmem:[%s250 + $0x44] sm:$0xf]
      %v269 = vld [vmem:[%s250 + $0x48] sm:$0xf]
      %v270 = vld [vmem:[%s250 + $0x4c] sm:$0xf]
      %v271 = vld [vmem:[%s250 + $0x50] sm:$0xf]
      %v272 = vld [vmem:[%s250 + $0x54] sm:$0xf]
      %v273 = vld [vmem:[%s250 + $0x58] sm:$0xf]
      %v274 = vld [vmem:[%s250 + $0x5c] sm:$0xf]
      %v275 = vld [vmem:[%s250 + $0x60] sm:$0xf]
      %v276 = vld [vmem:[%s250 + $0x64] sm:$0xf]
      %v277 = vld [vmem:[%s250 + $0x68] sm:$0xf]
      %v278 = vld [vmem:[%s250 + $0x6c] sm:$0xf]
      %v279 = vld [vmem:[%s250 + $0x70] sm:$0xf]
      %v280 = vld [vmem:[%s250 + $0x74] sm:$0xf]
      %v281 = vld [vmem:[%s250 + $0x78] sm:$0xf]
      %v282 = vld [vmem:[%s250 + $0x7c] sm:$0xf]
      %v283 = vunpack.c.l.bf16 %v251
      %v284 = vunpack.c.l.bf16 %v252
      %v285 = vunpack.c.l.bf16 %v253
      %v286 = vunpack.c.l.bf16 %v254
      %v287 = vunpack.c.l.bf16 %v255
      %v288 = vunpack.c.l.bf16 %v256
      %v289 = vunpack.c.l.bf16 %v257
      %v290 = vunpack.c.l.bf16 %v258
      %v291 = vunpack.c.l.bf16 %v259
      %v292 = vunpack.c.l.bf16 %v260
      %v293 = vunpack.c.l.bf16 %v261
      %v294 = vunpack.c.l.bf16 %v262
      %v295 = vunpack.c.l.bf16 %v263
      %v296 = vunpack.c.l.bf16 %v264
      %v297 = vunpack.c.l.bf16 %v265
      %v298 = vunpack.c.l.bf16 %v266
      %v299 = vunpack.c.l.bf16 %v267
      %v300 = vunpack.c.l.bf16 %v268
      %v301 = vunpack.c.l.bf16 %v269
      %v302 = vunpack.c.l.bf16 %v270
      %v303 = vunpack.c.l.bf16 %v271
      %v304 = vunpack.c.l.bf16 %v272
      %v305 = vunpack.c.l.bf16 %v273
      %v306 = vunpack.c.l.bf16 %v274
      %v307 = vunpack.c.l.bf16 %v275
      %v308 = vunpack.c.l.bf16 %v276
      %v309 = vunpack.c.l.bf16 %v277
      %v310 = vunpack.c.l.bf16 %v278
      %v311 = vunpack.c.l.bf16 %v279
      %v312 = vunpack.c.l.bf16 %v280
      %v313 = vunpack.c.l.bf16 %v281
      %v314 = vunpack.c.l.bf16 %v282
      %v315 = vmul.f32 %v283, %v283
      %v316 = vmul.f32 %v284, %v284
      %v317 = vmul.f32 %v285, %v285
      %v318 = vmul.f32 %v286, %v286
      %v319 = vmul.f32 %v287, %v287
      %v320 = vmul.f32 %v288, %v288
      %v321 = vmul.f32 %v289, %v289
      %v322 = vmul.f32 %v290, %v290
      %v323 = vmul.f32 %v291, %v291
      %v324 = vmul.f32 %v292, %v292
      %v325 = vmul.f32 %v293, %v293
      %v326 = vmul.f32 %v294, %v294
      %v327 = vmul.f32 %v295, %v295
      %v328 = vmul.f32 %v296, %v296
      %v329 = vmul.f32 %v297, %v297
      %v330 = vmul.f32 %v298, %v298
      %v331 = vmul.f32 %v299, %v299
      %v332 = vmul.f32 %v300, %v300
      %v333 = vmul.f32 %v301, %v301
      %v334 = vmul.f32 %v302, %v302
      %v335 = vmul.f32 %v303, %v303
      %v336 = vmul.f32 %v304, %v304
      %v337 = vmul.f32 %v305, %v305
      %v338 = vmul.f32 %v306, %v306
      %v339 = vmul.f32 %v307, %v307
      %v340 = vmul.f32 %v308, %v308
      %v341 = vmul.f32 %v309, %v309
      %v342 = vmul.f32 %v310, %v310
      %v343 = vmul.f32 %v311, %v311
      %v344 = vmul.f32 %v312, %v312
      %v345 = vmul.f32 %v313, %v313
      %v346 = vmul.f32 %v314, %v314
      %347 = vadd.xlane.f32.xlu0 %v315
      %v348 = vpop.xlane.xlu0 %347
      %349 = vadd.xlane.f32.xlu0 %v316
      %v350 = vpop.xlane.xlu0 %349
      %351 = vadd.xlane.f32.xlu0 %v317
      %v352 = vpop.xlane.xlu0 %351
      %353 = vadd.xlane.f32.xlu0 %v318
      %v354 = vpop.xlane.xlu0 %353
      %355 = vadd.xlane.f32.xlu0 %v319
      %v356 = vpop.xlane.xlu0 %355
      %357 = vadd.xlane.f32.xlu0 %v320
      %v358 = vpop.xlane.xlu0 %357
      %359 = vadd.xlane.f32.xlu0 %v321
      %v360 = vpop.xlane.xlu0 %359
      %361 = vadd.xlane.f32.xlu0 %v322
      %v362 = vpop.xlane.xlu0 %361
      %363 = vadd.xlane.f32.xlu0 %v323
      %v364 = vpop.xlane.xlu0 %363
      %365 = vadd.xlane.f32.xlu0 %v324
      %v366 = vpop.xlane.xlu0 %365
      %367 = vadd.xlane.f32.xlu0 %v325
      %v368 = vpop.xlane.xlu0 %367
      %369 = vadd.xlane.f32.xlu0 %v326
      %v370 = vpop.xlane.xlu0 %369
      %371 = vadd.xlane.f32.xlu0 %v327
      %v372 = vpop.xlane.xlu0 %371
      %373 = vadd.xlane.f32.xlu0 %v328
      %v374 = vpop.xlane.xlu0 %373
      %375 = vadd.xlane.f32.xlu0 %v329
      %v376 = vpop.xlane.xlu0 %375
      %377 = vadd.xlane.f32.xlu0 %v330
      %v378 = vpop.xlane.xlu0 %377
      %379 = vadd.xlane.f32.xlu0 %v331
      %v380 = vpop.xlane.xlu0 %379
      %381 = vadd.xlane.f32.xlu0 %v332
      %v382 = vpop.xlane.xlu0 %381
      %383 = vadd.xlane.f32.xlu0 %v333
      %v384 = vpop.xlane.xlu0 %383
      %385 = vadd.xlane.f32.xlu0 %v334
      %v386 = vpop.xlane.xlu0 %385
      %387 = vadd.xlane.f32.xlu0 %v335
      %v388 = vpop.xlane.xlu0 %387
      %389 = vadd.xlane.f32.xlu0 %v336
      %v390 = vpop.xlane.xlu0 %389
      %391 = vadd.xlane.f32.xlu0 %v337
      %v392 = vpop.xlane.xlu0 %391
      %393 = vadd.xlane.f32.xlu0 %v338
      %v394 = vpop.xlane.xlu0 %393
      %395 = vadd.xlane.f32.xlu0 %v339
      %v396 = vpop.xlane.xlu0 %395
      %397 = vadd.xlane.f32.xlu0 %v340
      %v398 = vpop.xlane.xlu0 %397
      %399 = vadd.xlane.f32.xlu0 %v341
      %v400 = vpop.xlane.xlu0 %399
      %401 = vadd.xlane.f32.xlu0 %v342
      %v402 = vpop.xlane.xlu0 %401
      %403 = vadd.xlane.f32.xlu0 %v343
      %v404 = vpop.xlane.xlu0 %403
      %405 = vadd.xlane.f32.xlu0 %v344
      %v406 = vpop.xlane.xlu0 %405
      %407 = vadd.xlane.f32.xlu0 %v345
      %v408 = vpop.xlane.xlu0 %407
      %409 = vadd.xlane.f32.xlu0 %v346
      %v410 = vpop.xlane.xlu0 %409
      %v411 = vrsqrt.pop %v348
      %v412 = vmul.f32 %v348, %v411
      %vm413 = vcmp.eq.f32.partialorder %v348, inf
      %v414 = vsel %vm413, %v348, %v412
      %vm415 = vcmp.eq.f32.partialorder %v348, 0.0
      %v416 = vand.u32 %v348, 2147483648
      %v417 = vsel %vm415, %v416, %v414
      %v418 = vrsqrt.pop %v350
      %v419 = vmul.f32 %v350, %v418
      %vm420 = vcmp.eq.f32.partialorder %v350, inf
      %v421 = vsel %vm420, %v350, %v419
      %vm422 = vcmp.eq.f32.partialorder %v350, 0.0
      %v423 = vand.u32 %v350, 2147483648
      %v424 = vsel %vm422, %v423, %v421
      %v425 = vrsqrt.pop %v352
      %v426 = vmul.f32 %v352, %v425
      %vm427 = vcmp.eq.f32.partialorder %v352, inf
      %v428 = vsel %vm427, %v352, %v426
      %vm429 = vcmp.eq.f32.partialorder %v352, 0.0
      %v430 = vand.u32 %v352, 2147483648
      %v431 = vsel %vm429, %v430, %v428
      %v432 = vrsqrt.pop %v354
      %v433 = vmul.f32 %v354, %v432
      %vm434 = vcmp.eq.f32.partialorder %v354, inf
      %v435 = vsel %vm434, %v354, %v433
      %vm436 = vcmp.eq.f32.partialorder %v354, 0.0
      %v437 = vand.u32 %v354, 2147483648
      %v438 = vsel %vm436, %v437, %v435
      %v439 = vrsqrt.pop %v356
      %v440 = vmul.f32 %v356, %v439
      %vm441 = vcmp.eq.f32.partialorder %v356, inf
      %v442 = vsel %vm441, %v356, %v440
      %vm443 = vcmp.eq.f32.partialorder %v356, 0.0
      %v444 = vand.u32 %v356, 2147483648
      %v445 = vsel %vm443, %v444, %v442
      %v446 = vrsqrt.pop %v358
      %v447 = vmul.f32 %v358, %v446
      %vm448 = vcmp.eq.f32.partialorder %v358, inf
      %v449 = vsel %vm448, %v358, %v447
      %vm450 = vcmp.eq.f32.partialorder %v358, 0.0
      %v451 = vand.u32 %v358, 2147483648
      %v452 = vsel %vm450, %v451, %v449
      %v453 = vrsqrt.pop %v360
      %v454 = vmul.f32 %v360, %v453
      %vm455 = vcmp.eq.f32.partialorder %v360, inf
      %v456 = vsel %vm455, %v360, %v454
      %vm457 = vcmp.eq.f32.partialorder %v360, 0.0
      %v458 = vand.u32 %v360, 2147483648
      %v459 = vsel %vm457, %v458, %v456
      %v460 = vrsqrt.pop %v362
      %v461 = vmul.f32 %v362, %v460
      %vm462 = vcmp.eq.f32.partialorder %v362, inf
      %v463 = vsel %vm462, %v362, %v461
      %vm464 = vcmp.eq.f32.partialorder %v362, 0.0
      %v465 = vand.u32 %v362, 2147483648
      %v466 = vsel %vm464, %v465, %v463
      %v467 = vrsqrt.pop %v364
      %v468 = vmul.f32 %v364, %v467
      %vm469 = vcmp.eq.f32.partialorder %v364, inf
      %v470 = vsel %vm469, %v364, %v468
      %vm471 = vcmp.eq.f32.partialorder %v364, 0.0
      %v472 = vand.u32 %v364, 2147483648
      %v473 = vsel %vm471, %v472, %v470
      %v474 = vrsqrt.pop %v366
      %v475 = vmul.f32 %v366, %v474
      %vm476 = vcmp.eq.f32.partialorder %v366, inf
      %v477 = vsel %vm476, %v366, %v475
      %vm478 = vcmp.eq.f32.partialorder %v366, 0.0
      %v479 = vand.u32 %v366, 2147483648
      %v480 = vsel %vm478, %v479, %v477
      %v481 = vrsqrt.pop %v368
      %v482 = vmul.f32 %v368, %v481
      %vm483 = vcmp.eq.f32.partialorder %v368, inf
      %v484 = vsel %vm483, %v368, %v482
      %vm485 = vcmp.eq.f32.partialorder %v368, 0.0
      %v486 = vand.u32 %v368, 2147483648
      %v487 = vsel %vm485, %v486, %v484
      %v488 = vrsqrt.pop %v370
      %v489 = vmul.f32 %v370, %v488
      %vm490 = vcmp.eq.f32.partialorder %v370, inf
      %v491 = vsel %vm490, %v370, %v489
      %vm492 = vcmp.eq.f32.partialorder %v370, 0.0
      %v493 = vand.u32 %v370, 2147483648
      %v494 = vsel %vm492, %v493, %v491
      %v495 = vrsqrt.pop %v372
      %v496 = vmul.f32 %v372, %v495
      %vm497 = vcmp.eq.f32.partialorder %v372, inf
      %v498 = vsel %vm497, %v372, %v496
      %vm499 = vcmp.eq.f32.partialorder %v372, 0.0
      %v500 = vand.u32 %v372, 2147483648
      %v501 = vsel %vm499, %v500, %v498
      %v502 = vrsqrt.pop %v374
      %v503 = vmul.f32 %v374, %v502
      %vm504 = vcmp.eq.f32.partialorder %v374, inf
      %v505 = vsel %vm504, %v374, %v503
      %vm506 = vcmp.eq.f32.partialorder %v374, 0.0
      %v507 = vand.u32 %v374, 2147483648
      %v508 = vsel %vm506, %v507, %v505
      %v509 = vrsqrt.pop %v376
      %v510 = vmul.f32 %v376, %v509
      %vm511 = vcmp.eq.f32.partialorder %v376, inf
      %v512 = vsel %vm511, %v376, %v510
      %vm513 = vcmp.eq.f32.partialorder %v376, 0.0
      %v514 = vand.u32 %v376, 2147483648
      %v515 = vsel %vm513, %v514, %v512
      %v516 = vrsqrt.pop %v378
      %v517 = vmul.f32 %v378, %v516
      %vm518 = vcmp.eq.f32.partialorder %v378, inf
      %v519 = vsel %vm518, %v378, %v517
      %vm520 = vcmp.eq.f32.partialorder %v378, 0.0
      %v521 = vand.u32 %v378, 2147483648
      %v522 = vsel %vm520, %v521, %v519
      %v523 = vrsqrt.pop %v380
      %v524 = vmul.f32 %v380, %v523
      %vm525 = vcmp.eq.f32.partialorder %v380, inf
      %v526 = vsel %vm525, %v380, %v524
      %vm527 = vcmp.eq.f32.partialorder %v380, 0.0
      %v528 = vand.u32 %v380, 2147483648
      %v529 = vsel %vm527, %v528, %v526
      %v530 = vrsqrt.pop %v382
      %v531 = vmul.f32 %v382, %v530
      %vm532 = vcmp.eq.f32.partialorder %v382, inf
      %v533 = vsel %vm532, %v382, %v531
      %vm534 = vcmp.eq.f32.partialorder %v382, 0.0
      %v535 = vand.u32 %v382, 2147483648
      %v536 = vsel %vm534, %v535, %v533
      %v537 = vrsqrt.pop %v384
      %v538 = vmul.f32 %v384, %v537
      %vm539 = vcmp.eq.f32.partialorder %v384, inf
      %v540 = vsel %vm539, %v384, %v538
      %vm541 = vcmp.eq.f32.partialorder %v384, 0.0
      %v542 = vand.u32 %v384, 2147483648
      %v543 = vsel %vm541, %v542, %v540
      %v544 = vrsqrt.pop %v386
      %v545 = vmul.f32 %v386, %v544
      %vm546 = vcmp.eq.f32.partialorder %v386, inf
      %v547 = vsel %vm546, %v386, %v545
      %vm548 = vcmp.eq.f32.partialorder %v386, 0.0
      %v549 = vand.u32 %v386, 2147483648
      %v550 = vsel %vm548, %v549, %v547
      %v551 = vrsqrt.pop %v388
      %v552 = vmul.f32 %v388, %v551
      %vm553 = vcmp.eq.f32.partialorder %v388, inf
      %v554 = vsel %vm553, %v388, %v552
      %vm555 = vcmp.eq.f32.partialorder %v388, 0.0
      %v556 = vand.u32 %v388, 2147483648
      %v557 = vsel %vm555, %v556, %v554
      %v558 = vrsqrt.pop %v390
      %v559 = vmul.f32 %v390, %v558
      %vm560 = vcmp.eq.f32.partialorder %v390, inf
      %v561 = vsel %vm560, %v390, %v559
      %vm562 = vcmp.eq.f32.partialorder %v390, 0.0
      %v563 = vand.u32 %v390, 2147483648
      %v564 = vsel %vm562, %v563, %v561
      %v565 = vrsqrt.pop %v392
      %v566 = vmul.f32 %v392, %v565
      %vm567 = vcmp.eq.f32.partialorder %v392, inf
      %v568 = vsel %vm567, %v392, %v566
      %vm569 = vcmp.eq.f32.partialorder %v392, 0.0
      %v570 = vand.u32 %v392, 2147483648
      %v571 = vsel %vm569, %v570, %v568
      %v572 = vrsqrt.pop %v394
      %v573 = vmul.f32 %v394, %v572
      %vm574 = vcmp.eq.f32.partialorder %v394, inf
      %v575 = vsel %vm574, %v394, %v573
      %vm576 = vcmp.eq.f32.partialorder %v394, 0.0
      %v577 = vand.u32 %v394, 2147483648
      %v578 = vsel %vm576, %v577, %v575
      %v579 = vrsqrt.pop %v396
      %v580 = vmul.f32 %v396, %v579
      %vm581 = vcmp.eq.f32.partialorder %v396, inf
      %v582 = vsel %vm581, %v396, %v580
      %vm583 = vcmp.eq.f32.partialorder %v396, 0.0
      %v584 = vand.u32 %v396, 2147483648
      %v585 = vsel %vm583, %v584, %v582
      %v586 = vrsqrt.pop %v398
      %v587 = vmul.f32 %v398, %v586
      %vm588 = vcmp.eq.f32.partialorder %v398, inf
      %v589 = vsel %vm588, %v398, %v587
      %vm590 = vcmp.eq.f32.partialorder %v398, 0.0
      %v591 = vand.u32 %v398, 2147483648
      %v592 = vsel %vm590, %v591, %v589
      %v593 = vrsqrt.pop %v400
      %v594 = vmul.f32 %v400, %v593
      %vm595 = vcmp.eq.f32.partialorder %v400, inf
      %v596 = vsel %vm595, %v400, %v594
      %vm597 = vcmp.eq.f32.partialorder %v400, 0.0
      %v598 = vand.u32 %v400, 2147483648
      %v599 = vsel %vm597, %v598, %v596
      %v600 = vrsqrt.pop %v402
      %v601 = vmul.f32 %v402, %v600
      %vm602 = vcmp.eq.f32.partialorder %v402, inf
      %v603 = vsel %vm602, %v402, %v601
      %vm604 = vcmp.eq.f32.partialorder %v402, 0.0
      %v605 = vand.u32 %v402, 2147483648
      %v606 = vsel %vm604, %v605, %v603
      %v607 = vrsqrt.pop %v404
      %v608 = vmul.f32 %v404, %v607
      %vm609 = vcmp.eq.f32.partialorder %v404, inf
      %v610 = vsel %vm609, %v404, %v608
      %vm611 = vcmp.eq.f32.partialorder %v404, 0.0
      %v612 = vand.u32 %v404, 2147483648
      %v613 = vsel %vm611, %v612, %v610
      %v614 = vrsqrt.pop %v406
      %v615 = vmul.f32 %v406, %v614
      %vm616 = vcmp.eq.f32.partialorder %v406, inf
      %v617 = vsel %vm616, %v406, %v615
      %vm618 = vcmp.eq.f32.partialorder %v406, 0.0
      %v619 = vand.u32 %v406, 2147483648
      %v620 = vsel %vm618, %v619, %v617
      %v621 = vrsqrt.pop %v408
      %v622 = vmul.f32 %v408, %v621
      %vm623 = vcmp.eq.f32.partialorder %v408, inf
      %v624 = vsel %vm623, %v408, %v622
      %vm625 = vcmp.eq.f32.partialorder %v408, 0.0
      %v626 = vand.u32 %v408, 2147483648
      %v627 = vsel %vm625, %v626, %v624
      %v628 = vrsqrt.pop %v410
      %v629 = vmul.f32 %v410, %v628
      %vm630 = vcmp.eq.f32.partialorder %v410, inf
      %v631 = vsel %vm630, %v410, %v629
      %vm632 = vcmp.eq.f32.partialorder %v410, 0.0
      %v633 = vand.u32 %v410, 2147483648
      %v634 = vsel %vm632, %v633, %v631
      %v635 = vld [vmem:[%s3] sm:$0x1]
      %v636 = vmax.f32 %v417, 1e-12
      %v637 = vmax.f32 %v424, 1e-12
      %v638 = vmax.f32 %v431, 1e-12
      %v639 = vmax.f32 %v438, 1e-12
      %v640 = vmax.f32 %v445, 1e-12
      %v641 = vmax.f32 %v452, 1e-12
      %v642 = vmax.f32 %v459, 1e-12
      %v643 = vmax.f32 %v466, 1e-12
      %v644 = vmax.f32 %v473, 1e-12
      %v645 = vmax.f32 %v480, 1e-12
      %v646 = vmax.f32 %v487, 1e-12
      %v647 = vmax.f32 %v494, 1e-12
      %v648 = vmax.f32 %v501, 1e-12
      %v649 = vmax.f32 %v508, 1e-12
      %v650 = vmax.f32 %v515, 1e-12
      %v651 = vmax.f32 %v522, 1e-12
      %v652 = vmax.f32 %v529, 1e-12
      %v653 = vmax.f32 %v536, 1e-12
      %v654 = vmax.f32 %v543, 1e-12
      %v655 = vmax.f32 %v550, 1e-12
      %v656 = vmax.f32 %v557, 1e-12
      %v657 = vmax.f32 %v564, 1e-12
      %v658 = vmax.f32 %v571, 1e-12
      %v659 = vmax.f32 %v578, 1e-12
      %v660 = vmax.f32 %v585, 1e-12
      %v661 = vmax.f32 %v592, 1e-12
      %v662 = vmax.f32 %v599, 1e-12
      %v663 = vmax.f32 %v606, 1e-12
      %v664 = vmax.f32 %v613, 1e-12
      %v665 = vmax.f32 %v620, 1e-12
      %v666 = vmax.f32 %v627, 1e-12
      %v667 = vmax.f32 %v634, 1e-12
      %v668 = vrcp.pop %v636
      %v669 = vmul.f32 8.0, %v668
      %v670 = vrcp.pop %v637
      %v671 = vmul.f32 8.0, %v670
      %v672 = vrcp.pop %v638
      %v673 = vmul.f32 8.0, %v672
      %v674 = vrcp.pop %v639
      %v675 = vmul.f32 8.0, %v674
      %v676 = vrcp.pop %v640
      %v677 = vmul.f32 8.0, %v676
      %v678 = vrcp.pop %v641
      %v679 = vmul.f32 8.0, %v678
      %v680 = vrcp.pop %v642
      %v681 = vmul.f32 8.0, %v680
      %v682 = vrcp.pop %v643
      %v683 = vmul.f32 8.0, %v682
      %v684 = vrcp.pop %v644
      %v685 = vmul.f32 8.0, %v684
      %v686 = vrcp.pop %v645
      %v687 = vmul.f32 8.0, %v686
      %v688 = vrcp.pop %v646
      %v689 = vmul.f32 8.0, %v688
      %v690 = vrcp.pop %v647
      %v691 = vmul.f32 8.0, %v690
      %v692 = vrcp.pop %v648
      %v693 = vmul.f32 8.0, %v692
      %v694 = vrcp.pop %v649
      %v695 = vmul.f32 8.0, %v694
      %v696 = vrcp.pop %v650
      %v697 = vmul.f32 8.0, %v696
      %v698 = vrcp.pop %v651
      %v699 = vmul.f32 8.0, %v698
      %v700 = vrcp.pop %v652
      %v701 = vmul.f32 8.0, %v700
      %v702 = vrcp.pop %v653
      %v703 = vmul.f32 8.0, %v702
      %v704 = vrcp.pop %v654
      %v705 = vmul.f32 8.0, %v704
      %v706 = vrcp.pop %v655
      %v707 = vmul.f32 8.0, %v706
      %v708 = vrcp.pop %v656
      %v709 = vmul.f32 8.0, %v708
      %v710 = vrcp.pop %v657
      %v711 = vmul.f32 8.0, %v710
      %v712 = vrcp.pop %v658
      %v713 = vmul.f32 8.0, %v712
      %v714 = vrcp.pop %v659
      %v715 = vmul.f32 8.0, %v714
      %v716 = vrcp.pop %v660
      %v717 = vmul.f32 8.0, %v716
      %v718 = vrcp.pop %v661
      %v719 = vmul.f32 8.0, %v718
      %v720 = vrcp.pop %v662
      %v721 = vmul.f32 8.0, %v720
      %v722 = vrcp.pop %v663
      %v723 = vmul.f32 8.0, %v722
      %v724 = vrcp.pop %v664
      %v725 = vmul.f32 8.0, %v724
      %v726 = vrcp.pop %v665
      %v727 = vmul.f32 8.0, %v726
      %v728 = vrcp.pop %v666
      %v729 = vmul.f32 8.0, %v728
      %v730 = vrcp.pop %v667
      %v731 = vmul.f32 8.0, %v730
      %v732 = vmul.f32 %v283, %v669
      %v733 = vmul.f32 %v284, %v671
      %v734 = vmul.f32 %v285, %v673
      %v735 = vmul.f32 %v286, %v675
      %v736 = vmul.f32 %v287, %v677
      %v737 = vmul.f32 %v288, %v679
      %v738 = vmul.f32 %v289, %v681
      %v739 = vmul.f32 %v290, %v683
      %v740 = vmul.f32 %v291, %v685
      %v741 = vmul.f32 %v292, %v687
      %v742 = vmul.f32 %v293, %v689
      %v743 = vmul.f32 %v294, %v691
      %v744 = vmul.f32 %v295, %v693
      %v745 = vmul.f32 %v296, %v695
      %v746 = vmul.f32 %v297, %v697
      %v747 = vmul.f32 %v298, %v699
      %v748 = vmul.f32 %v299, %v701
      %v749 = vmul.f32 %v300, %v703
      %v750 = vmul.f32 %v301, %v705
      %v751 = vmul.f32 %v302, %v707
      %v752 = vmul.f32 %v303, %v709
      %v753 = vmul.f32 %v304, %v711
      %v754 = vmul.f32 %v305, %v713
      %v755 = vmul.f32 %v306, %v715
      %v756 = vmul.f32 %v307, %v717
      %v757 = vmul.f32 %v308, %v719
      %v758 = vmul.f32 %v309, %v721
      %v759 = vmul.f32 %v310, %v723
      %v760 = vmul.f32 %v311, %v725
      %v761 = vmul.f32 %v312, %v727
      %v762 = vmul.f32 %v313, %v729
      %v763 = vmul.f32 %v314, %v731
      %v765 = vlaneseq
      %v766 = vshrl.u32 %v765, 7
      %v767 = vsub.s32 0, %v766
      %v768 = vrot.slane %v635, %v767
      %v770 = vmul.f32 %v732, %v768
      %v771 = vmul.f32 %v733, %v768
      %v772 = vmul.f32 %v734, %v768
      %v773 = vmul.f32 %v735, %v768
      %v774 = vmul.f32 %v736, %v768
      %v775 = vmul.f32 %v737, %v768
      %v776 = vmul.f32 %v738, %v768
      %v777 = vmul.f32 %v739, %v768
      %v778 = vmul.f32 %v740, %v768
      %v779 = vmul.f32 %v741, %v768
      %v780 = vmul.f32 %v742, %v768
      %v781 = vmul.f32 %v743, %v768
      %v782 = vmul.f32 %v744, %v768
      %v783 = vmul.f32 %v745, %v768
      %v784 = vmul.f32 %v746, %v768
      %v785 = vmul.f32 %v747, %v768
      %v786 = vmul.f32 %v748, %v768
      %v787 = vmul.f32 %v749, %v768
      %v788 = vmul.f32 %v750, %v768
      %v789 = vmul.f32 %v751, %v768
      %v790 = vmul.f32 %v752, %v768
      %v791 = vmul.f32 %v753, %v768
      %v792 = vmul.f32 %v754, %v768
      %v793 = vmul.f32 %v755, %v768
      %v794 = vmul.f32 %v756, %v768
      %v795 = vmul.f32 %v757, %v768
      %v796 = vmul.f32 %v758, %v768
      %v797 = vmul.f32 %v759, %v768
      %v798 = vmul.f32 %v760, %v768
      %v799 = vmul.f32 %v761, %v768
      %v800 = vmul.f32 %v762, %v768
      %v801 = vmul.f32 %v763, %v768
      %v802 = vxor.u32 %v770, 2147483648
      %v803 = vxor.u32 %v771, 2147483648
      %v804 = vxor.u32 %v772, 2147483648
      %v805 = vxor.u32 %v773, 2147483648
      %v806 = vxor.u32 %v774, 2147483648
      %v807 = vxor.u32 %v775, 2147483648
      %v808 = vxor.u32 %v776, 2147483648
      %v809 = vxor.u32 %v777, 2147483648
      %v810 = vxor.u32 %v778, 2147483648
      %v811 = vxor.u32 %v779, 2147483648
      %v812 = vxor.u32 %v780, 2147483648
      %v813 = vxor.u32 %v781, 2147483648
      %v814 = vxor.u32 %v782, 2147483648
      %v815 = vxor.u32 %v783, 2147483648
      %v816 = vxor.u32 %v784, 2147483648
      %v817 = vxor.u32 %v785, 2147483648
      %v818 = vxor.u32 %v786, 2147483648
      %v819 = vxor.u32 %v787, 2147483648
      %v820 = vxor.u32 %v788, 2147483648
      %v821 = vxor.u32 %v789, 2147483648
      %v822 = vxor.u32 %v790, 2147483648
      %v823 = vxor.u32 %v791, 2147483648
      %v824 = vxor.u32 %v792, 2147483648
      %v825 = vxor.u32 %v793, 2147483648
      %v826 = vxor.u32 %v794, 2147483648
      %v827 = vxor.u32 %v795, 2147483648
      %v828 = vxor.u32 %v796, 2147483648
      %v829 = vxor.u32 %v797, 2147483648
      %v830 = vxor.u32 %v798, 2147483648
      %v831 = vxor.u32 %v799, 2147483648
      %v832 = vxor.u32 %v800, 2147483648
      %v833 = vxor.u32 %v801, 2147483648
      %v834 = vmul.f32 %v802, 1.442695
      %v835 = vpow.pop %v834
      %v836 = vmul.f32 %v803, 1.442695
      %v837 = vpow.pop %v836
      %v838 = vmul.f32 %v804, 1.442695
      %v839 = vpow.pop %v838
      %v840 = vmul.f32 %v805, 1.442695
      %v841 = vpow.pop %v840
      %v842 = vmul.f32 %v806, 1.442695
      %v843 = vpow.pop %v842
      %v844 = vmul.f32 %v807, 1.442695
      %v845 = vpow.pop %v844
      %v846 = vmul.f32 %v808, 1.442695
      %v847 = vpow.pop %v846
      %v848 = vmul.f32 %v809, 1.442695
      %v849 = vpow.pop %v848
      %v850 = vmul.f32 %v810, 1.442695
      %v851 = vpow.pop %v850
      %v852 = vmul.f32 %v811, 1.442695
      %v853 = vpow.pop %v852
      %v854 = vmul.f32 %v812, 1.442695
      %v855 = vpow.pop %v854
      %v856 = vmul.f32 %v813, 1.442695
      %v857 = vpow.pop %v856
      %v858 = vmul.f32 %v814, 1.442695
      %v859 = vpow.pop %v858
      %v860 = vmul.f32 %v815, 1.442695
      %v861 = vpow.pop %v860
      %v862 = vmul.f32 %v816, 1.442695
      %v863 = vpow.pop %v862
      %v864 = vmul.f32 %v817, 1.442695
      %v865 = vpow.pop %v864
      %v866 = vmul.f32 %v818, 1.442695
      %v867 = vpow.pop %v866
      %v868 = vmul.f32 %v819, 1.442695
      %v869 = vpow.pop %v868
      %v870 = vmul.f32 %v820, 1.442695
      %v871 = vpow.pop %v870
      %v872 = vmul.f32 %v821, 1.442695
      %v873 = vpow.pop %v872
      %v874 = vmul.f32 %v822, 1.442695
      %v875 = vpow.pop %v874
      %v876 = vmul.f32 %v823, 1.442695
      %v877 = vpow.pop %v876
      %v878 = vmul.f32 %v824, 1.442695
      %v879 = vpow.pop %v878
      %v880 = vmul.f32 %v825, 1.442695
      %v881 = vpow.pop %v880
      %v882 = vmul.f32 %v826, 1.442695
      %v883 = vpow.pop %v882
      %v884 = vmul.f32 %v827, 1.442695
      %v885 = vpow.pop %v884
      %v886 = vmul.f32 %v828, 1.442695
      %v887 = vpow.pop %v886
      %v888 = vmul.f32 %v829, 1.442695
      %v889 = vpow.pop %v888
      %v890 = vmul.f32 %v830, 1.442695
      %v891 = vpow.pop %v890
      %v892 = vmul.f32 %v831, 1.442695
      %v893 = vpow.pop %v892
      %v894 = vmul.f32 %v832, 1.442695
      %v895 = vpow.pop %v894
      %v896 = vmul.f32 %v833, 1.442695
      %v897 = vpow.pop %v896
      %v898 = vadd.f32 %v835, 1.0
      %v899 = vadd.f32 %v837, 1.0
      %v900 = vadd.f32 %v839, 1.0
      %v901 = vadd.f32 %v841, 1.0
      %v902 = vadd.f32 %v843, 1.0
      %v903 = vadd.f32 %v845, 1.0
      %v904 = vadd.f32 %v847, 1.0
      %v905 = vadd.f32 %v849, 1.0
      %v906 = vadd.f32 %v851, 1.0
      %v907 = vadd.f32 %v853, 1.0
      %v908 = vadd.f32 %v855, 1.0
      %v909 = vadd.f32 %v857, 1.0
      %v910 = vadd.f32 %v859, 1.0
      %v911 = vadd.f32 %v861, 1.0
      %v912 = vadd.f32 %v863, 1.0
      %v913 = vadd.f32 %v865, 1.0
      %v914 = vadd.f32 %v867, 1.0
      %v915 = vadd.f32 %v869, 1.0
      %v916 = vadd.f32 %v871, 1.0
      %v917 = vadd.f32 %v873, 1.0
      %v918 = vadd.f32 %v875, 1.0
      %v919 = vadd.f32 %v877, 1.0
      %v920 = vadd.f32 %v879, 1.0
      %v921 = vadd.f32 %v881, 1.0
      %v922 = vadd.f32 %v883, 1.0
      %v923 = vadd.f32 %v885, 1.0
      %v924 = vadd.f32 %v887, 1.0
      %v925 = vadd.f32 %v889, 1.0
      %v926 = vadd.f32 %v891, 1.0
      %v927 = vadd.f32 %v893, 1.0
      %v928 = vadd.f32 %v895, 1.0
      %v929 = vadd.f32 %v897, 1.0
      %v930 = vrcp.pop %v898
      %v931 = vmul.f32 1.0, %v930
      %v932 = vrcp.pop %v899
      %v933 = vmul.f32 1.0, %v932
      %v934 = vrcp.pop %v900
      %v935 = vmul.f32 1.0, %v934
      %v936 = vrcp.pop %v901
      %v937 = vmul.f32 1.0, %v936
      %v938 = vrcp.pop %v902
      %v939 = vmul.f32 1.0, %v938
      %v940 = vrcp.pop %v903
      %v941 = vmul.f32 1.0, %v940
      %v942 = vrcp.pop %v904
      %v943 = vmul.f32 1.0, %v942
      %v944 = vrcp.pop %v905
      %v945 = vmul.f32 1.0, %v944
      %v946 = vrcp.pop %v906
      %v947 = vmul.f32 1.0, %v946
      %v948 = vrcp.pop %v907
      %v949 = vmul.f32 1.0, %v948
      %v950 = vrcp.pop %v908
      %v951 = vmul.f32 1.0, %v950
      %v952 = vrcp.pop %v909
      %v953 = vmul.f32 1.0, %v952
      %v954 = vrcp.pop %v910
      %v955 = vmul.f32 1.0, %v954
      %v956 = vrcp.pop %v911
      %v957 = vmul.f32 1.0, %v956
      %v958 = vrcp.pop %v912
      %v959 = vmul.f32 1.0, %v958
      %v960 = vrcp.pop %v913
      %v961 = vmul.f32 1.0, %v960
      %v962 = vrcp.pop %v914
      %v963 = vmul.f32 1.0, %v962
      %v964 = vrcp.pop %v915
      %v965 = vmul.f32 1.0, %v964
      %v966 = vrcp.pop %v916
      %v967 = vmul.f32 1.0, %v966
      %v968 = vrcp.pop %v917
      %v969 = vmul.f32 1.0, %v968
      %v970 = vrcp.pop %v918
      %v971 = vmul.f32 1.0, %v970
      %v972 = vrcp.pop %v919
      %v973 = vmul.f32 1.0, %v972
      %v974 = vrcp.pop %v920
      %v975 = vmul.f32 1.0, %v974
      %v976 = vrcp.pop %v921
      %v977 = vmul.f32 1.0, %v976
      %v978 = vrcp.pop %v922
      %v979 = vmul.f32 1.0, %v978
      %v980 = vrcp.pop %v923
      %v981 = vmul.f32 1.0, %v980
      %v982 = vrcp.pop %v924
      %v983 = vmul.f32 1.0, %v982
      %v984 = vrcp.pop %v925
      %v985 = vmul.f32 1.0, %v984
      %v986 = vrcp.pop %v926
      %v987 = vmul.f32 1.0, %v986
      %v988 = vrcp.pop %v927
      %v989 = vmul.f32 1.0, %v988
      %v990 = vrcp.pop %v928
      %v991 = vmul.f32 1.0, %v990
      %v992 = vrcp.pop %v929
      %v993 = vmul.f32 1.0, %v992
      %v994 = vmul.f32 %v770, %v931
      %v995 = vmul.f32 %v771, %v933
      %v996 = vmul.f32 %v772, %v935
      %v997 = vmul.f32 %v773, %v937
      %v998 = vmul.f32 %v774, %v939
      %v999 = vmul.f32 %v775, %v941
      %v1000 = vmul.f32 %v776, %v943
      %v1001 = vmul.f32 %v777, %v945
      %v1002 = vmul.f32 %v778, %v947
      %v1003 = vmul.f32 %v779, %v949
      %v1004 = vmul.f32 %v780, %v951
      %v1005 = vmul.f32 %v781, %v953
      %v1006 = vmul.f32 %v782, %v955
      %v1007 = vmul.f32 %v783, %v957
      %v1008 = vmul.f32 %v784, %v959
      %v1009 = vmul.f32 %v785, %v961
      %v1010 = vmul.f32 %v786, %v963
      %v1011 = vmul.f32 %v787, %v965
      %v1012 = vmul.f32 %v788, %v967
      %v1013 = vmul.f32 %v789, %v969
      %v1014 = vmul.f32 %v790, %v971
      %v1015 = vmul.f32 %v791, %v973
      %v1016 = vmul.f32 %v792, %v975
      %v1017 = vmul.f32 %v793, %v977
      %v1018 = vmul.f32 %v794, %v979
      %v1019 = vmul.f32 %v795, %v981
      %v1020 = vmul.f32 %v796, %v983
      %v1021 = vmul.f32 %v797, %v985
      %v1022 = vmul.f32 %v798, %v987
      %v1023 = vmul.f32 %v799, %v989
      %v1024 = vmul.f32 %v800, %v991
      %v1025 = vmul.f32 %v801, %v993
      %v1026 = vpack.c.bf16 %v995, %v994
      %v1027 = vpack.c.bf16 %v997, %v996
      %v1028 = vpack.c.bf16 %v999, %v998
      %v1029 = vpack.c.bf16 %v1001, %v1000
      %v1030 = vpack.c.bf16 %v1003, %v1002
      %v1031 = vpack.c.bf16 %v1005, %v1004
      %v1032 = vpack.c.bf16 %v1007, %v1006
      %v1033 = vpack.c.bf16 %v1009, %v1008
      %v1034 = vpack.c.bf16 %v1011, %v1010
      %v1035 = vpack.c.bf16 %v1013, %v1012
      %v1036 = vpack.c.bf16 %v1015, %v1014
      %v1037 = vpack.c.bf16 %v1017, %v1016
      %v1038 = vpack.c.bf16 %v1019, %v1018
      %v1039 = vpack.c.bf16 %v1021, %v1020
      %v1040 = vpack.c.bf16 %v1023, %v1022
      %v1041 = vpack.c.bf16 %v1025, %v1024
      %v1043 = vshrl.u32 %v1026, 16
      %v1045 = vrot.slane %v1043, 7
      %v1046 = vshll.u32 %v1026, 16
      %v1048 = vor.u32 %v1045, %v1046
      %v1050 = vshrl.u32 %v1027, 16
      %v1052 = vrot.slane %v1050, 7
      %v1053 = vshll.u32 %v1027, 16
      %v1055 = vor.u32 %v1052, %v1053
      %v1057 = vshrl.u32 %v1028, 16
      %v1059 = vrot.slane %v1057, 7
      %v1060 = vshll.u32 %v1028, 16
      %v1062 = vor.u32 %v1059, %v1060
      %v1064 = vshrl.u32 %v1029, 16
      %v1066 = vrot.slane %v1064, 7
      %v1067 = vshll.u32 %v1029, 16
      %v1069 = vor.u32 %v1066, %v1067
      %v1071 = vshrl.u32 %v1030, 16
      %v1073 = vrot.slane %v1071, 7
      %v1074 = vshll.u32 %v1030, 16
      %v1076 = vor.u32 %v1073, %v1074
      %v1078 = vshrl.u32 %v1031, 16
      %v1080 = vrot.slane %v1078, 7
      %v1081 = vshll.u32 %v1031, 16
      %v1083 = vor.u32 %v1080, %v1081
      %v1085 = vshrl.u32 %v1032, 16
      %v1087 = vrot.slane %v1085, 7
      %v1088 = vshll.u32 %v1032, 16
      %v1090 = vor.u32 %v1087, %v1088
      %v1092 = vshrl.u32 %v1033, 16
      %v1094 = vrot.slane %v1092, 7
      %v1095 = vshll.u32 %v1033, 16
      %v1097 = vor.u32 %v1094, %v1095
      %v1099 = vshrl.u32 %v1034, 16
      %v1101 = vrot.slane %v1099, 7
      %v1102 = vshll.u32 %v1034, 16
      %v1104 = vor.u32 %v1101, %v1102
      %v1106 = vshrl.u32 %v1035, 16
      %v1108 = vrot.slane %v1106, 7
      %v1109 = vshll.u32 %v1035, 16
      %v1111 = vor.u32 %v1108, %v1109
      %v1113 = vshrl.u32 %v1036, 16
      %v1115 = vrot.slane %v1113, 7
      %v1116 = vshll.u32 %v1036, 16
      %v1118 = vor.u32 %v1115, %v1116
      %v1120 = vshrl.u32 %v1037, 16
      %v1122 = vrot.slane %v1120, 7
      %v1123 = vshll.u32 %v1037, 16
      %v1125 = vor.u32 %v1122, %v1123
      %v1127 = vshrl.u32 %v1038, 16
      %v1129 = vrot.slane %v1127, 7
      %v1130 = vshll.u32 %v1038, 16
      %v1132 = vor.u32 %v1129, %v1130
      %v1134 = vshrl.u32 %v1039, 16
      %v1136 = vrot.slane %v1134, 7
      %v1137 = vshll.u32 %v1039, 16
      %v1139 = vor.u32 %v1136, %v1137
      %v1141 = vshrl.u32 %v1040, 16
      %v1143 = vrot.slane %v1141, 7
      %v1144 = vshll.u32 %v1040, 16
      %v1146 = vor.u32 %v1143, %v1144
      %v1148 = vshrl.u32 %v1041, 16
      %v1150 = vrot.slane %v1148, 7
      %v1151 = vshll.u32 %v1041, 16
      %v1153 = vor.u32 %v1150, %v1151
      %vm1186 = vcmask 1040384
      %vm1187 = vsmask.f32 256
      %vm1188 = vmand %vm1186, %vm1187
      %v1189 = vsel %vm1188, 0, %v1048
      %v1190 = vsel %vm1188, 0, %v1055
      %v1191 = vsel %vm1188, 0, %v1062
      %v1192 = vsel %vm1188, 0, %v1069
      %v1193 = vsel %vm1188, 0, %v1076
      %v1194 = vsel %vm1188, 0, %v1083
      %v1195 = vsel %vm1188, 0, %v1090
      %v1196 = vsel %vm1188, 0, %v1097
      %v1197 = vsel %vm1188, 0, %v1104
      %v1198 = vsel %vm1188, 0, %v1111
      %v1199 = vsel %vm1188, 0, %v1118
      %v1200 = vsel %vm1188, 0, %v1125
      %v1201 = vsel %vm1188, 0, %v1132
      %v1202 = vsel %vm1188, 0, %v1139
      %v1203 = vsel %vm1188, 0, %v1146
      %v1204 = vsel %vm1188, 0, %v1153
      %v1205 = vsel %vm1188, %v1045, 0
      %v1206 = vsel %vm1188, %v1052, 0
      %v1207 = vsel %vm1188, %v1059, 0
      %v1208 = vsel %vm1188, %v1066, 0
      %v1209 = vsel %vm1188, %v1073, 0
      %v1210 = vsel %vm1188, %v1080, 0
      %v1211 = vsel %vm1188, %v1087, 0
      %v1212 = vsel %vm1188, %v1094, 0
      %v1213 = vsel %vm1188, %v1101, 0
      %v1214 = vsel %vm1188, %v1108, 0
      %v1215 = vsel %vm1188, %v1115, 0
      %v1216 = vsel %vm1188, %v1122, 0
      %v1217 = vsel %vm1188, %v1129, 0
      %v1218 = vsel %vm1188, %v1136, 0
      %v1219 = vsel %vm1188, %v1143, 0
      %v1220 = vsel %vm1188, %v1150, 0
      %vm1221 = vsmask.f32 7424
      %v1223 = vshrl.u32 0, 16
      %v1225 = vshll.u32 0, 16
      %v1227 = vrot.slane %v1225, 1
      %v1228 = vor.u32 %v1223, %v1227
      %v1229 = vsel %vm1221, %v1228, %v1227
      %v1231 = vshrl.u32 %v1189, 16
      %v1233 = vshll.u32 %v1189, 16
      %v1235 = vrot.slane %v1233, 1
      %v1236 = vor.u32 %v1231, %v1235
      %v1238 = vshll.u32 %v1205, 16
      %v1240 = vrot.slane %v1238, 1
      %v1241 = vsel %vm1221, %v1236, %v1240
      %v1243 = vshrl.u32 %v1190, 16
      %v1245 = vshll.u32 %v1190, 16
      %v1247 = vrot.slane %v1245, 1
      %v1248 = vor.u32 %v1243, %v1247
      %v1250 = vshll.u32 %v1206, 16
      %v1252 = vrot.slane %v1250, 1
      %v1253 = vsel %vm1221, %v1248, %v1252
      %v1255 = vshrl.u32 %v1191, 16
      %v1257 = vshll.u32 %v1191, 16
      %v1259 = vrot.slane %v1257, 1
      %v1260 = vor.u32 %v1255, %v1259
      %v1262 = vshll.u32 %v1207, 16
      %v1264 = vrot.slane %v1262, 1
      %v1265 = vsel %vm1221, %v1260, %v1264
      %v1267 = vshrl.u32 %v1192, 16
      %v1269 = vshll.u32 %v1192, 16
      %v1271 = vrot.slane %v1269, 1
      %v1272 = vor.u32 %v1267, %v1271
      %v1274 = vshll.u32 %v1208, 16
      %v1276 = vrot.slane %v1274, 1
      %v1277 = vsel %vm1221, %v1272, %v1276
      %v1279 = vshrl.u32 %v1193, 16
      %v1281 = vshll.u32 %v1193, 16
      %v1283 = vrot.slane %v1281, 1
      %v1284 = vor.u32 %v1279, %v1283
      %v1286 = vshll.u32 %v1209, 16
      %v1288 = vrot.slane %v1286, 1
      %v1289 = vsel %vm1221, %v1284, %v1288
      %v1291 = vshrl.u32 %v1194, 16
      %v1293 = vshll.u32 %v1194, 16
      %v1295 = vrot.slane %v1293, 1
      %v1296 = vor.u32 %v1291, %v1295
      %v1298 = vshll.u32 %v1210, 16
      %v1300 = vrot.slane %v1298, 1
      %v1301 = vsel %vm1221, %v1296, %v1300
      %v1303 = vshrl.u32 %v1195, 16
      %v1305 = vshll.u32 %v1195, 16
      %v1307 = vrot.slane %v1305, 1
      %v1308 = vor.u32 %v1303, %v1307
      %v1310 = vshll.u32 %v1211, 16
      %v1312 = vrot.slane %v1310, 1
      %v1313 = vsel %vm1221, %v1308, %v1312
      %v1315 = vshrl.u32 %v1196, 16
      %v1317 = vshll.u32 %v1196, 16
      %v1319 = vrot.slane %v1317, 1
      %v1320 = vor.u32 %v1315, %v1319
      %v1322 = vshll.u32 %v1212, 16
      %v1324 = vrot.slane %v1322, 1
      %v1325 = vsel %vm1221, %v1320, %v1324
      %v1327 = vshrl.u32 %v1197, 16
      %v1329 = vshll.u32 %v1197, 16
      %v1331 = vrot.slane %v1329, 1
      %v1332 = vor.u32 %v1327, %v1331
      %v1334 = vshll.u32 %v1213, 16
      %v1336 = vrot.slane %v1334, 1
      %v1337 = vsel %vm1221, %v1332, %v1336
      %v1339 = vshrl.u32 %v1198, 16
      %v1341 = vshll.u32 %v1198, 16
      %v1343 = vrot.slane %v1341, 1
      %v1344 = vor.u32 %v1339, %v1343
      %v1346 = vshll.u32 %v1214, 16
      %v1348 = vrot.slane %v1346, 1
      %v1349 = vsel %vm1221, %v1344, %v1348
      %v1351 = vshrl.u32 %v1199, 16
      %v1353 = vshll.u32 %v1199, 16
      %v1355 = vrot.slane %v1353, 1
      %v1356 = vor.u32 %v1351, %v1355
      %v1358 = vshll.u32 %v1215, 16
      %v1360 = vrot.slane %v1358, 1
      %v1361 = vsel %vm1221, %v1356, %v1360
      %v1363 = vshrl.u32 %v1200, 16
      %v1365 = vshll.u32 %v1200, 16
      %v1367 = vrot.slane %v1365, 1
      %v1368 = vor.u32 %v1363, %v1367
      %v1370 = vshll.u32 %v1216, 16
      %v1372 = vrot.slane %v1370, 1
      %v1373 = vsel %vm1221, %v1368, %v1372
      %v1375 = vshrl.u32 %v1201, 16
      %v1377 = vshll.u32 %v1201, 16
      %v1379 = vrot.slane %v1377, 1
      %v1380 = vor.u32 %v1375, %v1379
      %v1382 = vshll.u32 %v1217, 16
      %v1384 = vrot.slane %v1382, 1
      %v1385 = vsel %vm1221, %v1380, %v1384
      %v1387 = vshrl.u32 %v1202, 16
      %v1389 = vshll.u32 %v1202, 16
      %v1391 = vrot.slane %v1389, 1
      %v1392 = vor.u32 %v1387, %v1391
      %v1394 = vshll.u32 %v1218, 16
      %v1396 = vrot.slane %v1394, 1
      %v1397 = vsel %vm1221, %v1392, %v1396
      %v1399 = vshrl.u32 %v1203, 16
      %v1401 = vshll.u32 %v1203, 16
      %v1403 = vrot.slane %v1401, 1
      %v1404 = vor.u32 %v1399, %v1403
      %v1406 = vshll.u32 %v1219, 16
      %v1408 = vrot.slane %v1406, 1
      %v1409 = vsel %vm1221, %v1404, %v1408
      %vm1457 = vcmask 1046528
      %v1458 = vrot.slane 0, 1
      %v1459 = vsel %vm1457, %v1458, %v1458
      %v1460 = vrot.slane %v1189, 1
      %v1461 = vrot.slane %v1205, 1
      %v1462 = vsel %vm1457, %v1460, %v1461
      %v1463 = vrot.slane %v1190, 1
      %v1464 = vrot.slane %v1206, 1
      %v1465 = vsel %vm1457, %v1463, %v1464
      %v1466 = vrot.slane %v1191, 1
      %v1467 = vrot.slane %v1207, 1
      %v1468 = vsel %vm1457, %v1466, %v1467
      %v1469 = vrot.slane %v1192, 1
      %v1470 = vrot.slane %v1208, 1
      %v1471 = vsel %vm1457, %v1469, %v1470
      %v1472 = vrot.slane %v1193, 1
      %v1473 = vrot.slane %v1209, 1
      %v1474 = vsel %vm1457, %v1472, %v1473
      %v1475 = vrot.slane %v1194, 1
      %v1476 = vrot.slane %v1210, 1
      %v1477 = vsel %vm1457, %v1475, %v1476
      %v1478 = vrot.slane %v1195, 1
      %v1479 = vrot.slane %v1211, 1
      %v1480 = vsel %vm1457, %v1478, %v1479
      %v1481 = vrot.slane %v1196, 1
      %v1482 = vrot.slane %v1212, 1
      %v1483 = vsel %vm1457, %v1481, %v1482
      %v1484 = vrot.slane %v1197, 1
      %v1485 = vrot.slane %v1213, 1
      %v1486 = vsel %vm1457, %v1484, %v1485
      %v1487 = vrot.slane %v1198, 1
      %v1488 = vrot.slane %v1214, 1
      %v1489 = vsel %vm1457, %v1487, %v1488
      %v1490 = vrot.slane %v1199, 1
      %v1491 = vrot.slane %v1215, 1
      %v1492 = vsel %vm1457, %v1490, %v1491
      %v1493 = vrot.slane %v1200, 1
      %v1494 = vrot.slane %v1216, 1
      %v1495 = vsel %vm1457, %v1493, %v1494
      %v1496 = vrot.slane %v1201, 1
      %v1497 = vrot.slane %v1217, 1
      %v1498 = vsel %vm1457, %v1496, %v1497
      %v1499 = vrot.slane %v1202, 1
      %v1500 = vrot.slane %v1218, 1
      %v1501 = vsel %vm1457, %v1499, %v1500
      %v1502 = vrot.slane %v1203, 1
      %v1503 = vrot.slane %v1219, 1
      %v1504 = vsel %vm1457, %v1502, %v1503
      %v1522 = vshrl.u32 %v1204, 16
      %v1524 = vshll.u32 %v1204, 16
      %v1526 = vrot.slane %v1524, 1
      %v1527 = vor.u32 %v1522, %v1526
      %v1529 = vshll.u32 %v1220, 16
      %v1531 = vrot.slane %v1529, 1
      %v1532 = vsel %vm1221, %v1527, %v1531
      %v1536 = vrot.slane %v1204, 1
      %v1537 = vrot.slane %v1220, 1
      %v1538 = vsel %vm1457, %v1536, %v1537
      %v1540 = vld [vmem:[%s1] sm:$0xf]
      %v1541 = vld [vmem:[%s1 + $0x4] sm:$0xf]
      %v1542 = vld [vmem:[%s1 + $0x8] sm:$0xf]
      %v1543 = vld [vmem:[%s1 + $0xc] sm:$0xf]
      %v1544 = vld [vmem:[%s1 + $0x10] sm:$0xf]
      %v1545 = vld [vmem:[%s1 + $0x14] sm:$0xf]
      %v1546 = vld [vmem:[%s1 + $0x18] sm:$0xf]
      %v1547 = vld [vmem:[%s1 + $0x1c] sm:$0xf]
      %v1548 = vld [vmem:[%s1 + $0x20] sm:$0xf]
      %v1549 = vld [vmem:[%s1 + $0x24] sm:$0xf]
      %v1550 = vld [vmem:[%s1 + $0x28] sm:$0xf]
      %v1551 = vld [vmem:[%s1 + $0x2c] sm:$0xf]
      %v1552 = vld [vmem:[%s1 + $0x30] sm:$0xf]
      %v1553 = vld [vmem:[%s1 + $0x34] sm:$0xf]
      %v1554 = vld [vmem:[%s1 + $0x38] sm:$0xf]
      %v1555 = vld [vmem:[%s1 + $0x3c] sm:$0xf]
      %v1556 = vld [vmem:[%s1 + $0x40] sm:$0xf]
      %v1557 = vld [vmem:[%s1 + $0x44] sm:$0xf]
      %v1558 = vld [vmem:[%s1 + $0x48] sm:$0xf]
      %v1559 = vld [vmem:[%s1 + $0x4c] sm:$0xf]
      %v1560 = vld [vmem:[%s1 + $0x50] sm:$0xf]
      %v1561 = vld [vmem:[%s1 + $0x54] sm:$0xf]
      %v1562 = vld [vmem:[%s1 + $0x58] sm:$0xf]
      %v1563 = vld [vmem:[%s1 + $0x5c] sm:$0xf]
      %v1564 = vld [vmem:[%s1 + $0x60] sm:$0xf]
      %v1565 = vld [vmem:[%s1 + $0x64] sm:$0xf]
      %v1566 = vld [vmem:[%s1 + $0x68] sm:$0xf]
      %v1567 = vld [vmem:[%s1 + $0x6c] sm:$0xf]
      %v1568 = vld [vmem:[%s1 + $0x70] sm:$0xf]
      %v1569 = vld [vmem:[%s1 + $0x74] sm:$0xf]
      %v1570 = vld [vmem:[%s1 + $0x78] sm:$0xf]
      %v1571 = vld [vmem:[%s1 + $0x7c] sm:$0xf]
      %v1572 = vld [vmem:[%s1 + $0x80] sm:$0xf]
      %v1573 = vld [vmem:[%s1 + $0x84] sm:$0xf]
      %v1574 = vld [vmem:[%s1 + $0x88] sm:$0xf]
      %v1575 = vld [vmem:[%s1 + $0x8c] sm:$0xf]
      %v1576 = vld [vmem:[%s1 + $0x90] sm:$0xf]
      %v1577 = vld [vmem:[%s1 + $0x94] sm:$0xf]
      %v1578 = vld [vmem:[%s1 + $0x98] sm:$0xf]
      %v1579 = vld [vmem:[%s1 + $0x9c] sm:$0xf]
      %v1580 = vld [vmem:[%s1 + $0xa0] sm:$0xf]
      %v1581 = vld [vmem:[%s1 + $0xa4] sm:$0xf]
      %v1582 = vld [vmem:[%s1 + $0xa8] sm:$0xf]
      %v1583 = vld [vmem:[%s1 + $0xac] sm:$0xf]
      %v1584 = vld [vmem:[%s1 + $0xb0] sm:$0xf]
      %v1585 = vld [vmem:[%s1 + $0xb4] sm:$0xf]
      %v1586 = vld [vmem:[%s1 + $0xb8] sm:$0xf]
      %v1587 = vld [vmem:[%s1 + $0xbc] sm:$0xf]
      %v1588 = vld [vmem:[%s1 + $0xc0] sm:$0xf]
      %v1589 = vld [vmem:[%s1 + $0xc4] sm:$0xf]
      %v1590 = vld [vmem:[%s1 + $0xc8] sm:$0xf]
      %v1591 = vld [vmem:[%s1 + $0xcc] sm:$0xf]
      %v1592 = vld [vmem:[%s1 + $0xd0] sm:$0xf]
      %v1593 = vld [vmem:[%s1 + $0xd4] sm:$0xf]
      %v1594 = vld [vmem:[%s1 + $0xd8] sm:$0xf]
      %v1595 = vld [vmem:[%s1 + $0xdc] sm:$0xf]
      %v1596 = vld [vmem:[%s1 + $0xe0] sm:$0xf]
      %v1597 = vld [vmem:[%s1 + $0xe4] sm:$0xf]
      %v1598 = vld [vmem:[%s1 + $0xe8] sm:$0xf]
      %v1599 = vld [vmem:[%s1 + $0xec] sm:$0xf]
      %v1600 = vld [vmem:[%s1 + $0xf0] sm:$0xf]
      %v1601 = vld [vmem:[%s1 + $0xf4] sm:$0xf]
      %v1602 = vld [vmem:[%s1 + $0xf8] sm:$0xf]
      %v1603 = vld [vmem:[%s1 + $0xfc] sm:$0xf]
      %v1604 = vld [vmem:[%s1 + $0x100] sm:$0xf]
      %v1605 = vld [vmem:[%s1 + $0x104] sm:$0xf]
      %v1606 = vld [vmem:[%s1 + $0x108] sm:$0xf]
      %v1607 = vld [vmem:[%s1 + $0x10c] sm:$0xf]
      %v1608 = vld [vmem:[%s1 + $0x110] sm:$0xf]
      %v1609 = vld [vmem:[%s1 + $0x114] sm:$0xf]
      %v1610 = vld [vmem:[%s1 + $0x118] sm:$0xf]
      %v1611 = vld [vmem:[%s1 + $0x11c] sm:$0xf]
      %v1612 = vld [vmem:[%s1 + $0x120] sm:$0xf]
      %v1613 = vld [vmem:[%s1 + $0x124] sm:$0xf]
      %v1614 = vld [vmem:[%s1 + $0x128] sm:$0xf]
      %v1615 = vld [vmem:[%s1 + $0x12c] sm:$0xf]
      %v1616 = vld [vmem:[%s1 + $0x130] sm:$0xf]
      %v1617 = vld [vmem:[%s1 + $0x134] sm:$0xf]
      %v1618 = vld [vmem:[%s1 + $0x138] sm:$0xf]
      %v1619 = vld [vmem:[%s1 + $0x13c] sm:$0xf]
      %v1620 = vld [vmem:[%s1 + $0x140] sm:$0xf]
      %v1621 = vld [vmem:[%s1 + $0x144] sm:$0xf]
      %v1622 = vld [vmem:[%s1 + $0x148] sm:$0xf]
      %v1623 = vld [vmem:[%s1 + $0x14c] sm:$0xf]
      %v1624 = vld [vmem:[%s1 + $0x150] sm:$0xf]
      %v1625 = vld [vmem:[%s1 + $0x154] sm:$0xf]
      %v1626 = vld [vmem:[%s1 + $0x158] sm:$0xf]
      %v1627 = vld [vmem:[%s1 + $0x15c] sm:$0xf]
      %v1628 = vld [vmem:[%s1 + $0x160] sm:$0xf]
      %v1629 = vld [vmem:[%s1 + $0x164] sm:$0xf]
      %v1630 = vld [vmem:[%s1 + $0x168] sm:$0xf]
      %v1631 = vld [vmem:[%s1 + $0x16c] sm:$0xf]
      %v1632 = vld [vmem:[%s1 + $0x170] sm:$0xf]
      %v1633 = vld [vmem:[%s1 + $0x174] sm:$0xf]
      %v1634 = vld [vmem:[%s1 + $0x178] sm:$0xf]
      %v1635 = vld [vmem:[%s1 + $0x17c] sm:$0xf]
      %v1636 = vld [vmem:[%s1 + $0x180] sm:$0xf]
      %v1637 = vld [vmem:[%s1 + $0x184] sm:$0xf]
      %v1638 = vld [vmem:[%s1 + $0x188] sm:$0xf]
      %v1639 = vld [vmem:[%s1 + $0x18c] sm:$0xf]
      %v1640 = vld [vmem:[%s1 + $0x190] sm:$0xf]
      %v1641 = vld [vmem:[%s1 + $0x194] sm:$0xf]
      %v1642 = vld [vmem:[%s1 + $0x198] sm:$0xf]
      %v1643 = vld [vmem:[%s1 + $0x19c] sm:$0xf]
      %v1644 = vld [vmem:[%s1 + $0x1a0] sm:$0xf]
      %v1645 = vld [vmem:[%s1 + $0x1a4] sm:$0xf]
      %v1646 = vld [vmem:[%s1 + $0x1a8] sm:$0xf]
      %v1647 = vld [vmem:[%s1 + $0x1ac] sm:$0xf]
      %v1648 = vld [vmem:[%s1 + $0x1b0] sm:$0xf]
      %v1649 = vld [vmem:[%s1 + $0x1b4] sm:$0xf]
      %v1650 = vld [vmem:[%s1 + $0x1b8] sm:$0xf]
      %v1651 = vld [vmem:[%s1 + $0x1bc] sm:$0xf]
      %v1652 = vld [vmem:[%s1 + $0x1c0] sm:$0xf]
      %v1653 = vld [vmem:[%s1 + $0x1c4] sm:$0xf]
      %v1654 = vld [vmem:[%s1 + $0x1c8] sm:$0xf]
      %v1655 = vld [vmem:[%s1 + $0x1cc] sm:$0xf]
      %v1656 = vld [vmem:[%s1 + $0x1d0] sm:$0xf]
      %v1657 = vld [vmem:[%s1 + $0x1d4] sm:$0xf]
      %v1658 = vld [vmem:[%s1 + $0x1d8] sm:$0xf]
      %v1659 = vld [vmem:[%s1 + $0x1dc] sm:$0xf]
      %v1660 = vld [vmem:[%s1 + $0x1e0] sm:$0xf]
      %v1661 = vld [vmem:[%s1 + $0x1e4] sm:$0xf]
      %v1662 = vld [vmem:[%s1 + $0x1e8] sm:$0xf]
      %v1663 = vld [vmem:[%s1 + $0x1ec] sm:$0xf]
      %v1664 = vld [vmem:[%s1 + $0x1f0] sm:$0xf]
      %v1665 = vld [vmem:[%s1 + $0x1f4] sm:$0xf]
      %v1666 = vld [vmem:[%s1 + $0x1f8] sm:$0xf]
      %v1667 = vld [vmem:[%s1 + $0x1fc] sm:$0xf]
      %v1668 = vld [vmem:[%s1 + $0x200] sm:$0xf]
      %v1669 = vld [vmem:[%s1 + $0x204] sm:$0xf]
      %v1670 = vld [vmem:[%s1 + $0x208] sm:$0xf]
      %v1671 = vld [vmem:[%s1 + $0x20c] sm:$0xf]
      %v1672 = vld [vmem:[%s1 + $0x210] sm:$0xf]
      %v1673 = vld [vmem:[%s1 + $0x214] sm:$0xf]
      %v1674 = vld [vmem:[%s1 + $0x218] sm:$0xf]
      %v1675 = vld [vmem:[%s1 + $0x21c] sm:$0xf]
      %v1676 = vld [vmem:[%s1 + $0x220] sm:$0xf]
      %v1677 = vld [vmem:[%s1 + $0x224] sm:$0xf]
      %v1678 = vld [vmem:[%s1 + $0x228] sm:$0xf]
      %v1679 = vld [vmem:[%s1 + $0x22c] sm:$0xf]
      %v1680 = vld [vmem:[%s1 + $0x230] sm:$0xf]
      %v1681 = vld [vmem:[%s1 + $0x234] sm:$0xf]
      %v1682 = vld [vmem:[%s1 + $0x238] sm:$0xf]
      %v1683 = vld [vmem:[%s1 + $0x23c] sm:$0xf]
      %v1684 = vld [vmem:[%s2] sm:$0x1]
      %v1686 = vlaneseq
      %v1687 = vshrl.u32 %v1686, 7
      %v1688 = vsub.s32 0, %v1687
      %v1689 = vrot.slane %v1684, %v1688
      %v1835 = vunpack.c.l.b16 %v1540
      %v1836 = vunpack.c.l.b16 %v1541
      %v1837 = vunpack.c.l.b16 %v1542
      %v1838 = vunpack.c.l.b16 %v1543
      %v1839 = vunpack.c.l.b16 %v1544
      %v1840 = vunpack.c.l.b16 %v1545
      %v1841 = vunpack.c.l.b16 %v1546
      %v1842 = vunpack.c.l.b16 %v1547
      %v1843 = vunpack.c.l.b16 %v1548
      %v1844 = vunpack.c.l.b16 %v1549
      %v1845 = vunpack.c.l.b16 %v1550
      %v1846 = vunpack.c.l.b16 %v1551
      %v1847 = vunpack.c.l.b16 %v1552
      %v1848 = vunpack.c.l.b16 %v1553
      %v1849 = vunpack.c.l.b16 %v1554
      %v1850 = vunpack.c.l.b16 %v1555
      %v1851 = vunpack.c.l.b16 %v1556
      %v1852 = vunpack.c.l.b16 %v1557
      %v1853 = vunpack.c.l.b16 %v1558
      %v1854 = vunpack.c.l.b16 %v1559
      %v1855 = vunpack.c.l.b16 %v1560
      %v1856 = vunpack.c.l.b16 %v1561
      %v1857 = vunpack.c.l.b16 %v1562
      %v1858 = vunpack.c.l.b16 %v1563
      %v1859 = vunpack.c.l.b16 %v1564
      %v1860 = vunpack.c.l.b16 %v1565
      %v1861 = vunpack.c.l.b16 %v1566
      %v1862 = vunpack.c.l.b16 %v1567
      %v1863 = vunpack.c.l.b16 %v1568
      %v1864 = vunpack.c.l.b16 %v1569
      %v1865 = vunpack.c.l.b16 %v1570
      %v1866 = vunpack.c.l.b16 %v1571
      %v1867 = vunpack.c.l.b16 %v1572
      %v1868 = vunpack.c.l.b16 %v1573
      %v1869 = vunpack.c.l.b16 %v1574
      %v1870 = vunpack.c.l.b16 %v1575
      %v1871 = vunpack.c.l.b16 %v1576
      %v1872 = vunpack.c.l.b16 %v1577
      %v1873 = vunpack.c.l.b16 %v1578
      %v1874 = vunpack.c.l.b16 %v1579
      %v1875 = vunpack.c.l.b16 %v1580
      %v1876 = vunpack.c.l.b16 %v1581
      %v1877 = vunpack.c.l.b16 %v1582
      %v1878 = vunpack.c.l.b16 %v1583
      %v1879 = vunpack.c.l.b16 %v1584
      %v1880 = vunpack.c.l.b16 %v1585
      %v1881 = vunpack.c.l.b16 %v1586
      %v1882 = vunpack.c.l.b16 %v1587
      %v1883 = vunpack.c.l.b16 %v1588
      %v1884 = vunpack.c.l.b16 %v1589
      %v1885 = vunpack.c.l.b16 %v1590
      %v1886 = vunpack.c.l.b16 %v1591
      %v1887 = vunpack.c.l.b16 %v1592
      %v1888 = vunpack.c.l.b16 %v1593
      %v1889 = vunpack.c.l.b16 %v1594
      %v1890 = vunpack.c.l.b16 %v1595
      %v1891 = vunpack.c.l.b16 %v1596
      %v1892 = vunpack.c.l.b16 %v1597
      %v1893 = vunpack.c.l.b16 %v1598
      %v1894 = vunpack.c.l.b16 %v1599
      %v1895 = vunpack.c.l.b16 %v1600
      %v1896 = vunpack.c.l.b16 %v1601
      %v1897 = vunpack.c.l.b16 %v1602
      %v1898 = vunpack.c.l.b16 %v1603
      %v1899 = vunpack.c.l.b16 %v1604
      %v1900 = vunpack.c.l.b16 %v1605
      %v1901 = vunpack.c.l.b16 %v1606
      %v1902 = vunpack.c.l.b16 %v1607
      %v1903 = vunpack.c.l.b16 %v1608
      %v1904 = vunpack.c.l.b16 %v1609
      %v1905 = vunpack.c.l.b16 %v1610
      %v1906 = vunpack.c.l.b16 %v1611
      %v1907 = vunpack.c.l.b16 %v1612
      %v1908 = vunpack.c.l.b16 %v1613
      %v1909 = vunpack.c.l.b16 %v1614
      %v1910 = vunpack.c.l.b16 %v1615
      %v1911 = vunpack.c.l.b16 %v1616
      %v1912 = vunpack.c.l.b16 %v1617
      %v1913 = vunpack.c.l.b16 %v1618
      %v1914 = vunpack.c.l.b16 %v1619
      %v1915 = vunpack.c.l.b16 %v1620
      %v1916 = vunpack.c.l.b16 %v1621
      %v1917 = vunpack.c.l.b16 %v1622
      %v1918 = vunpack.c.l.b16 %v1623
      %v1919 = vunpack.c.l.b16 %v1624
      %v1920 = vunpack.c.l.b16 %v1625
      %v1921 = vunpack.c.l.b16 %v1626
      %v1922 = vunpack.c.l.b16 %v1627
      %v1923 = vunpack.c.l.b16 %v1628
      %v1924 = vunpack.c.l.b16 %v1629
      %v1925 = vunpack.c.l.b16 %v1630
      %v1926 = vunpack.c.l.b16 %v1631
      %v1927 = vunpack.c.l.b16 %v1632
      %v1928 = vunpack.c.l.b16 %v1633
      %v1929 = vunpack.c.l.b16 %v1634
      %v1930 = vunpack.c.l.b16 %v1635
      %v1931 = vunpack.c.l.b16 %v1636
      %v1932 = vunpack.c.l.b16 %v1637
      %v1933 = vunpack.c.l.b16 %v1638
      %v1934 = vunpack.c.l.b16 %v1639
      %v1935 = vunpack.c.l.b16 %v1640
      %v1936 = vunpack.c.l.b16 %v1641
      %v1937 = vunpack.c.l.b16 %v1642
      %v1938 = vunpack.c.l.b16 %v1643
      %v1939 = vunpack.c.l.b16 %v1644
      %v1940 = vunpack.c.l.b16 %v1645
      %v1941 = vunpack.c.l.b16 %v1646
      %v1942 = vunpack.c.l.b16 %v1647
      %v1943 = vunpack.c.l.b16 %v1648
      %v1944 = vunpack.c.l.b16 %v1649
      %v1945 = vunpack.c.l.b16 %v1650
      %v1946 = vunpack.c.l.b16 %v1651
      %v1947 = vunpack.c.l.b16 %v1652
      %v1948 = vunpack.c.l.b16 %v1653
      %v1949 = vunpack.c.l.b16 %v1654
      %v1950 = vunpack.c.l.b16 %v1655
      %v1951 = vunpack.c.l.b16 %v1656
      %v1952 = vunpack.c.l.b16 %v1657
      %v1953 = vunpack.c.l.b16 %v1658
      %v1954 = vunpack.c.l.b16 %v1659
      %v1955 = vunpack.c.l.b16 %v1660
      %v1956 = vunpack.c.l.b16 %v1661
      %v1957 = vunpack.c.l.b16 %v1662
      %v1958 = vunpack.c.l.b16 %v1663
      %v1959 = vunpack.c.l.b16 %v1664
      %v1960 = vunpack.c.l.b16 %v1665
      %v1961 = vunpack.c.l.b16 %v1666
      %v1962 = vunpack.c.l.b16 %v1667
      %v1963 = vunpack.c.l.b16 %v1668
      %v1964 = vunpack.c.l.b16 %v1669
      %v1965 = vunpack.c.l.b16 %v1670
      %v1966 = vunpack.c.l.b16 %v1671
      %v1967 = vunpack.c.l.b16 %v1672
      %v1968 = vunpack.c.l.b16 %v1673
      %v1969 = vunpack.c.l.b16 %v1674
      %v1970 = vunpack.c.l.b16 %v1675
      %v1971 = vunpack.c.l.b16 %v1676
      %v1972 = vunpack.c.l.b16 %v1677
      %v1973 = vunpack.c.l.b16 %v1678
      %v1974 = vunpack.c.l.b16 %v1679
      %v1975 = vunpack.c.l.b16 %v1680
      %v1976 = vunpack.c.l.b16 %v1681
      %v1977 = vunpack.c.l.b16 %v1682
      %v1978 = vunpack.c.l.b16 %v1683
      %v1979 = vpack.c.b16 %v1836, %v1835
      %v1980 = vpack.c.b16 %v1838, %v1837
      %v1981 = vpack.c.b16 %v1840, %v1839
      %v1982 = vpack.c.b16 %v1842, %v1841
      %v1983 = vpack.c.b16 %v1844, %v1843
      %v1984 = vpack.c.b16 %v1846, %v1845
      %v1985 = vpack.c.b16 %v1848, %v1847
      %v1986 = vpack.c.b16 %v1850, %v1849
      %v1987 = vpack.c.b16 %v1852, %v1851
      %v1988 = vpack.c.b16 %v1854, %v1853
      %v1989 = vpack.c.b16 %v1856, %v1855
      %v1990 = vpack.c.b16 %v1858, %v1857
      %v1991 = vpack.c.b16 %v1860, %v1859
      %v1992 = vpack.c.b16 %v1862, %v1861
      %v1993 = vpack.c.b16 %v1864, %v1863
      %v1994 = vpack.c.b16 %v1866, %v1865
      %v1995 = vpack.c.b16 %v1868, %v1867
      %v1996 = vpack.c.b16 %v1870, %v1869
      %v1997 = vpack.c.b16 %v1872, %v1871
      %v1998 = vpack.c.b16 %v1874, %v1873
      %v1999 = vpack.c.b16 %v1876, %v1875
      %v2000 = vpack.c.b16 %v1878, %v1877
      %v2001 = vpack.c.b16 %v1880, %v1879
      %v2002 = vpack.c.b16 %v1882, %v1881
      %v2003 = vpack.c.b16 %v1884, %v1883
      %v2004 = vpack.c.b16 %v1886, %v1885
      %v2005 = vpack.c.b16 %v1888, %v1887
      %v2006 = vpack.c.b16 %v1890, %v1889
      %v2007 = vpack.c.b16 %v1892, %v1891
      %v2008 = vpack.c.b16 %v1894, %v1893
      %v2009 = vpack.c.b16 %v1896, %v1895
      %v2010 = vpack.c.b16 %v1898, %v1897
      %v2011 = vpack.c.b16 %v1900, %v1899
      %v2012 = vpack.c.b16 %v1902, %v1901
      %v2013 = vpack.c.b16 %v1904, %v1903
      %v2014 = vpack.c.b16 %v1906, %v1905
      %v2015 = vpack.c.b16 %v1908, %v1907
      %v2016 = vpack.c.b16 %v1910, %v1909
      %v2017 = vpack.c.b16 %v1912, %v1911
      %v2018 = vpack.c.b16 %v1914, %v1913
      %v2019 = vpack.c.b16 %v1916, %v1915
      %v2020 = vpack.c.b16 %v1918, %v1917
      %v2021 = vpack.c.b16 %v1920, %v1919
      %v2022 = vpack.c.b16 %v1922, %v1921
      %v2023 = vpack.c.b16 %v1924, %v1923
      %v2024 = vpack.c.b16 %v1926, %v1925
      %v2025 = vpack.c.b16 %v1928, %v1927
      %v2026 = vpack.c.b16 %v1930, %v1929
      %v2027 = vpack.c.b16 %v1932, %v1931
      %v2028 = vpack.c.b16 %v1934, %v1933
      %v2029 = vpack.c.b16 %v1936, %v1935
      %v2030 = vpack.c.b16 %v1938, %v1937
      %v2031 = vpack.c.b16 %v1940, %v1939
      %v2032 = vpack.c.b16 %v1942, %v1941
      %v2033 = vpack.c.b16 %v1944, %v1943
      %v2034 = vpack.c.b16 %v1946, %v1945
      %v2035 = vpack.c.b16 %v1948, %v1947
      %v2036 = vpack.c.b16 %v1950, %v1949
      %v2037 = vpack.c.b16 %v1952, %v1951
      %v2038 = vpack.c.b16 %v1954, %v1953
      %v2039 = vpack.c.b16 %v1956, %v1955
      %v2040 = vpack.c.b16 %v1958, %v1957
      %v2041 = vpack.c.b16 %v1960, %v1959
      %v2042 = vpack.c.b16 %v1962, %v1961
      %v2043 = vpack.c.b16 %v1964, %v1963
      %v2044 = vpack.c.b16 %v1966, %v1965
      %v2045 = vpack.c.b16 %v1968, %v1967
      %v2046 = vpack.c.b16 %v1970, %v1969
      %v2047 = vpack.c.b16 %v1972, %v1971
      %v2048 = vpack.c.b16 %v1974, %v1973
      %v2049 = vpack.c.b16 %v1976, %v1975
      %v2050 = vpack.c.b16 %v1978, %v1977
      %2123 = vmatprep.subr.bf16.mxu0 0
      %2124 = vmatpush1.bf16.msra.mxu0 %v1979
      %2125 = vmatprep.subr.bf16.mxu0 0
      %2126 = vmatpush1.bf16.msra.mxu0 %v1980
      %2127 = vmatprep.subr.bf16.mxu0 0
      %2128 = vmatpush1.bf16.msra.mxu0 %v1981
      %2129 = vmatprep.subr.bf16.mxu0 0
      %2130 = vmatpush1.bf16.msra.mxu0 %v1982
      %2131 = vmatprep.subr.bf16.mxu0 0
      %2132 = vmatpush1.bf16.msra.mxu0 %v1983
      %2133 = vmatprep.subr.bf16.mxu0 0
      %2134 = vmatpush1.bf16.msra.mxu0 %v1984
      %2135 = vmatprep.subr.bf16.mxu0 0
      %2136 = vmatpush1.bf16.msra.mxu0 %v1985
      %2137 = vmatprep.subr.bf16.mxu0 0
      %2138 = vmatpush1.bf16.msra.mxu0 %v1986
      %2139 = vmatprep.subr.bf16.mxu0 0
      %2140 = vmatpush1.bf16.msra.mxu0 %v1987
      %2141 = vmatprep.subr.bf16.mxu0 0
      %2142 = vmatpush1.bf16.msra.mxu0 %v1988
      %2143 = vmatprep.subr.bf16.mxu0 0
      %2144 = vmatpush1.bf16.msra.mxu0 %v1989
      %2145 = vmatprep.subr.bf16.mxu0 0
      %2146 = vmatpush1.bf16.msra.mxu0 %v1990
      %2147 = vmatprep.subr.bf16.mxu0 0
      %2148 = vmatpush1.bf16.msra.mxu0 %v1991
      %2149 = vmatprep.subr.bf16.mxu0 0
      %2150 = vmatpush1.bf16.msra.mxu0 %v1992
      %2151 = vmatprep.subr.bf16.mxu0 0
      %2152 = vmatpush1.bf16.msra.mxu0 %v1993
      %2153 = vmatprep.subr.bf16.mxu0 0
      %2154 = vmatpush1.bf16.msra.mxu0 %v1994
      %2155 = vmatprep.mubr.bf16.mxu0 %v1229
      %2156 = vmatmul.mubr.bf16.gmra.mrb[0].mxu0 0
      %v2157 = vpop.f32.mrb[0].mxu0
      %v2158 = vadd.f32 %v1689, %v2157
      %v2159 = vpop.f32.mrb[0].mxu0
      %v2160 = vpop.f32.mrb[0].mxu0
      %v2161 = vadd.f32 %v1689, %v2160
      %v2162 = vpop.f32.mrb[0].mxu0
      %2163 = vmatprep.mubr.bf16.mxu0 %v1241
      %2164 = vmatmul.mubr.bf16.gmra.mrb[0].mxu0 %v1189
      %v2165 = vpop.f32.mrb[0].mxu0
      %v2166 = vadd.f32 %v1689, %v2165
      %v2167 = vpop.f32.mrb[0].mxu0
      %v2168 = vpop.f32.mrb[0].mxu0
      %v2169 = vadd.f32 %v1689, %v2168
      %v2170 = vpop.f32.mrb[0].mxu0
      %2171 = vmatprep.mubr.bf16.mxu0 %v1253
      %2172 = vmatmul.mubr.bf16.gmra.mrb[0].mxu0 %v1190
      %v2173 = vpop.f32.mrb[0].mxu0
      %v2174 = vadd.f32 %v1689, %v2173
      %v2175 = vpop.f32.mrb[0].mxu0
      %v2176 = vpop.f32.mrb[0].mxu0
      %v2177 = vadd.f32 %v1689, %v2176
      %v2178 = vpop.f32.mrb[0].mxu0
      %2179 = vmatprep.mubr.bf16.mxu0 %v1265
      %2180 = vmatmul.mubr.bf16.gmra.mrb[0].mxu0 %v1191
      %v2181 = vpop.f32.mrb[0].mxu0
      %v2182 = vadd.f32 %v1689, %v2181
      %v2183 = vpop.f32.mrb[0].mxu0
      %v2184 = vpop.f32.mrb[0].mxu0
      %v2185 = vadd.f32 %v1689, %v2184
      %v2186 = vpop.f32.mrb[0].mxu0
      %2187 = vmatprep.mubr.bf16.mxu0 %v1277
      %2188 = vmatmul.mubr.bf16.gmra.mrb[0].mxu0 %v1192
      %v2189 = vpop.f32.mrb[0].mxu0
      %v2190 = vadd.f32 %v1689, %v2189
      %v2191 = vpop.f32.mrb[0].mxu0
      %v2192 = vpop.f32.mrb[0].mxu0
      %v2193 = vadd.f32 %v1689, %v2192
      %v2194 = vpop.f32.mrb[0].mxu0
      %2195 = vmatprep.mubr.bf16.mxu0 %v1289
      %2196 = vmatmul.mubr.bf16.gmra.mrb[0].mxu0 %v1193
      %v2197 = vpop.f32.mrb[0].mxu0
      %v2198 = vadd.f32 %v1689, %v2197
      %v2199 = vpop.f32.mrb[0].mxu0
      %v2200 = vpop.f32.mrb[0].mxu0
      %v2201 = vadd.f32 %v1689, %v2200
      %v2202 = vpop.f32.mrb[0].mxu0
      %2203 = vmatprep.mubr.bf16.mxu0 %v1301
      %2204 = vmatmul.mubr.bf16.gmra.mrb[0].mxu0 %v1194
      %v2205 = vpop.f32.mrb[0].mxu0
      %v2206 = vadd.f32 %v1689, %v2205
      %v2207 = vpop.f32.mrb[0].mxu0
      %v2208 = vpop.f32.mrb[0].mxu0
      %v2209 = vadd.f32 %v1689, %v2208
      %v2210 = vpop.f32.mrb[0].mxu0
      %2211 = vmatprep.mubr.bf16.mxu0 %v1313
      %2212 = vmatmul.mubr.bf16.gmra.mrb[0].mxu0 %v1195
      %v2213 = vpop.f32.mrb[0].mxu0
      %v2214 = vadd.f32 %v1689, %v2213
      %v2215 = vpop.f32.mrb[0].mxu0
      %v2216 = vpop.f32.mrb[0].mxu0
      %v2217 = vadd.f32 %v1689, %v2216
      %v2218 = vpop.f32.mrb[0].mxu0
      %2219 = vmatprep.mubr.bf16.mxu0 %v1325
      %2220 = vmatmul.mubr.bf16.gmra.mrb[0].mxu0 %v1196
      %v2221 = vpop.f32.mrb[0].mxu0
      %v2222 = vadd.f32 %v1689, %v2221
      %v2223 = vpop.f32.mrb[0].mxu0
      %v2224 = vpop.f32.mrb[0].mxu0
      %v2225 = vadd.f32 %v1689, %v2224
      %v2226 = vpop.f32.mrb[0].mxu0
      %2227 = vmatprep.mubr.bf16.mxu0 %v1337
      %2228 = vmatmul.mubr.bf16.gmra.mrb[0].mxu0 %v1197
      %v2229 = vpop.f32.mrb[0].mxu0
      %v2230 = vadd.f32 %v1689, %v2229
      %v2231 = vpop.f32.mrb[0].mxu0
      %v2232 = vpop.f32.mrb[0].mxu0
      %v2233 = vadd.f32 %v1689, %v2232
      %v2234 = vpop.f32.mrb[0].mxu0
      %2235 = vmatprep.mubr.bf16.mxu0 %v1349
      %2236 = vmatmul.mubr.bf16.gmra.mrb[0].mxu0 %v1198
      %v2237 = vpop.f32.mrb[0].mxu0
      %v2238 = vadd.f32 %v1689, %v2237
      %v2239 = vpop.f32.mrb[0].mxu0
      %v2240 = vpop.f32.mrb[0].mxu0
      %v2241 = vadd.f32 %v1689, %v2240
      %v2242 = vpop.f32.mrb[0].mxu0
      %2243 = vmatprep.mubr.bf16.mxu0 %v1361
      %2244 = vmatmul.mubr.bf16.gmra.mrb[0].mxu0 %v1199
      %v2245 = vpop.f32.mrb[0].mxu0
      %v2246 = vadd.f32 %v1689, %v2245
      %v2247 = vpop.f32.mrb[0].mxu0
      %v2248 = vpop.f32.mrb[0].mxu0
      %v2249 = vadd.f32 %v1689, %v2248
      %v2250 = vpop.f32.mrb[0].mxu0
      %2251 = vmatprep.mubr.bf16.mxu0 %v1373
      %2252 = vmatmul.mubr.bf16.gmra.mrb[0].mxu0 %v1200
      %v2253 = vpop.f32.mrb[0].mxu0
      %v2254 = vadd.f32 %v1689, %v2253
      %v2255 = vpop.f32.mrb[0].mxu0
      %v2256 = vpop.f32.mrb[0].mxu0
      %v2257 = vadd.f32 %v1689, %v2256
      %v2258 = vpop.f32.mrb[0].mxu0
      %2259 = vmatprep.mubr.bf16.mxu0 %v1385
      %2260 = vmatmul.mubr.bf16.gmra.mrb[0].mxu0 %v1201
      %v2261 = vpop.f32.mrb[0].mxu0
      %v2262 = vadd.f32 %v1689, %v2261
      %v2263 = vpop.f32.mrb[0].mxu0
      %v2264 = vpop.f32.mrb[0].mxu0
      %v2265 = vadd.f32 %v1689, %v2264
      %v2266 = vpop.f32.mrb[0].mxu0
      %2267 = vmatprep.mubr.bf16.mxu0 %v1397
      %2268 = vmatmul.mubr.bf16.gmra.mrb[0].mxu0 %v1202
      %v2269 = vpop.f32.mrb[0].mxu0
      %v2270 = vadd.f32 %v1689, %v2269
      %v2271 = vpop.f32.mrb[0].mxu0
      %v2272 = vpop.f32.mrb[0].mxu0
      %v2273 = vadd.f32 %v1689, %v2272
      %v2274 = vpop.f32.mrb[0].mxu0
      %2275 = vmatprep.mubr.bf16.mxu0 %v1409
      %2276 = vmatmul.mubr.bf16.gmra.mrb[0].mxu0 %v1203
      %v2277 = vpop.f32.mrb[0].mxu0
      %v2278 = vadd.f32 %v1689, %v2277
      %v2279 = vpop.f32.mrb[0].mxu0
      %v2280 = vpop.f32.mrb[0].mxu0
      %v2281 = vadd.f32 %v1689, %v2280
      %v2282 = vpop.f32.mrb[0].mxu0
      %2283 = vdwg.mxu0
      %2284 = vmatprep.subr.bf16.mxu0 0
      %2285 = vmatpush1.bf16.msra.mxu0 %v1995
      %2286 = vmatprep.subr.bf16.mxu0 0
      %2287 = vmatpush1.bf16.msra.mxu0 %v1996
      %2288 = vmatprep.subr.bf16.mxu0 0
      %2289 = vmatpush1.bf16.msra.mxu0 %v1997
      %2290 = vmatprep.subr.bf16.mxu0 0
      %2291 = vmatpush1.bf16.msra.mxu0 %v1998
      %2292 = vmatprep.subr.bf16.mxu0 0
      %2293 = vmatpush1.bf16.msra.mxu0 %v1999
      %2294 = vmatprep.subr.bf16.mxu0 0
      %2295 = vmatpush1.bf16.msra.mxu0 %v2000
      %2296 = vmatprep.subr.bf16.mxu0 0
      %2297 = vmatpush1.bf16.msra.mxu0 %v2001
      %2298 = vmatprep.subr.bf16.mxu0 0
      %2299 = vmatpush1.bf16.msra.mxu0 %v2002
      %2300 = vmatprep.subr.bf16.mxu0 0
      %2301 = vmatpush1.bf16.msra.mxu0 %v2003
      %2302 = vmatprep.subr.bf16.mxu0 0
      %2303 = vmatpush1.bf16.msra.mxu0 %v2004
      %2304 = vmatprep.subr.bf16.mxu0 0
      %2305 = vmatpush1.bf16.msra.mxu0 %v2005
      %2306 = vmatprep.subr.bf16.mxu0 0
      %2307 = vmatpush1.bf16.msra.mxu0 %v2006
      %2308 = vmatprep.subr.bf16.mxu0 0
      %2309 = vmatpush1.bf16.msra.mxu0 %v2007
      %2310 = vmatprep.subr.bf16.mxu0 0
      %2311 = vmatpush1.bf16.msra.mxu0 %v2008
      %2312 = vmatprep.subr.bf16.mxu0 0
      %2313 = vmatpush1.bf16.msra.mxu0 %v2009
      %2314 = vmatprep.subr.bf16.mxu0 0
      %2315 = vmatpush1.bf16.msra.mxu0 %v2010
      %2316 = vmatprep.mubr.bf16.mxu0 %v1189
      %2317 = vmatmul.mubr.bf16.gmra.mrb[0].mxu0 %v1459
      %v2318 = vpop.f32.mrb[0].mxu0
      %v2319 = vadd.f32 %v2158, %v2318
      %v2320 = vpop.f32.mrb[0].mxu0
      %v2321 = vpop.f32.mrb[0].mxu0
      %v2322 = vadd.f32 %v2161, %v2321
      %v2323 = vpop.f32.mrb[0].mxu0
      %2324 = vmatprep.mubr.bf16.mxu0 %v1190
      %2325 = vmatmul.mubr.bf16.gmra.mrb[0].mxu0 %v1462
      %v2326 = vpop.f32.mrb[0].mxu0
      %v2327 = vadd.f32 %v2166, %v2326
      %v2328 = vpop.f32.mrb[0].mxu0
      %v2329 = vpop.f32.mrb[0].mxu0
      %v2330 = vadd.f32 %v2169, %v2329
      %v2331 = vpop.f32.mrb[0].mxu0
      %2332 = vmatprep.mubr.bf16.mxu0 %v1191
      %2333 = vmatmul.mubr.bf16.gmra.mrb[0].mxu0 %v1465
      %v2334 = vpop.f32.mrb[0].mxu0
      %v2335 = vadd.f32 %v2174, %v2334
      %v2336 = vpop.f32.mrb[0].mxu0
      %v2337 = vpop.f32.mrb[0].mxu0
      %v2338 = vadd.f32 %v2177, %v2337
      %v2339 = vpop.f32.mrb[0].mxu0
      %2340 = vmatprep.mubr.bf16.mxu0 %v1192
      %2341 = vmatmul.mubr.bf16.gmra.mrb[0].mxu0 %v1468
      %v2342 = vpop.f32.mrb[0].mxu0
      %v2343 = vadd.f32 %v2182, %v2342
      %v2344 = vpop.f32.mrb[0].mxu0
      %v2345 = vpop.f32.mrb[0].mxu0
      %v2346 = vadd.f32 %v2185, %v2345
      %v2347 = vpop.f32.mrb[0].mxu0
      %2348 = vmatprep.mubr.bf16.mxu0 %v1193
      %2349 = vmatmul.mubr.bf16.gmra.mrb[0].mxu0 %v1471
      %v2350 = vpop.f32.mrb[0].mxu0
      %v2351 = vadd.f32 %v2190, %v2350
      %v2352 = vpop.f32.mrb[0].mxu0
      %v2353 = vpop.f32.mrb[0].mxu0
      %v2354 = vadd.f32 %v2193, %v2353
      %v2355 = vpop.f32.mrb[0].mxu0
      %2356 = vmatprep.mubr.bf16.mxu0 %v1194
      %2357 = vmatmul.mubr.bf16.gmra.mrb[0].mxu0 %v1474
      %v2358 = vpop.f32.mrb[0].mxu0
      %v2359 = vadd.f32 %v2198, %v2358
      %v2360 = vpop.f32.mrb[0].mxu0
      %v2361 = vpop.f32.mrb[0].mxu0
      %v2362 = vadd.f32 %v2201, %v2361
      %v2363 = vpop.f32.mrb[0].mxu0
      %2364 = vmatprep.mubr.bf16.mxu0 %v1195
      %2365 = vmatmul.mubr.bf16.gmra.mrb[0].mxu0 %v1477
      %v2366 = vpop.f32.mrb[0].mxu0
      %v2367 = vadd.f32 %v2206, %v2366
      %v2368 = vpop.f32.mrb[0].mxu0
      %v2369 = vpop.f32.mrb[0].mxu0
      %v2370 = vadd.f32 %v2209, %v2369
      %v2371 = vpop.f32.mrb[0].mxu0
      %2372 = vmatprep.mubr.bf16.mxu0 %v1196
      %2373 = vmatmul.mubr.bf16.gmra.mrb[0].mxu0 %v1480
      %v2374 = vpop.f32.mrb[0].mxu0
      %v2375 = vadd.f32 %v2214, %v2374
      %v2376 = vpop.f32.mrb[0].mxu0
      %v2377 = vpop.f32.mrb[0].mxu0
      %v2378 = vadd.f32 %v2217, %v2377
      %v2379 = vpop.f32.mrb[0].mxu0
      %2380 = vmatprep.mubr.bf16.mxu0 %v1197
      %2381 = vmatmul.mubr.bf16.gmra.mrb[0].mxu0 %v1483
      %v2382 = vpop.f32.mrb[0].mxu0
      %v2383 = vadd.f32 %v2222, %v2382
      %v2384 = vpop.f32.mrb[0].mxu0
      %v2385 = vpop.f32.mrb[0].mxu0
      %v2386 = vadd.f32 %v2225, %v2385
      %v2387 = vpop.f32.mrb[0].mxu0
      %2388 = vmatprep.mubr.bf16.mxu0 %v1198
      %2389 = vmatmul.mubr.bf16.gmra.mrb[0].mxu0 %v1486
      %v2390 = vpop.f32.mrb[0].mxu0
      %v2391 = vadd.f32 %v2230, %v2390
      %v2392 = vpop.f32.mrb[0].mxu0
      %v2393 = vpop.f32.mrb[0].mxu0
      %v2394 = vadd.f32 %v2233, %v2393
      %v2395 = vpop.f32.mrb[0].mxu0
      %2396 = vmatprep.mubr.bf16.mxu0 %v1199
      %2397 = vmatmul.mubr.bf16.gmra.mrb[0].mxu0 %v1489
      %v2398 = vpop.f32.mrb[0].mxu0
      %v2399 = vadd.f32 %v2238, %v2398
      %v2400 = vpop.f32.mrb[0].mxu0
      %v2401 = vpop.f32.mrb[0].mxu0
      %v2402 = vadd.f32 %v2241, %v2401
      %v2403 = vpop.f32.mrb[0].mxu0
      %2404 = vmatprep.mubr.bf16.mxu0 %v1200
      %2405 = vmatmul.mubr.bf16.gmra.mrb[0].mxu0 %v1492
      %v2406 = vpop.f32.mrb[0].mxu0
      %v2407 = vadd.f32 %v2246, %v2406
      %v2408 = vpop.f32.mrb[0].mxu0
      %v2409 = vpop.f32.mrb[0].mxu0
      %v2410 = vadd.f32 %v2249, %v2409
      %v2411 = vpop.f32.mrb[0].mxu0
      %2412 = vmatprep.mubr.bf16.mxu0 %v1201
      %2413 = vmatmul.mubr.bf16.gmra.mrb[0].mxu0 %v1495
      %v2414 = vpop.f32.mrb[0].mxu0
      %v2415 = vadd.f32 %v2254, %v2414
      %v2416 = vpop.f32.mrb[0].mxu0
      %v2417 = vpop.f32.mrb[0].mxu0
      %v2418 = vadd.f32 %v2257, %v2417
      %v2419 = vpop.f32.mrb[0].mxu0
      %2420 = vmatprep.mubr.bf16.mxu0 %v1202
      %2421 = vmatmul.mubr.bf16.gmra.mrb[0].mxu0 %v1498
      %v2422 = vpop.f32.mrb[0].mxu0
      %v2423 = vadd.f32 %v2262, %v2422
      %v2424 = vpop.f32.mrb[0].mxu0
      %v2425 = vpop.f32.mrb[0].mxu0
      %v2426 = vadd.f32 %v2265, %v2425
      %v2427 = vpop.f32.mrb[0].mxu0
      %2428 = vmatprep.mubr.bf16.mxu0 %v1203
      %2429 = vmatmul.mubr.bf16.gmra.mrb[0].mxu0 %v1501
      %v2430 = vpop.f32.mrb[0].mxu0
      %v2431 = vadd.f32 %v2270, %v2430
      %v2432 = vpop.f32.mrb[0].mxu0
      %v2433 = vpop.f32.mrb[0].mxu0
      %v2434 = vadd.f32 %v2273, %v2433
      %v2435 = vpop.f32.mrb[0].mxu0
      %2436 = vmatprep.mubr.bf16.mxu0 %v1204
      %2437 = vmatmul.mubr.bf16.gmra.mrb[0].mxu0 %v1504
      %v2438 = vpop.f32.mrb[0].mxu0
      %v2439 = vadd.f32 %v2278, %v2438
      %v2440 = vpop.f32.mrb[0].mxu0
      %v2441 = vpop.f32.mrb[0].mxu0
      %v2442 = vadd.f32 %v2281, %v2441
      %v2443 = vpop.f32.mrb[0].mxu0
      %2444 = vdwg.mxu0
      %2445 = vmatprep.subr.bf16.mxu0 0
      %2446 = vmatpush1.bf16.msra.mxu0 %v2011
      %2447 = vmatprep.subr.bf16.mxu0 0
      %2448 = vmatpush1.bf16.msra.mxu0 %v2012
      %2449 = vmatprep.subr.bf16.mxu0 0
      %2450 = vmatpush1.bf16.msra.mxu0 %v2013
      %2451 = vmatprep.subr.bf16.mxu0 0
      %2452 = vmatpush1.bf16.msra.mxu0 %v2014
      %2453 = vmatprep.subr.bf16.mxu0 0
      %2454 = vmatpush1.bf16.msra.mxu0 %v2015
      %2455 = vmatprep.subr.bf16.mxu0 0
      %2456 = vmatpush1.bf16.msra.mxu0 %v2016
      %2457 = vmatprep.subr.bf16.mxu0 0
      %2458 = vmatpush1.bf16.msra.mxu0 %v2017
      %2459 = vmatprep.subr.bf16.mxu0 0
      %2460 = vmatpush1.bf16.msra.mxu0 %v2018
      %2461 = vmatprep.subr.bf16.mxu0 0
      %2462 = vmatpush1.bf16.msra.mxu0 %v2019
      %2463 = vmatprep.subr.bf16.mxu0 0
      %2464 = vmatpush1.bf16.msra.mxu0 %v2020
      %2465 = vmatprep.subr.bf16.mxu0 0
      %2466 = vmatpush1.bf16.msra.mxu0 %v2021
      %2467 = vmatprep.subr.bf16.mxu0 0
      %2468 = vmatpush1.bf16.msra.mxu0 %v2022
      %2469 = vmatprep.subr.bf16.mxu0 0
      %2470 = vmatpush1.bf16.msra.mxu0 %v2023
      %2471 = vmatprep.subr.bf16.mxu0 0
      %2472 = vmatpush1.bf16.msra.mxu0 %v2024
      %2473 = vmatprep.subr.bf16.mxu0 0
      %2474 = vmatpush1.bf16.msra.mxu0 %v2025
      %2475 = vmatprep.subr.bf16.mxu0 0
      %2476 = vmatpush1.bf16.msra.mxu0 %v2026
      %2477 = vmatprep.mubr.bf16.mxu0 %v1462
      %2478 = vmatmul.mubr.bf16.gmra.mrb[0].mxu0 %v1241
      %v2479 = vpop.f32.mrb[0].mxu0
      %v2480 = vadd.f32 %v2319, %v2479
      %v2481 = vpop.f32.mrb[0].mxu0
      %v2482 = vpop.f32.mrb[0].mxu0
      %v2483 = vadd.f32 %v2322, %v2482
      %v2484 = vpop.f32.mrb[0].mxu0
      %2485 = vmatprep.mubr.bf16.mxu0 %v1465
      %2486 = vmatmul.mubr.bf16.gmra.mrb[0].mxu0 %v1253
      %v2487 = vpop.f32.mrb[0].mxu0
      %v2488 = vadd.f32 %v2327, %v2487
      %v2489 = vpop.f32.mrb[0].mxu0
      %v2490 = vpop.f32.mrb[0].mxu0
      %v2491 = vadd.f32 %v2330, %v2490
      %v2492 = vpop.f32.mrb[0].mxu0
      %2493 = vmatprep.mubr.bf16.mxu0 %v1468
      %2494 = vmatmul.mubr.bf16.gmra.mrb[0].mxu0 %v1265
      %v2495 = vpop.f32.mrb[0].mxu0
      %v2496 = vadd.f32 %v2335, %v2495
      %v2497 = vpop.f32.mrb[0].mxu0
      %v2498 = vpop.f32.mrb[0].mxu0
      %v2499 = vadd.f32 %v2338, %v2498
      %v2500 = vpop.f32.mrb[0].mxu0
      %2501 = vmatprep.mubr.bf16.mxu0 %v1471
      %2502 = vmatmul.mubr.bf16.gmra.mrb[0].mxu0 %v1277
      %v2503 = vpop.f32.mrb[0].mxu0
      %v2504 = vadd.f32 %v2343, %v2503
      %v2505 = vpop.f32.mrb[0].mxu0
      %v2506 = vpop.f32.mrb[0].mxu0
      %v2507 = vadd.f32 %v2346, %v2506
      %v2508 = vpop.f32.mrb[0].mxu0
      %2509 = vmatprep.mubr.bf16.mxu0 %v1474
      %2510 = vmatmul.mubr.bf16.gmra.mrb[0].mxu0 %v1289
      %v2511 = vpop.f32.mrb[0].mxu0
      %v2512 = vadd.f32 %v2351, %v2511
      %v2513 = vpop.f32.mrb[0].mxu0
      %v2514 = vpop.f32.mrb[0].mxu0
      %v2515 = vadd.f32 %v2354, %v2514
      %v2516 = vpop.f32.mrb[0].mxu0
      %2517 = vmatprep.mubr.bf16.mxu0 %v1477
      %2518 = vmatmul.mubr.bf16.gmra.mrb[0].mxu0 %v1301
      %v2519 = vpop.f32.mrb[0].mxu0
      %v2520 = vadd.f32 %v2359, %v2519
      %v2521 = vpop.f32.mrb[0].mxu0
      %v2522 = vpop.f32.mrb[0].mxu0
      %v2523 = vadd.f32 %v2362, %v2522
      %v2524 = vpop.f32.mrb[0].mxu0
      %2525 = vmatprep.mubr.bf16.mxu0 %v1480
      %2526 = vmatmul.mubr.bf16.gmra.mrb[0].mxu0 %v1313
      %v2527 = vpop.f32.mrb[0].mxu0
      %v2528 = vadd.f32 %v2367, %v2527
      %v2529 = vpop.f32.mrb[0].mxu0
      %v2530 = vpop.f32.mrb[0].mxu0
      %v2531 = vadd.f32 %v2370, %v2530
      %v2532 = vpop.f32.mrb[0].mxu0
      %2533 = vmatprep.mubr.bf16.mxu0 %v1483
      %2534 = vmatmul.mubr.bf16.gmra.mrb[0].mxu0 %v1325
      %v2535 = vpop.f32.mrb[0].mxu0
      %v2536 = vadd.f32 %v2375, %v2535
      %v2537 = vpop.f32.mrb[0].mxu0
      %v2538 = vpop.f32.mrb[0].mxu0
      %v2539 = vadd.f32 %v2378, %v2538
      %v2540 = vpop.f32.mrb[0].mxu0
      %2541 = vmatprep.mubr.bf16.mxu0 %v1486
      %2542 = vmatmul.mubr.bf16.gmra.mrb[0].mxu0 %v1337
      %v2543 = vpop.f32.mrb[0].mxu0
      %v2544 = vadd.f32 %v2383, %v2543
      %v2545 = vpop.f32.mrb[0].mxu0
      %v2546 = vpop.f32.mrb[0].mxu0
      %v2547 = vadd.f32 %v2386, %v2546
      %v2548 = vpop.f32.mrb[0].mxu0
      %2549 = vmatprep.mubr.bf16.mxu0 %v1489
      %2550 = vmatmul.mubr.bf16.gmra.mrb[0].mxu0 %v1349
      %v2551 = vpop.f32.mrb[0].mxu0
      %v2552 = vadd.f32 %v2391, %v2551
      %v2553 = vpop.f32.mrb[0].mxu0
      %v2554 = vpop.f32.mrb[0].mxu0
      %v2555 = vadd.f32 %v2394, %v2554
      %v2556 = vpop.f32.mrb[0].mxu0
      %2557 = vmatprep.mubr.bf16.mxu0 %v1492
      %2558 = vmatmul.mubr.bf16.gmra.mrb[0].mxu0 %v1361
      %v2559 = vpop.f32.mrb[0].mxu0
      %v2560 = vadd.f32 %v2399, %v2559
      %v2561 = vpop.f32.mrb[0].mxu0
      %v2562 = vpop.f32.mrb[0].mxu0
      %v2563 = vadd.f32 %v2402, %v2562
      %v2564 = vpop.f32.mrb[0].mxu0
      %2565 = vmatprep.mubr.bf16.mxu0 %v1495
      %2566 = vmatmul.mubr.bf16.gmra.mrb[0].mxu0 %v1373
      %v2567 = vpop.f32.mrb[0].mxu0
      %v2568 = vadd.f32 %v2407, %v2567
      %v2569 = vpop.f32.mrb[0].mxu0
      %v2570 = vpop.f32.mrb[0].mxu0
      %v2571 = vadd.f32 %v2410, %v2570
      %v2572 = vpop.f32.mrb[0].mxu0
      %2573 = vmatprep.mubr.bf16.mxu0 %v1498
      %2574 = vmatmul.mubr.bf16.gmra.mrb[0].mxu0 %v1385
      %v2575 = vpop.f32.mrb[0].mxu0
      %v2576 = vadd.f32 %v2415, %v2575
      %v2577 = vpop.f32.mrb[0].mxu0
      %v2578 = vpop.f32.mrb[0].mxu0
      %v2579 = vadd.f32 %v2418, %v2578
      %v2580 = vpop.f32.mrb[0].mxu0
      %2581 = vmatprep.mubr.bf16.mxu0 %v1501
      %2582 = vmatmul.mubr.bf16.gmra.mrb[0].mxu0 %v1397
      %v2583 = vpop.f32.mrb[0].mxu0
      %v2584 = vadd.f32 %v2423, %v2583
      %v2585 = vpop.f32.mrb[0].mxu0
      %v2586 = vpop.f32.mrb[0].mxu0
      %v2587 = vadd.f32 %v2426, %v2586
      %v2588 = vpop.f32.mrb[0].mxu0
      %2589 = vmatprep.mubr.bf16.mxu0 %v1504
      %2590 = vmatmul.mubr.bf16.gmra.mrb[0].mxu0 %v1409
      %v2591 = vpop.f32.mrb[0].mxu0
      %v2592 = vadd.f32 %v2431, %v2591
      %v2593 = vpop.f32.mrb[0].mxu0
      %v2594 = vpop.f32.mrb[0].mxu0
      %v2595 = vadd.f32 %v2434, %v2594
      %v2596 = vpop.f32.mrb[0].mxu0
      %2597 = vmatprep.mubr.bf16.mxu0 %v1538
      %2598 = vmatmul.mubr.bf16.gmra.mrb[0].mxu0 %v1532
      %v2599 = vpop.f32.mrb[0].mxu0
      %v2600 = vadd.f32 %v2439, %v2599
      %v2601 = vpop.f32.mrb[0].mxu0
      %v2602 = vpop.f32.mrb[0].mxu0
      %v2603 = vadd.f32 %v2442, %v2602
      %v2604 = vpop.f32.mrb[0].mxu0
      %2605 = vdwg.mxu0
      %2606 = vmatprep.subr.bf16.mxu0 0
      %2607 = vmatpush1.bf16.msra.mxu0 %v2027
      %2608 = vmatprep.subr.bf16.mxu0 0
      %2609 = vmatpush1.bf16.msra.mxu0 %v2028
      %2610 = vmatprep.subr.bf16.mxu0 0
      %2611 = vmatpush1.bf16.msra.mxu0 %v2029
      %2612 = vmatprep.subr.bf16.mxu0 0
      %2613 = vmatpush1.bf16.msra.mxu0 %v2030
      %2614 = vmatprep.subr.bf16.mxu0 0
      %2615 = vmatpush1.bf16.msra.mxu0 %v2031
      %2616 = vmatprep.subr.bf16.mxu0 0
      %2617 = vmatpush1.bf16.msra.mxu0 %v2032
      %2618 = vmatprep.subr.bf16.mxu0 0
      %2619 = vmatpush1.bf16.msra.mxu0 %v2033
      %2620 = vmatprep.subr.bf16.mxu0 0
      %2621 = vmatpush1.bf16.msra.mxu0 %v2034
      %2622 = vmatprep.subr.bf16.mxu0 0
      %2623 = vmatpush1.bf16.msra.mxu0 %v2035
      %2624 = vmatprep.subr.bf16.mxu0 0
      %2625 = vmatpush1.bf16.msra.mxu0 %v2036
      %2626 = vmatprep.subr.bf16.mxu0 0
      %2627 = vmatpush1.bf16.msra.mxu0 %v2037
      %2628 = vmatprep.subr.bf16.mxu0 0
      %2629 = vmatpush1.bf16.msra.mxu0 %v2038
      %2630 = vmatprep.subr.bf16.mxu0 0
      %2631 = vmatpush1.bf16.msra.mxu0 %v2039
      %2632 = vmatprep.subr.bf16.mxu0 0
      %2633 = vmatpush1.bf16.msra.mxu0 %v2040
      %2634 = vmatprep.subr.bf16.mxu0 0
      %2635 = vmatpush1.bf16.msra.mxu0 %v2041
      %2636 = vmatprep.subr.bf16.mxu0 0
      %2637 = vmatpush1.bf16.msra.mxu0 %v2042
      %2638 = vmatprep.mubr.bf16.mxu0 %v1253
      %2639 = vmatmul.mubr.bf16.gmra.mrb[0].mxu0 %v1190
      %v2640 = vpop.f32.mrb[0].mxu0
      %v2641 = vadd.f32 %v2480, %v2640
      %v2642 = vpop.f32.mrb[0].mxu0
      %v2643 = vpop.f32.mrb[0].mxu0
      %v2644 = vadd.f32 %v2483, %v2643
      %v2645 = vpop.f32.mrb[0].mxu0
      %2646 = vmatprep.mubr.bf16.mxu0 %v1265
      %2647 = vmatmul.mubr.bf16.gmra.mrb[0].mxu0 %v1191
      %v2648 = vpop.f32.mrb[0].mxu0
      %v2649 = vadd.f32 %v2488, %v2648
      %v2650 = vpop.f32.mrb[0].mxu0
      %v2651 = vpop.f32.mrb[0].mxu0
      %v2652 = vadd.f32 %v2491, %v2651
      %v2653 = vpop.f32.mrb[0].mxu0
      %2654 = vmatprep.mubr.bf16.mxu0 %v1277
      %2655 = vmatmul.mubr.bf16.gmra.mrb[0].mxu0 %v1192
      %v2656 = vpop.f32.mrb[0].mxu0
      %v2657 = vadd.f32 %v2496, %v2656
      %v2658 = vpop.f32.mrb[0].mxu0
      %v2659 = vpop.f32.mrb[0].mxu0
      %v2660 = vadd.f32 %v2499, %v2659
      %v2661 = vpop.f32.mrb[0].mxu0
      %2662 = vmatprep.mubr.bf16.mxu0 %v1289
      %2663 = vmatmul.mubr.bf16.gmra.mrb[0].mxu0 %v1193
      %v2664 = vpop.f32.mrb[0].mxu0
      %v2665 = vadd.f32 %v2504, %v2664
      %v2666 = vpop.f32.mrb[0].mxu0
      %v2667 = vpop.f32.mrb[0].mxu0
      %v2668 = vadd.f32 %v2507, %v2667
      %v2669 = vpop.f32.mrb[0].mxu0
      %2670 = vmatprep.mubr.bf16.mxu0 %v1301
      %2671 = vmatmul.mubr.bf16.gmra.mrb[0].mxu0 %v1194
      %v2672 = vpop.f32.mrb[0].mxu0
      %v2673 = vadd.f32 %v2512, %v2672
      %v2674 = vpop.f32.mrb[0].mxu0
      %v2675 = vpop.f32.mrb[0].mxu0
      %v2676 = vadd.f32 %v2515, %v2675
      %v2677 = vpop.f32.mrb[0].mxu0
      %2678 = vmatprep.mubr.bf16.mxu0 %v1313
      %2679 = vmatmul.mubr.bf16.gmra.mrb[0].mxu0 %v1195
      %v2680 = vpop.f32.mrb[0].mxu0
      %v2681 = vadd.f32 %v2520, %v2680
      %v2682 = vpop.f32.mrb[0].mxu0
      %v2683 = vpop.f32.mrb[0].mxu0
      %v2684 = vadd.f32 %v2523, %v2683
      %v2685 = vpop.f32.mrb[0].mxu0
      %2686 = vmatprep.mubr.bf16.mxu0 %v1325
      %2687 = vmatmul.mubr.bf16.gmra.mrb[0].mxu0 %v1196
      %v2688 = vpop.f32.mrb[0].mxu0
      %v2689 = vadd.f32 %v2528, %v2688
      %v2690 = vpop.f32.mrb[0].mxu0
      %v2691 = vpop.f32.mrb[0].mxu0
      %v2692 = vadd.f32 %v2531, %v2691
      %v2693 = vpop.f32.mrb[0].mxu0
      %2694 = vmatprep.mubr.bf16.mxu0 %v1337
      %2695 = vmatmul.mubr.bf16.gmra.mrb[0].mxu0 %v1197
      %v2696 = vpop.f32.mrb[0].mxu0
      %v2697 = vadd.f32 %v2536, %v2696
      %v2698 = vpop.f32.mrb[0].mxu0
      %v2699 = vpop.f32.mrb[0].mxu0
      %v2700 = vadd.f32 %v2539, %v2699
      %v2701 = vpop.f32.mrb[0].mxu0
      %2702 = vmatprep.mubr.bf16.mxu0 %v1349
      %2703 = vmatmul.mubr.bf16.gmra.mrb[0].mxu0 %v1198
      %v2704 = vpop.f32.mrb[0].mxu0
      %v2705 = vadd.f32 %v2544, %v2704
      %v2706 = vpop.f32.mrb[0].mxu0
      %v2707 = vpop.f32.mrb[0].mxu0
      %v2708 = vadd.f32 %v2547, %v2707
      %v2709 = vpop.f32.mrb[0].mxu0
      %2710 = vmatprep.mubr.bf16.mxu0 %v1361
      %2711 = vmatmul.mubr.bf16.gmra.mrb[0].mxu0 %v1199
      %v2712 = vpop.f32.mrb[0].mxu0
      %v2713 = vadd.f32 %v2552, %v2712
      %v2714 = vpop.f32.mrb[0].mxu0
      %v2715 = vpop.f32.mrb[0].mxu0
      %v2716 = vadd.f32 %v2555, %v2715
      %v2717 = vpop.f32.mrb[0].mxu0
      %2718 = vmatprep.mubr.bf16.mxu0 %v1373
      %2719 = vmatmul.mubr.bf16.gmra.mrb[0].mxu0 %v1200
      %v2720 = vpop.f32.mrb[0].mxu0
      %v2721 = vadd.f32 %v2560, %v2720
      %v2722 = vpop.f32.mrb[0].mxu0
      %v2723 = vpop.f32.mrb[0].mxu0
      %v2724 = vadd.f32 %v2563, %v2723
      %v2725 = vpop.f32.mrb[0].mxu0
      %2726 = vmatprep.mubr.bf16.mxu0 %v1385
      %2727 = vmatmul.mubr.bf16.gmra.mrb[0].mxu0 %v1201
      %v2728 = vpop.f32.mrb[0].mxu0
      %v2729 = vadd.f32 %v2568, %v2728
      %v2730 = vpop.f32.mrb[0].mxu0
      %v2731 = vpop.f32.mrb[0].mxu0
      %v2732 = vadd.f32 %v2571, %v2731
      %v2733 = vpop.f32.mrb[0].mxu0
      %2734 = vmatprep.mubr.bf16.mxu0 %v1397
      %2735 = vmatmul.mubr.bf16.gmra.mrb[0].mxu0 %v1202
      %v2736 = vpop.f32.mrb[0].mxu0
      %v2737 = vadd.f32 %v2576, %v2736
      %v2738 = vpop.f32.mrb[0].mxu0
      %v2739 = vpop.f32.mrb[0].mxu0
      %v2740 = vadd.f32 %v2579, %v2739
      %v2741 = vpop.f32.mrb[0].mxu0
      %2742 = vmatprep.mubr.bf16.mxu0 %v1409
      %2743 = vmatmul.mubr.bf16.gmra.mrb[0].mxu0 %v1203
      %v2744 = vpop.f32.mrb[0].mxu0
      %v2745 = vadd.f32 %v2584, %v2744
      %v2746 = vpop.f32.mrb[0].mxu0
      %v2747 = vpop.f32.mrb[0].mxu0
      %v2748 = vadd.f32 %v2587, %v2747
      %v2749 = vpop.f32.mrb[0].mxu0
      %2750 = vmatprep.mubr.bf16.mxu0 %v1532
      %2751 = vmatmul.mubr.bf16.gmra.mrb[0].mxu0 %v1204
      %v2752 = vpop.f32.mrb[0].mxu0
      %v2753 = vadd.f32 %v2592, %v2752
      %v2754 = vpop.f32.mrb[0].mxu0
      %v2755 = vpop.f32.mrb[0].mxu0
      %v2756 = vadd.f32 %v2595, %v2755
      %v2757 = vpop.f32.mrb[0].mxu0
      %2758 = vmatprep.mubr.bf16.mxu0 %v1229
      %2759 = vmatmul.mubr.bf16.gmra.mrb[0].mxu0 0
      %v2760 = vpop.f32.mrb[0].mxu0
      %v2761 = vadd.f32 %v2600, %v2760
      %v2762 = vpop.f32.mrb[0].mxu0
      %v2763 = vpop.f32.mrb[0].mxu0
      %v2764 = vadd.f32 %v2603, %v2763
      %v2765 = vpop.f32.mrb[0].mxu0
      %2766 = vdwg.mxu0
      %2767 = vmatprep.subr.bf16.mxu0 0
      %2768 = vmatpush1.bf16.msra.mxu0 %v2043
      %2769 = vmatprep.subr.bf16.mxu0 0
      %2770 = vmatpush1.bf16.msra.mxu0 %v2044
      %2771 = vmatprep.subr.bf16.mxu0 0
      %2772 = vmatpush1.bf16.msra.mxu0 %v2045
      %2773 = vmatprep.subr.bf16.mxu0 0
      %2774 = vmatpush1.bf16.msra.mxu0 %v2046
      %2775 = vmatprep.subr.bf16.mxu0 0
      %2776 = vmatpush1.bf16.msra.mxu0 %v2047
      %2777 = vmatprep.subr.bf16.mxu0 0
      %2778 = vmatpush1.bf16.msra.mxu0 %v2048
      %2779 = vmatprep.subr.bf16.mxu0 0
      %2780 = vmatpush1.bf16.msra.mxu0 %v2049
      %2781 = vmatprep.subr.bf16.mxu0 0
      %2782 = vmatpush1.bf16.msra.mxu0 %v2050
      %2783 = vmatprep.subr.bf16.mxu0 0
      %2784 = vmatpush1.bf16.msra.mxu0 0
      %2785 = vmatprep.subr.bf16.mxu0 0
      %2786 = vmatpush1.bf16.msra.mxu0 0
      %2787 = vmatprep.subr.bf16.mxu0 0
      %2788 = vmatpush1.bf16.msra.mxu0 0
      %2789 = vmatprep.subr.bf16.mxu0 0
      %2790 = vmatpush1.bf16.msra.mxu0 0
      %2791 = vmatprep.subr.bf16.mxu0 0
      %2792 = vmatpush1.bf16.msra.mxu0 0
      %2793 = vmatprep.subr.bf16.mxu0 0
      %2794 = vmatpush1.bf16.msra.mxu0 0
      %2795 = vmatprep.subr.bf16.mxu0 0
      %2796 = vmatpush1.bf16.msra.mxu0 0
      %2797 = vmatprep.subr.bf16.mxu0 0
      %2798 = vmatpush1.bf16.msra.mxu0 0
      %2799 = vmatprep.mubr.bf16.mxu0 0
      %2800 = vmatmul.mubr.bf16.gmra.mrb[0].mxu0 %v1465
      %v2801 = vpop.f32.mrb[0].mxu0
      %v2802 = vadd.f32 %v2641, %v2801
      %v2803 = vpop.f32.mrb[0].mxu0
      %v2804 = vpop.f32.mrb[0].mxu0
      %v2805 = vadd.f32 %v2644, %v2804
      %v2806 = vpop.f32.mrb[0].mxu0
      %2807 = vmatprep.mubr.bf16.mxu0 0
      %2808 = vmatmul.mubr.bf16.gmra.mrb[0].mxu0 %v1468
      %v2809 = vpop.f32.mrb[0].mxu0
      %v2810 = vadd.f32 %v2649, %v2809
      %v2811 = vpop.f32.mrb[0].mxu0
      %v2812 = vpop.f32.mrb[0].mxu0
      %v2813 = vadd.f32 %v2652, %v2812
      %v2814 = vpop.f32.mrb[0].mxu0
      %2815 = vmatprep.mubr.bf16.mxu0 0
      %2816 = vmatmul.mubr.bf16.gmra.mrb[0].mxu0 %v1471
      %v2817 = vpop.f32.mrb[0].mxu0
      %v2818 = vadd.f32 %v2657, %v2817
      %v2819 = vpop.f32.mrb[0].mxu0
      %v2820 = vpop.f32.mrb[0].mxu0
      %v2821 = vadd.f32 %v2660, %v2820
      %v2822 = vpop.f32.mrb[0].mxu0
      %2823 = vmatprep.mubr.bf16.mxu0 0
      %2824 = vmatmul.mubr.bf16.gmra.mrb[0].mxu0 %v1474
      %v2825 = vpop.f32.mrb[0].mxu0
      %v2826 = vadd.f32 %v2665, %v2825
      %v2827 = vpop.f32.mrb[0].mxu0
      %v2828 = vpop.f32.mrb[0].mxu0
      %v2829 = vadd.f32 %v2668, %v2828
      %v2830 = vpop.f32.mrb[0].mxu0
      %2831 = vmatprep.mubr.bf16.mxu0 0
      %2832 = vmatmul.mubr.bf16.gmra.mrb[0].mxu0 %v1477
      %v2833 = vpop.f32.mrb[0].mxu0
      %v2834 = vadd.f32 %v2673, %v2833
      %v2835 = vpop.f32.mrb[0].mxu0
      %v2836 = vpop.f32.mrb[0].mxu0
      %v2837 = vadd.f32 %v2676, %v2836
      %v2838 = vpop.f32.mrb[0].mxu0
      %2839 = vmatprep.mubr.bf16.mxu0 0
      %2840 = vmatmul.mubr.bf16.gmra.mrb[0].mxu0 %v1480
      %v2841 = vpop.f32.mrb[0].mxu0
      %v2842 = vadd.f32 %v2681, %v2841
      %v2843 = vpop.f32.mrb[0].mxu0
      %v2844 = vpop.f32.mrb[0].mxu0
      %v2845 = vadd.f32 %v2684, %v2844
      %v2846 = vpop.f32.mrb[0].mxu0
      %2847 = vmatprep.mubr.bf16.mxu0 0
      %2848 = vmatmul.mubr.bf16.gmra.mrb[0].mxu0 %v1483
      %v2849 = vpop.f32.mrb[0].mxu0
      %v2850 = vadd.f32 %v2689, %v2849
      %v2851 = vpop.f32.mrb[0].mxu0
      %v2852 = vpop.f32.mrb[0].mxu0
      %v2853 = vadd.f32 %v2692, %v2852
      %v2854 = vpop.f32.mrb[0].mxu0
      %2855 = vmatprep.mubr.bf16.mxu0 0
      %2856 = vmatmul.mubr.bf16.gmra.mrb[0].mxu0 %v1486
      %v2857 = vpop.f32.mrb[0].mxu0
      %v2858 = vadd.f32 %v2697, %v2857
      %v2859 = vpop.f32.mrb[0].mxu0
      %v2860 = vpop.f32.mrb[0].mxu0
      %v2861 = vadd.f32 %v2700, %v2860
      %v2862 = vpop.f32.mrb[0].mxu0
      %2863 = vmatprep.mubr.bf16.mxu0 0
      %2864 = vmatmul.mubr.bf16.gmra.mrb[0].mxu0 %v1489
      %v2865 = vpop.f32.mrb[0].mxu0
      %v2866 = vadd.f32 %v2705, %v2865
      %v2867 = vpop.f32.mrb[0].mxu0
      %v2868 = vpop.f32.mrb[0].mxu0
      %v2869 = vadd.f32 %v2708, %v2868
      %v2870 = vpop.f32.mrb[0].mxu0
      %2871 = vmatprep.mubr.bf16.mxu0 0
      %2872 = vmatmul.mubr.bf16.gmra.mrb[0].mxu0 %v1492
      %v2873 = vpop.f32.mrb[0].mxu0
      %v2874 = vadd.f32 %v2713, %v2873
      %v2875 = vpop.f32.mrb[0].mxu0
      %v2876 = vpop.f32.mrb[0].mxu0
      %v2877 = vadd.f32 %v2716, %v2876
      %v2878 = vpop.f32.mrb[0].mxu0
      %2879 = vmatprep.mubr.bf16.mxu0 0
      %2880 = vmatmul.mubr.bf16.gmra.mrb[0].mxu0 %v1495
      %v2881 = vpop.f32.mrb[0].mxu0
      %v2882 = vadd.f32 %v2721, %v2881
      %v2883 = vpop.f32.mrb[0].mxu0
      %v2884 = vpop.f32.mrb[0].mxu0
      %v2885 = vadd.f32 %v2724, %v2884
      %v2886 = vpop.f32.mrb[0].mxu0
      %2887 = vmatprep.mubr.bf16.mxu0 0
      %2888 = vmatmul.mubr.bf16.gmra.mrb[0].mxu0 %v1498
      %v2889 = vpop.f32.mrb[0].mxu0
      %v2890 = vadd.f32 %v2729, %v2889
      %v2891 = vpop.f32.mrb[0].mxu0
      %v2892 = vpop.f32.mrb[0].mxu0
      %v2893 = vadd.f32 %v2732, %v2892
      %v2894 = vpop.f32.mrb[0].mxu0
      %2895 = vmatprep.mubr.bf16.mxu0 0
      %2896 = vmatmul.mubr.bf16.gmra.mrb[0].mxu0 %v1501
      %v2897 = vpop.f32.mrb[0].mxu0
      %v2898 = vadd.f32 %v2737, %v2897
      %v2899 = vpop.f32.mrb[0].mxu0
      %v2900 = vpop.f32.mrb[0].mxu0
      %v2901 = vadd.f32 %v2740, %v2900
      %v2902 = vpop.f32.mrb[0].mxu0
      %2903 = vmatprep.mubr.bf16.mxu0 0
      %2904 = vmatmul.mubr.bf16.gmra.mrb[0].mxu0 %v1504
      %v2905 = vpop.f32.mrb[0].mxu0
      %v2906 = vadd.f32 %v2745, %v2905
      %v2907 = vpop.f32.mrb[0].mxu0
      %v2908 = vpop.f32.mrb[0].mxu0
      %v2909 = vadd.f32 %v2748, %v2908
      %v2910 = vpop.f32.mrb[0].mxu0
      %2911 = vmatprep.mubr.bf16.mxu0 0
      %2912 = vmatmul.mubr.bf16.gmra.mrb[0].mxu0 %v1538
      %v2913 = vpop.f32.mrb[0].mxu0
      %v2914 = vadd.f32 %v2753, %v2913
      %v2915 = vpop.f32.mrb[0].mxu0
      %v2916 = vpop.f32.mrb[0].mxu0
      %v2917 = vadd.f32 %v2756, %v2916
      %v2918 = vpop.f32.mrb[0].mxu0
      %2919 = vmatprep.mubr.bf16.mxu0 0
      %2920 = vmatmul.mubr.bf16.gmra.mrb[0].mxu0 %v1459
      %v2921 = vpop.f32.mrb[0].mxu0
      %v2922 = vadd.f32 %v2761, %v2921
      %v2923 = vpop.f32.mrb[0].mxu0
      %v2924 = vpop.f32.mrb[0].mxu0
      %v2925 = vadd.f32 %v2764, %v2924
      %v2926 = vpop.f32.mrb[0].mxu0
      %2927 = vdwg.mxu0
      %v2928 = vmul.f32 %v2802, %v2802
      %v2929 = vmul.f32 %v2805, %v2805
      %v2930 = vmul.f32 %v2810, %v2810
      %v2931 = vmul.f32 %v2813, %v2813
      %v2932 = vmul.f32 %v2818, %v2818
      %v2933 = vmul.f32 %v2821, %v2821
      %v2934 = vmul.f32 %v2826, %v2826
      %v2935 = vmul.f32 %v2829, %v2829
      %v2936 = vmul.f32 %v2834, %v2834
      %v2937 = vmul.f32 %v2837, %v2837
      %v2938 = vmul.f32 %v2842, %v2842
      %v2939 = vmul.f32 %v2845, %v2845
      %v2940 = vmul.f32 %v2850, %v2850
      %v2941 = vmul.f32 %v2853, %v2853
      %v2942 = vmul.f32 %v2858, %v2858
      %v2943 = vmul.f32 %v2861, %v2861
      %v2944 = vmul.f32 %v2866, %v2866
      %v2945 = vmul.f32 %v2869, %v2869
      %v2946 = vmul.f32 %v2874, %v2874
      %v2947 = vmul.f32 %v2877, %v2877
      %v2948 = vmul.f32 %v2882, %v2882
      %v2949 = vmul.f32 %v2885, %v2885
      %v2950 = vmul.f32 %v2890, %v2890
      %v2951 = vmul.f32 %v2893, %v2893
      %v2952 = vmul.f32 %v2898, %v2898
      %v2953 = vmul.f32 %v2901, %v2901
      %v2954 = vmul.f32 %v2906, %v2906
      %v2955 = vmul.f32 %v2909, %v2909
      %v2956 = vmul.f32 %v2914, %v2914
      %v2957 = vmul.f32 %v2917, %v2917
      %v2958 = vmul.f32 %v2922, %v2922
      %v2959 = vmul.f32 %v2925, %v2925
      %2960 = vadd.xlane.f32.xlu0 %v2928
      %v2961 = vpop.xlane.xlu0 %2960
      %2962 = vadd.xlane.f32.xlu0 %v2929
      %v2963 = vpop.xlane.xlu0 %2962
      %2964 = vadd.xlane.f32.xlu0 %v2930
      %v2965 = vpop.xlane.xlu0 %2964
      %2966 = vadd.xlane.f32.xlu0 %v2931
      %v2967 = vpop.xlane.xlu0 %2966
      %2968 = vadd.xlane.f32.xlu0 %v2932
      %v2969 = vpop.xlane.xlu0 %2968
      %2970 = vadd.xlane.f32.xlu0 %v2933
      %v2971 = vpop.xlane.xlu0 %2970
      %2972 = vadd.xlane.f32.xlu0 %v2934
      %v2973 = vpop.xlane.xlu0 %2972
      %2974 = vadd.xlane.f32.xlu0 %v2935
      %v2975 = vpop.xlane.xlu0 %2974
      %2976 = vadd.xlane.f32.xlu0 %v2936
      %v2977 = vpop.xlane.xlu0 %2976
      %2978 = vadd.xlane.f32.xlu0 %v2937
      %v2979 = vpop.xlane.xlu0 %2978
      %2980 = vadd.xlane.f32.xlu0 %v2938
      %v2981 = vpop.xlane.xlu0 %2980
      %2982 = vadd.xlane.f32.xlu0 %v2939
      %v2983 = vpop.xlane.xlu0 %2982
      %2984 = vadd.xlane.f32.xlu0 %v2940
      %v2985 = vpop.xlane.xlu0 %2984
      %2986 = vadd.xlane.f32.xlu0 %v2941
      %v2987 = vpop.xlane.xlu0 %2986
      %2988 = vadd.xlane.f32.xlu0 %v2942
      %v2989 = vpop.xlane.xlu0 %2988
      %2990 = vadd.xlane.f32.xlu0 %v2943
      %v2991 = vpop.xlane.xlu0 %2990
      %2992 = vadd.xlane.f32.xlu0 %v2944
      %v2993 = vpop.xlane.xlu0 %2992
      %2994 = vadd.xlane.f32.xlu0 %v2945
      %v2995 = vpop.xlane.xlu0 %2994
      %2996 = vadd.xlane.f32.xlu0 %v2946
      %v2997 = vpop.xlane.xlu0 %2996
      %2998 = vadd.xlane.f32.xlu0 %v2947
      %v2999 = vpop.xlane.xlu0 %2998
      %3000 = vadd.xlane.f32.xlu0 %v2948
      %v3001 = vpop.xlane.xlu0 %3000
      %3002 = vadd.xlane.f32.xlu0 %v2949
      %v3003 = vpop.xlane.xlu0 %3002
      %3004 = vadd.xlane.f32.xlu0 %v2950
      %v3005 = vpop.xlane.xlu0 %3004
      %3006 = vadd.xlane.f32.xlu0 %v2951
      %v3007 = vpop.xlane.xlu0 %3006
      %3008 = vadd.xlane.f32.xlu0 %v2952
      %v3009 = vpop.xlane.xlu0 %3008
      %3010 = vadd.xlane.f32.xlu0 %v2953
      %v3011 = vpop.xlane.xlu0 %3010
      %3012 = vadd.xlane.f32.xlu0 %v2954
      %v3013 = vpop.xlane.xlu0 %3012
      %3014 = vadd.xlane.f32.xlu0 %v2955
      %v3015 = vpop.xlane.xlu0 %3014
      %3016 = vadd.xlane.f32.xlu0 %v2956
      %v3017 = vpop.xlane.xlu0 %3016
      %3018 = vadd.xlane.f32.xlu0 %v2957
      %v3019 = vpop.xlane.xlu0 %3018
      %3020 = vadd.xlane.f32.xlu0 %v2958
      %v3021 = vpop.xlane.xlu0 %3020
      %3022 = vadd.xlane.f32.xlu0 %v2959
      %v3023 = vpop.xlane.xlu0 %3022
      %v3024 = vrsqrt.pop %v2961
      %v3025 = vmul.f32 %v2961, %v3024
      %vm3026 = vcmp.eq.f32.partialorder %v2961, inf
      %v3027 = vsel %vm3026, %v2961, %v3025
      %vm3028 = vcmp.eq.f32.partialorder %v2961, 0.0
      %v3029 = vand.u32 %v2961, 2147483648
      %v3030 = vsel %vm3028, %v3029, %v3027
      %v3031 = vrsqrt.pop %v2963
      %v3032 = vmul.f32 %v2963, %v3031
      %vm3033 = vcmp.eq.f32.partialorder %v2963, inf
      %v3034 = vsel %vm3033, %v2963, %v3032
      %vm3035 = vcmp.eq.f32.partialorder %v2963, 0.0
      %v3036 = vand.u32 %v2963, 2147483648
      %v3037 = vsel %vm3035, %v3036, %v3034
      %v3038 = vrsqrt.pop %v2965
      %v3039 = vmul.f32 %v2965, %v3038
      %vm3040 = vcmp.eq.f32.partialorder %v2965, inf
      %v3041 = vsel %vm3040, %v2965, %v3039
      %vm3042 = vcmp.eq.f32.partialorder %v2965, 0.0
      %v3043 = vand.u32 %v2965, 2147483648
      %v3044 = vsel %vm3042, %v3043, %v3041
      %v3045 = vrsqrt.pop %v2967
      %v3046 = vmul.f32 %v2967, %v3045
      %vm3047 = vcmp.eq.f32.partialorder %v2967, inf
      %v3048 = vsel %vm3047, %v2967, %v3046
      %vm3049 = vcmp.eq.f32.partialorder %v2967, 0.0
      %v3050 = vand.u32 %v2967, 2147483648
      %v3051 = vsel %vm3049, %v3050, %v3048
      %v3052 = vrsqrt.pop %v2969
      %v3053 = vmul.f32 %v2969, %v3052
      %vm3054 = vcmp.eq.f32.partialorder %v2969, inf
      %v3055 = vsel %vm3054, %v2969, %v3053
      %vm3056 = vcmp.eq.f32.partialorder %v2969, 0.0
      %v3057 = vand.u32 %v2969, 2147483648
      %v3058 = vsel %vm3056, %v3057, %v3055
      %v3059 = vrsqrt.pop %v2971
      %v3060 = vmul.f32 %v2971, %v3059
      %vm3061 = vcmp.eq.f32.partialorder %v2971, inf
      %v3062 = vsel %vm3061, %v2971, %v3060
      %vm3063 = vcmp.eq.f32.partialorder %v2971, 0.0
      %v3064 = vand.u32 %v2971, 2147483648
      %v3065 = vsel %vm3063, %v3064, %v3062
      %v3066 = vrsqrt.pop %v2973
      %v3067 = vmul.f32 %v2973, %v3066
      %vm3068 = vcmp.eq.f32.partialorder %v2973, inf
      %v3069 = vsel %vm3068, %v2973, %v3067
      %vm3070 = vcmp.eq.f32.partialorder %v2973, 0.0
      %v3071 = vand.u32 %v2973, 2147483648
      %v3072 = vsel %vm3070, %v3071, %v3069
      %v3073 = vrsqrt.pop %v2975
      %v3074 = vmul.f32 %v2975, %v3073
      %vm3075 = vcmp.eq.f32.partialorder %v2975, inf
      %v3076 = vsel %vm3075, %v2975, %v3074
      %vm3077 = vcmp.eq.f32.partialorder %v2975, 0.0
      %v3078 = vand.u32 %v2975, 2147483648
      %v3079 = vsel %vm3077, %v3078, %v3076
      %v3080 = vrsqrt.pop %v2977
      %v3081 = vmul.f32 %v2977, %v3080
      %vm3082 = vcmp.eq.f32.partialorder %v2977, inf
      %v3083 = vsel %vm3082, %v2977, %v3081
      %vm3084 = vcmp.eq.f32.partialorder %v2977, 0.0
      %v3085 = vand.u32 %v2977, 2147483648
      %v3086 = vsel %vm3084, %v3085, %v3083
      %v3087 = vrsqrt.pop %v2979
      %v3088 = vmul.f32 %v2979, %v3087
      %vm3089 = vcmp.eq.f32.partialorder %v2979, inf
      %v3090 = vsel %vm3089, %v2979, %v3088
      %vm3091 = vcmp.eq.f32.partialorder %v2979, 0.0
      %v3092 = vand.u32 %v2979, 2147483648
      %v3093 = vsel %vm3091, %v3092, %v3090
      %v3094 = vrsqrt.pop %v2981
      %v3095 = vmul.f32 %v2981, %v3094
      %vm3096 = vcmp.eq.f32.partialorder %v2981, inf
      %v3097 = vsel %vm3096, %v2981, %v3095
      %vm3098 = vcmp.eq.f32.partialorder %v2981, 0.0
      %v3099 = vand.u32 %v2981, 2147483648
      %v3100 = vsel %vm3098, %v3099, %v3097
      %v3101 = vrsqrt.pop %v2983
      %v3102 = vmul.f32 %v2983, %v3101
      %vm3103 = vcmp.eq.f32.partialorder %v2983, inf
      %v3104 = vsel %vm3103, %v2983, %v3102
      %vm3105 = vcmp.eq.f32.partialorder %v2983, 0.0
      %v3106 = vand.u32 %v2983, 2147483648
      %v3107 = vsel %vm3105, %v3106, %v3104
      %v3108 = vrsqrt.pop %v2985
      %v3109 = vmul.f32 %v2985, %v3108
      %vm3110 = vcmp.eq.f32.partialorder %v2985, inf
      %v3111 = vsel %vm3110, %v2985, %v3109
      %vm3112 = vcmp.eq.f32.partialorder %v2985, 0.0
      %v3113 = vand.u32 %v2985, 2147483648
      %v3114 = vsel %vm3112, %v3113, %v3111
      %v3115 = vrsqrt.pop %v2987
      %v3116 = vmul.f32 %v2987, %v3115
      %vm3117 = vcmp.eq.f32.partialorder %v2987, inf
      %v3118 = vsel %vm3117, %v2987, %v3116
      %vm3119 = vcmp.eq.f32.partialorder %v2987, 0.0
      %v3120 = vand.u32 %v2987, 2147483648
      %v3121 = vsel %vm3119, %v3120, %v3118
      %v3122 = vrsqrt.pop %v2989
      %v3123 = vmul.f32 %v2989, %v3122
      %vm3124 = vcmp.eq.f32.partialorder %v2989, inf
      %v3125 = vsel %vm3124, %v2989, %v3123
      %vm3126 = vcmp.eq.f32.partialorder %v2989, 0.0
      %v3127 = vand.u32 %v2989, 2147483648
      %v3128 = vsel %vm3126, %v3127, %v3125
      %v3129 = vrsqrt.pop %v2991
      %v3130 = vmul.f32 %v2991, %v3129
      %vm3131 = vcmp.eq.f32.partialorder %v2991, inf
      %v3132 = vsel %vm3131, %v2991, %v3130
      %vm3133 = vcmp.eq.f32.partialorder %v2991, 0.0
      %v3134 = vand.u32 %v2991, 2147483648
      %v3135 = vsel %vm3133, %v3134, %v3132
      %v3136 = vrsqrt.pop %v2993
      %v3137 = vmul.f32 %v2993, %v3136
      %vm3138 = vcmp.eq.f32.partialorder %v2993, inf
      %v3139 = vsel %vm3138, %v2993, %v3137
      %vm3140 = vcmp.eq.f32.partialorder %v2993, 0.0
      %v3141 = vand.u32 %v2993, 2147483648
      %v3142 = vsel %vm3140, %v3141, %v3139
      %v3143 = vrsqrt.pop %v2995
      %v3144 = vmul.f32 %v2995, %v3143
      %vm3145 = vcmp.eq.f32.partialorder %v2995, inf
      %v3146 = vsel %vm3145, %v2995, %v3144
      %vm3147 = vcmp.eq.f32.partialorder %v2995, 0.0
      %v3148 = vand.u32 %v2995, 2147483648
      %v3149 = vsel %vm3147, %v3148, %v3146
      %v3150 = vrsqrt.pop %v2997
      %v3151 = vmul.f32 %v2997, %v3150
      %vm3152 = vcmp.eq.f32.partialorder %v2997, inf
      %v3153 = vsel %vm3152, %v2997, %v3151
      %vm3154 = vcmp.eq.f32.partialorder %v2997, 0.0
      %v3155 = vand.u32 %v2997, 2147483648
      %v3156 = vsel %vm3154, %v3155, %v3153
      %v3157 = vrsqrt.pop %v2999
      %v3158 = vmul.f32 %v2999, %v3157
      %vm3159 = vcmp.eq.f32.partialorder %v2999, inf
      %v3160 = vsel %vm3159, %v2999, %v3158
      %vm3161 = vcmp.eq.f32.partialorder %v2999, 0.0
      %v3162 = vand.u32 %v2999, 2147483648
      %v3163 = vsel %vm3161, %v3162, %v3160
      %v3164 = vrsqrt.pop %v3001
      %v3165 = vmul.f32 %v3001, %v3164
      %vm3166 = vcmp.eq.f32.partialorder %v3001, inf
      %v3167 = vsel %vm3166, %v3001, %v3165
      %vm3168 = vcmp.eq.f32.partialorder %v3001, 0.0
      %v3169 = vand.u32 %v3001, 2147483648
      %v3170 = vsel %vm3168, %v3169, %v3167
      %v3171 = vrsqrt.pop %v3003
      %v3172 = vmul.f32 %v3003, %v3171
      %vm3173 = vcmp.eq.f32.partialorder %v3003, inf
      %v3174 = vsel %vm3173, %v3003, %v3172
      %vm3175 = vcmp.eq.f32.partialorder %v3003, 0.0
      %v3176 = vand.u32 %v3003, 2147483648
      %v3177 = vsel %vm3175, %v3176, %v3174
      %v3178 = vrsqrt.pop %v3005
      %v3179 = vmul.f32 %v3005, %v3178
      %vm3180 = vcmp.eq.f32.partialorder %v3005, inf
      %v3181 = vsel %vm3180, %v3005, %v3179
      %vm3182 = vcmp.eq.f32.partialorder %v3005, 0.0
      %v3183 = vand.u32 %v3005, 2147483648
      %v3184 = vsel %vm3182, %v3183, %v3181
      %v3185 = vrsqrt.pop %v3007
      %v3186 = vmul.f32 %v3007, %v3185
      %vm3187 = vcmp.eq.f32.partialorder %v3007, inf
      %v3188 = vsel %vm3187, %v3007, %v3186
      %vm3189 = vcmp.eq.f32.partialorder %v3007, 0.0
      %v3190 = vand.u32 %v3007, 2147483648
      %v3191 = vsel %vm3189, %v3190, %v3188
      %v3192 = vrsqrt.pop %v3009
      %v3193 = vmul.f32 %v3009, %v3192
      %vm3194 = vcmp.eq.f32.partialorder %v3009, inf
      %v3195 = vsel %vm3194, %v3009, %v3193
      %vm3196 = vcmp.eq.f32.partialorder %v3009, 0.0
      %v3197 = vand.u32 %v3009, 2147483648
      %v3198 = vsel %vm3196, %v3197, %v3195
      %v3199 = vrsqrt.pop %v3011
      %v3200 = vmul.f32 %v3011, %v3199
      %vm3201 = vcmp.eq.f32.partialorder %v3011, inf
      %v3202 = vsel %vm3201, %v3011, %v3200
      %vm3203 = vcmp.eq.f32.partialorder %v3011, 0.0
      %v3204 = vand.u32 %v3011, 2147483648
      %v3205 = vsel %vm3203, %v3204, %v3202
      %v3206 = vrsqrt.pop %v3013
      %v3207 = vmul.f32 %v3013, %v3206
      %vm3208 = vcmp.eq.f32.partialorder %v3013, inf
      %v3209 = vsel %vm3208, %v3013, %v3207
      %vm3210 = vcmp.eq.f32.partialorder %v3013, 0.0
      %v3211 = vand.u32 %v3013, 2147483648
      %v3212 = vsel %vm3210, %v3211, %v3209
      %v3213 = vrsqrt.pop %v3015
      %v3214 = vmul.f32 %v3015, %v3213
      %vm3215 = vcmp.eq.f32.partialorder %v3015, inf
      %v3216 = vsel %vm3215, %v3015, %v3214
      %vm3217 = vcmp.eq.f32.partialorder %v3015, 0.0
      %v3218 = vand.u32 %v3015, 2147483648
      %v3219 = vsel %vm3217, %v3218, %v3216
      %v3220 = vrsqrt.pop %v3017
      %v3221 = vmul.f32 %v3017, %v3220
      %vm3222 = vcmp.eq.f32.partialorder %v3017, inf
      %v3223 = vsel %vm3222, %v3017, %v3221
      %vm3224 = vcmp.eq.f32.partialorder %v3017, 0.0
      %v3225 = vand.u32 %v3017, 2147483648
      %v3226 = vsel %vm3224, %v3225, %v3223
      %v3227 = vrsqrt.pop %v3019
      %v3228 = vmul.f32 %v3019, %v3227
      %vm3229 = vcmp.eq.f32.partialorder %v3019, inf
      %v3230 = vsel %vm3229, %v3019, %v3228
      %vm3231 = vcmp.eq.f32.partialorder %v3019, 0.0
      %v3232 = vand.u32 %v3019, 2147483648
      %v3233 = vsel %vm3231, %v3232, %v3230
      %v3234 = vrsqrt.pop %v3021
      %v3235 = vmul.f32 %v3021, %v3234
      %vm3236 = vcmp.eq.f32.partialorder %v3021, inf
      %v3237 = vsel %vm3236, %v3021, %v3235
      %vm3238 = vcmp.eq.f32.partialorder %v3021, 0.0
      %v3239 = vand.u32 %v3021, 2147483648
      %v3240 = vsel %vm3238, %v3239, %v3237
      %v3241 = vrsqrt.pop %v3023
      %v3242 = vmul.f32 %v3023, %v3241
      %vm3243 = vcmp.eq.f32.partialorder %v3023, inf
      %v3244 = vsel %vm3243, %v3023, %v3242
      %vm3245 = vcmp.eq.f32.partialorder %v3023, 0.0
      %v3246 = vand.u32 %v3023, 2147483648
      %v3247 = vsel %vm3245, %v3246, %v3244
      %v3248 = vmax.f32 %v3030, 1e-12
      %v3249 = vmax.f32 %v3037, 1e-12
      %v3250 = vmax.f32 %v3044, 1e-12
      %v3251 = vmax.f32 %v3051, 1e-12
      %v3252 = vmax.f32 %v3058, 1e-12
      %v3253 = vmax.f32 %v3065, 1e-12
      %v3254 = vmax.f32 %v3072, 1e-12
      %v3255 = vmax.f32 %v3079, 1e-12
      %v3256 = vmax.f32 %v3086, 1e-12
      %v3257 = vmax.f32 %v3093, 1e-12
      %v3258 = vmax.f32 %v3100, 1e-12
      %v3259 = vmax.f32 %v3107, 1e-12
      %v3260 = vmax.f32 %v3114, 1e-12
      %v3261 = vmax.f32 %v3121, 1e-12
      %v3262 = vmax.f32 %v3128, 1e-12
      %v3263 = vmax.f32 %v3135, 1e-12
      %v3264 = vmax.f32 %v3142, 1e-12
      %v3265 = vmax.f32 %v3149, 1e-12
      %v3266 = vmax.f32 %v3156, 1e-12
      %v3267 = vmax.f32 %v3163, 1e-12
      %v3268 = vmax.f32 %v3170, 1e-12
      %v3269 = vmax.f32 %v3177, 1e-12
      %v3270 = vmax.f32 %v3184, 1e-12
      %v3271 = vmax.f32 %v3191, 1e-12
      %v3272 = vmax.f32 %v3198, 1e-12
      %v3273 = vmax.f32 %v3205, 1e-12
      %v3274 = vmax.f32 %v3212, 1e-12
      %v3275 = vmax.f32 %v3219, 1e-12
      %v3276 = vmax.f32 %v3226, 1e-12
      %v3277 = vmax.f32 %v3233, 1e-12
      %v3278 = vmax.f32 %v3240, 1e-12
      %v3279 = vmax.f32 %v3247, 1e-12
      %v3280 = vrcp.pop %v3248
      %v3281 = vmul.f32 8.0, %v3280
      %v3282 = vrcp.pop %v3249
      %v3283 = vmul.f32 8.0, %v3282
      %v3284 = vrcp.pop %v3250
      %v3285 = vmul.f32 8.0, %v3284
      %v3286 = vrcp.pop %v3251
      %v3287 = vmul.f32 8.0, %v3286
      %v3288 = vrcp.pop %v3252
      %v3289 = vmul.f32 8.0, %v3288
      %v3290 = vrcp.pop %v3253
      %v3291 = vmul.f32 8.0, %v3290
      %v3292 = vrcp.pop %v3254
      %v3293 = vmul.f32 8.0, %v3292
      %v3294 = vrcp.pop %v3255
      %v3295 = vmul.f32 8.0, %v3294
      %v3296 = vrcp.pop %v3256
      %v3297 = vmul.f32 8.0, %v3296
      %v3298 = vrcp.pop %v3257
      %v3299 = vmul.f32 8.0, %v3298
      %v3300 = vrcp.pop %v3258
      %v3301 = vmul.f32 8.0, %v3300
      %v3302 = vrcp.pop %v3259
      %v3303 = vmul.f32 8.0, %v3302
      %v3304 = vrcp.pop %v3260
      %v3305 = vmul.f32 8.0, %v3304
      %v3306 = vrcp.pop %v3261
      %v3307 = vmul.f32 8.0, %v3306
      %v3308 = vrcp.pop %v3262
      %v3309 = vmul.f32 8.0, %v3308
      %v3310 = vrcp.pop %v3263
      %v3311 = vmul.f32 8.0, %v3310
      %v3312 = vrcp.pop %v3264
      %v3313 = vmul.f32 8.0, %v3312
      %v3314 = vrcp.pop %v3265
      %v3315 = vmul.f32 8.0, %v3314
      %v3316 = vrcp.pop %v3266
      %v3317 = vmul.f32 8.0, %v3316
      %v3318 = vrcp.pop %v3267
      %v3319 = vmul.f32 8.0, %v3318
      %v3320 = vrcp.pop %v3268
      %v3321 = vmul.f32 8.0, %v3320
      %v3322 = vrcp.pop %v3269
      %v3323 = vmul.f32 8.0, %v3322
      %v3324 = vrcp.pop %v3270
      %v3325 = vmul.f32 8.0, %v3324
      %v3326 = vrcp.pop %v3271
      %v3327 = vmul.f32 8.0, %v3326
      %v3328 = vrcp.pop %v3272
      %v3329 = vmul.f32 8.0, %v3328
      %v3330 = vrcp.pop %v3273
      %v3331 = vmul.f32 8.0, %v3330
      %v3332 = vrcp.pop %v3274
      %v3333 = vmul.f32 8.0, %v3332
      %v3334 = vrcp.pop %v3275
      %v3335 = vmul.f32 8.0, %v3334
      %v3336 = vrcp.pop %v3276
      %v3337 = vmul.f32 8.0, %v3336
      %v3338 = vrcp.pop %v3277
      %v3339 = vmul.f32 8.0, %v3338
      %v3340 = vrcp.pop %v3278
      %v3341 = vmul.f32 8.0, %v3340
      %v3342 = vrcp.pop %v3279
      %v3343 = vmul.f32 8.0, %v3342
      %v3344 = vmul.f32 %v2802, %v3281
      %v3345 = vmul.f32 %v2805, %v3283
      %v3346 = vmul.f32 %v2810, %v3285
      %v3347 = vmul.f32 %v2813, %v3287
      %v3348 = vmul.f32 %v2818, %v3289
      %v3349 = vmul.f32 %v2821, %v3291
      %v3350 = vmul.f32 %v2826, %v3293
      %v3351 = vmul.f32 %v2829, %v3295
      %v3352 = vmul.f32 %v2834, %v3297
      %v3353 = vmul.f32 %v2837, %v3299
      %v3354 = vmul.f32 %v2842, %v3301
      %v3355 = vmul.f32 %v2845, %v3303
      %v3356 = vmul.f32 %v2850, %v3305
      %v3357 = vmul.f32 %v2853, %v3307
      %v3358 = vmul.f32 %v2858, %v3309
      %v3359 = vmul.f32 %v2861, %v3311
      %v3360 = vmul.f32 %v2866, %v3313
      %v3361 = vmul.f32 %v2869, %v3315
      %v3362 = vmul.f32 %v2874, %v3317
      %v3363 = vmul.f32 %v2877, %v3319
      %v3364 = vmul.f32 %v2882, %v3321
      %v3365 = vmul.f32 %v2885, %v3323
      %v3366 = vmul.f32 %v2890, %v3325
      %v3367 = vmul.f32 %v2893, %v3327
      %v3368 = vmul.f32 %v2898, %v3329
      %v3369 = vmul.f32 %v2901, %v3331
      %v3370 = vmul.f32 %v2906, %v3333
      %v3371 = vmul.f32 %v2909, %v3335
      %v3372 = vmul.f32 %v2914, %v3337
      %v3373 = vmul.f32 %v2917, %v3339
      %v3374 = vmul.f32 %v2922, %v3341
      %v3375 = vmul.f32 %v2925, %v3343
      %v3376 = vld [vmem:[%s4] sm:$0x1]
      %v3378 = vlaneseq
      %v3379 = vshrl.u32 %v3378, 7
      %v3380 = vsub.s32 0, %v3379
      %v3381 = vrot.slane %v3376, %v3380
      %v3383 = vmul.f32 %v3344, %v3381
      %v3384 = vmul.f32 %v3345, %v3381
      %v3385 = vmul.f32 %v3346, %v3381
      %v3386 = vmul.f32 %v3347, %v3381
      %v3387 = vmul.f32 %v3348, %v3381
      %v3388 = vmul.f32 %v3349, %v3381
      %v3389 = vmul.f32 %v3350, %v3381
      %v3390 = vmul.f32 %v3351, %v3381
      %v3391 = vmul.f32 %v3352, %v3381
      %v3392 = vmul.f32 %v3353, %v3381
      %v3393 = vmul.f32 %v3354, %v3381
      %v3394 = vmul.f32 %v3355, %v3381
      %v3395 = vmul.f32 %v3356, %v3381
      %v3396 = vmul.f32 %v3357, %v3381
      %v3397 = vmul.f32 %v3358, %v3381
      %v3398 = vmul.f32 %v3359, %v3381
      %v3399 = vmul.f32 %v3360, %v3381
      %v3400 = vmul.f32 %v3361, %v3381
      %v3401 = vmul.f32 %v3362, %v3381
      %v3402 = vmul.f32 %v3363, %v3381
      %v3403 = vmul.f32 %v3364, %v3381
      %v3404 = vmul.f32 %v3365, %v3381
      %v3405 = vmul.f32 %v3366, %v3381
      %v3406 = vmul.f32 %v3367, %v3381
      %v3407 = vmul.f32 %v3368, %v3381
      %v3408 = vmul.f32 %v3369, %v3381
      %v3409 = vmul.f32 %v3370, %v3381
      %v3410 = vmul.f32 %v3371, %v3381
      %v3411 = vmul.f32 %v3372, %v3381
      %v3412 = vmul.f32 %v3373, %v3381
      %v3413 = vmul.f32 %v3374, %v3381
      %v3414 = vmul.f32 %v3375, %v3381
      %v3415 = vxor.u32 %v3383, 2147483648
      %v3416 = vxor.u32 %v3384, 2147483648
      %v3417 = vxor.u32 %v3385, 2147483648
      %v3418 = vxor.u32 %v3386, 2147483648
      %v3419 = vxor.u32 %v3387, 2147483648
      %v3420 = vxor.u32 %v3388, 2147483648
      %v3421 = vxor.u32 %v3389, 2147483648
      %v3422 = vxor.u32 %v3390, 2147483648
      %v3423 = vxor.u32 %v3391, 2147483648
      %v3424 = vxor.u32 %v3392, 2147483648
      %v3425 = vxor.u32 %v3393, 2147483648
      %v3426 = vxor.u32 %v3394, 2147483648
      %v3427 = vxor.u32 %v3395, 2147483648
      %v3428 = vxor.u32 %v3396, 2147483648
      %v3429 = vxor.u32 %v3397, 2147483648
      %v3430 = vxor.u32 %v3398, 2147483648
      %v3431 = vxor.u32 %v3399, 2147483648
      %v3432 = vxor.u32 %v3400, 2147483648
      %v3433 = vxor.u32 %v3401, 2147483648
      %v3434 = vxor.u32 %v3402, 2147483648
      %v3435 = vxor.u32 %v3403, 2147483648
      %v3436 = vxor.u32 %v3404, 2147483648
      %v3437 = vxor.u32 %v3405, 2147483648
      %v3438 = vxor.u32 %v3406, 2147483648
      %v3439 = vxor.u32 %v3407, 2147483648
      %v3440 = vxor.u32 %v3408, 2147483648
      %v3441 = vxor.u32 %v3409, 2147483648
      %v3442 = vxor.u32 %v3410, 2147483648
      %v3443 = vxor.u32 %v3411, 2147483648
      %v3444 = vxor.u32 %v3412, 2147483648
      %v3445 = vxor.u32 %v3413, 2147483648
      %v3446 = vxor.u32 %v3414, 2147483648
      %v3447 = vmul.f32 %v3415, 1.442695
      %v3448 = vpow.pop %v3447
      %v3449 = vmul.f32 %v3416, 1.442695
      %v3450 = vpow.pop %v3449
      %v3451 = vmul.f32 %v3417, 1.442695
      %v3452 = vpow.pop %v3451
      %v3453 = vmul.f32 %v3418, 1.442695
      %v3454 = vpow.pop %v3453
      %v3455 = vmul.f32 %v3419, 1.442695
      %v3456 = vpow.pop %v3455
      %v3457 = vmul.f32 %v3420, 1.442695
      %v3458 = vpow.pop %v3457
      %v3459 = vmul.f32 %v3421, 1.442695
      %v3460 = vpow.pop %v3459
      %v3461 = vmul.f32 %v3422, 1.442695
      %v3462 = vpow.pop %v3461
      %v3463 = vmul.f32 %v3423, 1.442695
      %v3464 = vpow.pop %v3463
      %v3465 = vmul.f32 %v3424, 1.442695
      %v3466 = vpow.pop %v3465
      %v3467 = vmul.f32 %v3425, 1.442695
      %v3468 = vpow.pop %v3467
      %v3469 = vmul.f32 %v3426, 1.442695
      %v3470 = vpow.pop %v3469
      %v3471 = vmul.f32 %v3427, 1.442695
      %v3472 = vpow.pop %v3471
      %v3473 = vmul.f32 %v3428, 1.442695
      %v3474 = vpow.pop %v3473
      %v3475 = vmul.f32 %v3429, 1.442695
      %v3476 = vpow.pop %v3475
      %v3477 = vmul.f32 %v3430, 1.442695
      %v3478 = vpow.pop %v3477
      %v3479 = vmul.f32 %v3431, 1.442695
      %v3480 = vpow.pop %v3479
      %v3481 = vmul.f32 %v3432, 1.442695
      %v3482 = vpow.pop %v3481
      %v3483 = vmul.f32 %v3433, 1.442695
      %v3484 = vpow.pop %v3483
      %v3485 = vmul.f32 %v3434, 1.442695
      %v3486 = vpow.pop %v3485
      %v3487 = vmul.f32 %v3435, 1.442695
      %v3488 = vpow.pop %v3487
      %v3489 = vmul.f32 %v3436, 1.442695
      %v3490 = vpow.pop %v3489
      %v3491 = vmul.f32 %v3437, 1.442695
      %v3492 = vpow.pop %v3491
      %v3493 = vmul.f32 %v3438, 1.442695
      %v3494 = vpow.pop %v3493
      %v3495 = vmul.f32 %v3439, 1.442695
      %v3496 = vpow.pop %v3495
      %v3497 = vmul.f32 %v3440, 1.442695
      %v3498 = vpow.pop %v3497
      %v3499 = vmul.f32 %v3441, 1.442695
      %v3500 = vpow.pop %v3499
      %v3501 = vmul.f32 %v3442, 1.442695
      %v3502 = vpow.pop %v3501
      %v3503 = vmul.f32 %v3443, 1.442695
      %v3504 = vpow.pop %v3503
      %v3505 = vmul.f32 %v3444, 1.442695
      %v3506 = vpow.pop %v3505
      %v3507 = vmul.f32 %v3445, 1.442695
      %v3508 = vpow.pop %v3507
      %v3509 = vmul.f32 %v3446, 1.442695
      %v3510 = vpow.pop %v3509
      %v3511 = vadd.f32 %v3448, 1.0
      %v3512 = vadd.f32 %v3450, 1.0
      %v3513 = vadd.f32 %v3452, 1.0
      %v3514 = vadd.f32 %v3454, 1.0
      %v3515 = vadd.f32 %v3456, 1.0
      %v3516 = vadd.f32 %v3458, 1.0
      %v3517 = vadd.f32 %v3460, 1.0
      %v3518 = vadd.f32 %v3462, 1.0
      %v3519 = vadd.f32 %v3464, 1.0
      %v3520 = vadd.f32 %v3466, 1.0
      %v3521 = vadd.f32 %v3468, 1.0
      %v3522 = vadd.f32 %v3470, 1.0
      %v3523 = vadd.f32 %v3472, 1.0
      %v3524 = vadd.f32 %v3474, 1.0
      %v3525 = vadd.f32 %v3476, 1.0
      %v3526 = vadd.f32 %v3478, 1.0
      %v3527 = vadd.f32 %v3480, 1.0
      %v3528 = vadd.f32 %v3482, 1.0
      %v3529 = vadd.f32 %v3484, 1.0
      %v3530 = vadd.f32 %v3486, 1.0
      %v3531 = vadd.f32 %v3488, 1.0
      %v3532 = vadd.f32 %v3490, 1.0
      %v3533 = vadd.f32 %v3492, 1.0
      %v3534 = vadd.f32 %v3494, 1.0
      %v3535 = vadd.f32 %v3496, 1.0
      %v3536 = vadd.f32 %v3498, 1.0
      %v3537 = vadd.f32 %v3500, 1.0
      %v3538 = vadd.f32 %v3502, 1.0
      %v3539 = vadd.f32 %v3504, 1.0
      %v3540 = vadd.f32 %v3506, 1.0
      %v3541 = vadd.f32 %v3508, 1.0
      %v3542 = vadd.f32 %v3510, 1.0
      %v3543 = vrcp.pop %v3511
      %v3544 = vmul.f32 1.0, %v3543
      %v3545 = vrcp.pop %v3512
      %v3546 = vmul.f32 1.0, %v3545
      %v3547 = vrcp.pop %v3513
      %v3548 = vmul.f32 1.0, %v3547
      %v3549 = vrcp.pop %v3514
      %v3550 = vmul.f32 1.0, %v3549
      %v3551 = vrcp.pop %v3515
      %v3552 = vmul.f32 1.0, %v3551
      %v3553 = vrcp.pop %v3516
      %v3554 = vmul.f32 1.0, %v3553
      %v3555 = vrcp.pop %v3517
      %v3556 = vmul.f32 1.0, %v3555
      %v3557 = vrcp.pop %v3518
      %v3558 = vmul.f32 1.0, %v3557
      %v3559 = vrcp.pop %v3519
      %v3560 = vmul.f32 1.0, %v3559
      %v3561 = vrcp.pop %v3520
      %v3562 = vmul.f32 1.0, %v3561
      %v3563 = vrcp.pop %v3521
      %v3564 = vmul.f32 1.0, %v3563
      %v3565 = vrcp.pop %v3522
      %v3566 = vmul.f32 1.0, %v3565
      %v3567 = vrcp.pop %v3523
      %v3568 = vmul.f32 1.0, %v3567
      %v3569 = vrcp.pop %v3524
      %v3570 = vmul.f32 1.0, %v3569
      %v3571 = vrcp.pop %v3525
      %v3572 = vmul.f32 1.0, %v3571
      %v3573 = vrcp.pop %v3526
      %v3574 = vmul.f32 1.0, %v3573
      %v3575 = vrcp.pop %v3527
      %v3576 = vmul.f32 1.0, %v3575
      %v3577 = vrcp.pop %v3528
      %v3578 = vmul.f32 1.0, %v3577
      %v3579 = vrcp.pop %v3529
      %v3580 = vmul.f32 1.0, %v3579
      %v3581 = vrcp.pop %v3530
      %v3582 = vmul.f32 1.0, %v3581
      %v3583 = vrcp.pop %v3531
      %v3584 = vmul.f32 1.0, %v3583
      %v3585 = vrcp.pop %v3532
      %v3586 = vmul.f32 1.0, %v3585
      %v3587 = vrcp.pop %v3533
      %v3588 = vmul.f32 1.0, %v3587
      %v3589 = vrcp.pop %v3534
      %v3590 = vmul.f32 1.0, %v3589
      %v3591 = vrcp.pop %v3535
      %v3592 = vmul.f32 1.0, %v3591
      %v3593 = vrcp.pop %v3536
      %v3594 = vmul.f32 1.0, %v3593
      %v3595 = vrcp.pop %v3537
      %v3596 = vmul.f32 1.0, %v3595
      %v3597 = vrcp.pop %v3538
      %v3598 = vmul.f32 1.0, %v3597
      %v3599 = vrcp.pop %v3539
      %v3600 = vmul.f32 1.0, %v3599
      %v3601 = vrcp.pop %v3540
      %v3602 = vmul.f32 1.0, %v3601
      %v3603 = vrcp.pop %v3541
      %v3604 = vmul.f32 1.0, %v3603
      %v3605 = vrcp.pop %v3542
      %v3606 = vmul.f32 1.0, %v3605
      %v3607 = vmul.f32 %v3383, %v3544
      %v3608 = vmul.f32 %v3384, %v3546
      %v3609 = vmul.f32 %v3385, %v3548
      %v3610 = vmul.f32 %v3386, %v3550
      %v3611 = vmul.f32 %v3387, %v3552
      %v3612 = vmul.f32 %v3388, %v3554
      %v3613 = vmul.f32 %v3389, %v3556
      %v3614 = vmul.f32 %v3390, %v3558
      %v3615 = vmul.f32 %v3391, %v3560
      %v3616 = vmul.f32 %v3392, %v3562
      %v3617 = vmul.f32 %v3393, %v3564
      %v3618 = vmul.f32 %v3394, %v3566
      %v3619 = vmul.f32 %v3395, %v3568
      %v3620 = vmul.f32 %v3396, %v3570
      %v3621 = vmul.f32 %v3397, %v3572
      %v3622 = vmul.f32 %v3398, %v3574
      %v3623 = vmul.f32 %v3399, %v3576
      %v3624 = vmul.f32 %v3400, %v3578
      %v3625 = vmul.f32 %v3401, %v3580
      %v3626 = vmul.f32 %v3402, %v3582
      %v3627 = vmul.f32 %v3403, %v3584
      %v3628 = vmul.f32 %v3404, %v3586
      %v3629 = vmul.f32 %v3405, %v3588
      %v3630 = vmul.f32 %v3406, %v3590
      %v3631 = vmul.f32 %v3407, %v3592
      %v3632 = vmul.f32 %v3408, %v3594
      %v3633 = vmul.f32 %v3409, %v3596
      %v3634 = vmul.f32 %v3410, %v3598
      %v3635 = vmul.f32 %v3411, %v3600
      %v3636 = vmul.f32 %v3412, %v3602
      %v3637 = vmul.f32 %v3413, %v3604
      %v3638 = vmul.f32 %v3414, %v3606
      %v3639 = vpack.c.bf16 %v3608, %v3607
      %v3640 = vpack.c.bf16 %v3610, %v3609
      %v3641 = vpack.c.bf16 %v3612, %v3611
      %v3642 = vpack.c.bf16 %v3614, %v3613
      %v3643 = vpack.c.bf16 %v3616, %v3615
      %v3644 = vpack.c.bf16 %v3618, %v3617
      %v3645 = vpack.c.bf16 %v3620, %v3619
      %v3646 = vpack.c.bf16 %v3622, %v3621
      %v3647 = vpack.c.bf16 %v3624, %v3623
      %v3648 = vpack.c.bf16 %v3626, %v3625
      %v3649 = vpack.c.bf16 %v3628, %v3627
      %v3650 = vpack.c.bf16 %v3630, %v3629
      %v3651 = vpack.c.bf16 %v3632, %v3631
      %v3652 = vpack.c.bf16 %v3634, %v3633
      %v3653 = vpack.c.bf16 %v3636, %v3635
      %v3654 = vpack.c.bf16 %v3638, %v3637
      %v3671 = vunpack.c.l.b16 %v3639
      %v3672 = vunpack.c.h.b16 %v3639
      %v3673 = vunpack.c.l.b16 %v3640
      %v3674 = vunpack.c.h.b16 %v3640
      %v3675 = vunpack.c.l.b16 %v3641
      %v3676 = vunpack.c.h.b16 %v3641
      %v3677 = vunpack.c.l.b16 %v3642
      %v3678 = vunpack.c.h.b16 %v3642
      %v3679 = vunpack.c.l.b16 %v3643
      %v3680 = vunpack.c.h.b16 %v3643
      %v3681 = vunpack.c.l.b16 %v3644
      %v3682 = vunpack.c.h.b16 %v3644
      %v3683 = vunpack.c.l.b16 %v3645
      %v3684 = vunpack.c.h.b16 %v3645
      %v3685 = vunpack.c.l.b16 %v3646
      %v3686 = vunpack.c.h.b16 %v3646
      %v3687 = vunpack.c.l.b16 %v3647
      %v3688 = vunpack.c.h.b16 %v3647
      %v3689 = vunpack.c.l.b16 %v3648
      %v3690 = vunpack.c.h.b16 %v3648
      %v3691 = vunpack.c.l.b16 %v3649
      %v3692 = vunpack.c.h.b16 %v3649
      %v3693 = vunpack.c.l.b16 %v3650
      %v3694 = vunpack.c.h.b16 %v3650
      %v3695 = vunpack.c.l.b16 %v3651
      %v3696 = vunpack.c.h.b16 %v3651
      %v3697 = vunpack.c.l.b16 %v3652
      %v3698 = vunpack.c.h.b16 %v3652
      %v3699 = vunpack.c.l.b16 %v3653
      %v3700 = vunpack.c.h.b16 %v3653
      %v3701 = vunpack.c.l.b16 %v3654
      %v3702 = vunpack.c.h.b16 %v3654
      %v3703 = vpack.c.b16 %v3671, %v3671
      %v3704 = vpack.c.b16 %v3672, %v3672
      %v3705 = vpack.c.b16 %v3673, %v3673
      %v3706 = vpack.c.b16 %v3674, %v3674
      %v3707 = vpack.c.b16 %v3675, %v3675
      %v3708 = vpack.c.b16 %v3676, %v3676
      %v3709 = vpack.c.b16 %v3677, %v3677
      %v3710 = vpack.c.b16 %v3678, %v3678
      %v3711 = vpack.c.b16 %v3679, %v3679
      %v3712 = vpack.c.b16 %v3680, %v3680
      %v3713 = vpack.c.b16 %v3681, %v3681
      %v3714 = vpack.c.b16 %v3682, %v3682
      %v3715 = vpack.c.b16 %v3683, %v3683
      %v3716 = vpack.c.b16 %v3684, %v3684
      %v3717 = vpack.c.b16 %v3685, %v3685
      %v3718 = vpack.c.b16 %v3686, %v3686
      %v3719 = vpack.c.b16 %v3687, %v3687
      %v3720 = vpack.c.b16 %v3688, %v3688
      %v3721 = vpack.c.b16 %v3689, %v3689
      %v3722 = vpack.c.b16 %v3690, %v3690
      %v3723 = vpack.c.b16 %v3691, %v3691
      %v3724 = vpack.c.b16 %v3692, %v3692
      %v3725 = vpack.c.b16 %v3693, %v3693
      %v3726 = vpack.c.b16 %v3694, %v3694
      %v3727 = vpack.c.b16 %v3695, %v3695
      %v3728 = vpack.c.b16 %v3696, %v3696
      %v3729 = vpack.c.b16 %v3697, %v3697
      %v3730 = vpack.c.b16 %v3698, %v3698
      %v3731 = vpack.c.b16 %v3699, %v3699
      %v3732 = vpack.c.b16 %v3700, %v3700
      %v3733 = vpack.c.b16 %v3701, %v3701
      %v3734 = vpack.c.b16 %v3702, %v3702
      %3767 = vst [vmem:[%s246] sm:$0xf] %v3703
      %3768 = vst [vmem:[%s246 + $0x4] sm:$0xf] %v3704
      %3769 = vst [vmem:[%s246 + $0x8] sm:$0xf] %v3705
      %3770 = vst [vmem:[%s246 + $0xc] sm:$0xf] %v3706
      %3771 = vst [vmem:[%s246 + $0x10] sm:$0xf] %v3707
      %3772 = vst [vmem:[%s246 + $0x14] sm:$0xf] %v3708
      %3773 = vst [vmem:[%s246 + $0x18] sm:$0xf] %v3709
      %3774 = vst [vmem:[%s246 + $0x1c] sm:$0xf] %v3710
      %3775 = vst [vmem:[%s246 + $0x20] sm:$0xf] %v3711
      %3776 = vst [vmem:[%s246 + $0x24] sm:$0xf] %v3712
      %3777 = vst [vmem:[%s246 + $0x28] sm:$0xf] %v3713
      %3778 = vst [vmem:[%s246 + $0x2c] sm:$0xf] %v3714
      %3779 = vst [vmem:[%s246 + $0x30] sm:$0xf] %v3715
      %3780 = vst [vmem:[%s246 + $0x34] sm:$0xf] %v3716
      %3781 = vst [vmem:[%s246 + $0x38] sm:$0xf] %v3717
      %3782 = vst [vmem:[%s246 + $0x3c] sm:$0xf] %v3718
      %3783 = vst [vmem:[%s246 + $0x40] sm:$0xf] %v3719
      %3784 = vst [vmem:[%s246 + $0x44] sm:$0xf] %v3720
      %3785 = vst [vmem:[%s246 + $0x48] sm:$0xf] %v3721
      %3786 = vst [vmem:[%s246 + $0x4c] sm:$0xf] %v3722
      %3787 = vst [vmem:[%s246 + $0x50] sm:$0xf] %v3723
      %3788 = vst [vmem:[%s246 + $0x54] sm:$0xf] %v3724
      %3789 = vst [vmem:[%s246 + $0x58] sm:$0xf] %v3725
      %3790 = vst [vmem:[%s246 + $0x5c] sm:$0xf] %v3726
      %3791 = vst [vmem:[%s246 + $0x60] sm:$0xf] %v3727
      %3792 = vst [vmem:[%s246 + $0x64] sm:$0xf] %v3728
      %3793 = vst [vmem:[%s246 + $0x68] sm:$0xf] %v3729
      %3794 = vst [vmem:[%s246 + $0x6c] sm:$0xf] %v3730
      %3795 = vst [vmem:[%s246 + $0x70] sm:$0xf] %v3731
      %3796 = vst [vmem:[%s246 + $0x74] sm:$0xf] %v3732
      %3797 = vst [vmem:[%s246 + $0x78] sm:$0xf] %v3733
      %3798 = vst [vmem:[%s246 + $0x7c] sm:$0xf] %v3734
      %p3799 = scmp.lt.s32.totalorder %s20, 1
      %s3800 = scalar_select %p3799, %s20, 1
      %p3801 = scmp.lt.s32.totalorder %s21, 0
      %s3802 = scalar_select %p3801, %s21, 0
      %s3803 = smul.addr %s3802, 32
      %s3804 = smul.addr %s3800, 32
      %s3805 = sadd.s32 %s3803, %s3804
      %s3806 = smul.addr %s3805, 4
      %s3807 = scalar_lea.vmem %s5, %s3806
      // Predicated region
      $region41: #{_lambda_.9} parent=39 // pred_check
        %p3808 = pneg %p158
      $region42: #{_lambda_.9} parent=39 // pred_check_branch
        %3810 = sbr.rel (%p3808) target = $region44
      $region43: #{_lambda_.9} parent=39 // pred_region
        _
      $region44: #{_lambda_.9} parent=39 // pred_fallthru
        _
    $region40: #{_lambda_.9} parent=5 // pred_fallthru
      _
    %p3811 = scmp.le.s32.totalorder 2, %s11
    // Predicated region
    $region45: #{_lambda_.9} parent=5 // pred_check
      %p3812 = pneg %p3811
    $region46: #{_lambda_.9} parent=5 // pred_check_branch
      %3814 = sbr.rel (%p3812) target = $region48
    $region47: #{_lambda_.9} parent=5 // pred_region
      %s3815 = ssub.s32 %s11, 2
      // Predicated region
      $region49: #{_lambda_.9} parent=47 // pred_check
        %p3816 = pneg %p164
      $region50: #{_lambda_.9} parent=47 // pred_check_branch
        %3818 = sbr.rel (%p3816) target = $region52
      $region51: #{_lambda_.9} parent=47 // pred_region
        %p3819 = scmp.lt.s32.totalorder %s22, 1
        %s3820 = scalar_select %p3819, %s22, 1
        %p3821 = scmp.lt.s32.totalorder %s23, 0
        %s3822 = scalar_select %p3821, %s23, 0
        %s3823 = smul.addr %s3822, 32
        %s3824 = smul.addr %s3820, 32
        %s3825 = sadd.s32 %s3823, %s3824
        %s3826 = smul.addr %s3825, 4
        %s3827 = scalar_lea.vmem %s5, %s3826
      $region52: #{_lambda_.9} parent=47 // pred_fallthru
        _
    $region48: #{_lambda_.9} parent=5 // pred_fallthru
      _
  $region6: #{_lambda_.9} parent=0 // loop_footer
    %s15 = sadd.s32 1, %s11
  $region7: #{_lambda_.9} parent=0 // loop_footer_branch
    %10 = sbr.rel target = $region3
  $region8: #{_lambda_.9} parent=0 // loop_exit
    _

// kernel: _lambda_.11
$region0: #{_lambda_.11}
  #allocation0 [shape = 'u32[]', space=smem, size = 0x4, offset = 0x4, fixed_abs, tag = 'smem constant byte address 0x4 - core index']
  #allocation1 [shape = 'u32[144,128]{1,0:T(1,128)}', space=vmem, size = 0x12000, scoped, tag = 'internal scratch']
  %s0 = inlined_call_operand.vmem [shape: bf16[2,1,9,9,512], index: 0, kind: input, shape index: {}]
  %s1 = inlined_call_operand.vmem [shape: bf16[1152,128], index: 1, kind: input, shape index: {}]
  %s2 = inlined_call_operand.vmem [shape: f32[1,128], index: 2, kind: input, shape index: {}]
  %s3 = inlined_call_operand.vmem [shape: f32[2,1,8,8,128], index: 3, kind: input, shape index: {}]
  %s4 = inlined_call_operand.vmem [shape: f32[2,1,8,8,128], index: 4, kind: output, shape index: {}]
  %s5 = sld [smem:[#allocation0]]
  $region49: #{_lambda_.11} parent=0
    _
  %s7 = ssub.s32 1, %s5
  %s8 = scalar_select 0, %s7, %s5
  loop: start=0, step=1, limit=4
  $region2: #{_lambda_.11} parent=0 // loop_pre_header
    _
  $region3: #{_lambda_.11} parent=0 // loop_header
    %s10 = sphi 0, %s14
    %p11 = scmp.ge.s32.totalorder %s10, 4
    %s17 = sphi 0, %s29
    %s18 = sphi 0, %s25
    %s19 = sphi 0, %s17
    %s20 = sphi 0, %s18
    %s21 = sphi 0, %s19
    %s22 = sphi 0, %s20
    %s32 = sphi 0, %s34
    %s35 = sphi 0, %s32
    %s36 = sphi 0, %s35
    %s52 = sphi 0, %s36
    %s56 = sphi 0, %s56
    %s58 = sphi 0, %s56
    %s59 = sphi 0, %s58
    %s73 = sphi 0, %s59
    %s77 = sphi 0, %s77
    %s79 = sphi 0, %s77
    %s80 = sphi 0, %s79
    %s94 = sphi 0, %s80
    %s102 = sphi 0, %s104
    %s105 = sphi 0, %s102
    %s106 = sphi 0, %s105
    %s122 = sphi 0, %s106
    %s130 = sphi 0, %s132
    %s133 = sphi 0, %s130
    %s134 = sphi 0, %s133
    %s150 = sphi 0, %s134
  $region4: #{_lambda_.11} parent=0 // loop_header_branch
    %13 = sbr.rel (%p11) target = $region8
  $region5: #{_lambda_.11} parent=0 // loop_body
    %s15 = ssub.s32 %s10, 1
    %s16 = ssub.s32 %s10, 2
    %s23 = sadd.s32 1, %s18
    %p24 = scmp.ge.s32.totalorder %s23, 1
    %s25 = scalar_select %p24, 0, %s23
    %s26 = sadd.s32 1, %s17
    %s27 = scalar_select %p24, %s26, %s17
    %p28 = scmp.ge.s32.totalorder %s27, 2
    %s29 = scalar_select %p28, 0, %s27
    %s30 = ssub.s32 %s17, %s29
    %p31 = scmp.eq.s32.totalorder %s30, 0
    %s33 = sadd.s32 %s32, 1
    %s34 = scalar_select %p31, %s32, %s33
    %p37 = pneg %p31
    %p38 = scmp.eq.s32.totalorder %s10, 1
    %p39 = por %p37, %p38
    %p40 = scmp.ne.s32.totalorder %s32, %s35
    %p41 = scmp.eq.s32.totalorder %s10, 0
    %p42 = por %p40, %p41
    %p43 = scmp.ne.s32.totalorder %s32, %s35
    %p44 = scmp.eq.s32.totalorder %s15, 1
    %p45 = por %p43, %p44
    %p46 = scmp.ne.s32.totalorder %s35, %s36
    %p47 = scmp.eq.s32.totalorder %s15, 0
    %p48 = por %p46, %p47
    %p49 = scmp.ne.s32.totalorder %s35, %s36
    %p50 = scmp.eq.s32.totalorder %s16, 1
    %p51 = por %p49, %p50
    %p53 = scmp.ne.s32.totalorder %s36, %s52
    %p54 = scmp.eq.s32.totalorder %s16, 0
    %p55 = por %p53, %p54
    %s57 = sadd.s32 %s56, 1
    %p60 = scmp.eq.s32.totalorder %s10, 1
    %p61 = scmp.ne.s32.totalorder %s56, %s58
    %p62 = scmp.eq.s32.totalorder %s10, 0
    %p63 = por %p61, %p62
    %p64 = scmp.ne.s32.totalorder %s56, %s58
    %p65 = scmp.eq.s32.totalorder %s15, 1
    %p66 = por %p64, %p65
    %p67 = scmp.ne.s32.totalorder %s58, %s59
    %p68 = scmp.eq.s32.totalorder %s15, 0
    %p69 = por %p67, %p68
    %p70 = scmp.ne.s32.totalorder %s58, %s59
    %p71 = scmp.eq.s32.totalorder %s16, 1
    %p72 = por %p70, %p71
    %p74 = scmp.ne.s32.totalorder %s59, %s73
    %p75 = scmp.eq.s32.totalorder %s16, 0
    %p76 = por %p74, %p75
    %s78 = sadd.s32 %s77, 1
    %p81 = scmp.eq.s32.totalorder %s10, 1
    %p82 = scmp.ne.s32.totalorder %s77, %s79
    %p83 = scmp.eq.s32.totalorder %s10, 0
    %p84 = por %p82, %p83
    %p85 = scmp.ne.s32.totalorder %s77, %s79
    %p86 = scmp.eq.s32.totalorder %s15, 1
    %p87 = por %p85, %p86
    %p88 = scmp.ne.s32.totalorder %s79, %s80
    %p89 = scmp.eq.s32.totalorder %s15, 0
    %p90 = por %p88, %p89
    %p91 = scmp.ne.s32.totalorder %s79, %s80
    %p92 = scmp.eq.s32.totalorder %s16, 1
    %p93 = por %p91, %p92
    %p95 = scmp.ne.s32.totalorder %s80, %s94
    %p96 = scmp.eq.s32.totalorder %s16, 0
    %p97 = por %p95, %p96
    %s98 = ssub.s32 %s17, %s29
    %s99 = ssub.s32 %s18, %s25
    %s100 = sor.u32 %s98, %s99
    %p101 = scmp.eq.s32.totalorder %s100, 0
    %s103 = sadd.s32 %s102, 1
    %s104 = scalar_select %p101, %s102, %s103
    %p107 = pneg %p101
    %p108 = scmp.eq.s32.totalorder %s10, 1
    %p109 = por %p107, %p108
    %p110 = scmp.ne.s32.totalorder %s102, %s105
    %p111 = scmp.eq.s32.totalorder %s10, 0
    %p112 = por %p110, %p111
    %p113 = scmp.ne.s32.totalorder %s102, %s105
    %p114 = scmp.eq.s32.totalorder %s15, 1
    %p115 = por %p113, %p114
    %p116 = scmp.ne.s32.totalorder %s105, %s106
    %p117 = scmp.eq.s32.totalorder %s15, 0
    %p118 = por %p116, %p117
    %p119 = scmp.ne.s32.totalorder %s105, %s106
    %p120 = scmp.eq.s32.totalorder %s16, 1
    %p121 = por %p119, %p120
    %p123 = scmp.ne.s32.totalorder %s106, %s122
    %p124 = scmp.eq.s32.totalorder %s16, 0
    %p125 = por %p123, %p124
    %s126 = ssub.s32 %s17, %s29
    %s127 = ssub.s32 %s18, %s25
    %s128 = sor.u32 %s126, %s127
    %p129 = scmp.eq.s32.totalorder %s128, 0
    %s131 = sadd.s32 %s130, 1
    %s132 = scalar_select %p129, %s130, %s131
    %p135 = pneg %p129
    %p136 = scmp.eq.s32.totalorder %s10, 1
    %p137 = por %p135, %p136
    %p138 = scmp.ne.s32.totalorder %s130, %s133
    %p139 = scmp.eq.s32.totalorder %s10, 0
    %p140 = por %p138, %p139
    %p141 = scmp.ne.s32.totalorder %s130, %s133
    %p142 = scmp.eq.s32.totalorder %s15, 1
    %p143 = por %p141, %p142
    %p144 = scmp.ne.s32.totalorder %s133, %s134
    %p145 = scmp.eq.s32.totalorder %s15, 0
    %p146 = por %p144, %p145
    %p147 = scmp.ne.s32.totalorder %s133, %s134
    %p148 = scmp.eq.s32.totalorder %s16, 1
    %p149 = por %p147, %p148
    %p151 = scmp.ne.s32.totalorder %s134, %s150
    %p152 = scmp.eq.s32.totalorder %s16, 0
    %p153 = por %p151, %p152
    %p154 = scmp.le.s32.totalorder 1, %s10
    %p155 = scmp.lt.s32.totalorder %s10, 3
    %p156 = pnand %p154, %p155
    %p157 = pneg %p156
    // Predicated region
    $region9: #{_lambda_.11} parent=5 // pred_check
      _
    $region10: #{_lambda_.11} parent=5 // pred_check_branch
      %159 = sbr.rel (%p156) target = $region12
    $region11: #{_lambda_.11} parent=5 // pred_region
      %s160 = ssub.s32 %s10, 1
      // Predicated region
      $region13: #{_lambda_.11} parent=11 // pred_check
        %p161 = pneg %p69
      $region14: #{_lambda_.11} parent=11 // pred_check_branch
        %163 = sbr.rel (%p161) target = $region16
      $region15: #{_lambda_.11} parent=11 // pred_region
        _
      $region16: #{_lambda_.11} parent=11 // pred_fallthru
        _
      // Predicated region
      $region17: #{_lambda_.11} parent=11 // pred_check
        %p164 = pneg %p90
      $region18: #{_lambda_.11} parent=11 // pred_check_branch
        %166 = sbr.rel (%p164) target = $region20
      $region19: #{_lambda_.11} parent=11 // pred_region
        _
      $region20: #{_lambda_.11} parent=11 // pred_fallthru
        _
    $region12: #{_lambda_.11} parent=5 // pred_fallthru
      _
    %p167 = scmp.lt.s32.totalorder %s10, 2
    // Predicated region
    $region21: #{_lambda_.11} parent=5 // pred_check
      %p168 = pneg %p167
    $region22: #{_lambda_.11} parent=5 // pred_check_branch
      %170 = sbr.rel (%p168) target = $region24
    $region23: #{_lambda_.11} parent=5 // pred_region
      // Predicated region
      $region25: #{_lambda_.11} parent=23 // pred_check
        %p171 = pneg %p42
      $region26: #{_lambda_.11} parent=23 // pred_check_branch
        %173 = sbr.rel (%p171) target = $region28
      $region27: #{_lambda_.11} parent=23 // pred_region
        %p174 = scmp.lt.s32.totalorder %s17, 1
        %s175 = scalar_select %p174, %s17, 1
        %s176 = smul.addr %s175, 72
        %s177 = smul.addr %s176, 4
        %s178 = scalar_lea.vmem %s0, %s177
      $region28: #{_lambda_.11} parent=23 // pred_fallthru
        _
      // Predicated region
      $region29: #{_lambda_.11} parent=23 // pred_check
        %p179 = pneg %p112
      $region30: #{_lambda_.11} parent=23 // pred_check_branch
        %181 = sbr.rel (%p179) target = $region32
      $region31: #{_lambda_.11} parent=23 // pred_region
        %p182 = scmp.lt.s32.totalorder %s17, 1
        %s183 = scalar_select %p182, %s17, 1
        %p184 = scmp.lt.s32.totalorder %s18, 0
        %s185 = scalar_select %p184, %s18, 0
        %s186 = smul.addr %s185, 8
        %s187 = smul.addr %s183, 8
        %s188 = sadd.s32 %s186, %s187
        %s189 = smul.addr %s188, 8
        %s190 = scalar_lea.vmem %s3, %s189
      $region32: #{_lambda_.11} parent=23 // pred_fallthru
        _
    $region24: #{_lambda_.11} parent=5 // pred_fallthru
      _
    %p191 = scmp.le.s32.totalorder 1, %s10
    %p192 = scmp.lt.s32.totalorder %s10, 3
    %p193 = pnand %p191, %p192
    %p194 = pneg %p193
    // Predicated region
    $region33: #{_lambda_.11} parent=5 // pred_check
      _
    $region34: #{_lambda_.11} parent=5 // pred_check_branch
      %196 = sbr.rel (%p193) target = $region36
    $region35: #{_lambda_.11} parent=5 // pred_region
      %s197 = ssub.s32 %s10, 1
      %p198 = scmp.lt.s32.totalorder %s19, 1
      %s199 = scalar_select %p198, %s19, 1
      %s200 = smul.addr %s199, 72
      %s201 = smul.addr %s200, 4
      %s202 = scalar_lea.vmem %s0, %s201
      %p203 = pneg %p48
      %p204 = pneg %p45
      %p205 = pneg %p69
      %p206 = pneg %p66
      %p207 = pneg %p90
      %p208 = pneg %p87
      %p209 = scmp.lt.s32.totalorder %s19, 1
      %s210 = scalar_select %p209, %s19, 1
      %p211 = scmp.lt.s32.totalorder %s20, 0
      %s212 = scalar_select %p211, %s20, 0
      %s213 = smul.addr %s212, 8
      %s214 = smul.addr %s210, 8
      %s215 = sadd.s32 %s213, %s214
      %s216 = smul.addr %s215, 8
      %s217 = scalar_lea.vmem %s3, %s216
      %p218 = pneg %p118
      %p219 = pneg %p115
      %p220 = pneg %p146
      %p221 = pneg %p143
      %p222 = scmp.lt.s32.totalorder %s19, 1
      %s223 = scalar_select %p222, %s19, 1
      %p224 = scmp.lt.s32.totalorder %s20, 0
      %s225 = scalar_select %p224, %s20, 0
      %s226 = smul.addr %s225, 8
      %s227 = smul.addr %s223, 8
      %s228 = sadd.s32 %s226, %s227
      %s229 = smul.addr %s228, 8
      %s230 = scalar_lea.vmem %s4, %s229
      %p231 = scmp.lt.s32.totalorder %s19, 1
      %s232 = scalar_select %p231, %s19, 1
      %s233 = smul.addr %s232, 72
      %s234 = smul.addr %s233, 4
      %s235 = scalar_lea.vmem %s0, %s234
      %p236 = scmp.lt.s32.totalorder %s19, 1
      %s237 = scalar_select %p236, %s19, 1
      %p238 = scmp.lt.s32.totalorder %s20, 0
      %s239 = scalar_select %p238, %s20, 0
      %s240 = smul.addr %s239, 8
      %s241 = smul.addr %s237, 8
      %s242 = sadd.s32 %s240, %s241
      %s243 = smul.addr %s242, 8
      %s244 = scalar_lea.vmem %s3, %s243
      %p245 = scmp.lt.s32.totalorder %s19, 1
      %s246 = scalar_select %p245, %s19, 1
      %p247 = scmp.lt.s32.totalorder %s20, 0
      %s248 = scalar_select %p247, %s20, 0
      %s249 = smul.addr %s248, 8
      %s250 = smul.addr %s246, 8
      %s251 = sadd.s32 %s249, %s250
      %s252 = smul.addr %s251, 8
      %s253 = scalar_lea.vmem %s4, %s252
      %s255 = smul.u32 %s20, 72
      %s256 = smul.addr %s255, 4
      %s257 = scalar_lea.vmem %s235, %s256
      %v258 = vld [vmem:[%s257] sm:$0xff]
      %v259 = vld [vmem:[%s257 + $0x8] sm:$0xff]
      %v260 = vld [vmem:[%s257 + $0x10] sm:$0x11]
      %v261 = vld [vmem:[%s257 + $0x18] sm:$0x11]
      %v262 = vld [vmem:[%s257 + $0x20] sm:$0xff]
      %v263 = vld [vmem:[%s257 + $0x28] sm:$0xff]
      %v264 = vld [vmem:[%s257 + $0x30] sm:$0x11]
      %v265 = vld [vmem:[%s257 + $0x38] sm:$0x11]
      %v266 = vld [vmem:[%s257 + $0x40] sm:$0xff]
      %v267 = vld [vmem:[%s257 + $0x48] sm:$0xff]
      %v268 = vld [vmem:[%s257 + $0x50] sm:$0x11]
      %v269 = vld [vmem:[%s257 + $0x58] sm:$0x11]
      %v270 = vld [vmem:[%s257 + $0x60] sm:$0xff]
      %v271 = vld [vmem:[%s257 + $0x68] sm:$0xff]
      %v272 = vld [vmem:[%s257 + $0x70] sm:$0x11]
      %v273 = vld [vmem:[%s257 + $0x78] sm:$0x11]
      %v274 = vld [vmem:[%s257 + $0x80] sm:$0xff]
      %v275 = vld [vmem:[%s257 + $0x88] sm:$0xff]
      %v276 = vld [vmem:[%s257 + $0x90] sm:$0x11]
      %v277 = vld [vmem:[%s257 + $0x98] sm:$0x11]
      %v278 = vld [vmem:[%s257 + $0xa0] sm:$0xff]
      %v279 = vld [vmem:[%s257 + $0xa8] sm:$0xff]
      %v280 = vld [vmem:[%s257 + $0xb0] sm:$0x11]
      %v281 = vld [vmem:[%s257 + $0xb8] sm:$0x11]
      %v282 = vld [vmem:[%s257 + $0xc0] sm:$0xff]
      %v283 = vld [vmem:[%s257 + $0xc8] sm:$0xff]
      %v284 = vld [vmem:[%s257 + $0xd0] sm:$0x11]
      %v285 = vld [vmem:[%s257 + $0xd8] sm:$0x11]
      %v286 = vld [vmem:[%s257 + $0xe0] sm:$0xff]
      %v287 = vld [vmem:[%s257 + $0xe8] sm:$0xff]
      %v288 = vld [vmem:[%s257 + $0xf0] sm:$0x11]
      %v289 = vld [vmem:[%s257 + $0xf8] sm:$0x11]
      %v290 = vld [vmem:[%s257 + $0x100] sm:$0xff]
      %v291 = vld [vmem:[%s257 + $0x110] sm:$0x11]
      %v300 = vunpack.c.h.b16 %v258
      %v301 = vunpack.c.h.b16 %v262
      %v302 = vunpack.c.h.b16 %v266
      %v303 = vunpack.c.h.b16 %v270
      %v304 = vunpack.c.h.b16 %v274
      %v305 = vunpack.c.h.b16 %v278
      %v306 = vunpack.c.h.b16 %v282
      %v307 = vunpack.c.h.b16 %v286
      %v316 = vunpack.c.l.b16 %v258
      %v317 = vunpack.c.l.b16 %v260
      %v318 = vunpack.c.l.b16 %v262
      %v319 = vunpack.c.l.b16 %v264
      %v320 = vunpack.c.l.b16 %v266
      %v321 = vunpack.c.l.b16 %v268
      %v322 = vunpack.c.l.b16 %v270
      %v323 = vunpack.c.l.b16 %v272
      %v324 = vunpack.c.l.b16 %v274
      %v325 = vunpack.c.l.b16 %v276
      %v326 = vunpack.c.l.b16 %v278
      %v327 = vunpack.c.l.b16 %v280
      %v328 = vunpack.c.l.b16 %v282
      %v329 = vunpack.c.l.b16 %v284
      %v330 = vunpack.c.l.b16 %v286
      %v331 = vunpack.c.l.b16 %v288
      %v332 = vpack.c.b16 %v317, %v316
      %v333 = vpack.c.b16 %v319, %v318
      %v334 = vpack.c.b16 %v321, %v320
      %v335 = vpack.c.b16 %v323, %v322
      %v336 = vpack.c.b16 %v325, %v324
      %v337 = vpack.c.b16 %v327, %v326
      %v338 = vpack.c.b16 %v329, %v328
      %v339 = vpack.c.b16 %v331, %v330
      %v341 = vshrl.u32 %v332, 16
      %v343 = vshll.u32 %v332, 16
      %v345 = vrot.slane %v343, 1
      %v346 = vor.u32 %v341, %v345
      %v348 = vshrl.u32 %v333, 16
      %v350 = vshll.u32 %v333, 16
      %v352 = vrot.slane %v350, 1
      %v353 = vor.u32 %v348, %v352
      %v355 = vshrl.u32 %v334, 16
      %v357 = vshll.u32 %v334, 16
      %v359 = vrot.slane %v357, 1
      %v360 = vor.u32 %v355, %v359
      %v362 = vshrl.u32 %v335, 16
      %v364 = vshll.u32 %v335, 16
      %v366 = vrot.slane %v364, 1
      %v367 = vor.u32 %v362, %v366
      %v369 = vshrl.u32 %v336, 16
      %v371 = vshll.u32 %v336, 16
      %v373 = vrot.slane %v371, 1
      %v374 = vor.u32 %v369, %v373
      %v376 = vshrl.u32 %v337, 16
      %v378 = vshll.u32 %v337, 16
      %v380 = vrot.slane %v378, 1
      %v381 = vor.u32 %v376, %v380
      %v383 = vshrl.u32 %v338, 16
      %v385 = vshll.u32 %v338, 16
      %v387 = vrot.slane %v385, 1
      %v388 = vor.u32 %v383, %v387
      %v390 = vshrl.u32 %v339, 16
      %v392 = vshll.u32 %v339, 16
      %v394 = vrot.slane %v392, 1
      %v395 = vor.u32 %v390, %v394
      %v404 = vunpack.c.h.b16 %v259
      %v405 = vunpack.c.h.b16 %v263
      %v406 = vunpack.c.h.b16 %v267
      %v407 = vunpack.c.h.b16 %v271
      %v408 = vunpack.c.h.b16 %v275
      %v409 = vunpack.c.h.b16 %v279
      %v410 = vunpack.c.h.b16 %v283
      %v411 = vunpack.c.h.b16 %v287
      %v420 = vunpack.c.l.b16 %v259
      %v421 = vunpack.c.l.b16 %v261
      %v422 = vunpack.c.l.b16 %v263
      %v423 = vunpack.c.l.b16 %v265
      %v424 = vunpack.c.l.b16 %v267
      %v425 = vunpack.c.l.b16 %v269
      %v426 = vunpack.c.l.b16 %v271
      %v427 = vunpack.c.l.b16 %v273
      %v428 = vunpack.c.l.b16 %v275
      %v429 = vunpack.c.l.b16 %v277
      %v430 = vunpack.c.l.b16 %v279
      %v431 = vunpack.c.l.b16 %v281
      %v432 = vunpack.c.l.b16 %v283
      %v433 = vunpack.c.l.b16 %v285
      %v434 = vunpack.c.l.b16 %v287
      %v435 = vunpack.c.l.b16 %v289
      %v436 = vpack.c.b16 %v421, %v420
      %v437 = vpack.c.b16 %v423, %v422
      %v438 = vpack.c.b16 %v425, %v424
      %v439 = vpack.c.b16 %v427, %v426
      %v440 = vpack.c.b16 %v429, %v428
      %v441 = vpack.c.b16 %v431, %v430
      %v442 = vpack.c.b16 %v433, %v432
      %v443 = vpack.c.b16 %v435, %v434
      %v445 = vshrl.u32 %v436, 16
      %v447 = vshll.u32 %v436, 16
      %v449 = vrot.slane %v447, 1
      %v450 = vor.u32 %v445, %v449
      %v452 = vshrl.u32 %v437, 16
      %v454 = vshll.u32 %v437, 16
      %v456 = vrot.slane %v454, 1
      %v457 = vor.u32 %v452, %v456
      %v459 = vshrl.u32 %v438, 16
      %v461 = vshll.u32 %v438, 16
      %v463 = vrot.slane %v461, 1
      %v464 = vor.u32 %v459, %v463
      %v466 = vshrl.u32 %v439, 16
      %v468 = vshll.u32 %v439, 16
      %v470 = vrot.slane %v468, 1
      %v471 = vor.u32 %v466, %v470
      %v473 = vshrl.u32 %v440, 16
      %v475 = vshll.u32 %v440, 16
      %v477 = vrot.slane %v475, 1
      %v478 = vor.u32 %v473, %v477
      %v480 = vshrl.u32 %v441, 16
      %v482 = vshll.u32 %v441, 16
      %v484 = vrot.slane %v482, 1
      %v485 = vor.u32 %v480, %v484
      %v487 = vshrl.u32 %v442, 16
      %v489 = vshll.u32 %v442, 16
      %v491 = vrot.slane %v489, 1
      %v492 = vor.u32 %v487, %v491
      %v494 = vshrl.u32 %v443, 16
      %v496 = vshll.u32 %v443, 16
      %v498 = vrot.slane %v496, 1
      %v499 = vor.u32 %v494, %v498
      %v501 = vunpack.c.h.b16 %v290
      %v503 = vunpack.c.l.b16 %v290
      %v504 = vunpack.c.l.b16 %v291
      %v505 = vpack.c.b16 %v504, %v503
      %v507 = vshrl.u32 %v505, 16
      %v509 = vshll.u32 %v505, 16
      %v511 = vrot.slane %v509, 1
      %v512 = vor.u32 %v507, %v511
      %v513 = vunpack.c.l.b16 %v346
      %v514 = vunpack.c.l.b16 %v450
      %v515 = vunpack.c.l.b16 %v353
      %v516 = vunpack.c.l.b16 %v457
      %v517 = vunpack.c.l.b16 %v360
      %v518 = vunpack.c.l.b16 %v464
      %v519 = vunpack.c.l.b16 %v367
      %v520 = vunpack.c.l.b16 %v471
      %v521 = vunpack.c.l.b16 %v374
      %v522 = vunpack.c.l.b16 %v478
      %v523 = vunpack.c.l.b16 %v381
      %v524 = vunpack.c.l.b16 %v485
      %v525 = vunpack.c.l.b16 %v388
      %v526 = vunpack.c.l.b16 %v492
      %v527 = vunpack.c.l.b16 %v395
      %v528 = vunpack.c.l.b16 %v499
      %v529 = vunpack.c.l.b16 %v512
      %v530 = vld [vmem:[%s1] sm:$0xf]
      %v531 = vld [vmem:[%s1 + $0x4] sm:$0xf]
      %v532 = vld [vmem:[%s1 + $0x8] sm:$0xf]
      %v533 = vld [vmem:[%s1 + $0xc] sm:$0xf]
      %v534 = vld [vmem:[%s1 + $0x10] sm:$0xf]
      %v535 = vld [vmem:[%s1 + $0x14] sm:$0xf]
      %v536 = vld [vmem:[%s1 + $0x18] sm:$0xf]
      %v537 = vld [vmem:[%s1 + $0x1c] sm:$0xf]
      %v538 = vld [vmem:[%s1 + $0x20] sm:$0xf]
      %v539 = vld [vmem:[%s1 + $0x24] sm:$0xf]
      %v540 = vld [vmem:[%s1 + $0x28] sm:$0xf]
      %v541 = vld [vmem:[%s1 + $0x2c] sm:$0xf]
      %v542 = vld [vmem:[%s1 + $0x30] sm:$0xf]
      %v543 = vld [vmem:[%s1 + $0x34] sm:$0xf]
      %v544 = vld [vmem:[%s1 + $0x38] sm:$0xf]
      %v545 = vld [vmem:[%s1 + $0x3c] sm:$0xf]
      %v546 = vld [vmem:[%s1 + $0x40] sm:$0xf]
      %v547 = vld [vmem:[%s1 + $0x44] sm:$0xf]
      %v548 = vld [vmem:[%s1 + $0x48] sm:$0xf]
      %v549 = vld [vmem:[%s1 + $0x4c] sm:$0xf]
      %v550 = vld [vmem:[%s1 + $0x50] sm:$0xf]
      %v551 = vld [vmem:[%s1 + $0x54] sm:$0xf]
      %v552 = vld [vmem:[%s1 + $0x58] sm:$0xf]
      %v553 = vld [vmem:[%s1 + $0x5c] sm:$0xf]
      %v554 = vld [vmem:[%s1 + $0x60] sm:$0xf]
      %v555 = vld [vmem:[%s1 + $0x64] sm:$0xf]
      %v556 = vld [vmem:[%s1 + $0x68] sm:$0xf]
      %v557 = vld [vmem:[%s1 + $0x6c] sm:$0xf]
      %v558 = vld [vmem:[%s1 + $0x70] sm:$0xf]
      %v559 = vld [vmem:[%s1 + $0x74] sm:$0xf]
      %v560 = vld [vmem:[%s1 + $0x78] sm:$0xf]
      %v561 = vld [vmem:[%s1 + $0x7c] sm:$0xf]
      %v562 = vld [vmem:[%s1 + $0x80] sm:$0xf]
      %v563 = vld [vmem:[%s1 + $0x84] sm:$0xf]
      %v564 = vld [vmem:[%s1 + $0x88] sm:$0xf]
      %v565 = vld [vmem:[%s1 + $0x8c] sm:$0xf]
      %v566 = vld [vmem:[%s1 + $0x90] sm:$0xf]
      %v567 = vld [vmem:[%s1 + $0x94] sm:$0xf]
      %v568 = vld [vmem:[%s1 + $0x98] sm:$0xf]
      %v569 = vld [vmem:[%s1 + $0x9c] sm:$0xf]
      %v570 = vld [vmem:[%s1 + $0xa0] sm:$0xf]
      %v571 = vld [vmem:[%s1 + $0xa4] sm:$0xf]
      %v572 = vld [vmem:[%s1 + $0xa8] sm:$0xf]
      %v573 = vld [vmem:[%s1 + $0xac] sm:$0xf]
      %v574 = vld [vmem:[%s1 + $0xb0] sm:$0xf]
      %v575 = vld [vmem:[%s1 + $0xb4] sm:$0xf]
      %v576 = vld [vmem:[%s1 + $0xb8] sm:$0xf]
      %v577 = vld [vmem:[%s1 + $0xbc] sm:$0xf]
      %v578 = vld [vmem:[%s1 + $0xc0] sm:$0xf]
      %v579 = vld [vmem:[%s1 + $0xc4] sm:$0xf]
      %v580 = vld [vmem:[%s1 + $0xc8] sm:$0xf]
      %v581 = vld [vmem:[%s1 + $0xcc] sm:$0xf]
      %v582 = vld [vmem:[%s1 + $0xd0] sm:$0xf]
      %v583 = vld [vmem:[%s1 + $0xd4] sm:$0xf]
      %v584 = vld [vmem:[%s1 + $0xd8] sm:$0xf]
      %v585 = vld [vmem:[%s1 + $0xdc] sm:$0xf]
      %v586 = vld [vmem:[%s1 + $0xe0] sm:$0xf]
      %v587 = vld [vmem:[%s1 + $0xe4] sm:$0xf]
      %v588 = vld [vmem:[%s1 + $0xe8] sm:$0xf]
      %v589 = vld [vmem:[%s1 + $0xec] sm:$0xf]
      %v590 = vld [vmem:[%s1 + $0xf0] sm:$0xf]
      %v591 = vld [vmem:[%s1 + $0xf4] sm:$0xf]
      %v592 = vld [vmem:[%s1 + $0xf8] sm:$0xf]
      %v593 = vld [vmem:[%s1 + $0xfc] sm:$0xf]
      %v594 = vld [vmem:[%s1 + $0x100] sm:$0xf]
      %v595 = vld [vmem:[%s1 + $0x104] sm:$0xf]
      %v596 = vld [vmem:[%s1 + $0x108] sm:$0xf]
      %v597 = vld [vmem:[%s1 + $0x10c] sm:$0xf]
      %v598 = vld [vmem:[%s1 + $0x110] sm:$0xf]
      %v599 = vld [vmem:[%s1 + $0x114] sm:$0xf]
      %v600 = vld [vmem:[%s1 + $0x118] sm:$0xf]
      %v601 = vld [vmem:[%s1 + $0x11c] sm:$0xf]
      %v602 = vld [vmem:[%s1 + $0x120] sm:$0xf]
      %v603 = vld [vmem:[%s1 + $0x124] sm:$0xf]
      %v604 = vld [vmem:[%s1 + $0x128] sm:$0xf]
      %v605 = vld [vmem:[%s1 + $0x12c] sm:$0xf]
      %v606 = vld [vmem:[%s1 + $0x130] sm:$0xf]
      %v607 = vld [vmem:[%s1 + $0x134] sm:$0xf]
      %v608 = vld [vmem:[%s1 + $0x138] sm:$0xf]
      %v609 = vld [vmem:[%s1 + $0x13c] sm:$0xf]
      %v610 = vld [vmem:[%s1 + $0x140] sm:$0xf]
      %v611 = vld [vmem:[%s1 + $0x144] sm:$0xf]
      %v612 = vld [vmem:[%s1 + $0x148] sm:$0xf]
      %v613 = vld [vmem:[%s1 + $0x14c] sm:$0xf]
      %v614 = vld [vmem:[%s1 + $0x150] sm:$0xf]
      %v615 = vld [vmem:[%s1 + $0x154] sm:$0xf]
      %v616 = vld [vmem:[%s1 + $0x158] sm:$0xf]
      %v617 = vld [vmem:[%s1 + $0x15c] sm:$0xf]
      %v618 = vld [vmem:[%s1 + $0x160] sm:$0xf]
      %v619 = vld [vmem:[%s1 + $0x164] sm:$0xf]
      %v620 = vld [vmem:[%s1 + $0x168] sm:$0xf]
      %v621 = vld [vmem:[%s1 + $0x16c] sm:$0xf]
      %v622 = vld [vmem:[%s1 + $0x170] sm:$0xf]
      %v623 = vld [vmem:[%s1 + $0x174] sm:$0xf]
      %v624 = vld [vmem:[%s1 + $0x178] sm:$0xf]
      %v625 = vld [vmem:[%s1 + $0x17c] sm:$0xf]
      %v626 = vld [vmem:[%s1 + $0x180] sm:$0xf]
      %v627 = vld [vmem:[%s1 + $0x184] sm:$0xf]
      %v628 = vld [vmem:[%s1 + $0x188] sm:$0xf]
      %v629 = vld [vmem:[%s1 + $0x18c] sm:$0xf]
      %v630 = vld [vmem:[%s1 + $0x190] sm:$0xf]
      %v631 = vld [vmem:[%s1 + $0x194] sm:$0xf]
      %v632 = vld [vmem:[%s1 + $0x198] sm:$0xf]
      %v633 = vld [vmem:[%s1 + $0x19c] sm:$0xf]
      %v634 = vld [vmem:[%s1 + $0x1a0] sm:$0xf]
      %v635 = vld [vmem:[%s1 + $0x1a4] sm:$0xf]
      %v636 = vld [vmem:[%s1 + $0x1a8] sm:$0xf]
      %v637 = vld [vmem:[%s1 + $0x1ac] sm:$0xf]
      %v638 = vld [vmem:[%s1 + $0x1b0] sm:$0xf]
      %v639 = vld [vmem:[%s1 + $0x1b4] sm:$0xf]
      %v640 = vld [vmem:[%s1 + $0x1b8] sm:$0xf]
      %v641 = vld [vmem:[%s1 + $0x1bc] sm:$0xf]
      %v642 = vld [vmem:[%s1 + $0x1c0] sm:$0xf]
      %v643 = vld [vmem:[%s1 + $0x1c4] sm:$0xf]
      %v644 = vld [vmem:[%s1 + $0x1c8] sm:$0xf]
      %v645 = vld [vmem:[%s1 + $0x1cc] sm:$0xf]
      %v646 = vld [vmem:[%s1 + $0x1d0] sm:$0xf]
      %v647 = vld [vmem:[%s1 + $0x1d4] sm:$0xf]
      %v648 = vld [vmem:[%s1 + $0x1d8] sm:$0xf]
      %v649 = vld [vmem:[%s1 + $0x1dc] sm:$0xf]
      %v650 = vld [vmem:[%s1 + $0x1e0] sm:$0xf]
      %v651 = vld [vmem:[%s1 + $0x1e4] sm:$0xf]
      %v652 = vld [vmem:[%s1 + $0x1e8] sm:$0xf]
      %v653 = vld [vmem:[%s1 + $0x1ec] sm:$0xf]
      %v654 = vld [vmem:[%s1 + $0x1f0] sm:$0xf]
      %v655 = vld [vmem:[%s1 + $0x1f4] sm:$0xf]
      %v656 = vld [vmem:[%s1 + $0x1f8] sm:$0xf]
      %v657 = vld [vmem:[%s1 + $0x1fc] sm:$0xf]
      %v658 = vld [vmem:[%s1 + $0x200] sm:$0xf]
      %v659 = vld [vmem:[%s1 + $0x204] sm:$0xf]
      %v660 = vld [vmem:[%s1 + $0x208] sm:$0xf]
      %v661 = vld [vmem:[%s1 + $0x20c] sm:$0xf]
      %v662 = vld [vmem:[%s1 + $0x210] sm:$0xf]
      %v663 = vld [vmem:[%s1 + $0x214] sm:$0xf]
      %v664 = vld [vmem:[%s1 + $0x218] sm:$0xf]
      %v665 = vld [vmem:[%s1 + $0x21c] sm:$0xf]
      %v666 = vld [vmem:[%s1 + $0x220] sm:$0xf]
      %v667 = vld [vmem:[%s1 + $0x224] sm:$0xf]
      %v668 = vld [vmem:[%s1 + $0x228] sm:$0xf]
      %v669 = vld [vmem:[%s1 + $0x22c] sm:$0xf]
      %v670 = vld [vmem:[%s1 + $0x230] sm:$0xf]
      %v671 = vld [vmem:[%s1 + $0x234] sm:$0xf]
      %v672 = vld [vmem:[%s1 + $0x238] sm:$0xf]
      %v673 = vld [vmem:[%s1 + $0x23c] sm:$0xf]
      %v674 = vld [vmem:[%s2] sm:$0x1]
      %v676 = vlaneseq
      %v677 = vshrl.u32 %v676, 7
      %v678 = vsub.s32 0, %v677
      %v679 = vrot.slane %v674, %v678
      %v681 = vpack.c.b16 %v318, %v316
      %v682 = vpack.c.b16 %v301, %v300
      %v683 = vpack.c.b16 %v515, %v513
      %v684 = vpack.c.b16 %v422, %v420
      %v685 = vpack.c.b16 %v405, %v404
      %v686 = vpack.c.b16 %v516, %v514
      %v687 = vpack.c.b16 %v320, %v318
      %v688 = vpack.c.b16 %v302, %v301
      %v689 = vpack.c.b16 %v517, %v515
      %v690 = vpack.c.b16 %v322, %v320
      %v691 = vpack.c.b16 %v303, %v302
      %v692 = vpack.c.b16 %v519, %v517
      %v693 = vpack.c.b16 %v426, %v424
      %v694 = vpack.c.b16 %v407, %v406
      %v695 = vpack.c.b16 %v520, %v518
      %v696 = vpack.c.b16 %v324, %v322
      %v697 = vpack.c.b16 %v304, %v303
      %v698 = vpack.c.b16 %v521, %v519
      %v699 = vpack.c.b16 %v326, %v324
      %v700 = vpack.c.b16 %v305, %v304
      %v701 = vpack.c.b16 %v523, %v521
      %v702 = vpack.c.b16 %v430, %v428
      %v703 = vpack.c.b16 %v409, %v408
      %v704 = vpack.c.b16 %v524, %v522
      %v705 = vpack.c.b16 %v328, %v326
      %v706 = vpack.c.b16 %v306, %v305
      %v707 = vpack.c.b16 %v525, %v523
      %v708 = vpack.c.b16 %v330, %v328
      %v709 = vpack.c.b16 %v307, %v306
      %v710 = vpack.c.b16 %v527, %v525
      %v711 = vpack.c.b16 %v434, %v432
      %v712 = vpack.c.b16 %v411, %v410
      %v713 = vpack.c.b16 %v528, %v526
      %v714 = vpack.c.b16 %v503, %v330
      %v715 = vpack.c.b16 %v501, %v307
      %v716 = vpack.c.b16 %v529, %v527
      %v897 = vunpack.c.l.b16 %v530
      %v898 = vunpack.c.l.b16 %v531
      %v899 = vunpack.c.l.b16 %v532
      %v900 = vunpack.c.l.b16 %v533
      %v901 = vunpack.c.l.b16 %v534
      %v902 = vunpack.c.l.b16 %v535
      %v903 = vunpack.c.l.b16 %v536
      %v904 = vunpack.c.l.b16 %v537
      %v905 = vunpack.c.l.b16 %v538
      %v906 = vunpack.c.l.b16 %v539
      %v907 = vunpack.c.l.b16 %v540
      %v908 = vunpack.c.l.b16 %v541
      %v909 = vunpack.c.l.b16 %v542
      %v910 = vunpack.c.l.b16 %v543
      %v911 = vunpack.c.l.b16 %v544
      %v912 = vunpack.c.l.b16 %v545
      %v913 = vunpack.c.l.b16 %v546
      %v914 = vunpack.c.l.b16 %v547
      %v915 = vunpack.c.l.b16 %v548
      %v916 = vunpack.c.l.b16 %v549
      %v917 = vunpack.c.l.b16 %v550
      %v918 = vunpack.c.l.b16 %v551
      %v919 = vunpack.c.l.b16 %v552
      %v920 = vunpack.c.l.b16 %v553
      %v921 = vunpack.c.l.b16 %v554
      %v922 = vunpack.c.l.b16 %v555
      %v923 = vunpack.c.l.b16 %v556
      %v924 = vunpack.c.l.b16 %v557
      %v925 = vunpack.c.l.b16 %v558
      %v926 = vunpack.c.l.b16 %v559
      %v927 = vunpack.c.l.b16 %v560
      %v928 = vunpack.c.l.b16 %v561
      %v929 = vunpack.c.l.b16 %v562
      %v930 = vunpack.c.l.b16 %v563
      %v931 = vunpack.c.l.b16 %v564
      %v932 = vunpack.c.l.b16 %v565
      %v933 = vunpack.c.l.b16 %v566
      %v934 = vunpack.c.l.b16 %v567
      %v935 = vunpack.c.l.b16 %v568
      %v936 = vunpack.c.l.b16 %v569
      %v937 = vunpack.c.l.b16 %v570
      %v938 = vunpack.c.l.b16 %v571
      %v939 = vunpack.c.l.b16 %v572
      %v940 = vunpack.c.l.b16 %v573
      %v941 = vunpack.c.l.b16 %v574
      %v942 = vunpack.c.l.b16 %v575
      %v943 = vunpack.c.l.b16 %v576
      %v944 = vunpack.c.l.b16 %v577
      %v945 = vunpack.c.l.b16 %v578
      %v946 = vunpack.c.l.b16 %v579
      %v947 = vunpack.c.l.b16 %v580
      %v948 = vunpack.c.l.b16 %v581
      %v949 = vunpack.c.l.b16 %v582
      %v950 = vunpack.c.l.b16 %v583
      %v951 = vunpack.c.l.b16 %v584
      %v952 = vunpack.c.l.b16 %v585
      %v953 = vunpack.c.l.b16 %v586
      %v954 = vunpack.c.l.b16 %v587
      %v955 = vunpack.c.l.b16 %v588
      %v956 = vunpack.c.l.b16 %v589
      %v957 = vunpack.c.l.b16 %v590
      %v958 = vunpack.c.l.b16 %v591
      %v959 = vunpack.c.l.b16 %v592
      %v960 = vunpack.c.l.b16 %v593
      %v961 = vunpack.c.l.b16 %v594
      %v962 = vunpack.c.l.b16 %v595
      %v963 = vunpack.c.l.b16 %v596
      %v964 = vunpack.c.l.b16 %v597
      %v965 = vunpack.c.l.b16 %v598
      %v966 = vunpack.c.l.b16 %v599
      %v967 = vunpack.c.l.b16 %v600
      %v968 = vunpack.c.l.b16 %v601
      %v969 = vunpack.c.l.b16 %v602
      %v970 = vunpack.c.l.b16 %v603
      %v971 = vunpack.c.l.b16 %v604
      %v972 = vunpack.c.l.b16 %v605
      %v973 = vunpack.c.l.b16 %v606
      %v974 = vunpack.c.l.b16 %v607
      %v975 = vunpack.c.l.b16 %v608
      %v976 = vunpack.c.l.b16 %v609
      %v977 = vunpack.c.l.b16 %v610
      %v978 = vunpack.c.l.b16 %v611
      %v979 = vunpack.c.l.b16 %v612
      %v980 = vunpack.c.l.b16 %v613
      %v981 = vunpack.c.l.b16 %v614
      %v982 = vunpack.c.l.b16 %v615
      %v983 = vunpack.c.l.b16 %v616
      %v984 = vunpack.c.l.b16 %v617
      %v985 = vunpack.c.l.b16 %v618
      %v986 = vunpack.c.l.b16 %v619
      %v987 = vunpack.c.l.b16 %v620
      %v988 = vunpack.c.l.b16 %v621
      %v989 = vunpack.c.l.b16 %v622
      %v990 = vunpack.c.l.b16 %v623
      %v991 = vunpack.c.l.b16 %v624
      %v992 = vunpack.c.l.b16 %v625
      %v993 = vunpack.c.l.b16 %v626
      %v994 = vunpack.c.l.b16 %v627
      %v995 = vunpack.c.l.b16 %v628
      %v996 = vunpack.c.l.b16 %v629
      %v997 = vunpack.c.l.b16 %v630
      %v998 = vunpack.c.l.b16 %v631
      %v999 = vunpack.c.l.b16 %v632
      %v1000 = vunpack.c.l.b16 %v633
      %v1001 = vunpack.c.l.b16 %v634
      %v1002 = vunpack.c.l.b16 %v635
      %v1003 = vunpack.c.l.b16 %v636
      %v1004 = vunpack.c.l.b16 %v637
      %v1005 = vunpack.c.l.b16 %v638
      %v1006 = vunpack.c.l.b16 %v639
      %v1007 = vunpack.c.l.b16 %v640
      %v1008 = vunpack.c.l.b16 %v641
      %v1009 = vunpack.c.l.b16 %v642
      %v1010 = vunpack.c.l.b16 %v643
      %v1011 = vunpack.c.l.b16 %v644
      %v1012 = vunpack.c.l.b16 %v645
      %v1013 = vunpack.c.l.b16 %v646
      %v1014 = vunpack.c.l.b16 %v647
      %v1015 = vunpack.c.l.b16 %v648
      %v1016 = vunpack.c.l.b16 %v649
      %v1017 = vunpack.c.l.b16 %v650
      %v1018 = vunpack.c.l.b16 %v651
      %v1019 = vunpack.c.l.b16 %v652
      %v1020 = vunpack.c.l.b16 %v653
      %v1021 = vunpack.c.l.b16 %v654
      %v1022 = vunpack.c.l.b16 %v655
      %v1023 = vunpack.c.l.b16 %v656
      %v1024 = vunpack.c.l.b16 %v657
      %v1025 = vunpack.c.l.b16 %v658
      %v1026 = vunpack.c.l.b16 %v659
      %v1027 = vunpack.c.l.b16 %v660
      %v1028 = vunpack.c.l.b16 %v661
      %v1029 = vunpack.c.l.b16 %v662
      %v1030 = vunpack.c.l.b16 %v663
      %v1031 = vunpack.c.l.b16 %v664
      %v1032 = vunpack.c.l.b16 %v665
      %v1033 = vunpack.c.l.b16 %v666
      %v1034 = vunpack.c.l.b16 %v667
      %v1035 = vunpack.c.l.b16 %v668
      %v1036 = vunpack.c.l.b16 %v669
      %v1037 = vunpack.c.l.b16 %v670
      %v1038 = vunpack.c.l.b16 %v671
      %v1039 = vunpack.c.l.b16 %v672
      %v1040 = vunpack.c.l.b16 %v673
      %v1041 = vpack.c.b16 %v898, %v897
      %v1042 = vpack.c.b16 %v900, %v899
      %v1043 = vpack.c.b16 %v902, %v901
      %v1044 = vpack.c.b16 %v904, %v903
      %v1045 = vpack.c.b16 %v906, %v905
      %v1046 = vpack.c.b16 %v908, %v907
      %v1047 = vpack.c.b16 %v910, %v909
      %v1048 = vpack.c.b16 %v912, %v911
      %v1049 = vpack.c.b16 %v914, %v913
      %v1050 = vpack.c.b16 %v916, %v915
      %v1051 = vpack.c.b16 %v918, %v917
      %v1052 = vpack.c.b16 %v920, %v919
      %v1053 = vpack.c.b16 %v922, %v921
      %v1054 = vpack.c.b16 %v924, %v923
      %v1055 = vpack.c.b16 %v926, %v925
      %v1056 = vpack.c.b16 %v928, %v927
      %v1057 = vpack.c.b16 %v930, %v929
      %v1058 = vpack.c.b16 %v932, %v931
      %v1059 = vpack.c.b16 %v934, %v933
      %v1060 = vpack.c.b16 %v936, %v935
      %v1061 = vpack.c.b16 %v938, %v937
      %v1062 = vpack.c.b16 %v940, %v939
      %v1063 = vpack.c.b16 %v942, %v941
      %v1064 = vpack.c.b16 %v944, %v943
      %v1065 = vpack.c.b16 %v946, %v945
      %v1066 = vpack.c.b16 %v948, %v947
      %v1067 = vpack.c.b16 %v950, %v949
      %v1068 = vpack.c.b16 %v952, %v951
      %v1069 = vpack.c.b16 %v954, %v953
      %v1070 = vpack.c.b16 %v956, %v955
      %v1071 = vpack.c.b16 %v958, %v957
      %v1072 = vpack.c.b16 %v960, %v959
      %v1073 = vpack.c.b16 %v962, %v961
      %v1074 = vpack.c.b16 %v964, %v963
      %v1075 = vpack.c.b16 %v966, %v965
      %v1076 = vpack.c.b16 %v968, %v967
      %v1077 = vpack.c.b16 %v970, %v969
      %v1078 = vpack.c.b16 %v972, %v971
      %v1079 = vpack.c.b16 %v974, %v973
      %v1080 = vpack.c.b16 %v976, %v975
      %v1081 = vpack.c.b16 %v978, %v977
      %v1082 = vpack.c.b16 %v980, %v979
      %v1083 = vpack.c.b16 %v982, %v981
      %v1084 = vpack.c.b16 %v984, %v983
      %v1085 = vpack.c.b16 %v986, %v985
      %v1086 = vpack.c.b16 %v988, %v987
      %v1087 = vpack.c.b16 %v990, %v989
      %v1088 = vpack.c.b16 %v992, %v991
      %v1089 = vpack.c.b16 %v994, %v993
      %v1090 = vpack.c.b16 %v996, %v995
      %v1091 = vpack.c.b16 %v998, %v997
      %v1092 = vpack.c.b16 %v1000, %v999
      %v1093 = vpack.c.b16 %v1002, %v1001
      %v1094 = vpack.c.b16 %v1004, %v1003
      %v1095 = vpack.c.b16 %v1006, %v1005
      %v1096 = vpack.c.b16 %v1008, %v1007
      %v1097 = vpack.c.b16 %v1010, %v1009
      %v1098 = vpack.c.b16 %v1012, %v1011
      %v1099 = vpack.c.b16 %v1014, %v1013
      %v1100 = vpack.c.b16 %v1016, %v1015
      %v1101 = vpack.c.b16 %v1018, %v1017
      %v1102 = vpack.c.b16 %v1020, %v1019
      %v1103 = vpack.c.b16 %v1022, %v1021
      %v1104 = vpack.c.b16 %v1024, %v1023
      %v1105 = vpack.c.b16 %v1026, %v1025
      %v1106 = vpack.c.b16 %v1028, %v1027
      %v1107 = vpack.c.b16 %v1030, %v1029
      %v1108 = vpack.c.b16 %v1032, %v1031
      %v1109 = vpack.c.b16 %v1034, %v1033
      %v1110 = vpack.c.b16 %v1036, %v1035
      %v1111 = vpack.c.b16 %v1038, %v1037
      %v1112 = vpack.c.b16 %v1040, %v1039
      %1185 = vmatprep.subr.bf16.mxu0 0
      %1186 = vmatpush1.bf16.msra.mxu0 %v1041
      %1187 = vmatprep.subr.bf16.mxu0 0
      %1188 = vmatpush1.bf16.msra.mxu0 %v1042
      %1189 = vmatprep.subr.bf16.mxu0 0
      %1190 = vmatpush1.bf16.msra.mxu0 %v1043
      %1191 = vmatprep.subr.bf16.mxu0 0
      %1192 = vmatpush1.bf16.msra.mxu0 %v1044
      %1193 = vmatprep.subr.bf16.mxu0 0
      %1194 = vmatpush1.bf16.msra.mxu0 %v1045
      %1195 = vmatprep.subr.bf16.mxu0 0
      %1196 = vmatpush1.bf16.msra.mxu0 %v1046
      %1197 = vmatprep.subr.bf16.mxu0 0
      %1198 = vmatpush1.bf16.msra.mxu0 %v1047
      %1199 = vmatprep.subr.bf16.mxu0 0
      %1200 = vmatpush1.bf16.msra.mxu0 %v1048
      %1201 = vmatprep.subr.bf16.mxu0 0
      %1202 = vmatpush1.bf16.msra.mxu0 %v1049
      %1203 = vmatprep.subr.bf16.mxu0 0
      %1204 = vmatpush1.bf16.msra.mxu0 %v1050
      %1205 = vmatprep.subr.bf16.mxu0 0
      %1206 = vmatpush1.bf16.msra.mxu0 %v1051
      %1207 = vmatprep.subr.bf16.mxu0 0
      %1208 = vmatpush1.bf16.msra.mxu0 %v1052
      %1209 = vmatprep.subr.bf16.mxu0 0
      %1210 = vmatpush1.bf16.msra.mxu0 %v1053
      %1211 = vmatprep.subr.bf16.mxu0 0
      %1212 = vmatpush1.bf16.msra.mxu0 %v1054
      %1213 = vmatprep.subr.bf16.mxu0 0
      %1214 = vmatpush1.bf16.msra.mxu0 %v1055
      %1215 = vmatprep.subr.bf16.mxu0 0
      %1216 = vmatpush1.bf16.msra.mxu0 %v1056
      %1217 = vmatprep.mubr.bf16.mxu0 %v682
      %1218 = vmatmul.mubr.bf16.gmra.mrb[0].mxu0 %v681
      %v1219 = vpop.f32.mrb[0].mxu0
      %v1220 = vadd.f32 %v679, %v1219
      %v1221 = vpop.f32.mrb[0].mxu0
      %v1222 = vpop.f32.mrb[0].mxu0
      %v1223 = vadd.f32 %v679, %v1222
      %v1224 = vpop.f32.mrb[0].mxu0
      %1225 = vmatprep.mubr.bf16.mxu0 %v691
      %1226 = vmatmul.mubr.bf16.gmra.mrb[0].mxu0 %v690
      %v1227 = vpop.f32.mrb[0].mxu0
      %v1228 = vadd.f32 %v679, %v1227
      %v1229 = vpop.f32.mrb[0].mxu0
      %v1230 = vpop.f32.mrb[0].mxu0
      %v1231 = vadd.f32 %v679, %v1230
      %v1232 = vpop.f32.mrb[0].mxu0
      %1233 = vmatprep.mubr.bf16.mxu0 %v700
      %1234 = vmatmul.mubr.bf16.gmra.mrb[0].mxu0 %v699
      %v1235 = vpop.f32.mrb[0].mxu0
      %v1236 = vadd.f32 %v679, %v1235
      %v1237 = vpop.f32.mrb[0].mxu0
      %v1238 = vpop.f32.mrb[0].mxu0
      %v1239 = vadd.f32 %v679, %v1238
      %v1240 = vpop.f32.mrb[0].mxu0
      %1241 = vmatprep.mubr.bf16.mxu0 %v709
      %1242 = vmatmul.mubr.bf16.gmra.mrb[0].mxu0 %v708
      %v1243 = vpop.f32.mrb[0].mxu0
      %v1244 = vadd.f32 %v679, %v1243
      %v1245 = vpop.f32.mrb[0].mxu0
      %v1246 = vpop.f32.mrb[0].mxu0
      %v1247 = vadd.f32 %v679, %v1246
      %v1248 = vpop.f32.mrb[0].mxu0
      %1249 = vdwg.mxu0
      %1250 = vmatprep.subr.bf16.mxu0 0
      %1251 = vmatpush1.bf16.msra.mxu0 %v1057
      %1252 = vmatprep.subr.bf16.mxu0 0
      %1253 = vmatpush1.bf16.msra.mxu0 %v1058
      %1254 = vmatprep.subr.bf16.mxu0 0
      %1255 = vmatpush1.bf16.msra.mxu0 %v1059
      %1256 = vmatprep.subr.bf16.mxu0 0
      %1257 = vmatpush1.bf16.msra.mxu0 %v1060
      %1258 = vmatprep.subr.bf16.mxu0 0
      %1259 = vmatpush1.bf16.msra.mxu0 %v1061
      %1260 = vmatprep.subr.bf16.mxu0 0
      %1261 = vmatpush1.bf16.msra.mxu0 %v1062
      %1262 = vmatprep.subr.bf16.mxu0 0
      %1263 = vmatpush1.bf16.msra.mxu0 %v1063
      %1264 = vmatprep.subr.bf16.mxu0 0
      %1265 = vmatpush1.bf16.msra.mxu0 %v1064
      %1266 = vmatprep.subr.bf16.mxu0 0
      %1267 = vmatpush1.bf16.msra.mxu0 %v1065
      %1268 = vmatprep.subr.bf16.mxu0 0
      %1269 = vmatpush1.bf16.msra.mxu0 %v1066
      %1270 = vmatprep.subr.bf16.mxu0 0
      %1271 = vmatpush1.bf16.msra.mxu0 %v1067
      %1272 = vmatprep.subr.bf16.mxu0 0
      %1273 = vmatpush1.bf16.msra.mxu0 %v1068
      %1274 = vmatprep.subr.bf16.mxu0 0
      %1275 = vmatpush1.bf16.msra.mxu0 %v1069
      %1276 = vmatprep.subr.bf16.mxu0 0
      %1277 = vmatpush1.bf16.msra.mxu0 %v1070
      %1278 = vmatprep.subr.bf16.mxu0 0
      %1279 = vmatpush1.bf16.msra.mxu0 %v1071
      %1280 = vmatprep.subr.bf16.mxu0 0
      %1281 = vmatpush1.bf16.msra.mxu0 %v1072
      %1282 = vmatprep.mubr.bf16.mxu0 %v684
      %1283 = vmatmul.mubr.bf16.gmra.mrb[0].mxu0 %v683
      %v1284 = vpop.f32.mrb[0].mxu0
      %v1285 = vadd.f32 %v1220, %v1284
      %v1286 = vpop.f32.mrb[0].mxu0
      %v1287 = vpop.f32.mrb[0].mxu0
      %v1288 = vadd.f32 %v1223, %v1287
      %v1289 = vpop.f32.mrb[0].mxu0
      %1290 = vmatprep.mubr.bf16.mxu0 %v693
      %1291 = vmatmul.mubr.bf16.gmra.mrb[0].mxu0 %v692
      %v1292 = vpop.f32.mrb[0].mxu0
      %v1293 = vadd.f32 %v1228, %v1292
      %v1294 = vpop.f32.mrb[0].mxu0
      %v1295 = vpop.f32.mrb[0].mxu0
      %v1296 = vadd.f32 %v1231, %v1295
      %v1297 = vpop.f32.mrb[0].mxu0
      %1298 = vmatprep.mubr.bf16.mxu0 %v702
      %1299 = vmatmul.mubr.bf16.gmra.mrb[0].mxu0 %v701
      %v1300 = vpop.f32.mrb[0].mxu0
      %v1301 = vadd.f32 %v1236, %v1300
      %v1302 = vpop.f32.mrb[0].mxu0
      %v1303 = vpop.f32.mrb[0].mxu0
      %v1304 = vadd.f32 %v1239, %v1303
      %v1305 = vpop.f32.mrb[0].mxu0
      %1306 = vmatprep.mubr.bf16.mxu0 %v711
      %1307 = vmatmul.mubr.bf16.gmra.mrb[0].mxu0 %v710
      %v1308 = vpop.f32.mrb[0].mxu0
      %v1309 = vadd.f32 %v1244, %v1308
      %v1310 = vpop.f32.mrb[0].mxu0
      %v1311 = vpop.f32.mrb[0].mxu0
      %v1312 = vadd.f32 %v1247, %v1311
      %v1313 = vpop.f32.mrb[0].mxu0
      %1314 = vdwg.mxu0
      %1315 = vmatprep.subr.bf16.mxu0 0
      %1316 = vmatpush1.bf16.msra.mxu0 %v1073
      %1317 = vmatprep.subr.bf16.mxu0 0
      %1318 = vmatpush1.bf16.msra.mxu0 %v1074
      %1319 = vmatprep.subr.bf16.mxu0 0
      %1320 = vmatpush1.bf16.msra.mxu0 %v1075
      %1321 = vmatprep.subr.bf16.mxu0 0
      %1322 = vmatpush1.bf16.msra.mxu0 %v1076
      %1323 = vmatprep.subr.bf16.mxu0 0
      %1324 = vmatpush1.bf16.msra.mxu0 %v1077
      %1325 = vmatprep.subr.bf16.mxu0 0
      %1326 = vmatpush1.bf16.msra.mxu0 %v1078
      %1327 = vmatprep.subr.bf16.mxu0 0
      %1328 = vmatpush1.bf16.msra.mxu0 %v1079
      %1329 = vmatprep.subr.bf16.mxu0 0
      %1330 = vmatpush1.bf16.msra.mxu0 %v1080
      %1331 = vmatprep.subr.bf16.mxu0 0
      %1332 = vmatpush1.bf16.msra.mxu0 %v1081
      %1333 = vmatprep.subr.bf16.mxu0 0
      %1334 = vmatpush1.bf16.msra.mxu0 %v1082
      %1335 = vmatprep.subr.bf16.mxu0 0
      %1336 = vmatpush1.bf16.msra.mxu0 %v1083
      %1337 = vmatprep.subr.bf16.mxu0 0
      %1338 = vmatpush1.bf16.msra.mxu0 %v1084
      %1339 = vmatprep.subr.bf16.mxu0 0
      %1340 = vmatpush1.bf16.msra.mxu0 %v1085
      %1341 = vmatprep.subr.bf16.mxu0 0
      %1342 = vmatpush1.bf16.msra.mxu0 %v1086
      %1343 = vmatprep.subr.bf16.mxu0 0
      %1344 = vmatpush1.bf16.msra.mxu0 %v1087
      %1345 = vmatprep.subr.bf16.mxu0 0
      %1346 = vmatpush1.bf16.msra.mxu0 %v1088
      %1347 = vmatprep.mubr.bf16.mxu0 %v686
      %1348 = vmatmul.mubr.bf16.gmra.mrb[0].mxu0 %v685
      %v1349 = vpop.f32.mrb[0].mxu0
      %v1350 = vadd.f32 %v1285, %v1349
      %v1351 = vpop.f32.mrb[0].mxu0
      %v1352 = vpop.f32.mrb[0].mxu0
      %v1353 = vadd.f32 %v1288, %v1352
      %v1354 = vpop.f32.mrb[0].mxu0
      %1355 = vmatprep.mubr.bf16.mxu0 %v695
      %1356 = vmatmul.mubr.bf16.gmra.mrb[0].mxu0 %v694
      %v1357 = vpop.f32.mrb[0].mxu0
      %v1358 = vadd.f32 %v1293, %v1357
      %v1359 = vpop.f32.mrb[0].mxu0
      %v1360 = vpop.f32.mrb[0].mxu0
      %v1361 = vadd.f32 %v1296, %v1360
      %v1362 = vpop.f32.mrb[0].mxu0
      %1363 = vmatprep.mubr.bf16.mxu0 %v704
      %1364 = vmatmul.mubr.bf16.gmra.mrb[0].mxu0 %v703
      %v1365 = vpop.f32.mrb[0].mxu0
      %v1366 = vadd.f32 %v1301, %v1365
      %v1367 = vpop.f32.mrb[0].mxu0
      %v1368 = vpop.f32.mrb[0].mxu0
      %v1369 = vadd.f32 %v1304, %v1368
      %v1370 = vpop.f32.mrb[0].mxu0
      %1371 = vmatprep.mubr.bf16.mxu0 %v713
      %1372 = vmatmul.mubr.bf16.gmra.mrb[0].mxu0 %v712
      %v1373 = vpop.f32.mrb[0].mxu0
      %v1374 = vadd.f32 %v1309, %v1373
      %v1375 = vpop.f32.mrb[0].mxu0
      %v1376 = vpop.f32.mrb[0].mxu0
      %v1377 = vadd.f32 %v1312, %v1376
      %v1378 = vpop.f32.mrb[0].mxu0
      %1379 = vdwg.mxu0
      %1380 = vmatprep.subr.bf16.mxu0 0
      %1381 = vmatpush1.bf16.msra.mxu0 %v1089
      %1382 = vmatprep.subr.bf16.mxu0 0
      %1383 = vmatpush1.bf16.msra.mxu0 %v1090
      %1384 = vmatprep.subr.bf16.mxu0 0
      %1385 = vmatpush1.bf16.msra.mxu0 %v1091
      %1386 = vmatprep.subr.bf16.mxu0 0
      %1387 = vmatpush1.bf16.msra.mxu0 %v1092
      %1388 = vmatprep.subr.bf16.mxu0 0
      %1389 = vmatpush1.bf16.msra.mxu0 %v1093
      %1390 = vmatprep.subr.bf16.mxu0 0
      %1391 = vmatpush1.bf16.msra.mxu0 %v1094
      %1392 = vmatprep.subr.bf16.mxu0 0
      %1393 = vmatpush1.bf16.msra.mxu0 %v1095
      %1394 = vmatprep.subr.bf16.mxu0 0
      %1395 = vmatpush1.bf16.msra.mxu0 %v1096
      %1396 = vmatprep.subr.bf16.mxu0 0
      %1397 = vmatpush1.bf16.msra.mxu0 %v1097
      %1398 = vmatprep.subr.bf16.mxu0 0
      %1399 = vmatpush1.bf16.msra.mxu0 %v1098
      %1400 = vmatprep.subr.bf16.mxu0 0
      %1401 = vmatpush1.bf16.msra.mxu0 %v1099
      %1402 = vmatprep.subr.bf16.mxu0 0
      %1403 = vmatpush1.bf16.msra.mxu0 %v1100
      %1404 = vmatprep.subr.bf16.mxu0 0
      %1405 = vmatpush1.bf16.msra.mxu0 %v1101
      %1406 = vmatprep.subr.bf16.mxu0 0
      %1407 = vmatpush1.bf16.msra.mxu0 %v1102
      %1408 = vmatprep.subr.bf16.mxu0 0
      %1409 = vmatpush1.bf16.msra.mxu0 %v1103
      %1410 = vmatprep.subr.bf16.mxu0 0
      %1411 = vmatpush1.bf16.msra.mxu0 %v1104
      %1412 = vmatprep.mubr.bf16.mxu0 %v688
      %1413 = vmatmul.mubr.bf16.gmra.mrb[0].mxu0 %v687
      %v1414 = vpop.f32.mrb[0].mxu0
      %v1415 = vadd.f32 %v1350, %v1414
      %v1416 = vpop.f32.mrb[0].mxu0
      %v1417 = vpop.f32.mrb[0].mxu0
      %v1418 = vadd.f32 %v1353, %v1417
      %v1419 = vpop.f32.mrb[0].mxu0
      %1420 = vmatprep.mubr.bf16.mxu0 %v697
      %1421 = vmatmul.mubr.bf16.gmra.mrb[0].mxu0 %v696
      %v1422 = vpop.f32.mrb[0].mxu0
      %v1423 = vadd.f32 %v1358, %v1422
      %v1424 = vpop.f32.mrb[0].mxu0
      %v1425 = vpop.f32.mrb[0].mxu0
      %v1426 = vadd.f32 %v1361, %v1425
      %v1427 = vpop.f32.mrb[0].mxu0
      %1428 = vmatprep.mubr.bf16.mxu0 %v706
      %1429 = vmatmul.mubr.bf16.gmra.mrb[0].mxu0 %v705
      %v1430 = vpop.f32.mrb[0].mxu0
      %v1431 = vadd.f32 %v1366, %v1430
      %v1432 = vpop.f32.mrb[0].mxu0
      %v1433 = vpop.f32.mrb[0].mxu0
      %v1434 = vadd.f32 %v1369, %v1433
      %v1435 = vpop.f32.mrb[0].mxu0
      %1436 = vmatprep.mubr.bf16.mxu0 %v715
      %1437 = vmatmul.mubr.bf16.gmra.mrb[0].mxu0 %v714
      %v1438 = vpop.f32.mrb[0].mxu0
      %v1439 = vadd.f32 %v1374, %v1438
      %v1440 = vpop.f32.mrb[0].mxu0
      %v1441 = vpop.f32.mrb[0].mxu0
      %v1442 = vadd.f32 %v1377, %v1441
      %v1443 = vpop.f32.mrb[0].mxu0
      %1444 = vdwg.mxu0
      %1445 = vmatprep.subr.bf16.mxu0 0
      %1446 = vmatpush1.bf16.msra.mxu0 %v1105
      %1447 = vmatprep.subr.bf16.mxu0 0
      %1448 = vmatpush1.bf16.msra.mxu0 %v1106
      %1449 = vmatprep.subr.bf16.mxu0 0
      %1450 = vmatpush1.bf16.msra.mxu0 %v1107
      %1451 = vmatprep.subr.bf16.mxu0 0
      %1452 = vmatpush1.bf16.msra.mxu0 %v1108
      %1453 = vmatprep.subr.bf16.mxu0 0
      %1454 = vmatpush1.bf16.msra.mxu0 %v1109
      %1455 = vmatprep.subr.bf16.mxu0 0
      %1456 = vmatpush1.bf16.msra.mxu0 %v1110
      %1457 = vmatprep.subr.bf16.mxu0 0
      %1458 = vmatpush1.bf16.msra.mxu0 %v1111
      %1459 = vmatprep.subr.bf16.mxu0 0
      %1460 = vmatpush1.bf16.msra.mxu0 %v1112
      %1461 = vmatprep.subr.bf16.mxu0 0
      %1462 = vmatpush1.bf16.msra.mxu0 0
      %1463 = vmatprep.subr.bf16.mxu0 0
      %1464 = vmatpush1.bf16.msra.mxu0 0
      %1465 = vmatprep.subr.bf16.mxu0 0
      %1466 = vmatpush1.bf16.msra.mxu0 0
      %1467 = vmatprep.subr.bf16.mxu0 0
      %1468 = vmatpush1.bf16.msra.mxu0 0
      %1469 = vmatprep.subr.bf16.mxu0 0
      %1470 = vmatpush1.bf16.msra.mxu0 0
      %1471 = vmatprep.subr.bf16.mxu0 0
      %1472 = vmatpush1.bf16.msra.mxu0 0
      %1473 = vmatprep.subr.bf16.mxu0 0
      %1474 = vmatpush1.bf16.msra.mxu0 0
      %1475 = vmatprep.subr.bf16.mxu0 0
      %1476 = vmatpush1.bf16.msra.mxu0 0
      %1477 = vmatprep.mubr.bf16.mxu0 0
      %1478 = vmatmul.mubr.bf16.gmra.mrb[0].mxu0 %v689
      %v1479 = vpop.f32.mrb[0].mxu0
      %v1480 = vadd.f32 %v1415, %v1479
      %v1481 = vpop.f32.mrb[0].mxu0
      %v1482 = vpop.f32.mrb[0].mxu0
      %v1483 = vadd.f32 %v1418, %v1482
      %v1484 = vpop.f32.mrb[0].mxu0
      %1485 = vmatprep.mubr.bf16.mxu0 0
      %1486 = vmatmul.mubr.bf16.gmra.mrb[0].mxu0 %v698
      %v1487 = vpop.f32.mrb[0].mxu0
      %v1488 = vadd.f32 %v1423, %v1487
      %v1489 = vpop.f32.mrb[0].mxu0
      %v1490 = vpop.f32.mrb[0].mxu0
      %v1491 = vadd.f32 %v1426, %v1490
      %v1492 = vpop.f32.mrb[0].mxu0
      %1493 = vmatprep.mubr.bf16.mxu0 0
      %1494 = vmatmul.mubr.bf16.gmra.mrb[0].mxu0 %v707
      %v1495 = vpop.f32.mrb[0].mxu0
      %v1496 = vadd.f32 %v1431, %v1495
      %v1497 = vpop.f32.mrb[0].mxu0
      %v1498 = vpop.f32.mrb[0].mxu0
      %v1499 = vadd.f32 %v1434, %v1498
      %v1500 = vpop.f32.mrb[0].mxu0
      %1501 = vmatprep.mubr.bf16.mxu0 0
      %1502 = vmatmul.mubr.bf16.gmra.mrb[0].mxu0 %v716
      %v1503 = vpop.f32.mrb[0].mxu0
      %v1504 = vadd.f32 %v1439, %v1503
      %v1505 = vpop.f32.mrb[0].mxu0
      %v1506 = vpop.f32.mrb[0].mxu0
      %v1507 = vadd.f32 %v1442, %v1506
      %v1508 = vpop.f32.mrb[0].mxu0
      %1509 = vdwg.mxu0
      %v1510 = vld [vmem:[%s244] sm:$0xff]
      %v1511 = vld [vmem:[%s244 + $0x8] sm:$0xff]
      %v1512 = vld [vmem:[%s244 + $0x10] sm:$0xff]
      %v1513 = vld [vmem:[%s244 + $0x18] sm:$0xff]
      %v1514 = vld [vmem:[%s244 + $0x20] sm:$0xff]
      %v1515 = vld [vmem:[%s244 + $0x28] sm:$0xff]
      %v1516 = vld [vmem:[%s244 + $0x30] sm:$0xff]
      %v1517 = vld [vmem:[%s244 + $0x38] sm:$0xff]
      %v1518 = vadd.f32 %v1480, %v1510
      %v1519 = vadd.f32 %v1483, %v1511
      %v1520 = vadd.f32 %v1488, %v1512
      %v1521 = vadd.f32 %v1491, %v1513
      %v1522 = vadd.f32 %v1496, %v1514
      %v1523 = vadd.f32 %v1499, %v1515
      %v1524 = vadd.f32 %v1504, %v1516
      %v1525 = vadd.f32 %v1507, %v1517
      %1526 = vst [vmem:[%s253] sm:$0xff] %v1518
      %1527 = vst [vmem:[%s253 + $0x8] sm:$0xff] %v1519
      %1528 = vst [vmem:[%s253 + $0x10] sm:$0xff] %v1520
      %1529 = vst [vmem:[%s253 + $0x18] sm:$0xff] %v1521
      %1530 = vst [vmem:[%s253 + $0x20] sm:$0xff] %v1522
      %1531 = vst [vmem:[%s253 + $0x28] sm:$0xff] %v1523
      %1532 = vst [vmem:[%s253 + $0x30] sm:$0xff] %v1524
      %1533 = vst [vmem:[%s253 + $0x38] sm:$0xff] %v1525
      %p1534 = scmp.lt.s32.totalorder %s19, 1
      %s1535 = scalar_select %p1534, %s19, 1
      %p1536 = scmp.lt.s32.totalorder %s20, 0
      %s1537 = scalar_select %p1536, %s20, 0
      %s1538 = smul.addr %s1537, 8
      %s1539 = smul.addr %s1535, 8
      %s1540 = sadd.s32 %s1538, %s1539
      %s1541 = smul.addr %s1540, 8
      %s1542 = scalar_lea.vmem %s4, %s1541
      // Predicated region
      $region37: #{_lambda_.11} parent=35 // pred_check
        %p1543 = pneg %p143
      $region38: #{_lambda_.11} parent=35 // pred_check_branch
        %1545 = sbr.rel (%p1543) target = $region40
      $region39: #{_lambda_.11} parent=35 // pred_region
        _
      $region40: #{_lambda_.11} parent=35 // pred_fallthru
        _
    $region36: #{_lambda_.11} parent=5 // pred_fallthru
      _
    %p1546 = scmp.le.s32.totalorder 2, %s10
    // Predicated region
    $region41: #{_lambda_.11} parent=5 // pred_check
      %p1547 = pneg %p1546
    $region42: #{_lambda_.11} parent=5 // pred_check_branch
      %1549 = sbr.rel (%p1547) target = $region44
    $region43: #{_lambda_.11} parent=5 // pred_region
      %s1550 = ssub.s32 %s10, 2
      // Predicated region
      $region45: #{_lambda_.11} parent=43 // pred_check
        %p1551 = pneg %p149
      $region46: #{_lambda_.11} parent=43 // pred_check_branch
        %1553 = sbr.rel (%p1551) target = $region48
      $region47: #{_lambda_.11} parent=43 // pred_region
        %p1554 = scmp.lt.s32.totalorder %s21, 1
        %s1555 = scalar_select %p1554, %s21, 1
        %p1556 = scmp.lt.s32.totalorder %s22, 0
        %s1557 = scalar_select %p1556, %s22, 0
        %s1558 = smul.addr %s1557, 8
        %s1559 = smul.addr %s1555, 8
        %s1560 = sadd.s32 %s1558, %s1559
        %s1561 = smul.addr %s1560, 8
        %s1562 = scalar_lea.vmem %s4, %s1561
      $region48: #{_lambda_.11} parent=43 // pred_fallthru
        _
    $region44: #{_lambda_.11} parent=5 // pred_fallthru
      _
  $region6: #{_lambda_.11} parent=0 // loop_footer
    %s14 = sadd.s32 1, %s10
  $region7: #{_lambda_.11} parent=0 // loop_footer_branch
    %9 = sbr.rel target = $region3
  $region8: #{_lambda_.11} parent=0 // loop_exit
    _

</llo_original>
